<compile_context>
chip_gen: v6e
topology: v6e:2x2x1
jax: 0.10.0
libtpu: 0.0.40
codegen_flags: <defaults>
</compile_context>

<pallas_src>
import jax
import jax.numpy as jnp
from jax.experimental import pallas as pl
from jax.experimental.pallas import tpu as pltpu

_VMEM = pl.BlockSpec(memory_space=pltpu.MemorySpace.VMEM)


# ----------------------------------------------------------------------------
# Pallas kernels
# ----------------------------------------------------------------------------
def _conv_bn_pool_relu_kernel(p0_ref, p1_ref, p2_ref, p3_ref, w_ref, b_ref,
                              o_ref):
    """o = relu(max_i(W @ P_i) + b).

    P_i (K, M) holds the im2col patches of pool-window position i (2x2 window,
    4 positions), W (Cout, K) has the BatchNorm scale folded in, b is
    (Cout, 1).  Output (Cout, M) is lane-dense in M = B*Hp*Wp.
    """
    w = w_ref[...]
    m = jnp.dot(w, p0_ref[...], preferred_element_type=jnp.float32)
    m = jnp.maximum(m, jnp.dot(w, p1_ref[...], preferred_element_type=jnp.float32))
    m = jnp.maximum(m, jnp.dot(w, p2_ref[...], preferred_element_type=jnp.float32))
    m = jnp.maximum(m, jnp.dot(w, p3_ref[...], preferred_element_type=jnp.float32))
    o_ref[...] = jnp.maximum(m + b_ref[...], 0.0)


def _mlp_head_kernel(x_ref, w0_ref, b0_ref, w1_ref, b1_ref, w2_ref, b2_ref,
                     w3_ref, b3_ref, o_ref):
    """Four chained Linear+ReLU layers, fully VMEM-resident (no HBM bounces)."""
    h = x_ref[...]
    for w_ref, b_ref in ((w0_ref, b0_ref), (w1_ref, b1_ref),
                         (w2_ref, b2_ref), (w3_ref, b3_ref)):
        h = jnp.dot(h, w_ref[...], preferred_element_type=jnp.float32)
        h = jnp.maximum(h + b_ref[...], 0.0)   # ReLU after every layer (incl. lin3, as in the reference)
    o_ref[...] = h.astype(o_ref.dtype)


# ----------------------------------------------------------------------------
# Fused stages (JAX glue: BN fold + pooled im2col slicing only)
# ----------------------------------------------------------------------------
def conv_bn_pool_relu(x_cf, conv_params, bn_params, eps=1e-5):
    """Fused Conv2d(stride 1, valid) + BatchNorm(eval) + MaxPool2d(2) + ReLU.

    x_cf: channel-first feature map (Cin, B, H, W).
    Returns (Cout, B, Hp, Wp) with Hp = (H - kh + 1)//2, Wp = (W - kw + 1)//2.
    """
    w, b = conv_params                                 # torch: (Cout, Cin, kh, kw)
    gamma, beta, mean, var = bn_params
    Cout, Cin, kh, kw = w.shape
    scale = gamma / jnp.sqrt(var + eps)
    w_f = w * scale[:, None, None, None]               # fold BN scale into conv weight
    b_f = b * scale + (beta - mean * scale)            # fold BN shift into conv bias
    wmat = jnp.transpose(w_f, (0, 2, 3, 1)).reshape(Cout, kh * kw * Cin)

    C, B, H, W = x_cf.shape
    Hp, Wp = (H - kh + 1) // 2, (W - kw + 1) // 2
    K, Mp = kh * kw * C, B * Hp * Wp

    def patch_group(py, px):
        # im2col for conv output positions (2*yo + py, 2*xo + px): one operand
        # per position inside the 2x2 pool window.  K ordering = (dy, dx, ci),
        # matching wmat above.
        cols = []
        for dy in range(kh):
            for dx in range(kw):
                ys, xs = py + dy, px + dx
                cols.append(x_cf[:, :, ys:ys + 2 * Hp - 1:2,
                                 xs:xs + 2 * Wp - 1:2])          # (C, B, Hp, Wp)
        return jnp.stack(cols, axis=0).reshape(K, Mp)

    groups = [patch_group(py, px) for py in (0, 1) for px in (0, 1)]

    out = pl.pallas_call(
        _conv_bn_pool_relu_kernel,
        out_shape=jax.ShapeDtypeStruct((Cout, Mp), jnp.float32),
        in_specs=[_VMEM] * 6,
        out_specs=_VMEM,
    )(*groups, wmat, b_f.reshape(Cout, 1))
    return out.reshape(Cout, B, Hp, Wp)


def mlp_head(x, params):
    """lin0..lin3 (each + ReLU) in one kernel; all weights resident in VMEM."""
    (w0, b0), (w1, b1) = params['lin0'], params['lin1']
    (w2, b2), (w3, b3) = params['lin2'], params['lin3']
    B = x.shape[0]
    return pl.pallas_call(
        _mlp_head_kernel,
        out_shape=jax.ShapeDtypeStruct((B, w3.shape[0]), jnp.float32),
        in_specs=[_VMEM] * 9,
        out_specs=_VMEM,
    )(x, w0.T, b0.reshape(1, -1), w1.T, b1.reshape(1, -1),
      w2.T, b2.reshape(1, -1), w3.T, b3.reshape(1, -1))


# ----------------------------------------------------------------------------
# Parameters (torch layouts; BatchNorm at PyTorch defaults)
# ----------------------------------------------------------------------------
def init_params(key):
    def dense(k, shape, scale=0.05):
        return (scale * jax.random.normal(k, shape)).astype(jnp.float32)

    def bn(c):  # gamma=1, beta=0, running_mean=0, running_var=1
        return (jnp.ones((c,), jnp.float32), jnp.zeros((c,), jnp.float32),
                jnp.zeros((c,), jnp.float32), jnp.ones((c,), jnp.float32))

    ks = jax.random.split(key, 14)
    return {
        'conv1': (dense(ks[0], (4, 1, 5, 5)), dense(ks[1], (4,))),
        'norm1': bn(4),
        'conv2': (dense(ks[2], (8, 4, 5, 5)), dense(ks[3], (8,))),
        'norm2': bn(8),
        'conv3': (dense(ks[4], (16, 8, 6, 6)), dense(ks[5], (16,))),
        'norm3': bn(16),
        'lin0': (dense(ks[6], (768, 1024)), dense(ks[7], (768,))),
        'lin1': (dense(ks[8], (64, 768)), dense(ks[9], (64,))),
        'lin2': (dense(ks[10], (16, 64)), dense(ks[11], (16,))),
        'lin3': (dense(ks[12], (3, 16)), dense(ks[13], (3,))),
    }


# ----------------------------------------------------------------------------
# Forward pass (matches Agent.forward in eval mode)
# ----------------------------------------------------------------------------
def agent_forward(params, x_nchw):
    x = jnp.transpose(x_nchw, (1, 0, 2, 3))                       # (1, B, 96, 96)
    x = conv_bn_pool_relu(x, params['conv1'], params['norm1'])    # (4, B, 46, 46)
    x = conv_bn_pool_relu(x, params['conv2'], params['norm2'])    # (8, B, 21, 21)
    x = conv_bn_pool_relu(x, params['conv3'], params['norm3'])    # (16, B, 8, 8)
    B = x.shape[1]
    x = jnp.transpose(x, (1, 0, 2, 3)).reshape(B, -1)             # torch Flatten (C,H,W)
    return mlp_head(x, params)                                    # (B, 3)


if __name__ == "__main__":
    key = jax.random.PRNGKey(0)
    pkey, xkey = jax.random.split(key)
    params = init_params(pkey)
    # The module's lin0(1024, ...) forces a (B, 1, 96, 96) single-channel input; batch = 2.
    x = jax.random.normal(xkey, (2, 1, 96, 96), dtype=jnp.float32)

    out = jax.block_until_ready(jax.jit(agent_forward)(params, x))
    assert out.shape == (2, 3), out.shape
    assert out.dtype == jnp.float32
    assert bool(jnp.all(jnp.isfinite(out)))
    print("KERNEL_OK")
</pallas_src>

<mosaic_0001>
module attributes {stable_mosaic.version = 11 : i64} {
  func.func @_conv_bn_pool_relu_kernel(%arg0: memref<25x4232xf32, #tpu.memory_space<vmem>>, %arg1: memref<25x4232xf32, #tpu.memory_space<vmem>>, %arg2: memref<25x4232xf32, #tpu.memory_space<vmem>>, %arg3: memref<25x4232xf32, #tpu.memory_space<vmem>>, %arg4: memref<4x25xf32, #tpu.memory_space<vmem>>, %arg5: memref<4x1xf32, #tpu.memory_space<vmem>>, %arg6: memref<4x4232xf32, #tpu.memory_space<vmem>>) attributes {dimension_semantics = [], scalar_prefetch = 0 : i64, scratch_operands = 0 : i64, tpu.core_type = #tpu.core_type<tc>} {
    %c0 = arith.constant 0 : index
    %c0_0 = arith.constant 0 : index
    %0 = vector.load %arg4[%c0, %c0_0] : memref<4x25xf32, #tpu.memory_space<vmem>>, vector<4x25xf32>
    %c0_1 = arith.constant 0 : index
    %c0_2 = arith.constant 0 : index
    %1 = vector.load %arg0[%c0_1, %c0_2] : memref<25x4232xf32, #tpu.memory_space<vmem>>, vector<25x4232xf32>
    %cst = arith.constant dense<0.000000e+00> : vector<4x4232xf32>
    %2 = tpu.matmul %0, %1, %cst {dimension_numbers = #tpu.dot_dimension_numbers<[1], [0], [0], [1], [0, 0, 1, 1], [], []>} : vector<4x25xf32>, vector<25x4232xf32>, vector<4x4232xf32> -> vector<4x4232xf32>
    %c0_3 = arith.constant 0 : index
    %c0_4 = arith.constant 0 : index
    %3 = vector.load %arg1[%c0_3, %c0_4] : memref<25x4232xf32, #tpu.memory_space<vmem>>, vector<25x4232xf32>
    %cst_5 = arith.constant dense<0.000000e+00> : vector<4x4232xf32>
    %4 = tpu.matmul %0, %3, %cst_5 {dimension_numbers = #tpu.dot_dimension_numbers<[1], [0], [0], [1], [0, 0, 1, 1], [], []>} : vector<4x25xf32>, vector<25x4232xf32>, vector<4x4232xf32> -> vector<4x4232xf32>
    %5 = arith.maximumf %2, %4 : vector<4x4232xf32>
    %c0_6 = arith.constant 0 : index
    %c0_7 = arith.constant 0 : index
    %6 = vector.load %arg2[%c0_6, %c0_7] : memref<25x4232xf32, #tpu.memory_space<vmem>>, vector<25x4232xf32>
    %cst_8 = arith.constant dense<0.000000e+00> : vector<4x4232xf32>
    %7 = tpu.matmul %0, %6, %cst_8 {dimension_numbers = #tpu.dot_dimension_numbers<[1], [0], [0], [1], [0, 0, 1, 1], [], []>} : vector<4x25xf32>, vector<25x4232xf32>, vector<4x4232xf32> -> vector<4x4232xf32>
    %8 = arith.maximumf %5, %7 : vector<4x4232xf32>
    %c0_9 = arith.constant 0 : index
    %c0_10 = arith.constant 0 : index
    %9 = vector.load %arg3[%c0_9, %c0_10] : memref<25x4232xf32, #tpu.memory_space<vmem>>, vector<25x4232xf32>
    %cst_11 = arith.constant dense<0.000000e+00> : vector<4x4232xf32>
    %10 = tpu.matmul %0, %9, %cst_11 {dimension_numbers = #tpu.dot_dimension_numbers<[1], [0], [0], [1], [0, 0, 1, 1], [], []>} : vector<4x25xf32>, vector<25x4232xf32>, vector<4x4232xf32> -> vector<4x4232xf32>
    %11 = arith.maximumf %8, %10 : vector<4x4232xf32>
    %c0_12 = arith.constant 0 : index
    %c0_13 = arith.constant 0 : index
    %12 = vector.load %arg5[%c0_12, %c0_13] : memref<4x1xf32, #tpu.memory_space<vmem>>, vector<4x1xf32>
    %13 = vector.broadcast %12 : vector<4x1xf32> to vector<4x4232xf32>
    %14 = arith.addf %11, %13 : vector<4x4232xf32>
    %cst_14 = arith.constant 0.000000e+00 : f32
    %15 = vector.broadcast %cst_14 : f32 to vector<4x4232xf32>
    %16 = arith.maximumf %14, %15 : vector<4x4232xf32>
    %c0_15 = arith.constant 0 : index
    %c0_16 = arith.constant 0 : index
    %17 = vector.load %arg6[%c0_15, %c0_16] : memref<4x4232xf32, #tpu.memory_space<vmem>>, vector<4x4232xf32>
    tpu.vector_store %arg6[%c0_15, %c0_16], %16 {strides = array<i32>} : memref<4x4232xf32, #tpu.memory_space<vmem>>, vector<4x4232xf32>,
    return
  }
}

module attributes {stable_mosaic.version = 11 : i64} {
  func.func @_conv_bn_pool_relu_kernel(%arg0: memref<100x882xf32, #tpu.memory_space<vmem>>, %arg1: memref<100x882xf32, #tpu.memory_space<vmem>>, %arg2: memref<100x882xf32, #tpu.memory_space<vmem>>, %arg3: memref<100x882xf32, #tpu.memory_space<vmem>>, %arg4: memref<8x100xf32, #tpu.memory_space<vmem>>, %arg5: memref<8x1xf32, #tpu.memory_space<vmem>>, %arg6: memref<8x882xf32, #tpu.memory_space<vmem>>) attributes {dimension_semantics = [], scalar_prefetch = 0 : i64, scratch_operands = 0 : i64, tpu.core_type = #tpu.core_type<tc>} {
    %c0 = arith.constant 0 : index
    %c0_0 = arith.constant 0 : index
    %0 = vector.load %arg4[%c0, %c0_0] : memref<8x100xf32, #tpu.memory_space<vmem>>, vector<8x100xf32>
    %c0_1 = arith.constant 0 : index
    %c0_2 = arith.constant 0 : index
    %1 = vector.load %arg0[%c0_1, %c0_2] : memref<100x882xf32, #tpu.memory_space<vmem>>, vector<100x882xf32>
    %cst = arith.constant dense<0.000000e+00> : vector<8x882xf32>
    %2 = tpu.matmul %0, %1, %cst {dimension_numbers = #tpu.dot_dimension_numbers<[1], [0], [0], [1], [0, 0, 1, 1], [], []>} : vector<8x100xf32>, vector<100x882xf32>, vector<8x882xf32> -> vector<8x882xf32>
    %c0_3 = arith.constant 0 : index
    %c0_4 = arith.constant 0 : index
    %3 = vector.load %arg1[%c0_3, %c0_4] : memref<100x882xf32, #tpu.memory_space<vmem>>, vector<100x882xf32>
    %cst_5 = arith.constant dense<0.000000e+00> : vector<8x882xf32>
    %4 = tpu.matmul %0, %3, %cst_5 {dimension_numbers = #tpu.dot_dimension_numbers<[1], [0], [0], [1], [0, 0, 1, 1], [], []>} : vector<8x100xf32>, vector<100x882xf32>, vector<8x882xf32> -> vector<8x882xf32>
    %5 = arith.maximumf %2, %4 : vector<8x882xf32>
    %c0_6 = arith.constant 0 : index
    %c0_7 = arith.constant 0 : index
    %6 = vector.load %arg2[%c0_6, %c0_7] : memref<100x882xf32, #tpu.memory_space<vmem>>, vector<100x882xf32>
    %cst_8 = arith.constant dense<0.000000e+00> : vector<8x882xf32>
    %7 = tpu.matmul %0, %6, %cst_8 {dimension_numbers = #tpu.dot_dimension_numbers<[1], [0], [0], [1], [0, 0, 1, 1], [], []>} : vector<8x100xf32>, vector<100x882xf32>, vector<8x882xf32> -> vector<8x882xf32>
    %8 = arith.maximumf %5, %7 : vector<8x882xf32>
    %c0_9 = arith.constant 0 : index
    %c0_10 = arith.constant 0 : index
    %9 = vector.load %arg3[%c0_9, %c0_10] : memref<100x882xf32, #tpu.memory_space<vmem>>, vector<100x882xf32>
    %cst_11 = arith.constant dense<0.000000e+00> : vector<8x882xf32>
    %10 = tpu.matmul %0, %9, %cst_11 {dimension_numbers = #tpu.dot_dimension_numbers<[1], [0], [0], [1], [0, 0, 1, 1], [], []>} : vector<8x100xf32>, vector<100x882xf32>, vector<8x882xf32> -> vector<8x882xf32>
    %11 = arith.maximumf %8, %10 : vector<8x882xf32>
    %c0_12 = arith.constant 0 : index
    %c0_13 = arith.constant 0 : index
    %12 = vector.load %arg5[%c0_12, %c0_13] : memref<8x1xf32, #tpu.memory_space<vmem>>, vector<8x1xf32>
    %13 = vector.broadcast %12 : vector<8x1xf32> to vector<8x882xf32>
    %14 = arith.addf %11, %13 : vector<8x882xf32>
    %cst_14 = arith.constant 0.000000e+00 : f32
    %15 = vector.broadcast %cst_14 : f32 to vector<8x882xf32>
    %16 = arith.maximumf %14, %15 : vector<8x882xf32>
    %c0_15 = arith.constant 0 : index
    %c0_16 = arith.constant 0 : index
    %17 = vector.load %arg6[%c0_15, %c0_16] : memref<8x882xf32, #tpu.memory_space<vmem>>, vector<8x882xf32>
    tpu.vector_store %arg6[%c0_15, %c0_16], %16 {strides = array<i32>} : memref<8x882xf32, #tpu.memory_space<vmem>>, vector<8x882xf32>,
    return
  }
}

module attributes {stable_mosaic.version = 11 : i64} {
  func.func @_conv_bn_pool_relu_kernel(%arg0: memref<288x128xf32, #tpu.memory_space<vmem>>, %arg1: memref<288x128xf32, #tpu.memory_space<vmem>>, %arg2: memref<288x128xf32, #tpu.memory_space<vmem>>, %arg3: memref<288x128xf32, #tpu.memory_space<vmem>>, %arg4: memref<16x288xf32, #tpu.memory_space<vmem>>, %arg5: memref<16x1xf32, #tpu.memory_space<vmem>>, %arg6: memref<16x128xf32, #tpu.memory_space<vmem>>) attributes {dimension_semantics = [], scalar_prefetch = 0 : i64, scratch_operands = 0 : i64, tpu.core_type = #tpu.core_type<tc>} {
    %c0 = arith.constant 0 : index
    %c0_0 = arith.constant 0 : index
    %0 = vector.load %arg4[%c0, %c0_0] : memref<16x288xf32, #tpu.memory_space<vmem>>, vector<16x288xf32>
    %c0_1 = arith.constant 0 : index
    %c0_2 = arith.constant 0 : index
    %1 = vector.load %arg0[%c0_1, %c0_2] : memref<288x128xf32, #tpu.memory_space<vmem>>, vector<288x128xf32>
    %cst = arith.constant dense<0.000000e+00> : vector<16x128xf32>
    %2 = tpu.matmul %0, %1, %cst {dimension_numbers = #tpu.dot_dimension_numbers<[1], [0], [0], [1], [0, 0, 1, 1], [], []>} : vector<16x288xf32>, vector<288x128xf32>, vector<16x128xf32> -> vector<16x128xf32>
    %c0_3 = arith.constant 0 : index
    %c0_4 = arith.constant 0 : index
    %3 = vector.load %arg1[%c0_3, %c0_4] : memref<288x128xf32, #tpu.memory_space<vmem>>, vector<288x128xf32>
    %cst_5 = arith.constant dense<0.000000e+00> : vector<16x128xf32>
    %4 = tpu.matmul %0, %3, %cst_5 {dimension_numbers = #tpu.dot_dimension_numbers<[1], [0], [0], [1], [0, 0, 1, 1], [], []>} : vector<16x288xf32>, vector<288x128xf32>, vector<16x128xf32> -> vector<16x128xf32>
    %5 = arith.maximumf %2, %4 : vector<16x128xf32>
    %c0_6 = arith.constant 0 : index
    %c0_7 = arith.constant 0 : index
    %6 = vector.load %arg2[%c0_6, %c0_7] : memref<288x128xf32, #tpu.memory_space<vmem>>, vector<288x128xf32>
    %cst_8 = arith.constant dense<0.000000e+00> : vector<16x128xf32>
    %7 = tpu.matmul %0, %6, %cst_8 {dimension_numbers = #tpu.dot_dimension_numbers<[1], [0], [0], [1], [0, 0, 1, 1], [], []>} : vector<16x288xf32>, vector<288x128xf32>, vector<16x128xf32> -> vector<16x128xf32>
    %8 = arith.maximumf %5, %7 : vector<16x128xf32>
    %c0_9 = arith.constant 0 : index
    %c0_10 = arith.constant 0 : index
    %9 = vector.load %arg3[%c0_9, %c0_10] : memref<288x128xf32, #tpu.memory_space<vmem>>, vector<288x128xf32>
    %cst_11 = arith.constant dense<0.000000e+00> : vector<16x128xf32>
    %10 = tpu.matmul %0, %9, %cst_11 {dimension_numbers = #tpu.dot_dimension_numbers<[1], [0], [0], [1], [0, 0, 1, 1], [], []>} : vector<16x288xf32>, vector<288x128xf32>, vector<16x128xf32> -> vector<16x128xf32>
    %11 = arith.maximumf %8, %10 : vector<16x128xf32>
    %c0_12 = arith.constant 0 : index
    %c0_13 = arith.constant 0 : index
    %12 = vector.load %arg5[%c0_12, %c0_13] : memref<16x1xf32, #tpu.memory_space<vmem>>, vector<16x1xf32>
    %13 = vector.broadcast %12 : vector<16x1xf32> to vector<16x128xf32>
    %14 = arith.addf %11, %13 : vector<16x128xf32>
    %cst_14 = arith.constant 0.000000e+00 : f32
    %15 = vector.broadcast %cst_14 : f32 to vector<16x128xf32>
    %16 = arith.maximumf %14, %15 : vector<16x128xf32>
    %c0_15 = arith.constant 0 : index
    %c0_16 = arith.constant 0 : index
    %17 = vector.load %arg6[%c0_15, %c0_16] : memref<16x128xf32, #tpu.memory_space<vmem>>, vector<16x128xf32>
    tpu.vector_store %arg6[%c0_15, %c0_16], %16 {strides = array<i32>} : memref<16x128xf32, #tpu.memory_space<vmem>>, vector<16x128xf32>,
    return
  }
}

module attributes {stable_mosaic.version = 11 : i64} {
  func.func @_mlp_head_kernel(%arg0: memref<2x1024xf32, #tpu.memory_space<vmem>>, %arg1: memref<1024x768xf32, #tpu.memory_space<vmem>>, %arg2: memref<1x768xf32, #tpu.memory_space<vmem>>, %arg3: memref<768x64xf32, #tpu.memory_space<vmem>>, %arg4: memref<1x64xf32, #tpu.memory_space<vmem>>, %arg5: memref<64x16xf32, #tpu.memory_space<vmem>>, %arg6: memref<1x16xf32, #tpu.memory_space<vmem>>, %arg7: memref<16x3xf32, #tpu.memory_space<vmem>>, %arg8: memref<1x3xf32, #tpu.memory_space<vmem>>, %arg9: memref<2x3xf32, #tpu.memory_space<vmem>>) attributes {dimension_semantics = [], scalar_prefetch = 0 : i64, scratch_operands = 0 : i64, tpu.core_type = #tpu.core_type<tc>} {
    %c0 = arith.constant 0 : index
    %c0_0 = arith.constant 0 : index
    %0 = vector.load %arg0[%c0, %c0_0] : memref<2x1024xf32, #tpu.memory_space<vmem>>, vector<2x1024xf32>
    %c0_1 = arith.constant 0 : index
    %c0_2 = arith.constant 0 : index
    %1 = vector.load %arg1[%c0_1, %c0_2] : memref<1024x768xf32, #tpu.memory_space<vmem>>, vector<1024x768xf32>
    %cst = arith.constant dense<0.000000e+00> : vector<2x768xf32>
    %2 = tpu.matmul %0, %1, %cst {dimension_numbers = #tpu.dot_dimension_numbers<[1], [0], [0], [1], [0, 0, 1, 1], [], []>} : vector<2x1024xf32>, vector<1024x768xf32>, vector<2x768xf32> -> vector<2x768xf32>
    %c0_3 = arith.constant 0 : index
    %c0_4 = arith.constant 0 : index
    %3 = vector.load %arg2[%c0_3, %c0_4] : memref<1x768xf32, #tpu.memory_space<vmem>>, vector<1x768xf32>
    %4 = vector.broadcast %3 : vector<1x768xf32> to vector<2x768xf32>
    %5 = arith.addf %2, %4 : vector<2x768xf32>
    %cst_5 = arith.constant 0.000000e+00 : f32
    %6 = vector.broadcast %cst_5 : f32 to vector<2x768xf32>
    %7 = arith.maximumf %5, %6 : vector<2x768xf32>
    %c0_6 = arith.constant 0 : index
    %c0_7 = arith.constant 0 : index
    %8 = vector.load %arg3[%c0_6, %c0_7] : memref<768x64xf32, #tpu.memory_space<vmem>>, vector<768x64xf32>
    %cst_8 = arith.constant dense<0.000000e+00> : vector<2x64xf32>
    %9 = tpu.matmul %7, %8, %cst_8 {dimension_numbers = #tpu.dot_dimension_numbers<[1], [0], [0], [1], [0, 0, 1, 1], [], []>} : vector<2x768xf32>, vector<768x64xf32>, vector<2x64xf32> -> vector<2x64xf32>
    %c0_9 = arith.constant 0 : index
    %c0_10 = arith.constant 0 : index
    %10 = vector.load %arg4[%c0_9, %c0_10] : memref<1x64xf32, #tpu.memory_space<vmem>>, vector<1x64xf32>
    %11 = vector.broadcast %10 : vector<1x64xf32> to vector<2x64xf32>
    %12 = arith.addf %9, %11 : vector<2x64xf32>
    %cst_11 = arith.constant 0.000000e+00 : f32
    %13 = vector.broadcast %cst_11 : f32 to vector<2x64xf32>
    %14 = arith.maximumf %12, %13 : vector<2x64xf32>
    %c0_12 = arith.constant 0 : index
    %c0_13 = arith.constant 0 : index
    %15 = vector.load %arg5[%c0_12, %c0_13] : memref<64x16xf32, #tpu.memory_space<vmem>>, vector<64x16xf32>
    %cst_14 = arith.constant dense<0.000000e+00> : vector<2x16xf32>
    %16 = tpu.matmul %14, %15, %cst_14 {dimension_numbers = #tpu.dot_dimension_numbers<[1], [0], [0], [1], [0, 0, 1, 1], [], []>} : vector<2x64xf32>, vector<64x16xf32>, vector<2x16xf32> -> vector<2x16xf32>
    %c0_15 = arith.constant 0 : index
    %c0_16 = arith.constant 0 : index
    %17 = vector.load %arg6[%c0_15, %c0_16] : memref<1x16xf32, #tpu.memory_space<vmem>>, vector<1x16xf32>
    %18 = vector.broadcast %17 : vector<1x16xf32> to vector<2x16xf32>
    %19 = arith.addf %16, %18 : vector<2x16xf32>
    %cst_17 = arith.constant 0.000000e+00 : f32
    %20 = vector.broadcast %cst_17 : f32 to vector<2x16xf32>
    %21 = arith.maximumf %19, %20 : vector<2x16xf32>
    %c0_18 = arith.constant 0 : index
    %c0_19 = arith.constant 0 : index
    %22 = vector.load %arg7[%c0_18, %c0_19] : memref<16x3xf32, #tpu.memory_space<vmem>>, vector<16x3xf32>
    %cst_20 = arith.constant dense<0.000000e+00> : vector<2x3xf32>
    %23 = tpu.matmul %21, %22, %cst_20 {dimension_numbers = #tpu.dot_dimension_numbers<[1], [0], [0], [1], [0, 0, 1, 1], [], []>} : vector<2x16xf32>, vector<16x3xf32>, vector<2x3xf32> -> vector<2x3xf32>
    %c0_21 = arith.constant 0 : index
    %c0_22 = arith.constant 0 : index
    %24 = vector.load %arg8[%c0_21, %c0_22] : memref<1x3xf32, #tpu.memory_space<vmem>>, vector<1x3xf32>
    %25 = vector.broadcast %24 : vector<1x3xf32> to vector<2x3xf32>
    %26 = arith.addf %23, %25 : vector<2x3xf32>
    %cst_23 = arith.constant 0.000000e+00 : f32
    %27 = vector.broadcast %cst_23 : f32 to vector<2x3xf32>
    %28 = arith.maximumf %26, %27 : vector<2x3xf32>
    %c0_24 = arith.constant 0 : index
    %c0_25 = arith.constant 0 : index
    %29 = vector.load %arg9[%c0_24, %c0_25] : memref<2x3xf32, #tpu.memory_space<vmem>>, vector<2x3xf32>
    tpu.vector_store %arg9[%c0_24, %c0_25], %28 {strides = array<i32>} : memref<2x3xf32, #tpu.memory_space<vmem>>, vector<2x3xf32>,
    return
  }
}

</mosaic_0001>

<llo_original>
// kernel: agent_forward.4
$region0: #{agent_forward.4}
  #allocation0 [shape = 'u32[]', space=smem, size = 0x4, offset = 0x4, fixed_abs, tag = 'smem constant byte address 0x4 - core index']
  #allocation1 [shape = 'u32[144,128]{1,0:T(1,128)}', space=vmem, size = 0x12000, scoped, tag = 'internal scratch']
  %s0 = inlined_call_operand.vmem [shape: f32[25,4232], index: 0, kind: input, shape index: {}]
  %s1 = inlined_call_operand.vmem [shape: f32[25,4232], index: 1, kind: input, shape index: {}]
  %s2 = inlined_call_operand.vmem [shape: f32[25,4232], index: 2, kind: input, shape index: {}]
  %s3 = inlined_call_operand.vmem [shape: f32[25,4232], index: 3, kind: input, shape index: {}]
  %s4 = inlined_call_operand.vmem [shape: f32[4,25], index: 4, kind: input, shape index: {}]
  %s5 = inlined_call_operand.vmem [shape: f32[4,1], index: 5, kind: input, shape index: {}]
  %s6 = inlined_call_operand.vmem [shape: f32[4,4232], index: 6, kind: output, shape index: {}]
  %s7 = sld [smem:[#allocation0]]
  $region34: #{agent_forward.4} parent=0
    _
  %s9 = ssub.s32 1, %s7
  %s10 = scalar_select 0, %s9, %s7
  // Predicated region
  $region2: #{agent_forward.4} parent=0 // pred_check
    _
  $region3: #{agent_forward.4} parent=0 // pred_check_branch
    %12 = sbr.rel (0) target = $region5
  $region4: #{agent_forward.4} parent=0 // pred_region
    _
  $region5: #{agent_forward.4} parent=0 // pred_fallthru
    _
  // Predicated region
  $region6: #{agent_forward.4} parent=0 // pred_check
    _
  $region7: #{agent_forward.4} parent=0 // pred_check_branch
    %14 = sbr.rel (0) target = $region9
  $region8: #{agent_forward.4} parent=0 // pred_region
    _
  $region9: #{agent_forward.4} parent=0 // pred_fallthru
    _
  // Predicated region
  $region10: #{agent_forward.4} parent=0 // pred_check
    _
  $region11: #{agent_forward.4} parent=0 // pred_check_branch
    %16 = sbr.rel (0) target = $region13
  $region12: #{agent_forward.4} parent=0 // pred_region
    _
  $region13: #{agent_forward.4} parent=0 // pred_fallthru
    _
  // Predicated region
  $region14: #{agent_forward.4} parent=0 // pred_check
    _
  $region15: #{agent_forward.4} parent=0 // pred_check_branch
    %18 = sbr.rel (0) target = $region17
  $region16: #{agent_forward.4} parent=0 // pred_region
    _
  $region17: #{agent_forward.4} parent=0 // pred_fallthru
    _
  // Predicated region
  $region18: #{agent_forward.4} parent=0 // pred_check
    _
  $region19: #{agent_forward.4} parent=0 // pred_check_branch
    %20 = sbr.rel (0) target = $region21
  $region20: #{agent_forward.4} parent=0 // pred_region
    _
  $region21: #{agent_forward.4} parent=0 // pred_fallthru
    _
  // Predicated region
  $region22: #{agent_forward.4} parent=0 // pred_check
    _
  $region23: #{agent_forward.4} parent=0 // pred_check_branch
    %22 = sbr.rel (0) target = $region25
  $region24: #{agent_forward.4} parent=0 // pred_region
    _
  $region25: #{agent_forward.4} parent=0 // pred_fallthru
    _
  %v23 = vld [vmem:[%s4] sm:$0xf]
  %v24 = vld [vmem:[%s0] sm:$0xff]
  %v25 = vld [vmem:[%s0 + $0x8] sm:$0xff]
  %v26 = vld [vmem:[%s0 + $0x10] sm:$0xff]
  %v27 = vld [vmem:[%s0 + $0x18] sm:$0xff]
  %v28 = vld [vmem:[%s0 + $0x20] sm:$0xff]
  %v29 = vld [vmem:[%s0 + $0x28] sm:$0xff]
  %v30 = vld [vmem:[%s0 + $0x30] sm:$0xff]
  %v31 = vld [vmem:[%s0 + $0x38] sm:$0xff]
  %v32 = vld [vmem:[%s0 + $0x40] sm:$0xff]
  %v33 = vld [vmem:[%s0 + $0x48] sm:$0xff]
  %v34 = vld [vmem:[%s0 + $0x50] sm:$0xff]
  %v35 = vld [vmem:[%s0 + $0x58] sm:$0xff]
  %v36 = vld [vmem:[%s0 + $0x60] sm:$0xff]
  %v37 = vld [vmem:[%s0 + $0x68] sm:$0xff]
  %v38 = vld [vmem:[%s0 + $0x70] sm:$0xff]
  %v39 = vld [vmem:[%s0 + $0x78] sm:$0xff]
  %v40 = vld [vmem:[%s0 + $0x80] sm:$0xff]
  %v41 = vld [vmem:[%s0 + $0x88] sm:$0xff]
  %v42 = vld [vmem:[%s0 + $0x90] sm:$0xff]
  %v43 = vld [vmem:[%s0 + $0x98] sm:$0xff]
  %v44 = vld [vmem:[%s0 + $0xa0] sm:$0xff]
  %v45 = vld [vmem:[%s0 + $0xa8] sm:$0xff]
  %v46 = vld [vmem:[%s0 + $0xb0] sm:$0xff]
  %v47 = vld [vmem:[%s0 + $0xb8] sm:$0xff]
  %v48 = vld [vmem:[%s0 + $0xc0] sm:$0xff]
  %v49 = vld [vmem:[%s0 + $0xc8] sm:$0xff]
  %v50 = vld [vmem:[%s0 + $0xd0] sm:$0xff]
  %v51 = vld [vmem:[%s0 + $0xd8] sm:$0xff]
  %v52 = vld [vmem:[%s0 + $0xe0] sm:$0xff]
  %v53 = vld [vmem:[%s0 + $0xe8] sm:$0xff]
  %v54 = vld [vmem:[%s0 + $0xf0] sm:$0xff]
  %v55 = vld [vmem:[%s0 + $0xf8] sm:$0xff]
  %v56 = vld [vmem:[%s0 + $0x100] sm:$0xff]
  %v57 = vld [vmem:[%s0 + $0x108] sm:$0xff]
  %v58 = vld [vmem:[%s0 + $0x110] sm:$0xff]
  %v59 = vld [vmem:[%s0 + $0x118] sm:$0xff]
  %v60 = vld [vmem:[%s0 + $0x120] sm:$0xff]
  %v61 = vld [vmem:[%s0 + $0x128] sm:$0xff]
  %v62 = vld [vmem:[%s0 + $0x130] sm:$0xff]
  %v63 = vld [vmem:[%s0 + $0x138] sm:$0xff]
  %v64 = vld [vmem:[%s0 + $0x140] sm:$0xff]
  %v65 = vld [vmem:[%s0 + $0x148] sm:$0xff]
  %v66 = vld [vmem:[%s0 + $0x150] sm:$0xff]
  %v67 = vld [vmem:[%s0 + $0x158] sm:$0xff]
  %v68 = vld [vmem:[%s0 + $0x160] sm:$0xff]
  %v69 = vld [vmem:[%s0 + $0x168] sm:$0xff]
  %v70 = vld [vmem:[%s0 + $0x170] sm:$0xff]
  %v71 = vld [vmem:[%s0 + $0x178] sm:$0xff]
  %v72 = vld [vmem:[%s0 + $0x180] sm:$0xff]
  %v73 = vld [vmem:[%s0 + $0x188] sm:$0xff]
  %v74 = vld [vmem:[%s0 + $0x190] sm:$0xff]
  %v75 = vld [vmem:[%s0 + $0x198] sm:$0xff]
  %v76 = vld [vmem:[%s0 + $0x1a0] sm:$0xff]
  %v77 = vld [vmem:[%s0 + $0x1a8] sm:$0xff]
  %v78 = vld [vmem:[%s0 + $0x1b0] sm:$0xff]
  %v79 = vld [vmem:[%s0 + $0x1b8] sm:$0xff]
  %v80 = vld [vmem:[%s0 + $0x1c0] sm:$0xff]
  %v81 = vld [vmem:[%s0 + $0x1c8] sm:$0xff]
  %v82 = vld [vmem:[%s0 + $0x1d0] sm:$0xff]
  %v83 = vld [vmem:[%s0 + $0x1d8] sm:$0xff]
  %v84 = vld [vmem:[%s0 + $0x1e0] sm:$0xff]
  %v85 = vld [vmem:[%s0 + $0x1e8] sm:$0xff]
  %v86 = vld [vmem:[%s0 + $0x1f0] sm:$0xff]
  %v87 = vld [vmem:[%s0 + $0x1f8] sm:$0xff]
  %v88 = vld [vmem:[%s0 + $0x200] sm:$0xff]
  %v89 = vld [vmem:[%s0 + $0x208] sm:$0xff]
  %v90 = vld [vmem:[%s0 + $0x210] sm:$0xff]
  %v91 = vld [vmem:[%s0 + $0x218] sm:$0xff]
  %v92 = vld [vmem:[%s0 + $0x220] sm:$0xff]
  %v93 = vld [vmem:[%s0 + $0x228] sm:$0xff]
  %v94 = vld [vmem:[%s0 + $0x230] sm:$0xff]
  %v95 = vld [vmem:[%s0 + $0x238] sm:$0xff]
  %v96 = vld [vmem:[%s0 + $0x240] sm:$0xff]
  %v97 = vld [vmem:[%s0 + $0x248] sm:$0xff]
  %v98 = vld [vmem:[%s0 + $0x250] sm:$0xff]
  %v99 = vld [vmem:[%s0 + $0x258] sm:$0xff]
  %v100 = vld [vmem:[%s0 + $0x260] sm:$0xff]
  %v101 = vld [vmem:[%s0 + $0x268] sm:$0xff]
  %v102 = vld [vmem:[%s0 + $0x270] sm:$0xff]
  %v103 = vld [vmem:[%s0 + $0x278] sm:$0xff]
  %v104 = vld [vmem:[%s0 + $0x280] sm:$0xff]
  %v105 = vld [vmem:[%s0 + $0x288] sm:$0xff]
  %v106 = vld [vmem:[%s0 + $0x290] sm:$0xff]
  %v107 = vld [vmem:[%s0 + $0x298] sm:$0xff]
  %v108 = vld [vmem:[%s0 + $0x2a0] sm:$0xff]
  %v109 = vld [vmem:[%s0 + $0x2a8] sm:$0xff]
  %v110 = vld [vmem:[%s0 + $0x2b0] sm:$0xff]
  %v111 = vld [vmem:[%s0 + $0x2b8] sm:$0xff]
  %v112 = vld [vmem:[%s0 + $0x2c0] sm:$0xff]
  %v113 = vld [vmem:[%s0 + $0x2c8] sm:$0xff]
  %v114 = vld [vmem:[%s0 + $0x2d0] sm:$0xff]
  %v115 = vld [vmem:[%s0 + $0x2d8] sm:$0xff]
  %v116 = vld [vmem:[%s0 + $0x2e0] sm:$0xff]
  %v117 = vld [vmem:[%s0 + $0x2e8] sm:$0xff]
  %v118 = vld [vmem:[%s0 + $0x2f0] sm:$0xff]
  %v119 = vld [vmem:[%s0 + $0x2f8] sm:$0xff]
  %v120 = vld [vmem:[%s0 + $0x300] sm:$0xff]
  %v121 = vld [vmem:[%s0 + $0x308] sm:$0xff]
  %v122 = vld [vmem:[%s0 + $0x310] sm:$0xff]
  %v123 = vld [vmem:[%s0 + $0x318] sm:$0xff]
  %v124 = vld [vmem:[%s0 + $0x320] sm:$0xff]
  %v125 = vld [vmem:[%s0 + $0x328] sm:$0xff]
  %v126 = vld [vmem:[%s0 + $0x330] sm:$0x1]
  %v127 = vld [vmem:[%s0 + $0x338] sm:$0x1]
  %v128 = vld [vmem:[%s0 + $0x340] sm:$0x1]
  %v129 = vld [vmem:[%s0 + $0x348] sm:$0x1]
  %v130 = vld [vmem:[%s0 + $0x350] sm:$0x1]
  %v131 = vld [vmem:[%s0 + $0x358] sm:$0x1]
  %v132 = vld [vmem:[%s0 + $0x360] sm:$0x1]
  %v133 = vld [vmem:[%s0 + $0x368] sm:$0x1]
  %v134 = vld [vmem:[%s0 + $0x370] sm:$0x1]
  %v135 = vld [vmem:[%s0 + $0x378] sm:$0x1]
  %v136 = vld [vmem:[%s0 + $0x380] sm:$0x1]
  %v137 = vld [vmem:[%s0 + $0x388] sm:$0x1]
  %v138 = vld [vmem:[%s0 + $0x390] sm:$0x1]
  %v139 = vld [vmem:[%s0 + $0x398] sm:$0x1]
  %v140 = vld [vmem:[%s0 + $0x3a0] sm:$0x1]
  %v141 = vld [vmem:[%s0 + $0x3a8] sm:$0x1]
  %v142 = vld [vmem:[%s0 + $0x3b0] sm:$0x1]
  %v143 = vld [vmem:[%s0 + $0x3b8] sm:$0x1]
  %v144 = vld [vmem:[%s0 + $0x3c0] sm:$0x1]
  %v145 = vld [vmem:[%s0 + $0x3c8] sm:$0x1]
  %v146 = vld [vmem:[%s0 + $0x3d0] sm:$0x1]
  %v147 = vld [vmem:[%s0 + $0x3d8] sm:$0x1]
  %v148 = vld [vmem:[%s0 + $0x3e0] sm:$0x1]
  %v149 = vld [vmem:[%s0 + $0x3e8] sm:$0x1]
  %v150 = vld [vmem:[%s0 + $0x3f0] sm:$0x1]
  %v151 = vld [vmem:[%s0 + $0x3f8] sm:$0x1]
  %v152 = vld [vmem:[%s0 + $0x400] sm:$0x1]
  %v153 = vld [vmem:[%s0 + $0x408] sm:$0x1]
  %v154 = vld [vmem:[%s0 + $0x410] sm:$0x1]
  %v155 = vld [vmem:[%s0 + $0x418] sm:$0x1]
  %v156 = vld [vmem:[%s0 + $0x420] sm:$0x1]
  %v157 = vld [vmem:[%s0 + $0x428] sm:$0x1]
  %v158 = vld [vmem:[%s0 + $0x430] sm:$0x1]
  %v159 = vld [vmem:[%s0 + $0x438] sm:$0x1]
  %vm160 = vcmask 203776
  %v162 = vsel %vm160, %v23, 0
  %vm164 = vcmask 1040384
  %v166 = vsel %vm164, %v126, 0
  %v169 = vsel %vm164, %v127, 0
  %v172 = vsel %vm164, %v128, 0
  %v175 = vsel %vm164, %v129, 0
  %v178 = vsel %vm164, %v130, 0
  %v181 = vsel %vm164, %v131, 0
  %v184 = vsel %vm164, %v132, 0
  %v187 = vsel %vm164, %v133, 0
  %v190 = vsel %vm164, %v134, 0
  %v193 = vsel %vm164, %v135, 0
  %v196 = vsel %vm164, %v136, 0
  %v199 = vsel %vm164, %v137, 0
  %v202 = vsel %vm164, %v138, 0
  %v205 = vsel %vm164, %v139, 0
  %v208 = vsel %vm164, %v140, 0
  %v211 = vsel %vm164, %v141, 0
  %v214 = vsel %vm164, %v142, 0
  %v217 = vsel %vm164, %v143, 0
  %v220 = vsel %vm164, %v144, 0
  %v223 = vsel %vm164, %v145, 0
  %v226 = vsel %vm164, %v146, 0
  %v229 = vsel %vm164, %v147, 0
  %v232 = vsel %vm164, %v148, 0
  %v235 = vsel %vm164, %v149, 0
  %v238 = vsel %vm164, %v150, 0
  %v241 = vsel %vm164, %v151, 0
  %v244 = vsel %vm164, %v152, 0
  %v247 = vsel %vm164, %v153, 0
  %v250 = vsel %vm164, %v154, 0
  %v253 = vsel %vm164, %v155, 0
  %v256 = vsel %vm164, %v156, 0
  %v259 = vsel %vm164, %v157, 0
  %v262 = vsel %vm164, %v158, 0
  %v265 = vsel %vm164, %v159, 0
  %267 = vmatprep.subr.mxu0 0.0
  %268 = vmatpush1.msra.mxu0 0.0
  %269 = vmatprep.subr.mxu0 0.0
  %270 = vmatpush1.msra.mxu0 0.0
  %271 = vmatprep.subr.mxu0 0.0
  %272 = vmatpush1.msra.mxu0 0.0
  %273 = vmatprep.subr.mxu0 0.0
  %274 = vmatpush1.msra.mxu0 0.0
  %275 = vmatprep.subr.mxu0 0.0
  %276 = vmatpush1.msra.mxu0 0.0
  %277 = vmatprep.subr.mxu0 0.0
  %278 = vmatpush1.msra.mxu0 0.0
  %279 = vmatprep.subr.mxu0 0.0
  %280 = vmatpush1.msra.mxu0 0.0
  %281 = vmatprep.subr.mxu0 0.0
  %282 = vmatpush1.msra.mxu0 0.0
  %283 = vmatprep.subr.mxu0 0.0
  %284 = vmatpush1.msra.mxu0 0.0
  %285 = vmatprep.subr.mxu0 0.0
  %286 = vmatpush1.msra.mxu0 0.0
  %287 = vmatprep.subr.mxu0 0.0
  %288 = vmatpush1.msra.mxu0 0.0
  %289 = vmatprep.subr.mxu0 0.0
  %290 = vmatpush1.msra.mxu0 0.0
  %291 = vmatprep.subr.mxu0 %v169
  %292 = vmatpush1.msra.mxu0 %v166
  %293 = vmatprep.subr.mxu0 %v93
  %294 = vmatpush1.msra.mxu0 %v92
  %295 = vmatprep.subr.mxu0 %v59
  %296 = vmatpush1.msra.mxu0 %v58
  %297 = vmatprep.subr.mxu0 %v25
  %298 = vmatpush1.msra.mxu0 %v24
  %299 = vmatprep.subr.mxu0 0.0
  %300 = vmatpush2.msra.mxu0 0.0
  %301 = vmatprep.subr.mxu0 0.0
  %302 = vmatpush2.msra.mxu0 0.0
  %303 = vmatprep.subr.mxu0 0.0
  %304 = vmatpush2.msra.mxu0 0.0
  %305 = vmatprep.subr.mxu0 0.0
  %306 = vmatpush2.msra.mxu0 0.0
  %307 = vmatprep.subr.mxu0 0.0
  %308 = vmatpush2.msra.mxu0 0.0
  %309 = vmatprep.subr.mxu0 0.0
  %310 = vmatpush2.msra.mxu0 0.0
  %311 = vmatprep.subr.mxu0 0.0
  %312 = vmatpush2.msra.mxu0 0.0
  %313 = vmatprep.subr.mxu0 0.0
  %314 = vmatpush2.msra.mxu0 0.0
  %315 = vmatprep.subr.mxu0 0.0
  %316 = vmatpush2.msra.mxu0 0.0
  %317 = vmatprep.subr.mxu0 0.0
  %318 = vmatpush2.msra.mxu0 0.0
  %319 = vmatprep.subr.mxu0 0.0
  %320 = vmatpush2.msra.mxu0 0.0
  %321 = vmatprep.subr.mxu0 0.0
  %322 = vmatpush2.msra.mxu0 0.0
  %323 = vmatprep.subr.mxu0 0.0
  %324 = vmatpush2.msra.mxu0 0.0
  %325 = vmatprep.subr.mxu0 0.0
  %326 = vmatpush2.msra.mxu0 0.0
  %327 = vmatprep.subr.mxu0 0.0
  %328 = vmatpush2.msra.mxu0 0.0
  %329 = vmatprep.subr.mxu0 0.0
  %330 = vmatpush2.msra.mxu0 0.0
  %331 = vmatprep.mubr.f32.mxu0 0.0
  %332 = vmatmul.mubr.f32.gmra.mxu0 %v162
  %v333 = vpop.f32.mrf.mxu0
  %v334 = vadd.f32 0.0, %v333
  %v335 = vpop.f32.mrf.mxu0
  %v336 = vadd.f32 0.0, %v335
  %337 = vdwg.mxu0
  %338 = vmatprep.subr.mxu0 0.0
  %339 = vmatpush1.msra.mxu0 0.0
  %340 = vmatprep.subr.mxu0 0.0
  %341 = vmatpush1.msra.mxu0 0.0
  %342 = vmatprep.subr.mxu0 0.0
  %343 = vmatpush1.msra.mxu0 0.0
  %344 = vmatprep.subr.mxu0 0.0
  %345 = vmatpush1.msra.mxu0 0.0
  %346 = vmatprep.subr.mxu0 0.0
  %347 = vmatpush1.msra.mxu0 0.0
  %348 = vmatprep.subr.mxu0 0.0
  %349 = vmatpush1.msra.mxu0 0.0
  %350 = vmatprep.subr.mxu0 0.0
  %351 = vmatpush1.msra.mxu0 0.0
  %352 = vmatprep.subr.mxu0 0.0
  %353 = vmatpush1.msra.mxu0 0.0
  %354 = vmatprep.subr.mxu0 0.0
  %355 = vmatpush1.msra.mxu0 0.0
  %356 = vmatprep.subr.mxu0 0.0
  %357 = vmatpush1.msra.mxu0 0.0
  %358 = vmatprep.subr.mxu0 0.0
  %359 = vmatpush1.msra.mxu0 0.0
  %360 = vmatprep.subr.mxu0 0.0
  %361 = vmatpush1.msra.mxu0 0.0
  %362 = vmatprep.subr.mxu0 %v175
  %363 = vmatpush1.msra.mxu0 %v172
  %364 = vmatprep.subr.mxu0 %v95
  %365 = vmatpush1.msra.mxu0 %v94
  %366 = vmatprep.subr.mxu0 %v61
  %367 = vmatpush1.msra.mxu0 %v60
  %368 = vmatprep.subr.mxu0 %v27
  %369 = vmatpush1.msra.mxu0 %v26
  %370 = vmatprep.subr.mxu0 0.0
  %371 = vmatpush2.msra.mxu0 0.0
  %372 = vmatprep.subr.mxu0 0.0
  %373 = vmatpush2.msra.mxu0 0.0
  %374 = vmatprep.subr.mxu0 0.0
  %375 = vmatpush2.msra.mxu0 0.0
  %376 = vmatprep.subr.mxu0 0.0
  %377 = vmatpush2.msra.mxu0 0.0
  %378 = vmatprep.subr.mxu0 0.0
  %379 = vmatpush2.msra.mxu0 0.0
  %380 = vmatprep.subr.mxu0 0.0
  %381 = vmatpush2.msra.mxu0 0.0
  %382 = vmatprep.subr.mxu0 0.0
  %383 = vmatpush2.msra.mxu0 0.0
  %384 = vmatprep.subr.mxu0 0.0
  %385 = vmatpush2.msra.mxu0 0.0
  %386 = vmatprep.subr.mxu0 0.0
  %387 = vmatpush2.msra.mxu0 0.0
  %388 = vmatprep.subr.mxu0 0.0
  %389 = vmatpush2.msra.mxu0 0.0
  %390 = vmatprep.subr.mxu0 0.0
  %391 = vmatpush2.msra.mxu0 0.0
  %392 = vmatprep.subr.mxu0 0.0
  %393 = vmatpush2.msra.mxu0 0.0
  %394 = vmatprep.subr.mxu0 0.0
  %395 = vmatpush2.msra.mxu0 0.0
  %396 = vmatprep.subr.mxu0 0.0
  %397 = vmatpush2.msra.mxu0 0.0
  %398 = vmatprep.subr.mxu0 0.0
  %399 = vmatpush2.msra.mxu0 0.0
  %400 = vmatprep.subr.mxu0 0.0
  %401 = vmatpush2.msra.mxu0 0.0
  %402 = vmatprep.mubr.f32.mxu0 0.0
  %403 = vmatmul.mubr.f32.gmra.mxu0 %v162
  %v404 = vpop.f32.mrf.mxu0
  %v405 = vadd.f32 0.0, %v404
  %v406 = vpop.f32.mrf.mxu0
  %v407 = vadd.f32 0.0, %v406
  %408 = vdwg.mxu0
  %409 = vmatprep.subr.mxu0 0.0
  %410 = vmatpush1.msra.mxu0 0.0
  %411 = vmatprep.subr.mxu0 0.0
  %412 = vmatpush1.msra.mxu0 0.0
  %413 = vmatprep.subr.mxu0 0.0
  %414 = vmatpush1.msra.mxu0 0.0
  %415 = vmatprep.subr.mxu0 0.0
  %416 = vmatpush1.msra.mxu0 0.0
  %417 = vmatprep.subr.mxu0 0.0
  %418 = vmatpush1.msra.mxu0 0.0
  %419 = vmatprep.subr.mxu0 0.0
  %420 = vmatpush1.msra.mxu0 0.0
  %421 = vmatprep.subr.mxu0 0.0
  %422 = vmatpush1.msra.mxu0 0.0
  %423 = vmatprep.subr.mxu0 0.0
  %424 = vmatpush1.msra.mxu0 0.0
  %425 = vmatprep.subr.mxu0 0.0
  %426 = vmatpush1.msra.mxu0 0.0
  %427 = vmatprep.subr.mxu0 0.0
  %428 = vmatpush1.msra.mxu0 0.0
  %429 = vmatprep.subr.mxu0 0.0
  %430 = vmatpush1.msra.mxu0 0.0
  %431 = vmatprep.subr.mxu0 0.0
  %432 = vmatpush1.msra.mxu0 0.0
  %433 = vmatprep.subr.mxu0 %v181
  %434 = vmatpush1.msra.mxu0 %v178
  %435 = vmatprep.subr.mxu0 %v97
  %436 = vmatpush1.msra.mxu0 %v96
  %437 = vmatprep.subr.mxu0 %v63
  %438 = vmatpush1.msra.mxu0 %v62
  %439 = vmatprep.subr.mxu0 %v29
  %440 = vmatpush1.msra.mxu0 %v28
  %441 = vmatprep.subr.mxu0 0.0
  %442 = vmatpush2.msra.mxu0 0.0
  %443 = vmatprep.subr.mxu0 0.0
  %444 = vmatpush2.msra.mxu0 0.0
  %445 = vmatprep.subr.mxu0 0.0
  %446 = vmatpush2.msra.mxu0 0.0
  %447 = vmatprep.subr.mxu0 0.0
  %448 = vmatpush2.msra.mxu0 0.0
  %449 = vmatprep.subr.mxu0 0.0
  %450 = vmatpush2.msra.mxu0 0.0
  %451 = vmatprep.subr.mxu0 0.0
  %452 = vmatpush2.msra.mxu0 0.0
  %453 = vmatprep.subr.mxu0 0.0
  %454 = vmatpush2.msra.mxu0 0.0
  %455 = vmatprep.subr.mxu0 0.0
  %456 = vmatpush2.msra.mxu0 0.0
  %457 = vmatprep.subr.mxu0 0.0
  %458 = vmatpush2.msra.mxu0 0.0
  %459 = vmatprep.subr.mxu0 0.0
  %460 = vmatpush2.msra.mxu0 0.0
  %461 = vmatprep.subr.mxu0 0.0
  %462 = vmatpush2.msra.mxu0 0.0
  %463 = vmatprep.subr.mxu0 0.0
  %464 = vmatpush2.msra.mxu0 0.0
  %465 = vmatprep.subr.mxu0 0.0
  %466 = vmatpush2.msra.mxu0 0.0
  %467 = vmatprep.subr.mxu0 0.0
  %468 = vmatpush2.msra.mxu0 0.0
  %469 = vmatprep.subr.mxu0 0.0
  %470 = vmatpush2.msra.mxu0 0.0
  %471 = vmatprep.subr.mxu0 0.0
  %472 = vmatpush2.msra.mxu0 0.0
  %473 = vmatprep.mubr.f32.mxu0 0.0
  %474 = vmatmul.mubr.f32.gmra.mxu0 %v162
  %v475 = vpop.f32.mrf.mxu0
  %v476 = vadd.f32 0.0, %v475
  %v477 = vpop.f32.mrf.mxu0
  %v478 = vadd.f32 0.0, %v477
  %479 = vdwg.mxu0
  %480 = vmatprep.subr.mxu0 0.0
  %481 = vmatpush1.msra.mxu0 0.0
  %482 = vmatprep.subr.mxu0 0.0
  %483 = vmatpush1.msra.mxu0 0.0
  %484 = vmatprep.subr.mxu0 0.0
  %485 = vmatpush1.msra.mxu0 0.0
  %486 = vmatprep.subr.mxu0 0.0
  %487 = vmatpush1.msra.mxu0 0.0
  %488 = vmatprep.subr.mxu0 0.0
  %489 = vmatpush1.msra.mxu0 0.0
  %490 = vmatprep.subr.mxu0 0.0
  %491 = vmatpush1.msra.mxu0 0.0
  %492 = vmatprep.subr.mxu0 0.0
  %493 = vmatpush1.msra.mxu0 0.0
  %494 = vmatprep.subr.mxu0 0.0
  %495 = vmatpush1.msra.mxu0 0.0
  %496 = vmatprep.subr.mxu0 0.0
  %497 = vmatpush1.msra.mxu0 0.0
  %498 = vmatprep.subr.mxu0 0.0
  %499 = vmatpush1.msra.mxu0 0.0
  %500 = vmatprep.subr.mxu0 0.0
  %501 = vmatpush1.msra.mxu0 0.0
  %502 = vmatprep.subr.mxu0 0.0
  %503 = vmatpush1.msra.mxu0 0.0
  %504 = vmatprep.subr.mxu0 %v187
  %505 = vmatpush1.msra.mxu0 %v184
  %506 = vmatprep.subr.mxu0 %v99
  %507 = vmatpush1.msra.mxu0 %v98
  %508 = vmatprep.subr.mxu0 %v65
  %509 = vmatpush1.msra.mxu0 %v64
  %510 = vmatprep.subr.mxu0 %v31
  %511 = vmatpush1.msra.mxu0 %v30
  %512 = vmatprep.subr.mxu0 0.0
  %513 = vmatpush2.msra.mxu0 0.0
  %514 = vmatprep.subr.mxu0 0.0
  %515 = vmatpush2.msra.mxu0 0.0
  %516 = vmatprep.subr.mxu0 0.0
  %517 = vmatpush2.msra.mxu0 0.0
  %518 = vmatprep.subr.mxu0 0.0
  %519 = vmatpush2.msra.mxu0 0.0
  %520 = vmatprep.subr.mxu0 0.0
  %521 = vmatpush2.msra.mxu0 0.0
  %522 = vmatprep.subr.mxu0 0.0
  %523 = vmatpush2.msra.mxu0 0.0
  %524 = vmatprep.subr.mxu0 0.0
  %525 = vmatpush2.msra.mxu0 0.0
  %526 = vmatprep.subr.mxu0 0.0
  %527 = vmatpush2.msra.mxu0 0.0
  %528 = vmatprep.subr.mxu0 0.0
  %529 = vmatpush2.msra.mxu0 0.0
  %530 = vmatprep.subr.mxu0 0.0
  %531 = vmatpush2.msra.mxu0 0.0
  %532 = vmatprep.subr.mxu0 0.0
  %533 = vmatpush2.msra.mxu0 0.0
  %534 = vmatprep.subr.mxu0 0.0
  %535 = vmatpush2.msra.mxu0 0.0
  %536 = vmatprep.subr.mxu0 0.0
  %537 = vmatpush2.msra.mxu0 0.0
  %538 = vmatprep.subr.mxu0 0.0
  %539 = vmatpush2.msra.mxu0 0.0
  %540 = vmatprep.subr.mxu0 0.0
  %541 = vmatpush2.msra.mxu0 0.0
  %542 = vmatprep.subr.mxu0 0.0
  %543 = vmatpush2.msra.mxu0 0.0
  %544 = vmatprep.mubr.f32.mxu0 0.0
  %545 = vmatmul.mubr.f32.gmra.mxu0 %v162
  %v546 = vpop.f32.mrf.mxu0
  %v547 = vadd.f32 0.0, %v546
  %v548 = vpop.f32.mrf.mxu0
  %v549 = vadd.f32 0.0, %v548
  %550 = vdwg.mxu0
  %551 = vmatprep.subr.mxu0 0.0
  %552 = vmatpush1.msra.mxu0 0.0
  %553 = vmatprep.subr.mxu0 0.0
  %554 = vmatpush1.msra.mxu0 0.0
  %555 = vmatprep.subr.mxu0 0.0
  %556 = vmatpush1.msra.mxu0 0.0
  %557 = vmatprep.subr.mxu0 0.0
  %558 = vmatpush1.msra.mxu0 0.0
  %559 = vmatprep.subr.mxu0 0.0
  %560 = vmatpush1.msra.mxu0 0.0
  %561 = vmatprep.subr.mxu0 0.0
  %562 = vmatpush1.msra.mxu0 0.0
  %563 = vmatprep.subr.mxu0 0.0
  %564 = vmatpush1.msra.mxu0 0.0
  %565 = vmatprep.subr.mxu0 0.0
  %566 = vmatpush1.msra.mxu0 0.0
  %567 = vmatprep.subr.mxu0 0.0
  %568 = vmatpush1.msra.mxu0 0.0
  %569 = vmatprep.subr.mxu0 0.0
  %570 = vmatpush1.msra.mxu0 0.0
  %571 = vmatprep.subr.mxu0 0.0
  %572 = vmatpush1.msra.mxu0 0.0
  %573 = vmatprep.subr.mxu0 0.0
  %574 = vmatpush1.msra.mxu0 0.0
  %575 = vmatprep.subr.mxu0 %v193
  %576 = vmatpush1.msra.mxu0 %v190
  %577 = vmatprep.subr.mxu0 %v101
  %578 = vmatpush1.msra.mxu0 %v100
  %579 = vmatprep.subr.mxu0 %v67
  %580 = vmatpush1.msra.mxu0 %v66
  %581 = vmatprep.subr.mxu0 %v33
  %582 = vmatpush1.msra.mxu0 %v32
  %583 = vmatprep.subr.mxu0 0.0
  %584 = vmatpush2.msra.mxu0 0.0
  %585 = vmatprep.subr.mxu0 0.0
  %586 = vmatpush2.msra.mxu0 0.0
  %587 = vmatprep.subr.mxu0 0.0
  %588 = vmatpush2.msra.mxu0 0.0
  %589 = vmatprep.subr.mxu0 0.0
  %590 = vmatpush2.msra.mxu0 0.0
  %591 = vmatprep.subr.mxu0 0.0
  %592 = vmatpush2.msra.mxu0 0.0
  %593 = vmatprep.subr.mxu0 0.0
  %594 = vmatpush2.msra.mxu0 0.0
  %595 = vmatprep.subr.mxu0 0.0
  %596 = vmatpush2.msra.mxu0 0.0
  %597 = vmatprep.subr.mxu0 0.0
  %598 = vmatpush2.msra.mxu0 0.0
  %599 = vmatprep.subr.mxu0 0.0
  %600 = vmatpush2.msra.mxu0 0.0
  %601 = vmatprep.subr.mxu0 0.0
  %602 = vmatpush2.msra.mxu0 0.0
  %603 = vmatprep.subr.mxu0 0.0
  %604 = vmatpush2.msra.mxu0 0.0
  %605 = vmatprep.subr.mxu0 0.0
  %606 = vmatpush2.msra.mxu0 0.0
  %607 = vmatprep.subr.mxu0 0.0
  %608 = vmatpush2.msra.mxu0 0.0
  %609 = vmatprep.subr.mxu0 0.0
  %610 = vmatpush2.msra.mxu0 0.0
  %611 = vmatprep.subr.mxu0 0.0
  %612 = vmatpush2.msra.mxu0 0.0
  %613 = vmatprep.subr.mxu0 0.0
  %614 = vmatpush2.msra.mxu0 0.0
  %615 = vmatprep.mubr.f32.mxu0 0.0
  %616 = vmatmul.mubr.f32.gmra.mxu0 %v162
  %v617 = vpop.f32.mrf.mxu0
  %v618 = vadd.f32 0.0, %v617
  %v619 = vpop.f32.mrf.mxu0
  %v620 = vadd.f32 0.0, %v619
  %621 = vdwg.mxu0
  %622 = vmatprep.subr.mxu0 0.0
  %623 = vmatpush1.msra.mxu0 0.0
  %624 = vmatprep.subr.mxu0 0.0
  %625 = vmatpush1.msra.mxu0 0.0
  %626 = vmatprep.subr.mxu0 0.0
  %627 = vmatpush1.msra.mxu0 0.0
  %628 = vmatprep.subr.mxu0 0.0
  %629 = vmatpush1.msra.mxu0 0.0
  %630 = vmatprep.subr.mxu0 0.0
  %631 = vmatpush1.msra.mxu0 0.0
  %632 = vmatprep.subr.mxu0 0.0
  %633 = vmatpush1.msra.mxu0 0.0
  %634 = vmatprep.subr.mxu0 0.0
  %635 = vmatpush1.msra.mxu0 0.0
  %636 = vmatprep.subr.mxu0 0.0
  %637 = vmatpush1.msra.mxu0 0.0
  %638 = vmatprep.subr.mxu0 0.0
  %639 = vmatpush1.msra.mxu0 0.0
  %640 = vmatprep.subr.mxu0 0.0
  %641 = vmatpush1.msra.mxu0 0.0
  %642 = vmatprep.subr.mxu0 0.0
  %643 = vmatpush1.msra.mxu0 0.0
  %644 = vmatprep.subr.mxu0 0.0
  %645 = vmatpush1.msra.mxu0 0.0
  %646 = vmatprep.subr.mxu0 %v199
  %647 = vmatpush1.msra.mxu0 %v196
  %648 = vmatprep.subr.mxu0 %v103
  %649 = vmatpush1.msra.mxu0 %v102
  %650 = vmatprep.subr.mxu0 %v69
  %651 = vmatpush1.msra.mxu0 %v68
  %652 = vmatprep.subr.mxu0 %v35
  %653 = vmatpush1.msra.mxu0 %v34
  %654 = vmatprep.subr.mxu0 0.0
  %655 = vmatpush2.msra.mxu0 0.0
  %656 = vmatprep.subr.mxu0 0.0
  %657 = vmatpush2.msra.mxu0 0.0
  %658 = vmatprep.subr.mxu0 0.0
  %659 = vmatpush2.msra.mxu0 0.0
  %660 = vmatprep.subr.mxu0 0.0
  %661 = vmatpush2.msra.mxu0 0.0
  %662 = vmatprep.subr.mxu0 0.0
  %663 = vmatpush2.msra.mxu0 0.0
  %664 = vmatprep.subr.mxu0 0.0
  %665 = vmatpush2.msra.mxu0 0.0
  %666 = vmatprep.subr.mxu0 0.0
  %667 = vmatpush2.msra.mxu0 0.0
  %668 = vmatprep.subr.mxu0 0.0
  %669 = vmatpush2.msra.mxu0 0.0
  %670 = vmatprep.subr.mxu0 0.0
  %671 = vmatpush2.msra.mxu0 0.0
  %672 = vmatprep.subr.mxu0 0.0
  %673 = vmatpush2.msra.mxu0 0.0
  %674 = vmatprep.subr.mxu0 0.0
  %675 = vmatpush2.msra.mxu0 0.0
  %676 = vmatprep.subr.mxu0 0.0
  %677 = vmatpush2.msra.mxu0 0.0
  %678 = vmatprep.subr.mxu0 0.0
  %679 = vmatpush2.msra.mxu0 0.0
  %680 = vmatprep.subr.mxu0 0.0
  %681 = vmatpush2.msra.mxu0 0.0
  %682 = vmatprep.subr.mxu0 0.0
  %683 = vmatpush2.msra.mxu0 0.0
  %684 = vmatprep.subr.mxu0 0.0
  %685 = vmatpush2.msra.mxu0 0.0
  %686 = vmatprep.mubr.f32.mxu0 0.0
  %687 = vmatmul.mubr.f32.gmra.mxu0 %v162
  %v688 = vpop.f32.mrf.mxu0
  %v689 = vadd.f32 0.0, %v688
  %v690 = vpop.f32.mrf.mxu0
  %v691 = vadd.f32 0.0, %v690
  %692 = vdwg.mxu0
  %693 = vmatprep.subr.mxu0 0.0
  %694 = vmatpush1.msra.mxu0 0.0
  %695 = vmatprep.subr.mxu0 0.0
  %696 = vmatpush1.msra.mxu0 0.0
  %697 = vmatprep.subr.mxu0 0.0
  %698 = vmatpush1.msra.mxu0 0.0
  %699 = vmatprep.subr.mxu0 0.0
  %700 = vmatpush1.msra.mxu0 0.0
  %701 = vmatprep.subr.mxu0 0.0
  %702 = vmatpush1.msra.mxu0 0.0
  %703 = vmatprep.subr.mxu0 0.0
  %704 = vmatpush1.msra.mxu0 0.0
  %705 = vmatprep.subr.mxu0 0.0
  %706 = vmatpush1.msra.mxu0 0.0
  %707 = vmatprep.subr.mxu0 0.0
  %708 = vmatpush1.msra.mxu0 0.0
  %709 = vmatprep.subr.mxu0 0.0
  %710 = vmatpush1.msra.mxu0 0.0
  %711 = vmatprep.subr.mxu0 0.0
  %712 = vmatpush1.msra.mxu0 0.0
  %713 = vmatprep.subr.mxu0 0.0
  %714 = vmatpush1.msra.mxu0 0.0
  %715 = vmatprep.subr.mxu0 0.0
  %716 = vmatpush1.msra.mxu0 0.0
  %717 = vmatprep.subr.mxu0 %v205
  %718 = vmatpush1.msra.mxu0 %v202
  %719 = vmatprep.subr.mxu0 %v105
  %720 = vmatpush1.msra.mxu0 %v104
  %721 = vmatprep.subr.mxu0 %v71
  %722 = vmatpush1.msra.mxu0 %v70
  %723 = vmatprep.subr.mxu0 %v37
  %724 = vmatpush1.msra.mxu0 %v36
  %725 = vmatprep.subr.mxu0 0.0
  %726 = vmatpush2.msra.mxu0 0.0
  %727 = vmatprep.subr.mxu0 0.0
  %728 = vmatpush2.msra.mxu0 0.0
  %729 = vmatprep.subr.mxu0 0.0
  %730 = vmatpush2.msra.mxu0 0.0
  %731 = vmatprep.subr.mxu0 0.0
  %732 = vmatpush2.msra.mxu0 0.0
  %733 = vmatprep.subr.mxu0 0.0
  %734 = vmatpush2.msra.mxu0 0.0
  %735 = vmatprep.subr.mxu0 0.0
  %736 = vmatpush2.msra.mxu0 0.0
  %737 = vmatprep.subr.mxu0 0.0
  %738 = vmatpush2.msra.mxu0 0.0
  %739 = vmatprep.subr.mxu0 0.0
  %740 = vmatpush2.msra.mxu0 0.0
  %741 = vmatprep.subr.mxu0 0.0
  %742 = vmatpush2.msra.mxu0 0.0
  %743 = vmatprep.subr.mxu0 0.0
  %744 = vmatpush2.msra.mxu0 0.0
  %745 = vmatprep.subr.mxu0 0.0
  %746 = vmatpush2.msra.mxu0 0.0
  %747 = vmatprep.subr.mxu0 0.0
  %748 = vmatpush2.msra.mxu0 0.0
  %749 = vmatprep.subr.mxu0 0.0
  %750 = vmatpush2.msra.mxu0 0.0
  %751 = vmatprep.subr.mxu0 0.0
  %752 = vmatpush2.msra.mxu0 0.0
  %753 = vmatprep.subr.mxu0 0.0
  %754 = vmatpush2.msra.mxu0 0.0
  %755 = vmatprep.subr.mxu0 0.0
  %756 = vmatpush2.msra.mxu0 0.0
  %757 = vmatprep.mubr.f32.mxu0 0.0
  %758 = vmatmul.mubr.f32.gmra.mxu0 %v162
  %v759 = vpop.f32.mrf.mxu0
  %v760 = vadd.f32 0.0, %v759
  %v761 = vpop.f32.mrf.mxu0
  %v762 = vadd.f32 0.0, %v761
  %763 = vdwg.mxu0
  %764 = vmatprep.subr.mxu0 0.0
  %765 = vmatpush1.msra.mxu0 0.0
  %766 = vmatprep.subr.mxu0 0.0
  %767 = vmatpush1.msra.mxu0 0.0
  %768 = vmatprep.subr.mxu0 0.0
  %769 = vmatpush1.msra.mxu0 0.0
  %770 = vmatprep.subr.mxu0 0.0
  %771 = vmatpush1.msra.mxu0 0.0
  %772 = vmatprep.subr.mxu0 0.0
  %773 = vmatpush1.msra.mxu0 0.0
  %774 = vmatprep.subr.mxu0 0.0
  %775 = vmatpush1.msra.mxu0 0.0
  %776 = vmatprep.subr.mxu0 0.0
  %777 = vmatpush1.msra.mxu0 0.0
  %778 = vmatprep.subr.mxu0 0.0
  %779 = vmatpush1.msra.mxu0 0.0
  %780 = vmatprep.subr.mxu0 0.0
  %781 = vmatpush1.msra.mxu0 0.0
  %782 = vmatprep.subr.mxu0 0.0
  %783 = vmatpush1.msra.mxu0 0.0
  %784 = vmatprep.subr.mxu0 0.0
  %785 = vmatpush1.msra.mxu0 0.0
  %786 = vmatprep.subr.mxu0 0.0
  %787 = vmatpush1.msra.mxu0 0.0
  %788 = vmatprep.subr.mxu0 %v211
  %789 = vmatpush1.msra.mxu0 %v208
  %790 = vmatprep.subr.mxu0 %v107
  %791 = vmatpush1.msra.mxu0 %v106
  %792 = vmatprep.subr.mxu0 %v73
  %793 = vmatpush1.msra.mxu0 %v72
  %794 = vmatprep.subr.mxu0 %v39
  %795 = vmatpush1.msra.mxu0 %v38
  %796 = vmatprep.subr.mxu0 0.0
  %797 = vmatpush2.msra.mxu0 0.0
  %798 = vmatprep.subr.mxu0 0.0
  %799 = vmatpush2.msra.mxu0 0.0
  %800 = vmatprep.subr.mxu0 0.0
  %801 = vmatpush2.msra.mxu0 0.0
  %802 = vmatprep.subr.mxu0 0.0
  %803 = vmatpush2.msra.mxu0 0.0
  %804 = vmatprep.subr.mxu0 0.0
  %805 = vmatpush2.msra.mxu0 0.0
  %806 = vmatprep.subr.mxu0 0.0
  %807 = vmatpush2.msra.mxu0 0.0
  %808 = vmatprep.subr.mxu0 0.0
  %809 = vmatpush2.msra.mxu0 0.0
  %810 = vmatprep.subr.mxu0 0.0
  %811 = vmatpush2.msra.mxu0 0.0
  %812 = vmatprep.subr.mxu0 0.0
  %813 = vmatpush2.msra.mxu0 0.0
  %814 = vmatprep.subr.mxu0 0.0
  %815 = vmatpush2.msra.mxu0 0.0
  %816 = vmatprep.subr.mxu0 0.0
  %817 = vmatpush2.msra.mxu0 0.0
  %818 = vmatprep.subr.mxu0 0.0
  %819 = vmatpush2.msra.mxu0 0.0
  %820 = vmatprep.subr.mxu0 0.0
  %821 = vmatpush2.msra.mxu0 0.0
  %822 = vmatprep.subr.mxu0 0.0
  %823 = vmatpush2.msra.mxu0 0.0
  %824 = vmatprep.subr.mxu0 0.0
  %825 = vmatpush2.msra.mxu0 0.0
  %826 = vmatprep.subr.mxu0 0.0
  %827 = vmatpush2.msra.mxu0 0.0
  %828 = vmatprep.mubr.f32.mxu0 0.0
  %829 = vmatmul.mubr.f32.gmra.mxu0 %v162
  %v830 = vpop.f32.mrf.mxu0
  %v831 = vadd.f32 0.0, %v830
  %v832 = vpop.f32.mrf.mxu0
  %v833 = vadd.f32 0.0, %v832
  %834 = vdwg.mxu0
  %835 = vmatprep.subr.mxu0 0.0
  %836 = vmatpush1.msra.mxu0 0.0
  %837 = vmatprep.subr.mxu0 0.0
  %838 = vmatpush1.msra.mxu0 0.0
  %839 = vmatprep.subr.mxu0 0.0
  %840 = vmatpush1.msra.mxu0 0.0
  %841 = vmatprep.subr.mxu0 0.0
  %842 = vmatpush1.msra.mxu0 0.0
  %843 = vmatprep.subr.mxu0 0.0
  %844 = vmatpush1.msra.mxu0 0.0
  %845 = vmatprep.subr.mxu0 0.0
  %846 = vmatpush1.msra.mxu0 0.0
  %847 = vmatprep.subr.mxu0 0.0
  %848 = vmatpush1.msra.mxu0 0.0
  %849 = vmatprep.subr.mxu0 0.0
  %850 = vmatpush1.msra.mxu0 0.0
  %851 = vmatprep.subr.mxu0 0.0
  %852 = vmatpush1.msra.mxu0 0.0
  %853 = vmatprep.subr.mxu0 0.0
  %854 = vmatpush1.msra.mxu0 0.0
  %855 = vmatprep.subr.mxu0 0.0
  %856 = vmatpush1.msra.mxu0 0.0
  %857 = vmatprep.subr.mxu0 0.0
  %858 = vmatpush1.msra.mxu0 0.0
  %859 = vmatprep.subr.mxu0 %v217
  %860 = vmatpush1.msra.mxu0 %v214
  %861 = vmatprep.subr.mxu0 %v109
  %862 = vmatpush1.msra.mxu0 %v108
  %863 = vmatprep.subr.mxu0 %v75
  %864 = vmatpush1.msra.mxu0 %v74
  %865 = vmatprep.subr.mxu0 %v41
  %866 = vmatpush1.msra.mxu0 %v40
  %867 = vmatprep.subr.mxu0 0.0
  %868 = vmatpush2.msra.mxu0 0.0
  %869 = vmatprep.subr.mxu0 0.0
  %870 = vmatpush2.msra.mxu0 0.0
  %871 = vmatprep.subr.mxu0 0.0
  %872 = vmatpush2.msra.mxu0 0.0
  %873 = vmatprep.subr.mxu0 0.0
  %874 = vmatpush2.msra.mxu0 0.0
  %875 = vmatprep.subr.mxu0 0.0
  %876 = vmatpush2.msra.mxu0 0.0
  %877 = vmatprep.subr.mxu0 0.0
  %878 = vmatpush2.msra.mxu0 0.0
  %879 = vmatprep.subr.mxu0 0.0
  %880 = vmatpush2.msra.mxu0 0.0
  %881 = vmatprep.subr.mxu0 0.0
  %882 = vmatpush2.msra.mxu0 0.0
  %883 = vmatprep.subr.mxu0 0.0
  %884 = vmatpush2.msra.mxu0 0.0
  %885 = vmatprep.subr.mxu0 0.0
  %886 = vmatpush2.msra.mxu0 0.0
  %887 = vmatprep.subr.mxu0 0.0
  %888 = vmatpush2.msra.mxu0 0.0
  %889 = vmatprep.subr.mxu0 0.0
  %890 = vmatpush2.msra.mxu0 0.0
  %891 = vmatprep.subr.mxu0 0.0
  %892 = vmatpush2.msra.mxu0 0.0
  %893 = vmatprep.subr.mxu0 0.0
  %894 = vmatpush2.msra.mxu0 0.0
  %895 = vmatprep.subr.mxu0 0.0
  %896 = vmatpush2.msra.mxu0 0.0
  %897 = vmatprep.subr.mxu0 0.0
  %898 = vmatpush2.msra.mxu0 0.0
  %899 = vmatprep.mubr.f32.mxu0 0.0
  %900 = vmatmul.mubr.f32.gmra.mxu0 %v162
  %v901 = vpop.f32.mrf.mxu0
  %v902 = vadd.f32 0.0, %v901
  %v903 = vpop.f32.mrf.mxu0
  %v904 = vadd.f32 0.0, %v903
  %905 = vdwg.mxu0
  %906 = vmatprep.subr.mxu0 0.0
  %907 = vmatpush1.msra.mxu0 0.0
  %908 = vmatprep.subr.mxu0 0.0
  %909 = vmatpush1.msra.mxu0 0.0
  %910 = vmatprep.subr.mxu0 0.0
  %911 = vmatpush1.msra.mxu0 0.0
  %912 = vmatprep.subr.mxu0 0.0
  %913 = vmatpush1.msra.mxu0 0.0
  %914 = vmatprep.subr.mxu0 0.0
  %915 = vmatpush1.msra.mxu0 0.0
  %916 = vmatprep.subr.mxu0 0.0
  %917 = vmatpush1.msra.mxu0 0.0
  %918 = vmatprep.subr.mxu0 0.0
  %919 = vmatpush1.msra.mxu0 0.0
  %920 = vmatprep.subr.mxu0 0.0
  %921 = vmatpush1.msra.mxu0 0.0
  %922 = vmatprep.subr.mxu0 0.0
  %923 = vmatpush1.msra.mxu0 0.0
  %924 = vmatprep.subr.mxu0 0.0
  %925 = vmatpush1.msra.mxu0 0.0
  %926 = vmatprep.subr.mxu0 0.0
  %927 = vmatpush1.msra.mxu0 0.0
  %928 = vmatprep.subr.mxu0 0.0
  %929 = vmatpush1.msra.mxu0 0.0
  %930 = vmatprep.subr.mxu0 %v223
  %931 = vmatpush1.msra.mxu0 %v220
  %932 = vmatprep.subr.mxu0 %v111
  %933 = vmatpush1.msra.mxu0 %v110
  %934 = vmatprep.subr.mxu0 %v77
  %935 = vmatpush1.msra.mxu0 %v76
  %936 = vmatprep.subr.mxu0 %v43
  %937 = vmatpush1.msra.mxu0 %v42
  %938 = vmatprep.subr.mxu0 0.0
  %939 = vmatpush2.msra.mxu0 0.0
  %940 = vmatprep.subr.mxu0 0.0
  %941 = vmatpush2.msra.mxu0 0.0
  %942 = vmatprep.subr.mxu0 0.0
  %943 = vmatpush2.msra.mxu0 0.0
  %944 = vmatprep.subr.mxu0 0.0
  %945 = vmatpush2.msra.mxu0 0.0
  %946 = vmatprep.subr.mxu0 0.0
  %947 = vmatpush2.msra.mxu0 0.0
  %948 = vmatprep.subr.mxu0 0.0
  %949 = vmatpush2.msra.mxu0 0.0
  %950 = vmatprep.subr.mxu0 0.0
  %951 = vmatpush2.msra.mxu0 0.0
  %952 = vmatprep.subr.mxu0 0.0
  %953 = vmatpush2.msra.mxu0 0.0
  %954 = vmatprep.subr.mxu0 0.0
  %955 = vmatpush2.msra.mxu0 0.0
  %956 = vmatprep.subr.mxu0 0.0
  %957 = vmatpush2.msra.mxu0 0.0
  %958 = vmatprep.subr.mxu0 0.0
  %959 = vmatpush2.msra.mxu0 0.0
  %960 = vmatprep.subr.mxu0 0.0
  %961 = vmatpush2.msra.mxu0 0.0
  %962 = vmatprep.subr.mxu0 0.0
  %963 = vmatpush2.msra.mxu0 0.0
  %964 = vmatprep.subr.mxu0 0.0
  %965 = vmatpush2.msra.mxu0 0.0
  %966 = vmatprep.subr.mxu0 0.0
  %967 = vmatpush2.msra.mxu0 0.0
  %968 = vmatprep.subr.mxu0 0.0
  %969 = vmatpush2.msra.mxu0 0.0
  %970 = vmatprep.mubr.f32.mxu0 0.0
  %971 = vmatmul.mubr.f32.gmra.mxu0 %v162
  %v972 = vpop.f32.mrf.mxu0
  %v973 = vadd.f32 0.0, %v972
  %v974 = vpop.f32.mrf.mxu0
  %v975 = vadd.f32 0.0, %v974
  %976 = vdwg.mxu0
  %977 = vmatprep.subr.mxu0 0.0
  %978 = vmatpush1.msra.mxu0 0.0
  %979 = vmatprep.subr.mxu0 0.0
  %980 = vmatpush1.msra.mxu0 0.0
  %981 = vmatprep.subr.mxu0 0.0
  %982 = vmatpush1.msra.mxu0 0.0
  %983 = vmatprep.subr.mxu0 0.0
  %984 = vmatpush1.msra.mxu0 0.0
  %985 = vmatprep.subr.mxu0 0.0
  %986 = vmatpush1.msra.mxu0 0.0
  %987 = vmatprep.subr.mxu0 0.0
  %988 = vmatpush1.msra.mxu0 0.0
  %989 = vmatprep.subr.mxu0 0.0
  %990 = vmatpush1.msra.mxu0 0.0
  %991 = vmatprep.subr.mxu0 0.0
  %992 = vmatpush1.msra.mxu0 0.0
  %993 = vmatprep.subr.mxu0 0.0
  %994 = vmatpush1.msra.mxu0 0.0
  %995 = vmatprep.subr.mxu0 0.0
  %996 = vmatpush1.msra.mxu0 0.0
  %997 = vmatprep.subr.mxu0 0.0
  %998 = vmatpush1.msra.mxu0 0.0
  %999 = vmatprep.subr.mxu0 0.0
  %1000 = vmatpush1.msra.mxu0 0.0
  %1001 = vmatprep.subr.mxu0 %v229
  %1002 = vmatpush1.msra.mxu0 %v226
  %1003 = vmatprep.subr.mxu0 %v113
  %1004 = vmatpush1.msra.mxu0 %v112
  %1005 = vmatprep.subr.mxu0 %v79
  %1006 = vmatpush1.msra.mxu0 %v78
  %1007 = vmatprep.subr.mxu0 %v45
  %1008 = vmatpush1.msra.mxu0 %v44
  %1009 = vmatprep.subr.mxu0 0.0
  %1010 = vmatpush2.msra.mxu0 0.0
  %1011 = vmatprep.subr.mxu0 0.0
  %1012 = vmatpush2.msra.mxu0 0.0
  %1013 = vmatprep.subr.mxu0 0.0
  %1014 = vmatpush2.msra.mxu0 0.0
  %1015 = vmatprep.subr.mxu0 0.0
  %1016 = vmatpush2.msra.mxu0 0.0
  %1017 = vmatprep.subr.mxu0 0.0
  %1018 = vmatpush2.msra.mxu0 0.0
  %1019 = vmatprep.subr.mxu0 0.0
  %1020 = vmatpush2.msra.mxu0 0.0
  %1021 = vmatprep.subr.mxu0 0.0
  %1022 = vmatpush2.msra.mxu0 0.0
  %1023 = vmatprep.subr.mxu0 0.0
  %1024 = vmatpush2.msra.mxu0 0.0
  %1025 = vmatprep.subr.mxu0 0.0
  %1026 = vmatpush2.msra.mxu0 0.0
  %1027 = vmatprep.subr.mxu0 0.0
  %1028 = vmatpush2.msra.mxu0 0.0
  %1029 = vmatprep.subr.mxu0 0.0
  %1030 = vmatpush2.msra.mxu0 0.0
  %1031 = vmatprep.subr.mxu0 0.0
  %1032 = vmatpush2.msra.mxu0 0.0
  %1033 = vmatprep.subr.mxu0 0.0
  %1034 = vmatpush2.msra.mxu0 0.0
  %1035 = vmatprep.subr.mxu0 0.0
  %1036 = vmatpush2.msra.mxu0 0.0
  %1037 = vmatprep.subr.mxu0 0.0
  %1038 = vmatpush2.msra.mxu0 0.0
  %1039 = vmatprep.subr.mxu0 0.0
  %1040 = vmatpush2.msra.mxu0 0.0
  %1041 = vmatprep.mubr.f32.mxu0 0.0
  %1042 = vmatmul.mubr.f32.gmra.mxu0 %v162
  %v1043 = vpop.f32.mrf.mxu0
  %v1044 = vadd.f32 0.0, %v1043
  %v1045 = vpop.f32.mrf.mxu0
  %v1046 = vadd.f32 0.0, %v1045
  %1047 = vdwg.mxu0
  %1048 = vmatprep.subr.mxu0 0.0
  %1049 = vmatpush1.msra.mxu0 0.0
  %1050 = vmatprep.subr.mxu0 0.0
  %1051 = vmatpush1.msra.mxu0 0.0
  %1052 = vmatprep.subr.mxu0 0.0
  %1053 = vmatpush1.msra.mxu0 0.0
  %1054 = vmatprep.subr.mxu0 0.0
  %1055 = vmatpush1.msra.mxu0 0.0
  %1056 = vmatprep.subr.mxu0 0.0
  %1057 = vmatpush1.msra.mxu0 0.0
  %1058 = vmatprep.subr.mxu0 0.0
  %1059 = vmatpush1.msra.mxu0 0.0
  %1060 = vmatprep.subr.mxu0 0.0
  %1061 = vmatpush1.msra.mxu0 0.0
  %1062 = vmatprep.subr.mxu0 0.0
  %1063 = vmatpush1.msra.mxu0 0.0
  %1064 = vmatprep.subr.mxu0 0.0
  %1065 = vmatpush1.msra.mxu0 0.0
  %1066 = vmatprep.subr.mxu0 0.0
  %1067 = vmatpush1.msra.mxu0 0.0
  %1068 = vmatprep.subr.mxu0 0.0
  %1069 = vmatpush1.msra.mxu0 0.0
  %1070 = vmatprep.subr.mxu0 0.0
  %1071 = vmatpush1.msra.mxu0 0.0
  %1072 = vmatprep.subr.mxu0 %v235
  %1073 = vmatpush1.msra.mxu0 %v232
  %1074 = vmatprep.subr.mxu0 %v115
  %1075 = vmatpush1.msra.mxu0 %v114
  %1076 = vmatprep.subr.mxu0 %v81
  %1077 = vmatpush1.msra.mxu0 %v80
  %1078 = vmatprep.subr.mxu0 %v47
  %1079 = vmatpush1.msra.mxu0 %v46
  %1080 = vmatprep.subr.mxu0 0.0
  %1081 = vmatpush2.msra.mxu0 0.0
  %1082 = vmatprep.subr.mxu0 0.0
  %1083 = vmatpush2.msra.mxu0 0.0
  %1084 = vmatprep.subr.mxu0 0.0
  %1085 = vmatpush2.msra.mxu0 0.0
  %1086 = vmatprep.subr.mxu0 0.0
  %1087 = vmatpush2.msra.mxu0 0.0
  %1088 = vmatprep.subr.mxu0 0.0
  %1089 = vmatpush2.msra.mxu0 0.0
  %1090 = vmatprep.subr.mxu0 0.0
  %1091 = vmatpush2.msra.mxu0 0.0
  %1092 = vmatprep.subr.mxu0 0.0
  %1093 = vmatpush2.msra.mxu0 0.0
  %1094 = vmatprep.subr.mxu0 0.0
  %1095 = vmatpush2.msra.mxu0 0.0
  %1096 = vmatprep.subr.mxu0 0.0
  %1097 = vmatpush2.msra.mxu0 0.0
  %1098 = vmatprep.subr.mxu0 0.0
  %1099 = vmatpush2.msra.mxu0 0.0
  %1100 = vmatprep.subr.mxu0 0.0
  %1101 = vmatpush2.msra.mxu0 0.0
  %1102 = vmatprep.subr.mxu0 0.0
  %1103 = vmatpush2.msra.mxu0 0.0
  %1104 = vmatprep.subr.mxu0 0.0
  %1105 = vmatpush2.msra.mxu0 0.0
  %1106 = vmatprep.subr.mxu0 0.0
  %1107 = vmatpush2.msra.mxu0 0.0
  %1108 = vmatprep.subr.mxu0 0.0
  %1109 = vmatpush2.msra.mxu0 0.0
  %1110 = vmatprep.subr.mxu0 0.0
  %1111 = vmatpush2.msra.mxu0 0.0
  %1112 = vmatprep.mubr.f32.mxu0 0.0
  %1113 = vmatmul.mubr.f32.gmra.mxu0 %v162
  %v1114 = vpop.f32.mrf.mxu0
  %v1115 = vadd.f32 0.0, %v1114
  %v1116 = vpop.f32.mrf.mxu0
  %v1117 = vadd.f32 0.0, %v1116
  %1118 = vdwg.mxu0
  %1119 = vmatprep.subr.mxu0 0.0
  %1120 = vmatpush1.msra.mxu0 0.0
  %1121 = vmatprep.subr.mxu0 0.0
  %1122 = vmatpush1.msra.mxu0 0.0
  %1123 = vmatprep.subr.mxu0 0.0
  %1124 = vmatpush1.msra.mxu0 0.0
  %1125 = vmatprep.subr.mxu0 0.0
  %1126 = vmatpush1.msra.mxu0 0.0
  %1127 = vmatprep.subr.mxu0 0.0
  %1128 = vmatpush1.msra.mxu0 0.0
  %1129 = vmatprep.subr.mxu0 0.0
  %1130 = vmatpush1.msra.mxu0 0.0
  %1131 = vmatprep.subr.mxu0 0.0
  %1132 = vmatpush1.msra.mxu0 0.0
  %1133 = vmatprep.subr.mxu0 0.0
  %1134 = vmatpush1.msra.mxu0 0.0
  %1135 = vmatprep.subr.mxu0 0.0
  %1136 = vmatpush1.msra.mxu0 0.0
  %1137 = vmatprep.subr.mxu0 0.0
  %1138 = vmatpush1.msra.mxu0 0.0
  %1139 = vmatprep.subr.mxu0 0.0
  %1140 = vmatpush1.msra.mxu0 0.0
  %1141 = vmatprep.subr.mxu0 0.0
  %1142 = vmatpush1.msra.mxu0 0.0
  %1143 = vmatprep.subr.mxu0 %v241
  %1144 = vmatpush1.msra.mxu0 %v238
  %1145 = vmatprep.subr.mxu0 %v117
  %1146 = vmatpush1.msra.mxu0 %v116
  %1147 = vmatprep.subr.mxu0 %v83
  %1148 = vmatpush1.msra.mxu0 %v82
  %1149 = vmatprep.subr.mxu0 %v49
  %1150 = vmatpush1.msra.mxu0 %v48
  %1151 = vmatprep.subr.mxu0 0.0
  %1152 = vmatpush2.msra.mxu0 0.0
  %1153 = vmatprep.subr.mxu0 0.0
  %1154 = vmatpush2.msra.mxu0 0.0
  %1155 = vmatprep.subr.mxu0 0.0
  %1156 = vmatpush2.msra.mxu0 0.0
  %1157 = vmatprep.subr.mxu0 0.0
  %1158 = vmatpush2.msra.mxu0 0.0
  %1159 = vmatprep.subr.mxu0 0.0
  %1160 = vmatpush2.msra.mxu0 0.0
  %1161 = vmatprep.subr.mxu0 0.0
  %1162 = vmatpush2.msra.mxu0 0.0
  %1163 = vmatprep.subr.mxu0 0.0
  %1164 = vmatpush2.msra.mxu0 0.0
  %1165 = vmatprep.subr.mxu0 0.0
  %1166 = vmatpush2.msra.mxu0 0.0
  %1167 = vmatprep.subr.mxu0 0.0
  %1168 = vmatpush2.msra.mxu0 0.0
  %1169 = vmatprep.subr.mxu0 0.0
  %1170 = vmatpush2.msra.mxu0 0.0
  %1171 = vmatprep.subr.mxu0 0.0
  %1172 = vmatpush2.msra.mxu0 0.0
  %1173 = vmatprep.subr.mxu0 0.0
  %1174 = vmatpush2.msra.mxu0 0.0
  %1175 = vmatprep.subr.mxu0 0.0
  %1176 = vmatpush2.msra.mxu0 0.0
  %1177 = vmatprep.subr.mxu0 0.0
  %1178 = vmatpush2.msra.mxu0 0.0
  %1179 = vmatprep.subr.mxu0 0.0
  %1180 = vmatpush2.msra.mxu0 0.0
  %1181 = vmatprep.subr.mxu0 0.0
  %1182 = vmatpush2.msra.mxu0 0.0
  %1183 = vmatprep.mubr.f32.mxu0 0.0
  %1184 = vmatmul.mubr.f32.gmra.mxu0 %v162
  %v1185 = vpop.f32.mrf.mxu0
  %v1186 = vadd.f32 0.0, %v1185
  %v1187 = vpop.f32.mrf.mxu0
  %v1188 = vadd.f32 0.0, %v1187
  %1189 = vdwg.mxu0
  %1190 = vmatprep.subr.mxu0 0.0
  %1191 = vmatpush1.msra.mxu0 0.0
  %1192 = vmatprep.subr.mxu0 0.0
  %1193 = vmatpush1.msra.mxu0 0.0
  %1194 = vmatprep.subr.mxu0 0.0
  %1195 = vmatpush1.msra.mxu0 0.0
  %1196 = vmatprep.subr.mxu0 0.0
  %1197 = vmatpush1.msra.mxu0 0.0
  %1198 = vmatprep.subr.mxu0 0.0
  %1199 = vmatpush1.msra.mxu0 0.0
  %1200 = vmatprep.subr.mxu0 0.0
  %1201 = vmatpush1.msra.mxu0 0.0
  %1202 = vmatprep.subr.mxu0 0.0
  %1203 = vmatpush1.msra.mxu0 0.0
  %1204 = vmatprep.subr.mxu0 0.0
  %1205 = vmatpush1.msra.mxu0 0.0
  %1206 = vmatprep.subr.mxu0 0.0
  %1207 = vmatpush1.msra.mxu0 0.0
  %1208 = vmatprep.subr.mxu0 0.0
  %1209 = vmatpush1.msra.mxu0 0.0
  %1210 = vmatprep.subr.mxu0 0.0
  %1211 = vmatpush1.msra.mxu0 0.0
  %1212 = vmatprep.subr.mxu0 0.0
  %1213 = vmatpush1.msra.mxu0 0.0
  %1214 = vmatprep.subr.mxu0 %v247
  %1215 = vmatpush1.msra.mxu0 %v244
  %1216 = vmatprep.subr.mxu0 %v119
  %1217 = vmatpush1.msra.mxu0 %v118
  %1218 = vmatprep.subr.mxu0 %v85
  %1219 = vmatpush1.msra.mxu0 %v84
  %1220 = vmatprep.subr.mxu0 %v51
  %1221 = vmatpush1.msra.mxu0 %v50
  %1222 = vmatprep.subr.mxu0 0.0
  %1223 = vmatpush2.msra.mxu0 0.0
  %1224 = vmatprep.subr.mxu0 0.0
  %1225 = vmatpush2.msra.mxu0 0.0
  %1226 = vmatprep.subr.mxu0 0.0
  %1227 = vmatpush2.msra.mxu0 0.0
  %1228 = vmatprep.subr.mxu0 0.0
  %1229 = vmatpush2.msra.mxu0 0.0
  %1230 = vmatprep.subr.mxu0 0.0
  %1231 = vmatpush2.msra.mxu0 0.0
  %1232 = vmatprep.subr.mxu0 0.0
  %1233 = vmatpush2.msra.mxu0 0.0
  %1234 = vmatprep.subr.mxu0 0.0
  %1235 = vmatpush2.msra.mxu0 0.0
  %1236 = vmatprep.subr.mxu0 0.0
  %1237 = vmatpush2.msra.mxu0 0.0
  %1238 = vmatprep.subr.mxu0 0.0
  %1239 = vmatpush2.msra.mxu0 0.0
  %1240 = vmatprep.subr.mxu0 0.0
  %1241 = vmatpush2.msra.mxu0 0.0
  %1242 = vmatprep.subr.mxu0 0.0
  %1243 = vmatpush2.msra.mxu0 0.0
  %1244 = vmatprep.subr.mxu0 0.0
  %1245 = vmatpush2.msra.mxu0 0.0
  %1246 = vmatprep.subr.mxu0 0.0
  %1247 = vmatpush2.msra.mxu0 0.0
  %1248 = vmatprep.subr.mxu0 0.0
  %1249 = vmatpush2.msra.mxu0 0.0
  %1250 = vmatprep.subr.mxu0 0.0
  %1251 = vmatpush2.msra.mxu0 0.0
  %1252 = vmatprep.subr.mxu0 0.0
  %1253 = vmatpush2.msra.mxu0 0.0
  %1254 = vmatprep.mubr.f32.mxu0 0.0
  %1255 = vmatmul.mubr.f32.gmra.mxu0 %v162
  %v1256 = vpop.f32.mrf.mxu0
  %v1257 = vadd.f32 0.0, %v1256
  %v1258 = vpop.f32.mrf.mxu0
  %v1259 = vadd.f32 0.0, %v1258
  %1260 = vdwg.mxu0
  %1261 = vmatprep.subr.mxu0 0.0
  %1262 = vmatpush1.msra.mxu0 0.0
  %1263 = vmatprep.subr.mxu0 0.0
  %1264 = vmatpush1.msra.mxu0 0.0
  %1265 = vmatprep.subr.mxu0 0.0
  %1266 = vmatpush1.msra.mxu0 0.0
  %1267 = vmatprep.subr.mxu0 0.0
  %1268 = vmatpush1.msra.mxu0 0.0
  %1269 = vmatprep.subr.mxu0 0.0
  %1270 = vmatpush1.msra.mxu0 0.0
  %1271 = vmatprep.subr.mxu0 0.0
  %1272 = vmatpush1.msra.mxu0 0.0
  %1273 = vmatprep.subr.mxu0 0.0
  %1274 = vmatpush1.msra.mxu0 0.0
  %1275 = vmatprep.subr.mxu0 0.0
  %1276 = vmatpush1.msra.mxu0 0.0
  %1277 = vmatprep.subr.mxu0 0.0
  %1278 = vmatpush1.msra.mxu0 0.0
  %1279 = vmatprep.subr.mxu0 0.0
  %1280 = vmatpush1.msra.mxu0 0.0
  %1281 = vmatprep.subr.mxu0 0.0
  %1282 = vmatpush1.msra.mxu0 0.0
  %1283 = vmatprep.subr.mxu0 0.0
  %1284 = vmatpush1.msra.mxu0 0.0
  %1285 = vmatprep.subr.mxu0 %v253
  %1286 = vmatpush1.msra.mxu0 %v250
  %1287 = vmatprep.subr.mxu0 %v121
  %1288 = vmatpush1.msra.mxu0 %v120
  %1289 = vmatprep.subr.mxu0 %v87
  %1290 = vmatpush1.msra.mxu0 %v86
  %1291 = vmatprep.subr.mxu0 %v53
  %1292 = vmatpush1.msra.mxu0 %v52
  %1293 = vmatprep.subr.mxu0 0.0
  %1294 = vmatpush2.msra.mxu0 0.0
  %1295 = vmatprep.subr.mxu0 0.0
  %1296 = vmatpush2.msra.mxu0 0.0
  %1297 = vmatprep.subr.mxu0 0.0
  %1298 = vmatpush2.msra.mxu0 0.0
  %1299 = vmatprep.subr.mxu0 0.0
  %1300 = vmatpush2.msra.mxu0 0.0
  %1301 = vmatprep.subr.mxu0 0.0
  %1302 = vmatpush2.msra.mxu0 0.0
  %1303 = vmatprep.subr.mxu0 0.0
  %1304 = vmatpush2.msra.mxu0 0.0
  %1305 = vmatprep.subr.mxu0 0.0
  %1306 = vmatpush2.msra.mxu0 0.0
  %1307 = vmatprep.subr.mxu0 0.0
  %1308 = vmatpush2.msra.mxu0 0.0
  %1309 = vmatprep.subr.mxu0 0.0
  %1310 = vmatpush2.msra.mxu0 0.0
  %1311 = vmatprep.subr.mxu0 0.0
  %1312 = vmatpush2.msra.mxu0 0.0
  %1313 = vmatprep.subr.mxu0 0.0
  %1314 = vmatpush2.msra.mxu0 0.0
  %1315 = vmatprep.subr.mxu0 0.0
  %1316 = vmatpush2.msra.mxu0 0.0
  %1317 = vmatprep.subr.mxu0 0.0
  %1318 = vmatpush2.msra.mxu0 0.0
  %1319 = vmatprep.subr.mxu0 0.0
  %1320 = vmatpush2.msra.mxu0 0.0
  %1321 = vmatprep.subr.mxu0 0.0
  %1322 = vmatpush2.msra.mxu0 0.0
  %1323 = vmatprep.subr.mxu0 0.0
  %1324 = vmatpush2.msra.mxu0 0.0
  %1325 = vmatprep.mubr.f32.mxu0 0.0
  %1326 = vmatmul.mubr.f32.gmra.mxu0 %v162
  %v1327 = vpop.f32.mrf.mxu0
  %v1328 = vadd.f32 0.0, %v1327
  %v1329 = vpop.f32.mrf.mxu0
  %v1330 = vadd.f32 0.0, %v1329
  %1331 = vdwg.mxu0
  %1332 = vmatprep.subr.mxu0 0.0
  %1333 = vmatpush1.msra.mxu0 0.0
  %1334 = vmatprep.subr.mxu0 0.0
  %1335 = vmatpush1.msra.mxu0 0.0
  %1336 = vmatprep.subr.mxu0 0.0
  %1337 = vmatpush1.msra.mxu0 0.0
  %1338 = vmatprep.subr.mxu0 0.0
  %1339 = vmatpush1.msra.mxu0 0.0
  %1340 = vmatprep.subr.mxu0 0.0
  %1341 = vmatpush1.msra.mxu0 0.0
  %1342 = vmatprep.subr.mxu0 0.0
  %1343 = vmatpush1.msra.mxu0 0.0
  %1344 = vmatprep.subr.mxu0 0.0
  %1345 = vmatpush1.msra.mxu0 0.0
  %1346 = vmatprep.subr.mxu0 0.0
  %1347 = vmatpush1.msra.mxu0 0.0
  %1348 = vmatprep.subr.mxu0 0.0
  %1349 = vmatpush1.msra.mxu0 0.0
  %1350 = vmatprep.subr.mxu0 0.0
  %1351 = vmatpush1.msra.mxu0 0.0
  %1352 = vmatprep.subr.mxu0 0.0
  %1353 = vmatpush1.msra.mxu0 0.0
  %1354 = vmatprep.subr.mxu0 0.0
  %1355 = vmatpush1.msra.mxu0 0.0
  %1356 = vmatprep.subr.mxu0 %v259
  %1357 = vmatpush1.msra.mxu0 %v256
  %1358 = vmatprep.subr.mxu0 %v123
  %1359 = vmatpush1.msra.mxu0 %v122
  %1360 = vmatprep.subr.mxu0 %v89
  %1361 = vmatpush1.msra.mxu0 %v88
  %1362 = vmatprep.subr.mxu0 %v55
  %1363 = vmatpush1.msra.mxu0 %v54
  %1364 = vmatprep.subr.mxu0 0.0
  %1365 = vmatpush2.msra.mxu0 0.0
  %1366 = vmatprep.subr.mxu0 0.0
  %1367 = vmatpush2.msra.mxu0 0.0
  %1368 = vmatprep.subr.mxu0 0.0
  %1369 = vmatpush2.msra.mxu0 0.0
  %1370 = vmatprep.subr.mxu0 0.0
  %1371 = vmatpush2.msra.mxu0 0.0
  %1372 = vmatprep.subr.mxu0 0.0
  %1373 = vmatpush2.msra.mxu0 0.0
  %1374 = vmatprep.subr.mxu0 0.0
  %1375 = vmatpush2.msra.mxu0 0.0
  %1376 = vmatprep.subr.mxu0 0.0
  %1377 = vmatpush2.msra.mxu0 0.0
  %1378 = vmatprep.subr.mxu0 0.0
  %1379 = vmatpush2.msra.mxu0 0.0
  %1380 = vmatprep.subr.mxu0 0.0
  %1381 = vmatpush2.msra.mxu0 0.0
  %1382 = vmatprep.subr.mxu0 0.0
  %1383 = vmatpush2.msra.mxu0 0.0
  %1384 = vmatprep.subr.mxu0 0.0
  %1385 = vmatpush2.msra.mxu0 0.0
  %1386 = vmatprep.subr.mxu0 0.0
  %1387 = vmatpush2.msra.mxu0 0.0
  %1388 = vmatprep.subr.mxu0 0.0
  %1389 = vmatpush2.msra.mxu0 0.0
  %1390 = vmatprep.subr.mxu0 0.0
  %1391 = vmatpush2.msra.mxu0 0.0
  %1392 = vmatprep.subr.mxu0 0.0
  %1393 = vmatpush2.msra.mxu0 0.0
  %1394 = vmatprep.subr.mxu0 0.0
  %1395 = vmatpush2.msra.mxu0 0.0
  %1396 = vmatprep.mubr.f32.mxu0 0.0
  %1397 = vmatmul.mubr.f32.gmra.mxu0 %v162
  %v1398 = vpop.f32.mrf.mxu0
  %v1399 = vadd.f32 0.0, %v1398
  %v1400 = vpop.f32.mrf.mxu0
  %v1401 = vadd.f32 0.0, %v1400
  %1402 = vdwg.mxu0
  %1403 = vmatprep.subr.mxu0 0.0
  %1404 = vmatpush1.msra.mxu0 0.0
  %1405 = vmatprep.subr.mxu0 0.0
  %1406 = vmatpush1.msra.mxu0 0.0
  %1407 = vmatprep.subr.mxu0 0.0
  %1408 = vmatpush1.msra.mxu0 0.0
  %1409 = vmatprep.subr.mxu0 0.0
  %1410 = vmatpush1.msra.mxu0 0.0
  %1411 = vmatprep.subr.mxu0 0.0
  %1412 = vmatpush1.msra.mxu0 0.0
  %1413 = vmatprep.subr.mxu0 0.0
  %1414 = vmatpush1.msra.mxu0 0.0
  %1415 = vmatprep.subr.mxu0 0.0
  %1416 = vmatpush1.msra.mxu0 0.0
  %1417 = vmatprep.subr.mxu0 0.0
  %1418 = vmatpush1.msra.mxu0 0.0
  %1419 = vmatprep.subr.mxu0 0.0
  %1420 = vmatpush1.msra.mxu0 0.0
  %1421 = vmatprep.subr.mxu0 0.0
  %1422 = vmatpush1.msra.mxu0 0.0
  %1423 = vmatprep.subr.mxu0 0.0
  %1424 = vmatpush1.msra.mxu0 0.0
  %1425 = vmatprep.subr.mxu0 0.0
  %1426 = vmatpush1.msra.mxu0 0.0
  %1427 = vmatprep.subr.mxu0 %v265
  %1428 = vmatpush1.msra.mxu0 %v262
  %1429 = vmatprep.subr.mxu0 %v125
  %1430 = vmatpush1.msra.mxu0 %v124
  %1431 = vmatprep.subr.mxu0 %v91
  %1432 = vmatpush1.msra.mxu0 %v90
  %1433 = vmatprep.subr.mxu0 %v57
  %1434 = vmatpush1.msra.mxu0 %v56
  %1435 = vmatprep.subr.mxu0 0.0
  %1436 = vmatpush2.msra.mxu0 0.0
  %1437 = vmatprep.subr.mxu0 0.0
  %1438 = vmatpush2.msra.mxu0 0.0
  %1439 = vmatprep.subr.mxu0 0.0
  %1440 = vmatpush2.msra.mxu0 0.0
  %1441 = vmatprep.subr.mxu0 0.0
  %1442 = vmatpush2.msra.mxu0 0.0
  %1443 = vmatprep.subr.mxu0 0.0
  %1444 = vmatpush2.msra.mxu0 0.0
  %1445 = vmatprep.subr.mxu0 0.0
  %1446 = vmatpush2.msra.mxu0 0.0
  %1447 = vmatprep.subr.mxu0 0.0
  %1448 = vmatpush2.msra.mxu0 0.0
  %1449 = vmatprep.subr.mxu0 0.0
  %1450 = vmatpush2.msra.mxu0 0.0
  %1451 = vmatprep.subr.mxu0 0.0
  %1452 = vmatpush2.msra.mxu0 0.0
  %1453 = vmatprep.subr.mxu0 0.0
  %1454 = vmatpush2.msra.mxu0 0.0
  %1455 = vmatprep.subr.mxu0 0.0
  %1456 = vmatpush2.msra.mxu0 0.0
  %1457 = vmatprep.subr.mxu0 0.0
  %1458 = vmatpush2.msra.mxu0 0.0
  %1459 = vmatprep.subr.mxu0 0.0
  %1460 = vmatpush2.msra.mxu0 0.0
  %1461 = vmatprep.subr.mxu0 0.0
  %1462 = vmatpush2.msra.mxu0 0.0
  %1463 = vmatprep.subr.mxu0 0.0
  %1464 = vmatpush2.msra.mxu0 0.0
  %1465 = vmatprep.subr.mxu0 0.0
  %1466 = vmatpush2.msra.mxu0 0.0
  %1467 = vmatprep.mubr.f32.mxu0 0.0
  %1468 = vmatmul.mubr.f32.gmra.mxu0 %v162
  %v1469 = vpop.f32.mrf.mxu0
  %v1470 = vadd.f32 0.0, %v1469
  %v1471 = vpop.f32.mrf.mxu0
  %v1472 = vadd.f32 0.0, %v1471
  %1473 = vdwg.mxu0
  %v1474 = vld [vmem:[%s1] sm:$0xff]
  %v1475 = vld [vmem:[%s1 + $0x8] sm:$0xff]
  %v1476 = vld [vmem:[%s1 + $0x10] sm:$0xff]
  %v1477 = vld [vmem:[%s1 + $0x18] sm:$0xff]
  %v1478 = vld [vmem:[%s1 + $0x20] sm:$0xff]
  %v1479 = vld [vmem:[%s1 + $0x28] sm:$0xff]
  %v1480 = vld [vmem:[%s1 + $0x30] sm:$0xff]
  %v1481 = vld [vmem:[%s1 + $0x38] sm:$0xff]
  %v1482 = vld [vmem:[%s1 + $0x40] sm:$0xff]
  %v1483 = vld [vmem:[%s1 + $0x48] sm:$0xff]
  %v1484 = vld [vmem:[%s1 + $0x50] sm:$0xff]
  %v1485 = vld [vmem:[%s1 + $0x58] sm:$0xff]
  %v1486 = vld [vmem:[%s1 + $0x60] sm:$0xff]
  %v1487 = vld [vmem:[%s1 + $0x68] sm:$0xff]
  %v1488 = vld [vmem:[%s1 + $0x70] sm:$0xff]
  %v1489 = vld [vmem:[%s1 + $0x78] sm:$0xff]
  %v1490 = vld [vmem:[%s1 + $0x80] sm:$0xff]
  %v1491 = vld [vmem:[%s1 + $0x88] sm:$0xff]
  %v1492 = vld [vmem:[%s1 + $0x90] sm:$0xff]
  %v1493 = vld [vmem:[%s1 + $0x98] sm:$0xff]
  %v1494 = vld [vmem:[%s1 + $0xa0] sm:$0xff]
  %v1495 = vld [vmem:[%s1 + $0xa8] sm:$0xff]
  %v1496 = vld [vmem:[%s1 + $0xb0] sm:$0xff]
  %v1497 = vld [vmem:[%s1 + $0xb8] sm:$0xff]
  %v1498 = vld [vmem:[%s1 + $0xc0] sm:$0xff]
  %v1499 = vld [vmem:[%s1 + $0xc8] sm:$0xff]
  %v1500 = vld [vmem:[%s1 + $0xd0] sm:$0xff]
  %v1501 = vld [vmem:[%s1 + $0xd8] sm:$0xff]
  %v1502 = vld [vmem:[%s1 + $0xe0] sm:$0xff]
  %v1503 = vld [vmem:[%s1 + $0xe8] sm:$0xff]
  %v1504 = vld [vmem:[%s1 + $0xf0] sm:$0xff]
  %v1505 = vld [vmem:[%s1 + $0xf8] sm:$0xff]
  %v1506 = vld [vmem:[%s1 + $0x100] sm:$0xff]
  %v1507 = vld [vmem:[%s1 + $0x108] sm:$0xff]
  %v1508 = vld [vmem:[%s1 + $0x110] sm:$0xff]
  %v1509 = vld [vmem:[%s1 + $0x118] sm:$0xff]
  %v1510 = vld [vmem:[%s1 + $0x120] sm:$0xff]
  %v1511 = vld [vmem:[%s1 + $0x128] sm:$0xff]
  %v1512 = vld [vmem:[%s1 + $0x130] sm:$0xff]
  %v1513 = vld [vmem:[%s1 + $0x138] sm:$0xff]
  %v1514 = vld [vmem:[%s1 + $0x140] sm:$0xff]
  %v1515 = vld [vmem:[%s1 + $0x148] sm:$0xff]
  %v1516 = vld [vmem:[%s1 + $0x150] sm:$0xff]
  %v1517 = vld [vmem:[%s1 + $0x158] sm:$0xff]
  %v1518 = vld [vmem:[%s1 + $0x160] sm:$0xff]
  %v1519 = vld [vmem:[%s1 + $0x168] sm:$0xff]
  %v1520 = vld [vmem:[%s1 + $0x170] sm:$0xff]
  %v1521 = vld [vmem:[%s1 + $0x178] sm:$0xff]
  %v1522 = vld [vmem:[%s1 + $0x180] sm:$0xff]
  %v1523 = vld [vmem:[%s1 + $0x188] sm:$0xff]
  %v1524 = vld [vmem:[%s1 + $0x190] sm:$0xff]
  %v1525 = vld [vmem:[%s1 + $0x198] sm:$0xff]
  %v1526 = vld [vmem:[%s1 + $0x1a0] sm:$0xff]
  %v1527 = vld [vmem:[%s1 + $0x1a8] sm:$0xff]
  %v1528 = vld [vmem:[%s1 + $0x1b0] sm:$0xff]
  %v1529 = vld [vmem:[%s1 + $0x1b8] sm:$0xff]
  %v1530 = vld [vmem:[%s1 + $0x1c0] sm:$0xff]
  %v1531 = vld [vmem:[%s1 + $0x1c8] sm:$0xff]
  %v1532 = vld [vmem:[%s1 + $0x1d0] sm:$0xff]
  %v1533 = vld [vmem:[%s1 + $0x1d8] sm:$0xff]
  %v1534 = vld [vmem:[%s1 + $0x1e0] sm:$0xff]
  %v1535 = vld [vmem:[%s1 + $0x1e8] sm:$0xff]
  %v1536 = vld [vmem:[%s1 + $0x1f0] sm:$0xff]
  %v1537 = vld [vmem:[%s1 + $0x1f8] sm:$0xff]
  %v1538 = vld [vmem:[%s1 + $0x200] sm:$0xff]
  %v1539 = vld [vmem:[%s1 + $0x208] sm:$0xff]
  %v1540 = vld [vmem:[%s1 + $0x210] sm:$0xff]
  %v1541 = vld [vmem:[%s1 + $0x218] sm:$0xff]
  %v1542 = vld [vmem:[%s1 + $0x220] sm:$0xff]
  %v1543 = vld [vmem:[%s1 + $0x228] sm:$0xff]
  %v1544 = vld [vmem:[%s1 + $0x230] sm:$0xff]
  %v1545 = vld [vmem:[%s1 + $0x238] sm:$0xff]
  %v1546 = vld [vmem:[%s1 + $0x240] sm:$0xff]
  %v1547 = vld [vmem:[%s1 + $0x248] sm:$0xff]
  %v1548 = vld [vmem:[%s1 + $0x250] sm:$0xff]
  %v1549 = vld [vmem:[%s1 + $0x258] sm:$0xff]
  %v1550 = vld [vmem:[%s1 + $0x260] sm:$0xff]
  %v1551 = vld [vmem:[%s1 + $0x268] sm:$0xff]
  %v1552 = vld [vmem:[%s1 + $0x270] sm:$0xff]
  %v1553 = vld [vmem:[%s1 + $0x278] sm:$0xff]
  %v1554 = vld [vmem:[%s1 + $0x280] sm:$0xff]
  %v1555 = vld [vmem:[%s1 + $0x288] sm:$0xff]
  %v1556 = vld [vmem:[%s1 + $0x290] sm:$0xff]
  %v1557 = vld [vmem:[%s1 + $0x298] sm:$0xff]
  %v1558 = vld [vmem:[%s1 + $0x2a0] sm:$0xff]
  %v1559 = vld [vmem:[%s1 + $0x2a8] sm:$0xff]
  %v1560 = vld [vmem:[%s1 + $0x2b0] sm:$0xff]
  %v1561 = vld [vmem:[%s1 + $0x2b8] sm:$0xff]
  %v1562 = vld [vmem:[%s1 + $0x2c0] sm:$0xff]
  %v1563 = vld [vmem:[%s1 + $0x2c8] sm:$0xff]
  %v1564 = vld [vmem:[%s1 + $0x2d0] sm:$0xff]
  %v1565 = vld [vmem:[%s1 + $0x2d8] sm:$0xff]
  %v1566 = vld [vmem:[%s1 + $0x2e0] sm:$0xff]
  %v1567 = vld [vmem:[%s1 + $0x2e8] sm:$0xff]
  %v1568 = vld [vmem:[%s1 + $0x2f0] sm:$0xff]
  %v1569 = vld [vmem:[%s1 + $0x2f8] sm:$0xff]
  %v1570 = vld [vmem:[%s1 + $0x300] sm:$0xff]
  %v1571 = vld [vmem:[%s1 + $0x308] sm:$0xff]
  %v1572 = vld [vmem:[%s1 + $0x310] sm:$0xff]
  %v1573 = vld [vmem:[%s1 + $0x318] sm:$0xff]
  %v1574 = vld [vmem:[%s1 + $0x320] sm:$0xff]
  %v1575 = vld [vmem:[%s1 + $0x328] sm:$0xff]
  %v1576 = vld [vmem:[%s1 + $0x330] sm:$0x1]
  %v1577 = vld [vmem:[%s1 + $0x338] sm:$0x1]
  %v1578 = vld [vmem:[%s1 + $0x340] sm:$0x1]
  %v1579 = vld [vmem:[%s1 + $0x348] sm:$0x1]
  %v1580 = vld [vmem:[%s1 + $0x350] sm:$0x1]
  %v1581 = vld [vmem:[%s1 + $0x358] sm:$0x1]
  %v1582 = vld [vmem:[%s1 + $0x360] sm:$0x1]
  %v1583 = vld [vmem:[%s1 + $0x368] sm:$0x1]
  %v1584 = vld [vmem:[%s1 + $0x370] sm:$0x1]
  %v1585 = vld [vmem:[%s1 + $0x378] sm:$0x1]
  %v1586 = vld [vmem:[%s1 + $0x380] sm:$0x1]
  %v1587 = vld [vmem:[%s1 + $0x388] sm:$0x1]
  %v1588 = vld [vmem:[%s1 + $0x390] sm:$0x1]
  %v1589 = vld [vmem:[%s1 + $0x398] sm:$0x1]
  %v1590 = vld [vmem:[%s1 + $0x3a0] sm:$0x1]
  %v1591 = vld [vmem:[%s1 + $0x3a8] sm:$0x1]
  %v1592 = vld [vmem:[%s1 + $0x3b0] sm:$0x1]
  %v1593 = vld [vmem:[%s1 + $0x3b8] sm:$0x1]
  %v1594 = vld [vmem:[%s1 + $0x3c0] sm:$0x1]
  %v1595 = vld [vmem:[%s1 + $0x3c8] sm:$0x1]
  %v1596 = vld [vmem:[%s1 + $0x3d0] sm:$0x1]
  %v1597 = vld [vmem:[%s1 + $0x3d8] sm:$0x1]
  %v1598 = vld [vmem:[%s1 + $0x3e0] sm:$0x1]
  %v1599 = vld [vmem:[%s1 + $0x3e8] sm:$0x1]
  %v1600 = vld [vmem:[%s1 + $0x3f0] sm:$0x1]
  %v1601 = vld [vmem:[%s1 + $0x3f8] sm:$0x1]
  %v1602 = vld [vmem:[%s1 + $0x400] sm:$0x1]
  %v1603 = vld [vmem:[%s1 + $0x408] sm:$0x1]
  %v1604 = vld [vmem:[%s1 + $0x410] sm:$0x1]
  %v1605 = vld [vmem:[%s1 + $0x418] sm:$0x1]
  %v1606 = vld [vmem:[%s1 + $0x420] sm:$0x1]
  %v1607 = vld [vmem:[%s1 + $0x428] sm:$0x1]
  %v1608 = vld [vmem:[%s1 + $0x430] sm:$0x1]
  %v1609 = vld [vmem:[%s1 + $0x438] sm:$0x1]
  %v1611 = vsel %vm164, %v1576, 0
  %v1614 = vsel %vm164, %v1577, 0
  %v1617 = vsel %vm164, %v1578, 0
  %v1620 = vsel %vm164, %v1579, 0
  %v1623 = vsel %vm164, %v1580, 0
  %v1626 = vsel %vm164, %v1581, 0
  %v1629 = vsel %vm164, %v1582, 0
  %v1632 = vsel %vm164, %v1583, 0
  %v1635 = vsel %vm164, %v1584, 0
  %v1638 = vsel %vm164, %v1585, 0
  %v1641 = vsel %vm164, %v1586, 0
  %v1644 = vsel %vm164, %v1587, 0
  %v1647 = vsel %vm164, %v1588, 0
  %v1650 = vsel %vm164, %v1589, 0
  %v1653 = vsel %vm164, %v1590, 0
  %v1656 = vsel %vm164, %v1591, 0
  %v1659 = vsel %vm164, %v1592, 0
  %v1662 = vsel %vm164, %v1593, 0
  %v1665 = vsel %vm164, %v1594, 0
  %v1668 = vsel %vm164, %v1595, 0
  %v1671 = vsel %vm164, %v1596, 0
  %v1674 = vsel %vm164, %v1597, 0
  %v1677 = vsel %vm164, %v1598, 0
  %v1680 = vsel %vm164, %v1599, 0
  %v1683 = vsel %vm164, %v1600, 0
  %v1686 = vsel %vm164, %v1601, 0
  %v1689 = vsel %vm164, %v1602, 0
  %v1692 = vsel %vm164, %v1603, 0
  %v1695 = vsel %vm164, %v1604, 0
  %v1698 = vsel %vm164, %v1605, 0
  %v1701 = vsel %vm164, %v1606, 0
  %v1704 = vsel %vm164, %v1607, 0
  %v1707 = vsel %vm164, %v1608, 0
  %v1710 = vsel %vm164, %v1609, 0
  %1712 = vmatprep.subr.mxu0 0.0
  %1713 = vmatpush1.msra.mxu0 0.0
  %1714 = vmatprep.subr.mxu0 0.0
  %1715 = vmatpush1.msra.mxu0 0.0
  %1716 = vmatprep.subr.mxu0 0.0
  %1717 = vmatpush1.msra.mxu0 0.0
  %1718 = vmatprep.subr.mxu0 0.0
  %1719 = vmatpush1.msra.mxu0 0.0
  %1720 = vmatprep.subr.mxu0 0.0
  %1721 = vmatpush1.msra.mxu0 0.0
  %1722 = vmatprep.subr.mxu0 0.0
  %1723 = vmatpush1.msra.mxu0 0.0
  %1724 = vmatprep.subr.mxu0 0.0
  %1725 = vmatpush1.msra.mxu0 0.0
  %1726 = vmatprep.subr.mxu0 0.0
  %1727 = vmatpush1.msra.mxu0 0.0
  %1728 = vmatprep.subr.mxu0 0.0
  %1729 = vmatpush1.msra.mxu0 0.0
  %1730 = vmatprep.subr.mxu0 0.0
  %1731 = vmatpush1.msra.mxu0 0.0
  %1732 = vmatprep.subr.mxu0 0.0
  %1733 = vmatpush1.msra.mxu0 0.0
  %1734 = vmatprep.subr.mxu0 0.0
  %1735 = vmatpush1.msra.mxu0 0.0
  %1736 = vmatprep.subr.mxu0 %v1614
  %1737 = vmatpush1.msra.mxu0 %v1611
  %1738 = vmatprep.subr.mxu0 %v1543
  %1739 = vmatpush1.msra.mxu0 %v1542
  %1740 = vmatprep.subr.mxu0 %v1509
  %1741 = vmatpush1.msra.mxu0 %v1508
  %1742 = vmatprep.subr.mxu0 %v1475
  %1743 = vmatpush1.msra.mxu0 %v1474
  %1744 = vmatprep.subr.mxu0 0.0
  %1745 = vmatpush2.msra.mxu0 0.0
  %1746 = vmatprep.subr.mxu0 0.0
  %1747 = vmatpush2.msra.mxu0 0.0
  %1748 = vmatprep.subr.mxu0 0.0
  %1749 = vmatpush2.msra.mxu0 0.0
  %1750 = vmatprep.subr.mxu0 0.0
  %1751 = vmatpush2.msra.mxu0 0.0
  %1752 = vmatprep.subr.mxu0 0.0
  %1753 = vmatpush2.msra.mxu0 0.0
  %1754 = vmatprep.subr.mxu0 0.0
  %1755 = vmatpush2.msra.mxu0 0.0
  %1756 = vmatprep.subr.mxu0 0.0
  %1757 = vmatpush2.msra.mxu0 0.0
  %1758 = vmatprep.subr.mxu0 0.0
  %1759 = vmatpush2.msra.mxu0 0.0
  %1760 = vmatprep.subr.mxu0 0.0
  %1761 = vmatpush2.msra.mxu0 0.0
  %1762 = vmatprep.subr.mxu0 0.0
  %1763 = vmatpush2.msra.mxu0 0.0
  %1764 = vmatprep.subr.mxu0 0.0
  %1765 = vmatpush2.msra.mxu0 0.0
  %1766 = vmatprep.subr.mxu0 0.0
  %1767 = vmatpush2.msra.mxu0 0.0
  %1768 = vmatprep.subr.mxu0 0.0
  %1769 = vmatpush2.msra.mxu0 0.0
  %1770 = vmatprep.subr.mxu0 0.0
  %1771 = vmatpush2.msra.mxu0 0.0
  %1772 = vmatprep.subr.mxu0 0.0
  %1773 = vmatpush2.msra.mxu0 0.0
  %1774 = vmatprep.subr.mxu0 0.0
  %1775 = vmatpush2.msra.mxu0 0.0
  %1776 = vmatprep.mubr.f32.mxu0 0.0
  %1777 = vmatmul.mubr.f32.gmra.mxu0 %v162
  %v1778 = vpop.f32.mrf.mxu0
  %v1779 = vadd.f32 0.0, %v1778
  %v1780 = vpop.f32.mrf.mxu0
  %v1781 = vadd.f32 0.0, %v1780
  %1782 = vdwg.mxu0
  %1783 = vmatprep.subr.mxu0 0.0
  %1784 = vmatpush1.msra.mxu0 0.0
  %1785 = vmatprep.subr.mxu0 0.0
  %1786 = vmatpush1.msra.mxu0 0.0
  %1787 = vmatprep.subr.mxu0 0.0
  %1788 = vmatpush1.msra.mxu0 0.0
  %1789 = vmatprep.subr.mxu0 0.0
  %1790 = vmatpush1.msra.mxu0 0.0
  %1791 = vmatprep.subr.mxu0 0.0
  %1792 = vmatpush1.msra.mxu0 0.0
  %1793 = vmatprep.subr.mxu0 0.0
  %1794 = vmatpush1.msra.mxu0 0.0
  %1795 = vmatprep.subr.mxu0 0.0
  %1796 = vmatpush1.msra.mxu0 0.0
  %1797 = vmatprep.subr.mxu0 0.0
  %1798 = vmatpush1.msra.mxu0 0.0
  %1799 = vmatprep.subr.mxu0 0.0
  %1800 = vmatpush1.msra.mxu0 0.0
  %1801 = vmatprep.subr.mxu0 0.0
  %1802 = vmatpush1.msra.mxu0 0.0
  %1803 = vmatprep.subr.mxu0 0.0
  %1804 = vmatpush1.msra.mxu0 0.0
  %1805 = vmatprep.subr.mxu0 0.0
  %1806 = vmatpush1.msra.mxu0 0.0
  %1807 = vmatprep.subr.mxu0 %v1620
  %1808 = vmatpush1.msra.mxu0 %v1617
  %1809 = vmatprep.subr.mxu0 %v1545
  %1810 = vmatpush1.msra.mxu0 %v1544
  %1811 = vmatprep.subr.mxu0 %v1511
  %1812 = vmatpush1.msra.mxu0 %v1510
  %1813 = vmatprep.subr.mxu0 %v1477
  %1814 = vmatpush1.msra.mxu0 %v1476
  %1815 = vmatprep.subr.mxu0 0.0
  %1816 = vmatpush2.msra.mxu0 0.0
  %1817 = vmatprep.subr.mxu0 0.0
  %1818 = vmatpush2.msra.mxu0 0.0
  %1819 = vmatprep.subr.mxu0 0.0
  %1820 = vmatpush2.msra.mxu0 0.0
  %1821 = vmatprep.subr.mxu0 0.0
  %1822 = vmatpush2.msra.mxu0 0.0
  %1823 = vmatprep.subr.mxu0 0.0
  %1824 = vmatpush2.msra.mxu0 0.0
  %1825 = vmatprep.subr.mxu0 0.0
  %1826 = vmatpush2.msra.mxu0 0.0
  %1827 = vmatprep.subr.mxu0 0.0
  %1828 = vmatpush2.msra.mxu0 0.0
  %1829 = vmatprep.subr.mxu0 0.0
  %1830 = vmatpush2.msra.mxu0 0.0
  %1831 = vmatprep.subr.mxu0 0.0
  %1832 = vmatpush2.msra.mxu0 0.0
  %1833 = vmatprep.subr.mxu0 0.0
  %1834 = vmatpush2.msra.mxu0 0.0
  %1835 = vmatprep.subr.mxu0 0.0
  %1836 = vmatpush2.msra.mxu0 0.0
  %1837 = vmatprep.subr.mxu0 0.0
  %1838 = vmatpush2.msra.mxu0 0.0
  %1839 = vmatprep.subr.mxu0 0.0
  %1840 = vmatpush2.msra.mxu0 0.0
  %1841 = vmatprep.subr.mxu0 0.0
  %1842 = vmatpush2.msra.mxu0 0.0
  %1843 = vmatprep.subr.mxu0 0.0
  %1844 = vmatpush2.msra.mxu0 0.0
  %1845 = vmatprep.subr.mxu0 0.0
  %1846 = vmatpush2.msra.mxu0 0.0
  %1847 = vmatprep.mubr.f32.mxu0 0.0
  %1848 = vmatmul.mubr.f32.gmra.mxu0 %v162
  %v1849 = vpop.f32.mrf.mxu0
  %v1850 = vadd.f32 0.0, %v1849
  %v1851 = vpop.f32.mrf.mxu0
  %v1852 = vadd.f32 0.0, %v1851
  %1853 = vdwg.mxu0
  %1854 = vmatprep.subr.mxu0 0.0
  %1855 = vmatpush1.msra.mxu0 0.0
  %1856 = vmatprep.subr.mxu0 0.0
  %1857 = vmatpush1.msra.mxu0 0.0
  %1858 = vmatprep.subr.mxu0 0.0
  %1859 = vmatpush1.msra.mxu0 0.0
  %1860 = vmatprep.subr.mxu0 0.0
  %1861 = vmatpush1.msra.mxu0 0.0
  %1862 = vmatprep.subr.mxu0 0.0
  %1863 = vmatpush1.msra.mxu0 0.0
  %1864 = vmatprep.subr.mxu0 0.0
  %1865 = vmatpush1.msra.mxu0 0.0
  %1866 = vmatprep.subr.mxu0 0.0
  %1867 = vmatpush1.msra.mxu0 0.0
  %1868 = vmatprep.subr.mxu0 0.0
  %1869 = vmatpush1.msra.mxu0 0.0
  %1870 = vmatprep.subr.mxu0 0.0
  %1871 = vmatpush1.msra.mxu0 0.0
  %1872 = vmatprep.subr.mxu0 0.0
  %1873 = vmatpush1.msra.mxu0 0.0
  %1874 = vmatprep.subr.mxu0 0.0
  %1875 = vmatpush1.msra.mxu0 0.0
  %1876 = vmatprep.subr.mxu0 0.0
  %1877 = vmatpush1.msra.mxu0 0.0
  %1878 = vmatprep.subr.mxu0 %v1626
  %1879 = vmatpush1.msra.mxu0 %v1623
  %1880 = vmatprep.subr.mxu0 %v1547
  %1881 = vmatpush1.msra.mxu0 %v1546
  %1882 = vmatprep.subr.mxu0 %v1513
  %1883 = vmatpush1.msra.mxu0 %v1512
  %1884 = vmatprep.subr.mxu0 %v1479
  %1885 = vmatpush1.msra.mxu0 %v1478
  %1886 = vmatprep.subr.mxu0 0.0
  %1887 = vmatpush2.msra.mxu0 0.0
  %1888 = vmatprep.subr.mxu0 0.0
  %1889 = vmatpush2.msra.mxu0 0.0
  %1890 = vmatprep.subr.mxu0 0.0
  %1891 = vmatpush2.msra.mxu0 0.0
  %1892 = vmatprep.subr.mxu0 0.0
  %1893 = vmatpush2.msra.mxu0 0.0
  %1894 = vmatprep.subr.mxu0 0.0
  %1895 = vmatpush2.msra.mxu0 0.0
  %1896 = vmatprep.subr.mxu0 0.0
  %1897 = vmatpush2.msra.mxu0 0.0
  %1898 = vmatprep.subr.mxu0 0.0
  %1899 = vmatpush2.msra.mxu0 0.0
  %1900 = vmatprep.subr.mxu0 0.0
  %1901 = vmatpush2.msra.mxu0 0.0
  %1902 = vmatprep.subr.mxu0 0.0
  %1903 = vmatpush2.msra.mxu0 0.0
  %1904 = vmatprep.subr.mxu0 0.0
  %1905 = vmatpush2.msra.mxu0 0.0
  %1906 = vmatprep.subr.mxu0 0.0
  %1907 = vmatpush2.msra.mxu0 0.0
  %1908 = vmatprep.subr.mxu0 0.0
  %1909 = vmatpush2.msra.mxu0 0.0
  %1910 = vmatprep.subr.mxu0 0.0
  %1911 = vmatpush2.msra.mxu0 0.0
  %1912 = vmatprep.subr.mxu0 0.0
  %1913 = vmatpush2.msra.mxu0 0.0
  %1914 = vmatprep.subr.mxu0 0.0
  %1915 = vmatpush2.msra.mxu0 0.0
  %1916 = vmatprep.subr.mxu0 0.0
  %1917 = vmatpush2.msra.mxu0 0.0
  %1918 = vmatprep.mubr.f32.mxu0 0.0
  %1919 = vmatmul.mubr.f32.gmra.mxu0 %v162
  %v1920 = vpop.f32.mrf.mxu0
  %v1921 = vadd.f32 0.0, %v1920
  %v1922 = vpop.f32.mrf.mxu0
  %v1923 = vadd.f32 0.0, %v1922
  %1924 = vdwg.mxu0
  %1925 = vmatprep.subr.mxu0 0.0
  %1926 = vmatpush1.msra.mxu0 0.0
  %1927 = vmatprep.subr.mxu0 0.0
  %1928 = vmatpush1.msra.mxu0 0.0
  %1929 = vmatprep.subr.mxu0 0.0
  %1930 = vmatpush1.msra.mxu0 0.0
  %1931 = vmatprep.subr.mxu0 0.0
  %1932 = vmatpush1.msra.mxu0 0.0
  %1933 = vmatprep.subr.mxu0 0.0
  %1934 = vmatpush1.msra.mxu0 0.0
  %1935 = vmatprep.subr.mxu0 0.0
  %1936 = vmatpush1.msra.mxu0 0.0
  %1937 = vmatprep.subr.mxu0 0.0
  %1938 = vmatpush1.msra.mxu0 0.0
  %1939 = vmatprep.subr.mxu0 0.0
  %1940 = vmatpush1.msra.mxu0 0.0
  %1941 = vmatprep.subr.mxu0 0.0
  %1942 = vmatpush1.msra.mxu0 0.0
  %1943 = vmatprep.subr.mxu0 0.0
  %1944 = vmatpush1.msra.mxu0 0.0
  %1945 = vmatprep.subr.mxu0 0.0
  %1946 = vmatpush1.msra.mxu0 0.0
  %1947 = vmatprep.subr.mxu0 0.0
  %1948 = vmatpush1.msra.mxu0 0.0
  %1949 = vmatprep.subr.mxu0 %v1632
  %1950 = vmatpush1.msra.mxu0 %v1629
  %1951 = vmatprep.subr.mxu0 %v1549
  %1952 = vmatpush1.msra.mxu0 %v1548
  %1953 = vmatprep.subr.mxu0 %v1515
  %1954 = vmatpush1.msra.mxu0 %v1514
  %1955 = vmatprep.subr.mxu0 %v1481
  %1956 = vmatpush1.msra.mxu0 %v1480
  %1957 = vmatprep.subr.mxu0 0.0
  %1958 = vmatpush2.msra.mxu0 0.0
  %1959 = vmatprep.subr.mxu0 0.0
  %1960 = vmatpush2.msra.mxu0 0.0
  %1961 = vmatprep.subr.mxu0 0.0
  %1962 = vmatpush2.msra.mxu0 0.0
  %1963 = vmatprep.subr.mxu0 0.0
  %1964 = vmatpush2.msra.mxu0 0.0
  %1965 = vmatprep.subr.mxu0 0.0
  %1966 = vmatpush2.msra.mxu0 0.0
  %1967 = vmatprep.subr.mxu0 0.0
  %1968 = vmatpush2.msra.mxu0 0.0
  %1969 = vmatprep.subr.mxu0 0.0
  %1970 = vmatpush2.msra.mxu0 0.0
  %1971 = vmatprep.subr.mxu0 0.0
  %1972 = vmatpush2.msra.mxu0 0.0
  %1973 = vmatprep.subr.mxu0 0.0
  %1974 = vmatpush2.msra.mxu0 0.0
  %1975 = vmatprep.subr.mxu0 0.0
  %1976 = vmatpush2.msra.mxu0 0.0
  %1977 = vmatprep.subr.mxu0 0.0
  %1978 = vmatpush2.msra.mxu0 0.0
  %1979 = vmatprep.subr.mxu0 0.0
  %1980 = vmatpush2.msra.mxu0 0.0
  %1981 = vmatprep.subr.mxu0 0.0
  %1982 = vmatpush2.msra.mxu0 0.0
  %1983 = vmatprep.subr.mxu0 0.0
  %1984 = vmatpush2.msra.mxu0 0.0
  %1985 = vmatprep.subr.mxu0 0.0
  %1986 = vmatpush2.msra.mxu0 0.0
  %1987 = vmatprep.subr.mxu0 0.0
  %1988 = vmatpush2.msra.mxu0 0.0
  %1989 = vmatprep.mubr.f32.mxu0 0.0
  %1990 = vmatmul.mubr.f32.gmra.mxu0 %v162
  %v1991 = vpop.f32.mrf.mxu0
  %v1992 = vadd.f32 0.0, %v1991
  %v1993 = vpop.f32.mrf.mxu0
  %v1994 = vadd.f32 0.0, %v1993
  %1995 = vdwg.mxu0
  %1996 = vmatprep.subr.mxu0 0.0
  %1997 = vmatpush1.msra.mxu0 0.0
  %1998 = vmatprep.subr.mxu0 0.0
  %1999 = vmatpush1.msra.mxu0 0.0
  %2000 = vmatprep.subr.mxu0 0.0
  %2001 = vmatpush1.msra.mxu0 0.0
  %2002 = vmatprep.subr.mxu0 0.0
  %2003 = vmatpush1.msra.mxu0 0.0
  %2004 = vmatprep.subr.mxu0 0.0
  %2005 = vmatpush1.msra.mxu0 0.0
  %2006 = vmatprep.subr.mxu0 0.0
  %2007 = vmatpush1.msra.mxu0 0.0
  %2008 = vmatprep.subr.mxu0 0.0
  %2009 = vmatpush1.msra.mxu0 0.0
  %2010 = vmatprep.subr.mxu0 0.0
  %2011 = vmatpush1.msra.mxu0 0.0
  %2012 = vmatprep.subr.mxu0 0.0
  %2013 = vmatpush1.msra.mxu0 0.0
  %2014 = vmatprep.subr.mxu0 0.0
  %2015 = vmatpush1.msra.mxu0 0.0
  %2016 = vmatprep.subr.mxu0 0.0
  %2017 = vmatpush1.msra.mxu0 0.0
  %2018 = vmatprep.subr.mxu0 0.0
  %2019 = vmatpush1.msra.mxu0 0.0
  %2020 = vmatprep.subr.mxu0 %v1638
  %2021 = vmatpush1.msra.mxu0 %v1635
  %2022 = vmatprep.subr.mxu0 %v1551
  %2023 = vmatpush1.msra.mxu0 %v1550
  %2024 = vmatprep.subr.mxu0 %v1517
  %2025 = vmatpush1.msra.mxu0 %v1516
  %2026 = vmatprep.subr.mxu0 %v1483
  %2027 = vmatpush1.msra.mxu0 %v1482
  %2028 = vmatprep.subr.mxu0 0.0
  %2029 = vmatpush2.msra.mxu0 0.0
  %2030 = vmatprep.subr.mxu0 0.0
  %2031 = vmatpush2.msra.mxu0 0.0
  %2032 = vmatprep.subr.mxu0 0.0
  %2033 = vmatpush2.msra.mxu0 0.0
  %2034 = vmatprep.subr.mxu0 0.0
  %2035 = vmatpush2.msra.mxu0 0.0
  %2036 = vmatprep.subr.mxu0 0.0
  %2037 = vmatpush2.msra.mxu0 0.0
  %2038 = vmatprep.subr.mxu0 0.0
  %2039 = vmatpush2.msra.mxu0 0.0
  %2040 = vmatprep.subr.mxu0 0.0
  %2041 = vmatpush2.msra.mxu0 0.0
  %2042 = vmatprep.subr.mxu0 0.0
  %2043 = vmatpush2.msra.mxu0 0.0
  %2044 = vmatprep.subr.mxu0 0.0
  %2045 = vmatpush2.msra.mxu0 0.0
  %2046 = vmatprep.subr.mxu0 0.0
  %2047 = vmatpush2.msra.mxu0 0.0
  %2048 = vmatprep.subr.mxu0 0.0
  %2049 = vmatpush2.msra.mxu0 0.0
  %2050 = vmatprep.subr.mxu0 0.0
  %2051 = vmatpush2.msra.mxu0 0.0
  %2052 = vmatprep.subr.mxu0 0.0
  %2053 = vmatpush2.msra.mxu0 0.0
  %2054 = vmatprep.subr.mxu0 0.0
  %2055 = vmatpush2.msra.mxu0 0.0
  %2056 = vmatprep.subr.mxu0 0.0
  %2057 = vmatpush2.msra.mxu0 0.0
  %2058 = vmatprep.subr.mxu0 0.0
  %2059 = vmatpush2.msra.mxu0 0.0
  %2060 = vmatprep.mubr.f32.mxu0 0.0
  %2061 = vmatmul.mubr.f32.gmra.mxu0 %v162
  %v2062 = vpop.f32.mrf.mxu0
  %v2063 = vadd.f32 0.0, %v2062
  %v2064 = vpop.f32.mrf.mxu0
  %v2065 = vadd.f32 0.0, %v2064
  %2066 = vdwg.mxu0
  %2067 = vmatprep.subr.mxu0 0.0
  %2068 = vmatpush1.msra.mxu0 0.0
  %2069 = vmatprep.subr.mxu0 0.0
  %2070 = vmatpush1.msra.mxu0 0.0
  %2071 = vmatprep.subr.mxu0 0.0
  %2072 = vmatpush1.msra.mxu0 0.0
  %2073 = vmatprep.subr.mxu0 0.0
  %2074 = vmatpush1.msra.mxu0 0.0
  %2075 = vmatprep.subr.mxu0 0.0
  %2076 = vmatpush1.msra.mxu0 0.0
  %2077 = vmatprep.subr.mxu0 0.0
  %2078 = vmatpush1.msra.mxu0 0.0
  %2079 = vmatprep.subr.mxu0 0.0
  %2080 = vmatpush1.msra.mxu0 0.0
  %2081 = vmatprep.subr.mxu0 0.0
  %2082 = vmatpush1.msra.mxu0 0.0
  %2083 = vmatprep.subr.mxu0 0.0
  %2084 = vmatpush1.msra.mxu0 0.0
  %2085 = vmatprep.subr.mxu0 0.0
  %2086 = vmatpush1.msra.mxu0 0.0
  %2087 = vmatprep.subr.mxu0 0.0
  %2088 = vmatpush1.msra.mxu0 0.0
  %2089 = vmatprep.subr.mxu0 0.0
  %2090 = vmatpush1.msra.mxu0 0.0
  %2091 = vmatprep.subr.mxu0 %v1644
  %2092 = vmatpush1.msra.mxu0 %v1641
  %2093 = vmatprep.subr.mxu0 %v1553
  %2094 = vmatpush1.msra.mxu0 %v1552
  %2095 = vmatprep.subr.mxu0 %v1519
  %2096 = vmatpush1.msra.mxu0 %v1518
  %2097 = vmatprep.subr.mxu0 %v1485
  %2098 = vmatpush1.msra.mxu0 %v1484
  %2099 = vmatprep.subr.mxu0 0.0
  %2100 = vmatpush2.msra.mxu0 0.0
  %2101 = vmatprep.subr.mxu0 0.0
  %2102 = vmatpush2.msra.mxu0 0.0
  %2103 = vmatprep.subr.mxu0 0.0
  %2104 = vmatpush2.msra.mxu0 0.0
  %2105 = vmatprep.subr.mxu0 0.0
  %2106 = vmatpush2.msra.mxu0 0.0
  %2107 = vmatprep.subr.mxu0 0.0
  %2108 = vmatpush2.msra.mxu0 0.0
  %2109 = vmatprep.subr.mxu0 0.0
  %2110 = vmatpush2.msra.mxu0 0.0
  %2111 = vmatprep.subr.mxu0 0.0
  %2112 = vmatpush2.msra.mxu0 0.0
  %2113 = vmatprep.subr.mxu0 0.0
  %2114 = vmatpush2.msra.mxu0 0.0
  %2115 = vmatprep.subr.mxu0 0.0
  %2116 = vmatpush2.msra.mxu0 0.0
  %2117 = vmatprep.subr.mxu0 0.0
  %2118 = vmatpush2.msra.mxu0 0.0
  %2119 = vmatprep.subr.mxu0 0.0
  %2120 = vmatpush2.msra.mxu0 0.0
  %2121 = vmatprep.subr.mxu0 0.0
  %2122 = vmatpush2.msra.mxu0 0.0
  %2123 = vmatprep.subr.mxu0 0.0
  %2124 = vmatpush2.msra.mxu0 0.0
  %2125 = vmatprep.subr.mxu0 0.0
  %2126 = vmatpush2.msra.mxu0 0.0
  %2127 = vmatprep.subr.mxu0 0.0
  %2128 = vmatpush2.msra.mxu0 0.0
  %2129 = vmatprep.subr.mxu0 0.0
  %2130 = vmatpush2.msra.mxu0 0.0
  %2131 = vmatprep.mubr.f32.mxu0 0.0
  %2132 = vmatmul.mubr.f32.gmra.mxu0 %v162
  %v2133 = vpop.f32.mrf.mxu0
  %v2134 = vadd.f32 0.0, %v2133
  %v2135 = vpop.f32.mrf.mxu0
  %v2136 = vadd.f32 0.0, %v2135
  %2137 = vdwg.mxu0
  %2138 = vmatprep.subr.mxu0 0.0
  %2139 = vmatpush1.msra.mxu0 0.0
  %2140 = vmatprep.subr.mxu0 0.0
  %2141 = vmatpush1.msra.mxu0 0.0
  %2142 = vmatprep.subr.mxu0 0.0
  %2143 = vmatpush1.msra.mxu0 0.0
  %2144 = vmatprep.subr.mxu0 0.0
  %2145 = vmatpush1.msra.mxu0 0.0
  %2146 = vmatprep.subr.mxu0 0.0
  %2147 = vmatpush1.msra.mxu0 0.0
  %2148 = vmatprep.subr.mxu0 0.0
  %2149 = vmatpush1.msra.mxu0 0.0
  %2150 = vmatprep.subr.mxu0 0.0
  %2151 = vmatpush1.msra.mxu0 0.0
  %2152 = vmatprep.subr.mxu0 0.0
  %2153 = vmatpush1.msra.mxu0 0.0
  %2154 = vmatprep.subr.mxu0 0.0
  %2155 = vmatpush1.msra.mxu0 0.0
  %2156 = vmatprep.subr.mxu0 0.0
  %2157 = vmatpush1.msra.mxu0 0.0
  %2158 = vmatprep.subr.mxu0 0.0
  %2159 = vmatpush1.msra.mxu0 0.0
  %2160 = vmatprep.subr.mxu0 0.0
  %2161 = vmatpush1.msra.mxu0 0.0
  %2162 = vmatprep.subr.mxu0 %v1650
  %2163 = vmatpush1.msra.mxu0 %v1647
  %2164 = vmatprep.subr.mxu0 %v1555
  %2165 = vmatpush1.msra.mxu0 %v1554
  %2166 = vmatprep.subr.mxu0 %v1521
  %2167 = vmatpush1.msra.mxu0 %v1520
  %2168 = vmatprep.subr.mxu0 %v1487
  %2169 = vmatpush1.msra.mxu0 %v1486
  %2170 = vmatprep.subr.mxu0 0.0
  %2171 = vmatpush2.msra.mxu0 0.0
  %2172 = vmatprep.subr.mxu0 0.0
  %2173 = vmatpush2.msra.mxu0 0.0
  %2174 = vmatprep.subr.mxu0 0.0
  %2175 = vmatpush2.msra.mxu0 0.0
  %2176 = vmatprep.subr.mxu0 0.0
  %2177 = vmatpush2.msra.mxu0 0.0
  %2178 = vmatprep.subr.mxu0 0.0
  %2179 = vmatpush2.msra.mxu0 0.0
  %2180 = vmatprep.subr.mxu0 0.0
  %2181 = vmatpush2.msra.mxu0 0.0
  %2182 = vmatprep.subr.mxu0 0.0
  %2183 = vmatpush2.msra.mxu0 0.0
  %2184 = vmatprep.subr.mxu0 0.0
  %2185 = vmatpush2.msra.mxu0 0.0
  %2186 = vmatprep.subr.mxu0 0.0
  %2187 = vmatpush2.msra.mxu0 0.0
  %2188 = vmatprep.subr.mxu0 0.0
  %2189 = vmatpush2.msra.mxu0 0.0
  %2190 = vmatprep.subr.mxu0 0.0
  %2191 = vmatpush2.msra.mxu0 0.0
  %2192 = vmatprep.subr.mxu0 0.0
  %2193 = vmatpush2.msra.mxu0 0.0
  %2194 = vmatprep.subr.mxu0 0.0
  %2195 = vmatpush2.msra.mxu0 0.0
  %2196 = vmatprep.subr.mxu0 0.0
  %2197 = vmatpush2.msra.mxu0 0.0
  %2198 = vmatprep.subr.mxu0 0.0
  %2199 = vmatpush2.msra.mxu0 0.0
  %2200 = vmatprep.subr.mxu0 0.0
  %2201 = vmatpush2.msra.mxu0 0.0
  %2202 = vmatprep.mubr.f32.mxu0 0.0
  %2203 = vmatmul.mubr.f32.gmra.mxu0 %v162
  %v2204 = vpop.f32.mrf.mxu0
  %v2205 = vadd.f32 0.0, %v2204
  %v2206 = vpop.f32.mrf.mxu0
  %v2207 = vadd.f32 0.0, %v2206
  %2208 = vdwg.mxu0
  %2209 = vmatprep.subr.mxu0 0.0
  %2210 = vmatpush1.msra.mxu0 0.0
  %2211 = vmatprep.subr.mxu0 0.0
  %2212 = vmatpush1.msra.mxu0 0.0
  %2213 = vmatprep.subr.mxu0 0.0
  %2214 = vmatpush1.msra.mxu0 0.0
  %2215 = vmatprep.subr.mxu0 0.0
  %2216 = vmatpush1.msra.mxu0 0.0
  %2217 = vmatprep.subr.mxu0 0.0
  %2218 = vmatpush1.msra.mxu0 0.0
  %2219 = vmatprep.subr.mxu0 0.0
  %2220 = vmatpush1.msra.mxu0 0.0
  %2221 = vmatprep.subr.mxu0 0.0
  %2222 = vmatpush1.msra.mxu0 0.0
  %2223 = vmatprep.subr.mxu0 0.0
  %2224 = vmatpush1.msra.mxu0 0.0
  %2225 = vmatprep.subr.mxu0 0.0
  %2226 = vmatpush1.msra.mxu0 0.0
  %2227 = vmatprep.subr.mxu0 0.0
  %2228 = vmatpush1.msra.mxu0 0.0
  %2229 = vmatprep.subr.mxu0 0.0
  %2230 = vmatpush1.msra.mxu0 0.0
  %2231 = vmatprep.subr.mxu0 0.0
  %2232 = vmatpush1.msra.mxu0 0.0
  %2233 = vmatprep.subr.mxu0 %v1656
  %2234 = vmatpush1.msra.mxu0 %v1653
  %2235 = vmatprep.subr.mxu0 %v1557
  %2236 = vmatpush1.msra.mxu0 %v1556
  %2237 = vmatprep.subr.mxu0 %v1523
  %2238 = vmatpush1.msra.mxu0 %v1522
  %2239 = vmatprep.subr.mxu0 %v1489
  %2240 = vmatpush1.msra.mxu0 %v1488
  %2241 = vmatprep.subr.mxu0 0.0
  %2242 = vmatpush2.msra.mxu0 0.0
  %2243 = vmatprep.subr.mxu0 0.0
  %2244 = vmatpush2.msra.mxu0 0.0
  %2245 = vmatprep.subr.mxu0 0.0
  %2246 = vmatpush2.msra.mxu0 0.0
  %2247 = vmatprep.subr.mxu0 0.0
  %2248 = vmatpush2.msra.mxu0 0.0
  %2249 = vmatprep.subr.mxu0 0.0
  %2250 = vmatpush2.msra.mxu0 0.0
  %2251 = vmatprep.subr.mxu0 0.0
  %2252 = vmatpush2.msra.mxu0 0.0
  %2253 = vmatprep.subr.mxu0 0.0
  %2254 = vmatpush2.msra.mxu0 0.0
  %2255 = vmatprep.subr.mxu0 0.0
  %2256 = vmatpush2.msra.mxu0 0.0
  %2257 = vmatprep.subr.mxu0 0.0
  %2258 = vmatpush2.msra.mxu0 0.0
  %2259 = vmatprep.subr.mxu0 0.0
  %2260 = vmatpush2.msra.mxu0 0.0
  %2261 = vmatprep.subr.mxu0 0.0
  %2262 = vmatpush2.msra.mxu0 0.0
  %2263 = vmatprep.subr.mxu0 0.0
  %2264 = vmatpush2.msra.mxu0 0.0
  %2265 = vmatprep.subr.mxu0 0.0
  %2266 = vmatpush2.msra.mxu0 0.0
  %2267 = vmatprep.subr.mxu0 0.0
  %2268 = vmatpush2.msra.mxu0 0.0
  %2269 = vmatprep.subr.mxu0 0.0
  %2270 = vmatpush2.msra.mxu0 0.0
  %2271 = vmatprep.subr.mxu0 0.0
  %2272 = vmatpush2.msra.mxu0 0.0
  %2273 = vmatprep.mubr.f32.mxu0 0.0
  %2274 = vmatmul.mubr.f32.gmra.mxu0 %v162
  %v2275 = vpop.f32.mrf.mxu0
  %v2276 = vadd.f32 0.0, %v2275
  %v2277 = vpop.f32.mrf.mxu0
  %v2278 = vadd.f32 0.0, %v2277
  %2279 = vdwg.mxu0
  %2280 = vmatprep.subr.mxu0 0.0
  %2281 = vmatpush1.msra.mxu0 0.0
  %2282 = vmatprep.subr.mxu0 0.0
  %2283 = vmatpush1.msra.mxu0 0.0
  %2284 = vmatprep.subr.mxu0 0.0
  %2285 = vmatpush1.msra.mxu0 0.0
  %2286 = vmatprep.subr.mxu0 0.0
  %2287 = vmatpush1.msra.mxu0 0.0
  %2288 = vmatprep.subr.mxu0 0.0
  %2289 = vmatpush1.msra.mxu0 0.0
  %2290 = vmatprep.subr.mxu0 0.0
  %2291 = vmatpush1.msra.mxu0 0.0
  %2292 = vmatprep.subr.mxu0 0.0
  %2293 = vmatpush1.msra.mxu0 0.0
  %2294 = vmatprep.subr.mxu0 0.0
  %2295 = vmatpush1.msra.mxu0 0.0
  %2296 = vmatprep.subr.mxu0 0.0
  %2297 = vmatpush1.msra.mxu0 0.0
  %2298 = vmatprep.subr.mxu0 0.0
  %2299 = vmatpush1.msra.mxu0 0.0
  %2300 = vmatprep.subr.mxu0 0.0
  %2301 = vmatpush1.msra.mxu0 0.0
  %2302 = vmatprep.subr.mxu0 0.0
  %2303 = vmatpush1.msra.mxu0 0.0
  %2304 = vmatprep.subr.mxu0 %v1662
  %2305 = vmatpush1.msra.mxu0 %v1659
  %2306 = vmatprep.subr.mxu0 %v1559
  %2307 = vmatpush1.msra.mxu0 %v1558
  %2308 = vmatprep.subr.mxu0 %v1525
  %2309 = vmatpush1.msra.mxu0 %v1524
  %2310 = vmatprep.subr.mxu0 %v1491
  %2311 = vmatpush1.msra.mxu0 %v1490
  %2312 = vmatprep.subr.mxu0 0.0
  %2313 = vmatpush2.msra.mxu0 0.0
  %2314 = vmatprep.subr.mxu0 0.0
  %2315 = vmatpush2.msra.mxu0 0.0
  %2316 = vmatprep.subr.mxu0 0.0
  %2317 = vmatpush2.msra.mxu0 0.0
  %2318 = vmatprep.subr.mxu0 0.0
  %2319 = vmatpush2.msra.mxu0 0.0
  %2320 = vmatprep.subr.mxu0 0.0
  %2321 = vmatpush2.msra.mxu0 0.0
  %2322 = vmatprep.subr.mxu0 0.0
  %2323 = vmatpush2.msra.mxu0 0.0
  %2324 = vmatprep.subr.mxu0 0.0
  %2325 = vmatpush2.msra.mxu0 0.0
  %2326 = vmatprep.subr.mxu0 0.0
  %2327 = vmatpush2.msra.mxu0 0.0
  %2328 = vmatprep.subr.mxu0 0.0
  %2329 = vmatpush2.msra.mxu0 0.0
  %2330 = vmatprep.subr.mxu0 0.0
  %2331 = vmatpush2.msra.mxu0 0.0
  %2332 = vmatprep.subr.mxu0 0.0
  %2333 = vmatpush2.msra.mxu0 0.0
  %2334 = vmatprep.subr.mxu0 0.0
  %2335 = vmatpush2.msra.mxu0 0.0
  %2336 = vmatprep.subr.mxu0 0.0
  %2337 = vmatpush2.msra.mxu0 0.0
  %2338 = vmatprep.subr.mxu0 0.0
  %2339 = vmatpush2.msra.mxu0 0.0
  %2340 = vmatprep.subr.mxu0 0.0
  %2341 = vmatpush2.msra.mxu0 0.0
  %2342 = vmatprep.subr.mxu0 0.0
  %2343 = vmatpush2.msra.mxu0 0.0
  %2344 = vmatprep.mubr.f32.mxu0 0.0
  %2345 = vmatmul.mubr.f32.gmra.mxu0 %v162
  %v2346 = vpop.f32.mrf.mxu0
  %v2347 = vadd.f32 0.0, %v2346
  %v2348 = vpop.f32.mrf.mxu0
  %v2349 = vadd.f32 0.0, %v2348
  %2350 = vdwg.mxu0
  %2351 = vmatprep.subr.mxu0 0.0
  %2352 = vmatpush1.msra.mxu0 0.0
  %2353 = vmatprep.subr.mxu0 0.0
  %2354 = vmatpush1.msra.mxu0 0.0
  %2355 = vmatprep.subr.mxu0 0.0
  %2356 = vmatpush1.msra.mxu0 0.0
  %2357 = vmatprep.subr.mxu0 0.0
  %2358 = vmatpush1.msra.mxu0 0.0
  %2359 = vmatprep.subr.mxu0 0.0
  %2360 = vmatpush1.msra.mxu0 0.0
  %2361 = vmatprep.subr.mxu0 0.0
  %2362 = vmatpush1.msra.mxu0 0.0
  %2363 = vmatprep.subr.mxu0 0.0
  %2364 = vmatpush1.msra.mxu0 0.0
  %2365 = vmatprep.subr.mxu0 0.0
  %2366 = vmatpush1.msra.mxu0 0.0
  %2367 = vmatprep.subr.mxu0 0.0
  %2368 = vmatpush1.msra.mxu0 0.0
  %2369 = vmatprep.subr.mxu0 0.0
  %2370 = vmatpush1.msra.mxu0 0.0
  %2371 = vmatprep.subr.mxu0 0.0
  %2372 = vmatpush1.msra.mxu0 0.0
  %2373 = vmatprep.subr.mxu0 0.0
  %2374 = vmatpush1.msra.mxu0 0.0
  %2375 = vmatprep.subr.mxu0 %v1668
  %2376 = vmatpush1.msra.mxu0 %v1665
  %2377 = vmatprep.subr.mxu0 %v1561
  %2378 = vmatpush1.msra.mxu0 %v1560
  %2379 = vmatprep.subr.mxu0 %v1527
  %2380 = vmatpush1.msra.mxu0 %v1526
  %2381 = vmatprep.subr.mxu0 %v1493
  %2382 = vmatpush1.msra.mxu0 %v1492
  %2383 = vmatprep.subr.mxu0 0.0
  %2384 = vmatpush2.msra.mxu0 0.0
  %2385 = vmatprep.subr.mxu0 0.0
  %2386 = vmatpush2.msra.mxu0 0.0
  %2387 = vmatprep.subr.mxu0 0.0
  %2388 = vmatpush2.msra.mxu0 0.0
  %2389 = vmatprep.subr.mxu0 0.0
  %2390 = vmatpush2.msra.mxu0 0.0
  %2391 = vmatprep.subr.mxu0 0.0
  %2392 = vmatpush2.msra.mxu0 0.0
  %2393 = vmatprep.subr.mxu0 0.0
  %2394 = vmatpush2.msra.mxu0 0.0
  %2395 = vmatprep.subr.mxu0 0.0
  %2396 = vmatpush2.msra.mxu0 0.0
  %2397 = vmatprep.subr.mxu0 0.0
  %2398 = vmatpush2.msra.mxu0 0.0
  %2399 = vmatprep.subr.mxu0 0.0
  %2400 = vmatpush2.msra.mxu0 0.0
  %2401 = vmatprep.subr.mxu0 0.0
  %2402 = vmatpush2.msra.mxu0 0.0
  %2403 = vmatprep.subr.mxu0 0.0
  %2404 = vmatpush2.msra.mxu0 0.0
  %2405 = vmatprep.subr.mxu0 0.0
  %2406 = vmatpush2.msra.mxu0 0.0
  %2407 = vmatprep.subr.mxu0 0.0
  %2408 = vmatpush2.msra.mxu0 0.0
  %2409 = vmatprep.subr.mxu0 0.0
  %2410 = vmatpush2.msra.mxu0 0.0
  %2411 = vmatprep.subr.mxu0 0.0
  %2412 = vmatpush2.msra.mxu0 0.0
  %2413 = vmatprep.subr.mxu0 0.0
  %2414 = vmatpush2.msra.mxu0 0.0
  %2415 = vmatprep.mubr.f32.mxu0 0.0
  %2416 = vmatmul.mubr.f32.gmra.mxu0 %v162
  %v2417 = vpop.f32.mrf.mxu0
  %v2418 = vadd.f32 0.0, %v2417
  %v2419 = vpop.f32.mrf.mxu0
  %v2420 = vadd.f32 0.0, %v2419
  %2421 = vdwg.mxu0
  %2422 = vmatprep.subr.mxu0 0.0
  %2423 = vmatpush1.msra.mxu0 0.0
  %2424 = vmatprep.subr.mxu0 0.0
  %2425 = vmatpush1.msra.mxu0 0.0
  %2426 = vmatprep.subr.mxu0 0.0
  %2427 = vmatpush1.msra.mxu0 0.0
  %2428 = vmatprep.subr.mxu0 0.0
  %2429 = vmatpush1.msra.mxu0 0.0
  %2430 = vmatprep.subr.mxu0 0.0
  %2431 = vmatpush1.msra.mxu0 0.0
  %2432 = vmatprep.subr.mxu0 0.0
  %2433 = vmatpush1.msra.mxu0 0.0
  %2434 = vmatprep.subr.mxu0 0.0
  %2435 = vmatpush1.msra.mxu0 0.0
  %2436 = vmatprep.subr.mxu0 0.0
  %2437 = vmatpush1.msra.mxu0 0.0
  %2438 = vmatprep.subr.mxu0 0.0
  %2439 = vmatpush1.msra.mxu0 0.0
  %2440 = vmatprep.subr.mxu0 0.0
  %2441 = vmatpush1.msra.mxu0 0.0
  %2442 = vmatprep.subr.mxu0 0.0
  %2443 = vmatpush1.msra.mxu0 0.0
  %2444 = vmatprep.subr.mxu0 0.0
  %2445 = vmatpush1.msra.mxu0 0.0
  %2446 = vmatprep.subr.mxu0 %v1674
  %2447 = vmatpush1.msra.mxu0 %v1671
  %2448 = vmatprep.subr.mxu0 %v1563
  %2449 = vmatpush1.msra.mxu0 %v1562
  %2450 = vmatprep.subr.mxu0 %v1529
  %2451 = vmatpush1.msra.mxu0 %v1528
  %2452 = vmatprep.subr.mxu0 %v1495
  %2453 = vmatpush1.msra.mxu0 %v1494
  %2454 = vmatprep.subr.mxu0 0.0
  %2455 = vmatpush2.msra.mxu0 0.0
  %2456 = vmatprep.subr.mxu0 0.0
  %2457 = vmatpush2.msra.mxu0 0.0
  %2458 = vmatprep.subr.mxu0 0.0
  %2459 = vmatpush2.msra.mxu0 0.0
  %2460 = vmatprep.subr.mxu0 0.0
  %2461 = vmatpush2.msra.mxu0 0.0
  %2462 = vmatprep.subr.mxu0 0.0
  %2463 = vmatpush2.msra.mxu0 0.0
  %2464 = vmatprep.subr.mxu0 0.0
  %2465 = vmatpush2.msra.mxu0 0.0
  %2466 = vmatprep.subr.mxu0 0.0
  %2467 = vmatpush2.msra.mxu0 0.0
  %2468 = vmatprep.subr.mxu0 0.0
  %2469 = vmatpush2.msra.mxu0 0.0
  %2470 = vmatprep.subr.mxu0 0.0
  %2471 = vmatpush2.msra.mxu0 0.0
  %2472 = vmatprep.subr.mxu0 0.0
  %2473 = vmatpush2.msra.mxu0 0.0
  %2474 = vmatprep.subr.mxu0 0.0
  %2475 = vmatpush2.msra.mxu0 0.0
  %2476 = vmatprep.subr.mxu0 0.0
  %2477 = vmatpush2.msra.mxu0 0.0
  %2478 = vmatprep.subr.mxu0 0.0
  %2479 = vmatpush2.msra.mxu0 0.0
  %2480 = vmatprep.subr.mxu0 0.0
  %2481 = vmatpush2.msra.mxu0 0.0
  %2482 = vmatprep.subr.mxu0 0.0
  %2483 = vmatpush2.msra.mxu0 0.0
  %2484 = vmatprep.subr.mxu0 0.0
  %2485 = vmatpush2.msra.mxu0 0.0
  %2486 = vmatprep.mubr.f32.mxu0 0.0
  %2487 = vmatmul.mubr.f32.gmra.mxu0 %v162
  %v2488 = vpop.f32.mrf.mxu0
  %v2489 = vadd.f32 0.0, %v2488
  %v2490 = vpop.f32.mrf.mxu0
  %v2491 = vadd.f32 0.0, %v2490
  %2492 = vdwg.mxu0
  %2493 = vmatprep.subr.mxu0 0.0
  %2494 = vmatpush1.msra.mxu0 0.0
  %2495 = vmatprep.subr.mxu0 0.0
  %2496 = vmatpush1.msra.mxu0 0.0
  %2497 = vmatprep.subr.mxu0 0.0
  %2498 = vmatpush1.msra.mxu0 0.0
  %2499 = vmatprep.subr.mxu0 0.0
  %2500 = vmatpush1.msra.mxu0 0.0
  %2501 = vmatprep.subr.mxu0 0.0
  %2502 = vmatpush1.msra.mxu0 0.0
  %2503 = vmatprep.subr.mxu0 0.0
  %2504 = vmatpush1.msra.mxu0 0.0
  %2505 = vmatprep.subr.mxu0 0.0
  %2506 = vmatpush1.msra.mxu0 0.0
  %2507 = vmatprep.subr.mxu0 0.0
  %2508 = vmatpush1.msra.mxu0 0.0
  %2509 = vmatprep.subr.mxu0 0.0
  %2510 = vmatpush1.msra.mxu0 0.0
  %2511 = vmatprep.subr.mxu0 0.0
  %2512 = vmatpush1.msra.mxu0 0.0
  %2513 = vmatprep.subr.mxu0 0.0
  %2514 = vmatpush1.msra.mxu0 0.0
  %2515 = vmatprep.subr.mxu0 0.0
  %2516 = vmatpush1.msra.mxu0 0.0
  %2517 = vmatprep.subr.mxu0 %v1680
  %2518 = vmatpush1.msra.mxu0 %v1677
  %2519 = vmatprep.subr.mxu0 %v1565
  %2520 = vmatpush1.msra.mxu0 %v1564
  %2521 = vmatprep.subr.mxu0 %v1531
  %2522 = vmatpush1.msra.mxu0 %v1530
  %2523 = vmatprep.subr.mxu0 %v1497
  %2524 = vmatpush1.msra.mxu0 %v1496
  %2525 = vmatprep.subr.mxu0 0.0
  %2526 = vmatpush2.msra.mxu0 0.0
  %2527 = vmatprep.subr.mxu0 0.0
  %2528 = vmatpush2.msra.mxu0 0.0
  %2529 = vmatprep.subr.mxu0 0.0
  %2530 = vmatpush2.msra.mxu0 0.0
  %2531 = vmatprep.subr.mxu0 0.0
  %2532 = vmatpush2.msra.mxu0 0.0
  %2533 = vmatprep.subr.mxu0 0.0
  %2534 = vmatpush2.msra.mxu0 0.0
  %2535 = vmatprep.subr.mxu0 0.0
  %2536 = vmatpush2.msra.mxu0 0.0
  %2537 = vmatprep.subr.mxu0 0.0
  %2538 = vmatpush2.msra.mxu0 0.0
  %2539 = vmatprep.subr.mxu0 0.0
  %2540 = vmatpush2.msra.mxu0 0.0
  %2541 = vmatprep.subr.mxu0 0.0
  %2542 = vmatpush2.msra.mxu0 0.0
  %2543 = vmatprep.subr.mxu0 0.0
  %2544 = vmatpush2.msra.mxu0 0.0
  %2545 = vmatprep.subr.mxu0 0.0
  %2546 = vmatpush2.msra.mxu0 0.0
  %2547 = vmatprep.subr.mxu0 0.0
  %2548 = vmatpush2.msra.mxu0 0.0
  %2549 = vmatprep.subr.mxu0 0.0
  %2550 = vmatpush2.msra.mxu0 0.0
  %2551 = vmatprep.subr.mxu0 0.0
  %2552 = vmatpush2.msra.mxu0 0.0
  %2553 = vmatprep.subr.mxu0 0.0
  %2554 = vmatpush2.msra.mxu0 0.0
  %2555 = vmatprep.subr.mxu0 0.0
  %2556 = vmatpush2.msra.mxu0 0.0
  %2557 = vmatprep.mubr.f32.mxu0 0.0
  %2558 = vmatmul.mubr.f32.gmra.mxu0 %v162
  %v2559 = vpop.f32.mrf.mxu0
  %v2560 = vadd.f32 0.0, %v2559
  %v2561 = vpop.f32.mrf.mxu0
  %v2562 = vadd.f32 0.0, %v2561
  %2563 = vdwg.mxu0
  %2564 = vmatprep.subr.mxu0 0.0
  %2565 = vmatpush1.msra.mxu0 0.0
  %2566 = vmatprep.subr.mxu0 0.0
  %2567 = vmatpush1.msra.mxu0 0.0
  %2568 = vmatprep.subr.mxu0 0.0
  %2569 = vmatpush1.msra.mxu0 0.0
  %2570 = vmatprep.subr.mxu0 0.0
  %2571 = vmatpush1.msra.mxu0 0.0
  %2572 = vmatprep.subr.mxu0 0.0
  %2573 = vmatpush1.msra.mxu0 0.0
  %2574 = vmatprep.subr.mxu0 0.0
  %2575 = vmatpush1.msra.mxu0 0.0
  %2576 = vmatprep.subr.mxu0 0.0
  %2577 = vmatpush1.msra.mxu0 0.0
  %2578 = vmatprep.subr.mxu0 0.0
  %2579 = vmatpush1.msra.mxu0 0.0
  %2580 = vmatprep.subr.mxu0 0.0
  %2581 = vmatpush1.msra.mxu0 0.0
  %2582 = vmatprep.subr.mxu0 0.0
  %2583 = vmatpush1.msra.mxu0 0.0
  %2584 = vmatprep.subr.mxu0 0.0
  %2585 = vmatpush1.msra.mxu0 0.0
  %2586 = vmatprep.subr.mxu0 0.0
  %2587 = vmatpush1.msra.mxu0 0.0
  %2588 = vmatprep.subr.mxu0 %v1686
  %2589 = vmatpush1.msra.mxu0 %v1683
  %2590 = vmatprep.subr.mxu0 %v1567
  %2591 = vmatpush1.msra.mxu0 %v1566
  %2592 = vmatprep.subr.mxu0 %v1533
  %2593 = vmatpush1.msra.mxu0 %v1532
  %2594 = vmatprep.subr.mxu0 %v1499
  %2595 = vmatpush1.msra.mxu0 %v1498
  %2596 = vmatprep.subr.mxu0 0.0
  %2597 = vmatpush2.msra.mxu0 0.0
  %2598 = vmatprep.subr.mxu0 0.0
  %2599 = vmatpush2.msra.mxu0 0.0
  %2600 = vmatprep.subr.mxu0 0.0
  %2601 = vmatpush2.msra.mxu0 0.0
  %2602 = vmatprep.subr.mxu0 0.0
  %2603 = vmatpush2.msra.mxu0 0.0
  %2604 = vmatprep.subr.mxu0 0.0
  %2605 = vmatpush2.msra.mxu0 0.0
  %2606 = vmatprep.subr.mxu0 0.0
  %2607 = vmatpush2.msra.mxu0 0.0
  %2608 = vmatprep.subr.mxu0 0.0
  %2609 = vmatpush2.msra.mxu0 0.0
  %2610 = vmatprep.subr.mxu0 0.0
  %2611 = vmatpush2.msra.mxu0 0.0
  %2612 = vmatprep.subr.mxu0 0.0
  %2613 = vmatpush2.msra.mxu0 0.0
  %2614 = vmatprep.subr.mxu0 0.0
  %2615 = vmatpush2.msra.mxu0 0.0
  %2616 = vmatprep.subr.mxu0 0.0
  %2617 = vmatpush2.msra.mxu0 0.0
  %2618 = vmatprep.subr.mxu0 0.0
  %2619 = vmatpush2.msra.mxu0 0.0
  %2620 = vmatprep.subr.mxu0 0.0
  %2621 = vmatpush2.msra.mxu0 0.0
  %2622 = vmatprep.subr.mxu0 0.0
  %2623 = vmatpush2.msra.mxu0 0.0
  %2624 = vmatprep.subr.mxu0 0.0
  %2625 = vmatpush2.msra.mxu0 0.0
  %2626 = vmatprep.subr.mxu0 0.0
  %2627 = vmatpush2.msra.mxu0 0.0
  %2628 = vmatprep.mubr.f32.mxu0 0.0
  %2629 = vmatmul.mubr.f32.gmra.mxu0 %v162
  %v2630 = vpop.f32.mrf.mxu0
  %v2631 = vadd.f32 0.0, %v2630
  %v2632 = vpop.f32.mrf.mxu0
  %v2633 = vadd.f32 0.0, %v2632
  %2634 = vdwg.mxu0
  %2635 = vmatprep.subr.mxu0 0.0
  %2636 = vmatpush1.msra.mxu0 0.0
  %2637 = vmatprep.subr.mxu0 0.0
  %2638 = vmatpush1.msra.mxu0 0.0
  %2639 = vmatprep.subr.mxu0 0.0
  %2640 = vmatpush1.msra.mxu0 0.0
  %2641 = vmatprep.subr.mxu0 0.0
  %2642 = vmatpush1.msra.mxu0 0.0
  %2643 = vmatprep.subr.mxu0 0.0
  %2644 = vmatpush1.msra.mxu0 0.0
  %2645 = vmatprep.subr.mxu0 0.0
  %2646 = vmatpush1.msra.mxu0 0.0
  %2647 = vmatprep.subr.mxu0 0.0
  %2648 = vmatpush1.msra.mxu0 0.0
  %2649 = vmatprep.subr.mxu0 0.0
  %2650 = vmatpush1.msra.mxu0 0.0
  %2651 = vmatprep.subr.mxu0 0.0
  %2652 = vmatpush1.msra.mxu0 0.0
  %2653 = vmatprep.subr.mxu0 0.0
  %2654 = vmatpush1.msra.mxu0 0.0
  %2655 = vmatprep.subr.mxu0 0.0
  %2656 = vmatpush1.msra.mxu0 0.0
  %2657 = vmatprep.subr.mxu0 0.0
  %2658 = vmatpush1.msra.mxu0 0.0
  %2659 = vmatprep.subr.mxu0 %v1692
  %2660 = vmatpush1.msra.mxu0 %v1689
  %2661 = vmatprep.subr.mxu0 %v1569
  %2662 = vmatpush1.msra.mxu0 %v1568
  %2663 = vmatprep.subr.mxu0 %v1535
  %2664 = vmatpush1.msra.mxu0 %v1534
  %2665 = vmatprep.subr.mxu0 %v1501
  %2666 = vmatpush1.msra.mxu0 %v1500
  %2667 = vmatprep.subr.mxu0 0.0
  %2668 = vmatpush2.msra.mxu0 0.0
  %2669 = vmatprep.subr.mxu0 0.0
  %2670 = vmatpush2.msra.mxu0 0.0
  %2671 = vmatprep.subr.mxu0 0.0
  %2672 = vmatpush2.msra.mxu0 0.0
  %2673 = vmatprep.subr.mxu0 0.0
  %2674 = vmatpush2.msra.mxu0 0.0
  %2675 = vmatprep.subr.mxu0 0.0
  %2676 = vmatpush2.msra.mxu0 0.0
  %2677 = vmatprep.subr.mxu0 0.0
  %2678 = vmatpush2.msra.mxu0 0.0
  %2679 = vmatprep.subr.mxu0 0.0
  %2680 = vmatpush2.msra.mxu0 0.0
  %2681 = vmatprep.subr.mxu0 0.0
  %2682 = vmatpush2.msra.mxu0 0.0
  %2683 = vmatprep.subr.mxu0 0.0
  %2684 = vmatpush2.msra.mxu0 0.0
  %2685 = vmatprep.subr.mxu0 0.0
  %2686 = vmatpush2.msra.mxu0 0.0
  %2687 = vmatprep.subr.mxu0 0.0
  %2688 = vmatpush2.msra.mxu0 0.0
  %2689 = vmatprep.subr.mxu0 0.0
  %2690 = vmatpush2.msra.mxu0 0.0
  %2691 = vmatprep.subr.mxu0 0.0
  %2692 = vmatpush2.msra.mxu0 0.0
  %2693 = vmatprep.subr.mxu0 0.0
  %2694 = vmatpush2.msra.mxu0 0.0
  %2695 = vmatprep.subr.mxu0 0.0
  %2696 = vmatpush2.msra.mxu0 0.0
  %2697 = vmatprep.subr.mxu0 0.0
  %2698 = vmatpush2.msra.mxu0 0.0
  %2699 = vmatprep.mubr.f32.mxu0 0.0
  %2700 = vmatmul.mubr.f32.gmra.mxu0 %v162
  %v2701 = vpop.f32.mrf.mxu0
  %v2702 = vadd.f32 0.0, %v2701
  %v2703 = vpop.f32.mrf.mxu0
  %v2704 = vadd.f32 0.0, %v2703
  %2705 = vdwg.mxu0
  %2706 = vmatprep.subr.mxu0 0.0
  %2707 = vmatpush1.msra.mxu0 0.0
  %2708 = vmatprep.subr.mxu0 0.0
  %2709 = vmatpush1.msra.mxu0 0.0
  %2710 = vmatprep.subr.mxu0 0.0
  %2711 = vmatpush1.msra.mxu0 0.0
  %2712 = vmatprep.subr.mxu0 0.0
  %2713 = vmatpush1.msra.mxu0 0.0
  %2714 = vmatprep.subr.mxu0 0.0
  %2715 = vmatpush1.msra.mxu0 0.0
  %2716 = vmatprep.subr.mxu0 0.0
  %2717 = vmatpush1.msra.mxu0 0.0
  %2718 = vmatprep.subr.mxu0 0.0
  %2719 = vmatpush1.msra.mxu0 0.0
  %2720 = vmatprep.subr.mxu0 0.0
  %2721 = vmatpush1.msra.mxu0 0.0
  %2722 = vmatprep.subr.mxu0 0.0
  %2723 = vmatpush1.msra.mxu0 0.0
  %2724 = vmatprep.subr.mxu0 0.0
  %2725 = vmatpush1.msra.mxu0 0.0
  %2726 = vmatprep.subr.mxu0 0.0
  %2727 = vmatpush1.msra.mxu0 0.0
  %2728 = vmatprep.subr.mxu0 0.0
  %2729 = vmatpush1.msra.mxu0 0.0
  %2730 = vmatprep.subr.mxu0 %v1698
  %2731 = vmatpush1.msra.mxu0 %v1695
  %2732 = vmatprep.subr.mxu0 %v1571
  %2733 = vmatpush1.msra.mxu0 %v1570
  %2734 = vmatprep.subr.mxu0 %v1537
  %2735 = vmatpush1.msra.mxu0 %v1536
  %2736 = vmatprep.subr.mxu0 %v1503
  %2737 = vmatpush1.msra.mxu0 %v1502
  %2738 = vmatprep.subr.mxu0 0.0
  %2739 = vmatpush2.msra.mxu0 0.0
  %2740 = vmatprep.subr.mxu0 0.0
  %2741 = vmatpush2.msra.mxu0 0.0
  %2742 = vmatprep.subr.mxu0 0.0
  %2743 = vmatpush2.msra.mxu0 0.0
  %2744 = vmatprep.subr.mxu0 0.0
  %2745 = vmatpush2.msra.mxu0 0.0
  %2746 = vmatprep.subr.mxu0 0.0
  %2747 = vmatpush2.msra.mxu0 0.0
  %2748 = vmatprep.subr.mxu0 0.0
  %2749 = vmatpush2.msra.mxu0 0.0
  %2750 = vmatprep.subr.mxu0 0.0
  %2751 = vmatpush2.msra.mxu0 0.0
  %2752 = vmatprep.subr.mxu0 0.0
  %2753 = vmatpush2.msra.mxu0 0.0
  %2754 = vmatprep.subr.mxu0 0.0
  %2755 = vmatpush2.msra.mxu0 0.0
  %2756 = vmatprep.subr.mxu0 0.0
  %2757 = vmatpush2.msra.mxu0 0.0
  %2758 = vmatprep.subr.mxu0 0.0
  %2759 = vmatpush2.msra.mxu0 0.0
  %2760 = vmatprep.subr.mxu0 0.0
  %2761 = vmatpush2.msra.mxu0 0.0
  %2762 = vmatprep.subr.mxu0 0.0
  %2763 = vmatpush2.msra.mxu0 0.0
  %2764 = vmatprep.subr.mxu0 0.0
  %2765 = vmatpush2.msra.mxu0 0.0
  %2766 = vmatprep.subr.mxu0 0.0
  %2767 = vmatpush2.msra.mxu0 0.0
  %2768 = vmatprep.subr.mxu0 0.0
  %2769 = vmatpush2.msra.mxu0 0.0
  %2770 = vmatprep.mubr.f32.mxu0 0.0
  %2771 = vmatmul.mubr.f32.gmra.mxu0 %v162
  %v2772 = vpop.f32.mrf.mxu0
  %v2773 = vadd.f32 0.0, %v2772
  %v2774 = vpop.f32.mrf.mxu0
  %v2775 = vadd.f32 0.0, %v2774
  %2776 = vdwg.mxu0
  %2777 = vmatprep.subr.mxu0 0.0
  %2778 = vmatpush1.msra.mxu0 0.0
  %2779 = vmatprep.subr.mxu0 0.0
  %2780 = vmatpush1.msra.mxu0 0.0
  %2781 = vmatprep.subr.mxu0 0.0
  %2782 = vmatpush1.msra.mxu0 0.0
  %2783 = vmatprep.subr.mxu0 0.0
  %2784 = vmatpush1.msra.mxu0 0.0
  %2785 = vmatprep.subr.mxu0 0.0
  %2786 = vmatpush1.msra.mxu0 0.0
  %2787 = vmatprep.subr.mxu0 0.0
  %2788 = vmatpush1.msra.mxu0 0.0
  %2789 = vmatprep.subr.mxu0 0.0
  %2790 = vmatpush1.msra.mxu0 0.0
  %2791 = vmatprep.subr.mxu0 0.0
  %2792 = vmatpush1.msra.mxu0 0.0
  %2793 = vmatprep.subr.mxu0 0.0
  %2794 = vmatpush1.msra.mxu0 0.0
  %2795 = vmatprep.subr.mxu0 0.0
  %2796 = vmatpush1.msra.mxu0 0.0
  %2797 = vmatprep.subr.mxu0 0.0
  %2798 = vmatpush1.msra.mxu0 0.0
  %2799 = vmatprep.subr.mxu0 0.0
  %2800 = vmatpush1.msra.mxu0 0.0
  %2801 = vmatprep.subr.mxu0 %v1704
  %2802 = vmatpush1.msra.mxu0 %v1701
  %2803 = vmatprep.subr.mxu0 %v1573
  %2804 = vmatpush1.msra.mxu0 %v1572
  %2805 = vmatprep.subr.mxu0 %v1539
  %2806 = vmatpush1.msra.mxu0 %v1538
  %2807 = vmatprep.subr.mxu0 %v1505
  %2808 = vmatpush1.msra.mxu0 %v1504
  %2809 = vmatprep.subr.mxu0 0.0
  %2810 = vmatpush2.msra.mxu0 0.0
  %2811 = vmatprep.subr.mxu0 0.0
  %2812 = vmatpush2.msra.mxu0 0.0
  %2813 = vmatprep.subr.mxu0 0.0
  %2814 = vmatpush2.msra.mxu0 0.0
  %2815 = vmatprep.subr.mxu0 0.0
  %2816 = vmatpush2.msra.mxu0 0.0
  %2817 = vmatprep.subr.mxu0 0.0
  %2818 = vmatpush2.msra.mxu0 0.0
  %2819 = vmatprep.subr.mxu0 0.0
  %2820 = vmatpush2.msra.mxu0 0.0
  %2821 = vmatprep.subr.mxu0 0.0
  %2822 = vmatpush2.msra.mxu0 0.0
  %2823 = vmatprep.subr.mxu0 0.0
  %2824 = vmatpush2.msra.mxu0 0.0
  %2825 = vmatprep.subr.mxu0 0.0
  %2826 = vmatpush2.msra.mxu0 0.0
  %2827 = vmatprep.subr.mxu0 0.0
  %2828 = vmatpush2.msra.mxu0 0.0
  %2829 = vmatprep.subr.mxu0 0.0
  %2830 = vmatpush2.msra.mxu0 0.0
  %2831 = vmatprep.subr.mxu0 0.0
  %2832 = vmatpush2.msra.mxu0 0.0
  %2833 = vmatprep.subr.mxu0 0.0
  %2834 = vmatpush2.msra.mxu0 0.0
  %2835 = vmatprep.subr.mxu0 0.0
  %2836 = vmatpush2.msra.mxu0 0.0
  %2837 = vmatprep.subr.mxu0 0.0
  %2838 = vmatpush2.msra.mxu0 0.0
  %2839 = vmatprep.subr.mxu0 0.0
  %2840 = vmatpush2.msra.mxu0 0.0
  %2841 = vmatprep.mubr.f32.mxu0 0.0
  %2842 = vmatmul.mubr.f32.gmra.mxu0 %v162
  %v2843 = vpop.f32.mrf.mxu0
  %v2844 = vadd.f32 0.0, %v2843
  %v2845 = vpop.f32.mrf.mxu0
  %v2846 = vadd.f32 0.0, %v2845
  %2847 = vdwg.mxu0
  %2848 = vmatprep.subr.mxu0 0.0
  %2849 = vmatpush1.msra.mxu0 0.0
  %2850 = vmatprep.subr.mxu0 0.0
  %2851 = vmatpush1.msra.mxu0 0.0
  %2852 = vmatprep.subr.mxu0 0.0
  %2853 = vmatpush1.msra.mxu0 0.0
  %2854 = vmatprep.subr.mxu0 0.0
  %2855 = vmatpush1.msra.mxu0 0.0
  %2856 = vmatprep.subr.mxu0 0.0
  %2857 = vmatpush1.msra.mxu0 0.0
  %2858 = vmatprep.subr.mxu0 0.0
  %2859 = vmatpush1.msra.mxu0 0.0
  %2860 = vmatprep.subr.mxu0 0.0
  %2861 = vmatpush1.msra.mxu0 0.0
  %2862 = vmatprep.subr.mxu0 0.0
  %2863 = vmatpush1.msra.mxu0 0.0
  %2864 = vmatprep.subr.mxu0 0.0
  %2865 = vmatpush1.msra.mxu0 0.0
  %2866 = vmatprep.subr.mxu0 0.0
  %2867 = vmatpush1.msra.mxu0 0.0
  %2868 = vmatprep.subr.mxu0 0.0
  %2869 = vmatpush1.msra.mxu0 0.0
  %2870 = vmatprep.subr.mxu0 0.0
  %2871 = vmatpush1.msra.mxu0 0.0
  %2872 = vmatprep.subr.mxu0 %v1710
  %2873 = vmatpush1.msra.mxu0 %v1707
  %2874 = vmatprep.subr.mxu0 %v1575
  %2875 = vmatpush1.msra.mxu0 %v1574
  %2876 = vmatprep.subr.mxu0 %v1541
  %2877 = vmatpush1.msra.mxu0 %v1540
  %2878 = vmatprep.subr.mxu0 %v1507
  %2879 = vmatpush1.msra.mxu0 %v1506
  %2880 = vmatprep.subr.mxu0 0.0
  %2881 = vmatpush2.msra.mxu0 0.0
  %2882 = vmatprep.subr.mxu0 0.0
  %2883 = vmatpush2.msra.mxu0 0.0
  %2884 = vmatprep.subr.mxu0 0.0
  %2885 = vmatpush2.msra.mxu0 0.0
  %2886 = vmatprep.subr.mxu0 0.0
  %2887 = vmatpush2.msra.mxu0 0.0
  %2888 = vmatprep.subr.mxu0 0.0
  %2889 = vmatpush2.msra.mxu0 0.0
  %2890 = vmatprep.subr.mxu0 0.0
  %2891 = vmatpush2.msra.mxu0 0.0
  %2892 = vmatprep.subr.mxu0 0.0
  %2893 = vmatpush2.msra.mxu0 0.0
  %2894 = vmatprep.subr.mxu0 0.0
  %2895 = vmatpush2.msra.mxu0 0.0
  %2896 = vmatprep.subr.mxu0 0.0
  %2897 = vmatpush2.msra.mxu0 0.0
  %2898 = vmatprep.subr.mxu0 0.0
  %2899 = vmatpush2.msra.mxu0 0.0
  %2900 = vmatprep.subr.mxu0 0.0
  %2901 = vmatpush2.msra.mxu0 0.0
  %2902 = vmatprep.subr.mxu0 0.0
  %2903 = vmatpush2.msra.mxu0 0.0
  %2904 = vmatprep.subr.mxu0 0.0
  %2905 = vmatpush2.msra.mxu0 0.0
  %2906 = vmatprep.subr.mxu0 0.0
  %2907 = vmatpush2.msra.mxu0 0.0
  %2908 = vmatprep.subr.mxu0 0.0
  %2909 = vmatpush2.msra.mxu0 0.0
  %2910 = vmatprep.subr.mxu0 0.0
  %2911 = vmatpush2.msra.mxu0 0.0
  %2912 = vmatprep.mubr.f32.mxu0 0.0
  %2913 = vmatmul.mubr.f32.gmra.mxu0 %v162
  %v2914 = vpop.f32.mrf.mxu0
  %v2915 = vadd.f32 0.0, %v2914
  %v2916 = vpop.f32.mrf.mxu0
  %v2917 = vadd.f32 0.0, %v2916
  %2918 = vdwg.mxu0
  %v2919 = vmax.f32 %v334, %v1779
  %v2920 = vmax.f32 %v336, %v1781
  %v2921 = vmax.f32 %v405, %v1850
  %v2922 = vmax.f32 %v407, %v1852
  %v2923 = vmax.f32 %v476, %v1921
  %v2924 = vmax.f32 %v478, %v1923
  %v2925 = vmax.f32 %v547, %v1992
  %v2926 = vmax.f32 %v549, %v1994
  %v2927 = vmax.f32 %v618, %v2063
  %v2928 = vmax.f32 %v620, %v2065
  %v2929 = vmax.f32 %v689, %v2134
  %v2930 = vmax.f32 %v691, %v2136
  %v2931 = vmax.f32 %v760, %v2205
  %v2932 = vmax.f32 %v762, %v2207
  %v2933 = vmax.f32 %v831, %v2276
  %v2934 = vmax.f32 %v833, %v2278
  %v2935 = vmax.f32 %v902, %v2347
  %v2936 = vmax.f32 %v904, %v2349
  %v2937 = vmax.f32 %v973, %v2418
  %v2938 = vmax.f32 %v975, %v2420
  %v2939 = vmax.f32 %v1044, %v2489
  %v2940 = vmax.f32 %v1046, %v2491
  %v2941 = vmax.f32 %v1115, %v2560
  %v2942 = vmax.f32 %v1117, %v2562
  %v2943 = vmax.f32 %v1186, %v2631
  %v2944 = vmax.f32 %v1188, %v2633
  %v2945 = vmax.f32 %v1257, %v2702
  %v2946 = vmax.f32 %v1259, %v2704
  %v2947 = vmax.f32 %v1328, %v2773
  %v2948 = vmax.f32 %v1330, %v2775
  %v2949 = vmax.f32 %v1399, %v2844
  %v2950 = vmax.f32 %v1401, %v2846
  %v2951 = vmax.f32 %v1470, %v2915
  %v2952 = vmax.f32 %v1472, %v2917
  %v2953 = vld [vmem:[%s2] sm:$0xff]
  %v2954 = vld [vmem:[%s2 + $0x8] sm:$0xff]
  %v2955 = vld [vmem:[%s2 + $0x10] sm:$0xff]
  %v2956 = vld [vmem:[%s2 + $0x18] sm:$0xff]
  %v2957 = vld [vmem:[%s2 + $0x20] sm:$0xff]
  %v2958 = vld [vmem:[%s2 + $0x28] sm:$0xff]
  %v2959 = vld [vmem:[%s2 + $0x30] sm:$0xff]
  %v2960 = vld [vmem:[%s2 + $0x38] sm:$0xff]
  %v2961 = vld [vmem:[%s2 + $0x40] sm:$0xff]
  %v2962 = vld [vmem:[%s2 + $0x48] sm:$0xff]
  %v2963 = vld [vmem:[%s2 + $0x50] sm:$0xff]
  %v2964 = vld [vmem:[%s2 + $0x58] sm:$0xff]
  %v2965 = vld [vmem:[%s2 + $0x60] sm:$0xff]
  %v2966 = vld [vmem:[%s2 + $0x68] sm:$0xff]
  %v2967 = vld [vmem:[%s2 + $0x70] sm:$0xff]
  %v2968 = vld [vmem:[%s2 + $0x78] sm:$0xff]
  %v2969 = vld [vmem:[%s2 + $0x80] sm:$0xff]
  %v2970 = vld [vmem:[%s2 + $0x88] sm:$0xff]
  %v2971 = vld [vmem:[%s2 + $0x90] sm:$0xff]
  %v2972 = vld [vmem:[%s2 + $0x98] sm:$0xff]
  %v2973 = vld [vmem:[%s2 + $0xa0] sm:$0xff]
  %v2974 = vld [vmem:[%s2 + $0xa8] sm:$0xff]
  %v2975 = vld [vmem:[%s2 + $0xb0] sm:$0xff]
  %v2976 = vld [vmem:[%s2 + $0xb8] sm:$0xff]
  %v2977 = vld [vmem:[%s2 + $0xc0] sm:$0xff]
  %v2978 = vld [vmem:[%s2 + $0xc8] sm:$0xff]
  %v2979 = vld [vmem:[%s2 + $0xd0] sm:$0xff]
  %v2980 = vld [vmem:[%s2 + $0xd8] sm:$0xff]
  %v2981 = vld [vmem:[%s2 + $0xe0] sm:$0xff]
  %v2982 = vld [vmem:[%s2 + $0xe8] sm:$0xff]
  %v2983 = vld [vmem:[%s2 + $0xf0] sm:$0xff]
  %v2984 = vld [vmem:[%s2 + $0xf8] sm:$0xff]
  %v2985 = vld [vmem:[%s2 + $0x100] sm:$0xff]
  %v2986 = vld [vmem:[%s2 + $0x108] sm:$0xff]
  %v2987 = vld [vmem:[%s2 + $0x110] sm:$0xff]
  %v2988 = vld [vmem:[%s2 + $0x118] sm:$0xff]
  %v2989 = vld [vmem:[%s2 + $0x120] sm:$0xff]
  %v2990 = vld [vmem:[%s2 + $0x128] sm:$0xff]
  %v2991 = vld [vmem:[%s2 + $0x130] sm:$0xff]
  %v2992 = vld [vmem:[%s2 + $0x138] sm:$0xff]
  %v2993 = vld [vmem:[%s2 + $0x140] sm:$0xff]
  %v2994 = vld [vmem:[%s2 + $0x148] sm:$0xff]
  %v2995 = vld [vmem:[%s2 + $0x150] sm:$0xff]
  %v2996 = vld [vmem:[%s2 + $0x158] sm:$0xff]
  %v2997 = vld [vmem:[%s2 + $0x160] sm:$0xff]
  %v2998 = vld [vmem:[%s2 + $0x168] sm:$0xff]
  %v2999 = vld [vmem:[%s2 + $0x170] sm:$0xff]
  %v3000 = vld [vmem:[%s2 + $0x178] sm:$0xff]
  %v3001 = vld [vmem:[%s2 + $0x180] sm:$0xff]
  %v3002 = vld [vmem:[%s2 + $0x188] sm:$0xff]
  %v3003 = vld [vmem:[%s2 + $0x190] sm:$0xff]
  %v3004 = vld [vmem:[%s2 + $0x198] sm:$0xff]
  %v3005 = vld [vmem:[%s2 + $0x1a0] sm:$0xff]
  %v3006 = vld [vmem:[%s2 + $0x1a8] sm:$0xff]
  %v3007 = vld [vmem:[%s2 + $0x1b0] sm:$0xff]
  %v3008 = vld [vmem:[%s2 + $0x1b8] sm:$0xff]
  %v3009 = vld [vmem:[%s2 + $0x1c0] sm:$0xff]
  %v3010 = vld [vmem:[%s2 + $0x1c8] sm:$0xff]
  %v3011 = vld [vmem:[%s2 + $0x1d0] sm:$0xff]
  %v3012 = vld [vmem:[%s2 + $0x1d8] sm:$0xff]
  %v3013 = vld [vmem:[%s2 + $0x1e0] sm:$0xff]
  %v3014 = vld [vmem:[%s2 + $0x1e8] sm:$0xff]
  %v3015 = vld [vmem:[%s2 + $0x1f0] sm:$0xff]
  %v3016 = vld [vmem:[%s2 + $0x1f8] sm:$0xff]
  %v3017 = vld [vmem:[%s2 + $0x200] sm:$0xff]
  %v3018 = vld [vmem:[%s2 + $0x208] sm:$0xff]
  %v3019 = vld [vmem:[%s2 + $0x210] sm:$0xff]
  %v3020 = vld [vmem:[%s2 + $0x218] sm:$0xff]
  %v3021 = vld [vmem:[%s2 + $0x220] sm:$0xff]
  %v3022 = vld [vmem:[%s2 + $0x228] sm:$0xff]
  %v3023 = vld [vmem:[%s2 + $0x230] sm:$0xff]
  %v3024 = vld [vmem:[%s2 + $0x238] sm:$0xff]
  %v3025 = vld [vmem:[%s2 + $0x240] sm:$0xff]
  %v3026 = vld [vmem:[%s2 + $0x248] sm:$0xff]
  %v3027 = vld [vmem:[%s2 + $0x250] sm:$0xff]
  %v3028 = vld [vmem:[%s2 + $0x258] sm:$0xff]
  %v3029 = vld [vmem:[%s2 + $0x260] sm:$0xff]
  %v3030 = vld [vmem:[%s2 + $0x268] sm:$0xff]
  %v3031 = vld [vmem:[%s2 + $0x270] sm:$0xff]
  %v3032 = vld [vmem:[%s2 + $0x278] sm:$0xff]
  %v3033 = vld [vmem:[%s2 + $0x280] sm:$0xff]
  %v3034 = vld [vmem:[%s2 + $0x288] sm:$0xff]
  %v3035 = vld [vmem:[%s2 + $0x290] sm:$0xff]
  %v3036 = vld [vmem:[%s2 + $0x298] sm:$0xff]
  %v3037 = vld [vmem:[%s2 + $0x2a0] sm:$0xff]
  %v3038 = vld [vmem:[%s2 + $0x2a8] sm:$0xff]
  %v3039 = vld [vmem:[%s2 + $0x2b0] sm:$0xff]
  %v3040 = vld [vmem:[%s2 + $0x2b8] sm:$0xff]
  %v3041 = vld [vmem:[%s2 + $0x2c0] sm:$0xff]
  %v3042 = vld [vmem:[%s2 + $0x2c8] sm:$0xff]
  %v3043 = vld [vmem:[%s2 + $0x2d0] sm:$0xff]
  %v3044 = vld [vmem:[%s2 + $0x2d8] sm:$0xff]
  %v3045 = vld [vmem:[%s2 + $0x2e0] sm:$0xff]
  %v3046 = vld [vmem:[%s2 + $0x2e8] sm:$0xff]
  %v3047 = vld [vmem:[%s2 + $0x2f0] sm:$0xff]
  %v3048 = vld [vmem:[%s2 + $0x2f8] sm:$0xff]
  %v3049 = vld [vmem:[%s2 + $0x300] sm:$0xff]
  %v3050 = vld [vmem:[%s2 + $0x308] sm:$0xff]
  %v3051 = vld [vmem:[%s2 + $0x310] sm:$0xff]
  %v3052 = vld [vmem:[%s2 + $0x318] sm:$0xff]
  %v3053 = vld [vmem:[%s2 + $0x320] sm:$0xff]
  %v3054 = vld [vmem:[%s2 + $0x328] sm:$0xff]
  %v3055 = vld [vmem:[%s2 + $0x330] sm:$0x1]
  %v3056 = vld [vmem:[%s2 + $0x338] sm:$0x1]
  %v3057 = vld [vmem:[%s2 + $0x340] sm:$0x1]
  %v3058 = vld [vmem:[%s2 + $0x348] sm:$0x1]
  %v3059 = vld [vmem:[%s2 + $0x350] sm:$0x1]
  %v3060 = vld [vmem:[%s2 + $0x358] sm:$0x1]
  %v3061 = vld [vmem:[%s2 + $0x360] sm:$0x1]
  %v3062 = vld [vmem:[%s2 + $0x368] sm:$0x1]
  %v3063 = vld [vmem:[%s2 + $0x370] sm:$0x1]
  %v3064 = vld [vmem:[%s2 + $0x378] sm:$0x1]
  %v3065 = vld [vmem:[%s2 + $0x380] sm:$0x1]
  %v3066 = vld [vmem:[%s2 + $0x388] sm:$0x1]
  %v3067 = vld [vmem:[%s2 + $0x390] sm:$0x1]
  %v3068 = vld [vmem:[%s2 + $0x398] sm:$0x1]
  %v3069 = vld [vmem:[%s2 + $0x3a0] sm:$0x1]
  %v3070 = vld [vmem:[%s2 + $0x3a8] sm:$0x1]
  %v3071 = vld [vmem:[%s2 + $0x3b0] sm:$0x1]
  %v3072 = vld [vmem:[%s2 + $0x3b8] sm:$0x1]
  %v3073 = vld [vmem:[%s2 + $0x3c0] sm:$0x1]
  %v3074 = vld [vmem:[%s2 + $0x3c8] sm:$0x1]
  %v3075 = vld [vmem:[%s2 + $0x3d0] sm:$0x1]
  %v3076 = vld [vmem:[%s2 + $0x3d8] sm:$0x1]
  %v3077 = vld [vmem:[%s2 + $0x3e0] sm:$0x1]
  %v3078 = vld [vmem:[%s2 + $0x3e8] sm:$0x1]
  %v3079 = vld [vmem:[%s2 + $0x3f0] sm:$0x1]
  %v3080 = vld [vmem:[%s2 + $0x3f8] sm:$0x1]
  %v3081 = vld [vmem:[%s2 + $0x400] sm:$0x1]
  %v3082 = vld [vmem:[%s2 + $0x408] sm:$0x1]
  %v3083 = vld [vmem:[%s2 + $0x410] sm:$0x1]
  %v3084 = vld [vmem:[%s2 + $0x418] sm:$0x1]
  %v3085 = vld [vmem:[%s2 + $0x420] sm:$0x1]
  %v3086 = vld [vmem:[%s2 + $0x428] sm:$0x1]
  %v3087 = vld [vmem:[%s2 + $0x430] sm:$0x1]
  %v3088 = vld [vmem:[%s2 + $0x438] sm:$0x1]
  %v3090 = vsel %vm164, %v3055, 0
  %v3093 = vsel %vm164, %v3056, 0
  %v3096 = vsel %vm164, %v3057, 0
  %v3099 = vsel %vm164, %v3058, 0
  %v3102 = vsel %vm164, %v3059, 0
  %v3105 = vsel %vm164, %v3060, 0
  %v3108 = vsel %vm164, %v3061, 0
  %v3111 = vsel %vm164, %v3062, 0
  %v3114 = vsel %vm164, %v3063, 0
  %v3117 = vsel %vm164, %v3064, 0
  %v3120 = vsel %vm164, %v3065, 0
  %v3123 = vsel %vm164, %v3066, 0
  %v3126 = vsel %vm164, %v3067, 0
  %v3129 = vsel %vm164, %v3068, 0
  %v3132 = vsel %vm164, %v3069, 0
  %v3135 = vsel %vm164, %v3070, 0
  %v3138 = vsel %vm164, %v3071, 0
  %v3141 = vsel %vm164, %v3072, 0
  %v3144 = vsel %vm164, %v3073, 0
  %v3147 = vsel %vm164, %v3074, 0
  %v3150 = vsel %vm164, %v3075, 0
  %v3153 = vsel %vm164, %v3076, 0
  %v3156 = vsel %vm164, %v3077, 0
  %v3159 = vsel %vm164, %v3078, 0
  %v3162 = vsel %vm164, %v3079, 0
  %v3165 = vsel %vm164, %v3080, 0
  %v3168 = vsel %vm164, %v3081, 0
  %v3171 = vsel %vm164, %v3082, 0
  %v3174 = vsel %vm164, %v3083, 0
  %v3177 = vsel %vm164, %v3084, 0
  %v3180 = vsel %vm164, %v3085, 0
  %v3183 = vsel %vm164, %v3086, 0
  %v3186 = vsel %vm164, %v3087, 0
  %v3189 = vsel %vm164, %v3088, 0
  %3191 = vmatprep.subr.mxu0 0.0
  %3192 = vmatpush1.msra.mxu0 0.0
  %3193 = vmatprep.subr.mxu0 0.0
  %3194 = vmatpush1.msra.mxu0 0.0
  %3195 = vmatprep.subr.mxu0 0.0
  %3196 = vmatpush1.msra.mxu0 0.0
  %3197 = vmatprep.subr.mxu0 0.0
  %3198 = vmatpush1.msra.mxu0 0.0
  %3199 = vmatprep.subr.mxu0 0.0
  %3200 = vmatpush1.msra.mxu0 0.0
  %3201 = vmatprep.subr.mxu0 0.0
  %3202 = vmatpush1.msra.mxu0 0.0
  %3203 = vmatprep.subr.mxu0 0.0
  %3204 = vmatpush1.msra.mxu0 0.0
  %3205 = vmatprep.subr.mxu0 0.0
  %3206 = vmatpush1.msra.mxu0 0.0
  %3207 = vmatprep.subr.mxu0 0.0
  %3208 = vmatpush1.msra.mxu0 0.0
  %3209 = vmatprep.subr.mxu0 0.0
  %3210 = vmatpush1.msra.mxu0 0.0
  %3211 = vmatprep.subr.mxu0 0.0
  %3212 = vmatpush1.msra.mxu0 0.0
  %3213 = vmatprep.subr.mxu0 0.0
  %3214 = vmatpush1.msra.mxu0 0.0
  %3215 = vmatprep.subr.mxu0 %v3093
  %3216 = vmatpush1.msra.mxu0 %v3090
  %3217 = vmatprep.subr.mxu0 %v3022
  %3218 = vmatpush1.msra.mxu0 %v3021
  %3219 = vmatprep.subr.mxu0 %v2988
  %3220 = vmatpush1.msra.mxu0 %v2987
  %3221 = vmatprep.subr.mxu0 %v2954
  %3222 = vmatpush1.msra.mxu0 %v2953
  %3223 = vmatprep.subr.mxu0 0.0
  %3224 = vmatpush2.msra.mxu0 0.0
  %3225 = vmatprep.subr.mxu0 0.0
  %3226 = vmatpush2.msra.mxu0 0.0
  %3227 = vmatprep.subr.mxu0 0.0
  %3228 = vmatpush2.msra.mxu0 0.0
  %3229 = vmatprep.subr.mxu0 0.0
  %3230 = vmatpush2.msra.mxu0 0.0
  %3231 = vmatprep.subr.mxu0 0.0
  %3232 = vmatpush2.msra.mxu0 0.0
  %3233 = vmatprep.subr.mxu0 0.0
  %3234 = vmatpush2.msra.mxu0 0.0
  %3235 = vmatprep.subr.mxu0 0.0
  %3236 = vmatpush2.msra.mxu0 0.0
  %3237 = vmatprep.subr.mxu0 0.0
  %3238 = vmatpush2.msra.mxu0 0.0
  %3239 = vmatprep.subr.mxu0 0.0
  %3240 = vmatpush2.msra.mxu0 0.0
  %3241 = vmatprep.subr.mxu0 0.0
  %3242 = vmatpush2.msra.mxu0 0.0
  %3243 = vmatprep.subr.mxu0 0.0
  %3244 = vmatpush2.msra.mxu0 0.0
  %3245 = vmatprep.subr.mxu0 0.0
  %3246 = vmatpush2.msra.mxu0 0.0
  %3247 = vmatprep.subr.mxu0 0.0
  %3248 = vmatpush2.msra.mxu0 0.0
  %3249 = vmatprep.subr.mxu0 0.0
  %3250 = vmatpush2.msra.mxu0 0.0
  %3251 = vmatprep.subr.mxu0 0.0
  %3252 = vmatpush2.msra.mxu0 0.0
  %3253 = vmatprep.subr.mxu0 0.0
  %3254 = vmatpush2.msra.mxu0 0.0
  %3255 = vmatprep.mubr.f32.mxu0 0.0
  %3256 = vmatmul.mubr.f32.gmra.mxu0 %v162
  %v3257 = vpop.f32.mrf.mxu0
  %v3258 = vadd.f32 0.0, %v3257
  %v3259 = vpop.f32.mrf.mxu0
  %v3260 = vadd.f32 0.0, %v3259
  %3261 = vdwg.mxu0
  %3262 = vmatprep.subr.mxu0 0.0
  %3263 = vmatpush1.msra.mxu0 0.0
  %3264 = vmatprep.subr.mxu0 0.0
  %3265 = vmatpush1.msra.mxu0 0.0
  %3266 = vmatprep.subr.mxu0 0.0
  %3267 = vmatpush1.msra.mxu0 0.0
  %3268 = vmatprep.subr.mxu0 0.0
  %3269 = vmatpush1.msra.mxu0 0.0
  %3270 = vmatprep.subr.mxu0 0.0
  %3271 = vmatpush1.msra.mxu0 0.0
  %3272 = vmatprep.subr.mxu0 0.0
  %3273 = vmatpush1.msra.mxu0 0.0
  %3274 = vmatprep.subr.mxu0 0.0
  %3275 = vmatpush1.msra.mxu0 0.0
  %3276 = vmatprep.subr.mxu0 0.0
  %3277 = vmatpush1.msra.mxu0 0.0
  %3278 = vmatprep.subr.mxu0 0.0
  %3279 = vmatpush1.msra.mxu0 0.0
  %3280 = vmatprep.subr.mxu0 0.0
  %3281 = vmatpush1.msra.mxu0 0.0
  %3282 = vmatprep.subr.mxu0 0.0
  %3283 = vmatpush1.msra.mxu0 0.0
  %3284 = vmatprep.subr.mxu0 0.0
  %3285 = vmatpush1.msra.mxu0 0.0
  %3286 = vmatprep.subr.mxu0 %v3099
  %3287 = vmatpush1.msra.mxu0 %v3096
  %3288 = vmatprep.subr.mxu0 %v3024
  %3289 = vmatpush1.msra.mxu0 %v3023
  %3290 = vmatprep.subr.mxu0 %v2990
  %3291 = vmatpush1.msra.mxu0 %v2989
  %3292 = vmatprep.subr.mxu0 %v2956
  %3293 = vmatpush1.msra.mxu0 %v2955
  %3294 = vmatprep.subr.mxu0 0.0
  %3295 = vmatpush2.msra.mxu0 0.0
  %3296 = vmatprep.subr.mxu0 0.0
  %3297 = vmatpush2.msra.mxu0 0.0
  %3298 = vmatprep.subr.mxu0 0.0
  %3299 = vmatpush2.msra.mxu0 0.0
  %3300 = vmatprep.subr.mxu0 0.0
  %3301 = vmatpush2.msra.mxu0 0.0
  %3302 = vmatprep.subr.mxu0 0.0
  %3303 = vmatpush2.msra.mxu0 0.0
  %3304 = vmatprep.subr.mxu0 0.0
  %3305 = vmatpush2.msra.mxu0 0.0
  %3306 = vmatprep.subr.mxu0 0.0
  %3307 = vmatpush2.msra.mxu0 0.0
  %3308 = vmatprep.subr.mxu0 0.0
  %3309 = vmatpush2.msra.mxu0 0.0
  %3310 = vmatprep.subr.mxu0 0.0
  %3311 = vmatpush2.msra.mxu0 0.0
  %3312 = vmatprep.subr.mxu0 0.0
  %3313 = vmatpush2.msra.mxu0 0.0
  %3314 = vmatprep.subr.mxu0 0.0
  %3315 = vmatpush2.msra.mxu0 0.0
  %3316 = vmatprep.subr.mxu0 0.0
  %3317 = vmatpush2.msra.mxu0 0.0
  %3318 = vmatprep.subr.mxu0 0.0
  %3319 = vmatpush2.msra.mxu0 0.0
  %3320 = vmatprep.subr.mxu0 0.0
  %3321 = vmatpush2.msra.mxu0 0.0
  %3322 = vmatprep.subr.mxu0 0.0
  %3323 = vmatpush2.msra.mxu0 0.0
  %3324 = vmatprep.subr.mxu0 0.0
  %3325 = vmatpush2.msra.mxu0 0.0
  %3326 = vmatprep.mubr.f32.mxu0 0.0
  %3327 = vmatmul.mubr.f32.gmra.mxu0 %v162
  %v3328 = vpop.f32.mrf.mxu0
  %v3329 = vadd.f32 0.0, %v3328
  %v3330 = vpop.f32.mrf.mxu0
  %v3331 = vadd.f32 0.0, %v3330
  %3332 = vdwg.mxu0
  %3333 = vmatprep.subr.mxu0 0.0
  %3334 = vmatpush1.msra.mxu0 0.0
  %3335 = vmatprep.subr.mxu0 0.0
  %3336 = vmatpush1.msra.mxu0 0.0
  %3337 = vmatprep.subr.mxu0 0.0
  %3338 = vmatpush1.msra.mxu0 0.0
  %3339 = vmatprep.subr.mxu0 0.0
  %3340 = vmatpush1.msra.mxu0 0.0
  %3341 = vmatprep.subr.mxu0 0.0
  %3342 = vmatpush1.msra.mxu0 0.0
  %3343 = vmatprep.subr.mxu0 0.0
  %3344 = vmatpush1.msra.mxu0 0.0
  %3345 = vmatprep.subr.mxu0 0.0
  %3346 = vmatpush1.msra.mxu0 0.0
  %3347 = vmatprep.subr.mxu0 0.0
  %3348 = vmatpush1.msra.mxu0 0.0
  %3349 = vmatprep.subr.mxu0 0.0
  %3350 = vmatpush1.msra.mxu0 0.0
  %3351 = vmatprep.subr.mxu0 0.0
  %3352 = vmatpush1.msra.mxu0 0.0
  %3353 = vmatprep.subr.mxu0 0.0
  %3354 = vmatpush1.msra.mxu0 0.0
  %3355 = vmatprep.subr.mxu0 0.0
  %3356 = vmatpush1.msra.mxu0 0.0
  %3357 = vmatprep.subr.mxu0 %v3105
  %3358 = vmatpush1.msra.mxu0 %v3102
  %3359 = vmatprep.subr.mxu0 %v3026
  %3360 = vmatpush1.msra.mxu0 %v3025
  %3361 = vmatprep.subr.mxu0 %v2992
  %3362 = vmatpush1.msra.mxu0 %v2991
  %3363 = vmatprep.subr.mxu0 %v2958
  %3364 = vmatpush1.msra.mxu0 %v2957
  %3365 = vmatprep.subr.mxu0 0.0
  %3366 = vmatpush2.msra.mxu0 0.0
  %3367 = vmatprep.subr.mxu0 0.0
  %3368 = vmatpush2.msra.mxu0 0.0
  %3369 = vmatprep.subr.mxu0 0.0
  %3370 = vmatpush2.msra.mxu0 0.0
  %3371 = vmatprep.subr.mxu0 0.0
  %3372 = vmatpush2.msra.mxu0 0.0
  %3373 = vmatprep.subr.mxu0 0.0
  %3374 = vmatpush2.msra.mxu0 0.0
  %3375 = vmatprep.subr.mxu0 0.0
  %3376 = vmatpush2.msra.mxu0 0.0
  %3377 = vmatprep.subr.mxu0 0.0
  %3378 = vmatpush2.msra.mxu0 0.0
  %3379 = vmatprep.subr.mxu0 0.0
  %3380 = vmatpush2.msra.mxu0 0.0
  %3381 = vmatprep.subr.mxu0 0.0
  %3382 = vmatpush2.msra.mxu0 0.0
  %3383 = vmatprep.subr.mxu0 0.0
  %3384 = vmatpush2.msra.mxu0 0.0
  %3385 = vmatprep.subr.mxu0 0.0
  %3386 = vmatpush2.msra.mxu0 0.0
  %3387 = vmatprep.subr.mxu0 0.0
  %3388 = vmatpush2.msra.mxu0 0.0
  %3389 = vmatprep.subr.mxu0 0.0
  %3390 = vmatpush2.msra.mxu0 0.0
  %3391 = vmatprep.subr.mxu0 0.0
  %3392 = vmatpush2.msra.mxu0 0.0
  %3393 = vmatprep.subr.mxu0 0.0
  %3394 = vmatpush2.msra.mxu0 0.0
  %3395 = vmatprep.subr.mxu0 0.0
  %3396 = vmatpush2.msra.mxu0 0.0
  %3397 = vmatprep.mubr.f32.mxu0 0.0
  %3398 = vmatmul.mubr.f32.gmra.mxu0 %v162
  %v3399 = vpop.f32.mrf.mxu0
  %v3400 = vadd.f32 0.0, %v3399
  %v3401 = vpop.f32.mrf.mxu0
  %v3402 = vadd.f32 0.0, %v3401
  %3403 = vdwg.mxu0
  %3404 = vmatprep.subr.mxu0 0.0
  %3405 = vmatpush1.msra.mxu0 0.0
  %3406 = vmatprep.subr.mxu0 0.0
  %3407 = vmatpush1.msra.mxu0 0.0
  %3408 = vmatprep.subr.mxu0 0.0
  %3409 = vmatpush1.msra.mxu0 0.0
  %3410 = vmatprep.subr.mxu0 0.0
  %3411 = vmatpush1.msra.mxu0 0.0
  %3412 = vmatprep.subr.mxu0 0.0
  %3413 = vmatpush1.msra.mxu0 0.0
  %3414 = vmatprep.subr.mxu0 0.0
  %3415 = vmatpush1.msra.mxu0 0.0
  %3416 = vmatprep.subr.mxu0 0.0
  %3417 = vmatpush1.msra.mxu0 0.0
  %3418 = vmatprep.subr.mxu0 0.0
  %3419 = vmatpush1.msra.mxu0 0.0
  %3420 = vmatprep.subr.mxu0 0.0
  %3421 = vmatpush1.msra.mxu0 0.0
  %3422 = vmatprep.subr.mxu0 0.0
  %3423 = vmatpush1.msra.mxu0 0.0
  %3424 = vmatprep.subr.mxu0 0.0
  %3425 = vmatpush1.msra.mxu0 0.0
  %3426 = vmatprep.subr.mxu0 0.0
  %3427 = vmatpush1.msra.mxu0 0.0
  %3428 = vmatprep.subr.mxu0 %v3111
  %3429 = vmatpush1.msra.mxu0 %v3108
  %3430 = vmatprep.subr.mxu0 %v3028
  %3431 = vmatpush1.msra.mxu0 %v3027
  %3432 = vmatprep.subr.mxu0 %v2994
  %3433 = vmatpush1.msra.mxu0 %v2993
  %3434 = vmatprep.subr.mxu0 %v2960
  %3435 = vmatpush1.msra.mxu0 %v2959
  %3436 = vmatprep.subr.mxu0 0.0
  %3437 = vmatpush2.msra.mxu0 0.0
  %3438 = vmatprep.subr.mxu0 0.0
  %3439 = vmatpush2.msra.mxu0 0.0
  %3440 = vmatprep.subr.mxu0 0.0
  %3441 = vmatpush2.msra.mxu0 0.0
  %3442 = vmatprep.subr.mxu0 0.0
  %3443 = vmatpush2.msra.mxu0 0.0
  %3444 = vmatprep.subr.mxu0 0.0
  %3445 = vmatpush2.msra.mxu0 0.0
  %3446 = vmatprep.subr.mxu0 0.0
  %3447 = vmatpush2.msra.mxu0 0.0
  %3448 = vmatprep.subr.mxu0 0.0
  %3449 = vmatpush2.msra.mxu0 0.0
  %3450 = vmatprep.subr.mxu0 0.0
  %3451 = vmatpush2.msra.mxu0 0.0
  %3452 = vmatprep.subr.mxu0 0.0
  %3453 = vmatpush2.msra.mxu0 0.0
  %3454 = vmatprep.subr.mxu0 0.0
  %3455 = vmatpush2.msra.mxu0 0.0
  %3456 = vmatprep.subr.mxu0 0.0
  %3457 = vmatpush2.msra.mxu0 0.0
  %3458 = vmatprep.subr.mxu0 0.0
  %3459 = vmatpush2.msra.mxu0 0.0
  %3460 = vmatprep.subr.mxu0 0.0
  %3461 = vmatpush2.msra.mxu0 0.0
  %3462 = vmatprep.subr.mxu0 0.0
  %3463 = vmatpush2.msra.mxu0 0.0
  %3464 = vmatprep.subr.mxu0 0.0
  %3465 = vmatpush2.msra.mxu0 0.0
  %3466 = vmatprep.subr.mxu0 0.0
  %3467 = vmatpush2.msra.mxu0 0.0
  %3468 = vmatprep.mubr.f32.mxu0 0.0
  %3469 = vmatmul.mubr.f32.gmra.mxu0 %v162
  %v3470 = vpop.f32.mrf.mxu0
  %v3471 = vadd.f32 0.0, %v3470
  %v3472 = vpop.f32.mrf.mxu0
  %v3473 = vadd.f32 0.0, %v3472
  %3474 = vdwg.mxu0
  %3475 = vmatprep.subr.mxu0 0.0
  %3476 = vmatpush1.msra.mxu0 0.0
  %3477 = vmatprep.subr.mxu0 0.0
  %3478 = vmatpush1.msra.mxu0 0.0
  %3479 = vmatprep.subr.mxu0 0.0
  %3480 = vmatpush1.msra.mxu0 0.0
  %3481 = vmatprep.subr.mxu0 0.0
  %3482 = vmatpush1.msra.mxu0 0.0
  %3483 = vmatprep.subr.mxu0 0.0
  %3484 = vmatpush1.msra.mxu0 0.0
  %3485 = vmatprep.subr.mxu0 0.0
  %3486 = vmatpush1.msra.mxu0 0.0
  %3487 = vmatprep.subr.mxu0 0.0
  %3488 = vmatpush1.msra.mxu0 0.0
  %3489 = vmatprep.subr.mxu0 0.0
  %3490 = vmatpush1.msra.mxu0 0.0
  %3491 = vmatprep.subr.mxu0 0.0
  %3492 = vmatpush1.msra.mxu0 0.0
  %3493 = vmatprep.subr.mxu0 0.0
  %3494 = vmatpush1.msra.mxu0 0.0
  %3495 = vmatprep.subr.mxu0 0.0
  %3496 = vmatpush1.msra.mxu0 0.0
  %3497 = vmatprep.subr.mxu0 0.0
  %3498 = vmatpush1.msra.mxu0 0.0
  %3499 = vmatprep.subr.mxu0 %v3117
  %3500 = vmatpush1.msra.mxu0 %v3114
  %3501 = vmatprep.subr.mxu0 %v3030
  %3502 = vmatpush1.msra.mxu0 %v3029
  %3503 = vmatprep.subr.mxu0 %v2996
  %3504 = vmatpush1.msra.mxu0 %v2995
  %3505 = vmatprep.subr.mxu0 %v2962
  %3506 = vmatpush1.msra.mxu0 %v2961
  %3507 = vmatprep.subr.mxu0 0.0
  %3508 = vmatpush2.msra.mxu0 0.0
  %3509 = vmatprep.subr.mxu0 0.0
  %3510 = vmatpush2.msra.mxu0 0.0
  %3511 = vmatprep.subr.mxu0 0.0
  %3512 = vmatpush2.msra.mxu0 0.0
  %3513 = vmatprep.subr.mxu0 0.0
  %3514 = vmatpush2.msra.mxu0 0.0
  %3515 = vmatprep.subr.mxu0 0.0
  %3516 = vmatpush2.msra.mxu0 0.0
  %3517 = vmatprep.subr.mxu0 0.0
  %3518 = vmatpush2.msra.mxu0 0.0
  %3519 = vmatprep.subr.mxu0 0.0
  %3520 = vmatpush2.msra.mxu0 0.0
  %3521 = vmatprep.subr.mxu0 0.0
  %3522 = vmatpush2.msra.mxu0 0.0
  %3523 = vmatprep.subr.mxu0 0.0
  %3524 = vmatpush2.msra.mxu0 0.0
  %3525 = vmatprep.subr.mxu0 0.0
  %3526 = vmatpush2.msra.mxu0 0.0
  %3527 = vmatprep.subr.mxu0 0.0
  %3528 = vmatpush2.msra.mxu0 0.0
  %3529 = vmatprep.subr.mxu0 0.0
  %3530 = vmatpush2.msra.mxu0 0.0
  %3531 = vmatprep.subr.mxu0 0.0
  %3532 = vmatpush2.msra.mxu0 0.0
  %3533 = vmatprep.subr.mxu0 0.0
  %3534 = vmatpush2.msra.mxu0 0.0
  %3535 = vmatprep.subr.mxu0 0.0
  %3536 = vmatpush2.msra.mxu0 0.0
  %3537 = vmatprep.subr.mxu0 0.0
  %3538 = vmatpush2.msra.mxu0 0.0
  %3539 = vmatprep.mubr.f32.mxu0 0.0
  %3540 = vmatmul.mubr.f32.gmra.mxu0 %v162
  %v3541 = vpop.f32.mrf.mxu0
  %v3542 = vadd.f32 0.0, %v3541
  %v3543 = vpop.f32.mrf.mxu0
  %v3544 = vadd.f32 0.0, %v3543
  %3545 = vdwg.mxu0
  %3546 = vmatprep.subr.mxu0 0.0
  %3547 = vmatpush1.msra.mxu0 0.0
  %3548 = vmatprep.subr.mxu0 0.0
  %3549 = vmatpush1.msra.mxu0 0.0
  %3550 = vmatprep.subr.mxu0 0.0
  %3551 = vmatpush1.msra.mxu0 0.0
  %3552 = vmatprep.subr.mxu0 0.0
  %3553 = vmatpush1.msra.mxu0 0.0
  %3554 = vmatprep.subr.mxu0 0.0
  %3555 = vmatpush1.msra.mxu0 0.0
  %3556 = vmatprep.subr.mxu0 0.0
  %3557 = vmatpush1.msra.mxu0 0.0
  %3558 = vmatprep.subr.mxu0 0.0
  %3559 = vmatpush1.msra.mxu0 0.0
  %3560 = vmatprep.subr.mxu0 0.0
  %3561 = vmatpush1.msra.mxu0 0.0
  %3562 = vmatprep.subr.mxu0 0.0
  %3563 = vmatpush1.msra.mxu0 0.0
  %3564 = vmatprep.subr.mxu0 0.0
  %3565 = vmatpush1.msra.mxu0 0.0
  %3566 = vmatprep.subr.mxu0 0.0
  %3567 = vmatpush1.msra.mxu0 0.0
  %3568 = vmatprep.subr.mxu0 0.0
  %3569 = vmatpush1.msra.mxu0 0.0
  %3570 = vmatprep.subr.mxu0 %v3123
  %3571 = vmatpush1.msra.mxu0 %v3120
  %3572 = vmatprep.subr.mxu0 %v3032
  %3573 = vmatpush1.msra.mxu0 %v3031
  %3574 = vmatprep.subr.mxu0 %v2998
  %3575 = vmatpush1.msra.mxu0 %v2997
  %3576 = vmatprep.subr.mxu0 %v2964
  %3577 = vmatpush1.msra.mxu0 %v2963
  %3578 = vmatprep.subr.mxu0 0.0
  %3579 = vmatpush2.msra.mxu0 0.0
  %3580 = vmatprep.subr.mxu0 0.0
  %3581 = vmatpush2.msra.mxu0 0.0
  %3582 = vmatprep.subr.mxu0 0.0
  %3583 = vmatpush2.msra.mxu0 0.0
  %3584 = vmatprep.subr.mxu0 0.0
  %3585 = vmatpush2.msra.mxu0 0.0
  %3586 = vmatprep.subr.mxu0 0.0
  %3587 = vmatpush2.msra.mxu0 0.0
  %3588 = vmatprep.subr.mxu0 0.0
  %3589 = vmatpush2.msra.mxu0 0.0
  %3590 = vmatprep.subr.mxu0 0.0
  %3591 = vmatpush2.msra.mxu0 0.0
  %3592 = vmatprep.subr.mxu0 0.0
  %3593 = vmatpush2.msra.mxu0 0.0
  %3594 = vmatprep.subr.mxu0 0.0
  %3595 = vmatpush2.msra.mxu0 0.0
  %3596 = vmatprep.subr.mxu0 0.0
  %3597 = vmatpush2.msra.mxu0 0.0
  %3598 = vmatprep.subr.mxu0 0.0
  %3599 = vmatpush2.msra.mxu0 0.0
  %3600 = vmatprep.subr.mxu0 0.0
  %3601 = vmatpush2.msra.mxu0 0.0
  %3602 = vmatprep.subr.mxu0 0.0
  %3603 = vmatpush2.msra.mxu0 0.0
  %3604 = vmatprep.subr.mxu0 0.0
  %3605 = vmatpush2.msra.mxu0 0.0
  %3606 = vmatprep.subr.mxu0 0.0
  %3607 = vmatpush2.msra.mxu0 0.0
  %3608 = vmatprep.subr.mxu0 0.0
  %3609 = vmatpush2.msra.mxu0 0.0
  %3610 = vmatprep.mubr.f32.mxu0 0.0
  %3611 = vmatmul.mubr.f32.gmra.mxu0 %v162
  %v3612 = vpop.f32.mrf.mxu0
  %v3613 = vadd.f32 0.0, %v3612
  %v3614 = vpop.f32.mrf.mxu0
  %v3615 = vadd.f32 0.0, %v3614
  %3616 = vdwg.mxu0
  %3617 = vmatprep.subr.mxu0 0.0
  %3618 = vmatpush1.msra.mxu0 0.0
  %3619 = vmatprep.subr.mxu0 0.0
  %3620 = vmatpush1.msra.mxu0 0.0
  %3621 = vmatprep.subr.mxu0 0.0
  %3622 = vmatpush1.msra.mxu0 0.0
  %3623 = vmatprep.subr.mxu0 0.0
  %3624 = vmatpush1.msra.mxu0 0.0
  %3625 = vmatprep.subr.mxu0 0.0
  %3626 = vmatpush1.msra.mxu0 0.0
  %3627 = vmatprep.subr.mxu0 0.0
  %3628 = vmatpush1.msra.mxu0 0.0
  %3629 = vmatprep.subr.mxu0 0.0
  %3630 = vmatpush1.msra.mxu0 0.0
  %3631 = vmatprep.subr.mxu0 0.0
  %3632 = vmatpush1.msra.mxu0 0.0
  %3633 = vmatprep.subr.mxu0 0.0
  %3634 = vmatpush1.msra.mxu0 0.0
  %3635 = vmatprep.subr.mxu0 0.0
  %3636 = vmatpush1.msra.mxu0 0.0
  %3637 = vmatprep.subr.mxu0 0.0
  %3638 = vmatpush1.msra.mxu0 0.0
  %3639 = vmatprep.subr.mxu0 0.0
  %3640 = vmatpush1.msra.mxu0 0.0
  %3641 = vmatprep.subr.mxu0 %v3129
  %3642 = vmatpush1.msra.mxu0 %v3126
  %3643 = vmatprep.subr.mxu0 %v3034
  %3644 = vmatpush1.msra.mxu0 %v3033
  %3645 = vmatprep.subr.mxu0 %v3000
  %3646 = vmatpush1.msra.mxu0 %v2999
  %3647 = vmatprep.subr.mxu0 %v2966
  %3648 = vmatpush1.msra.mxu0 %v2965
  %3649 = vmatprep.subr.mxu0 0.0
  %3650 = vmatpush2.msra.mxu0 0.0
  %3651 = vmatprep.subr.mxu0 0.0
  %3652 = vmatpush2.msra.mxu0 0.0
  %3653 = vmatprep.subr.mxu0 0.0
  %3654 = vmatpush2.msra.mxu0 0.0
  %3655 = vmatprep.subr.mxu0 0.0
  %3656 = vmatpush2.msra.mxu0 0.0
  %3657 = vmatprep.subr.mxu0 0.0
  %3658 = vmatpush2.msra.mxu0 0.0
  %3659 = vmatprep.subr.mxu0 0.0
  %3660 = vmatpush2.msra.mxu0 0.0
  %3661 = vmatprep.subr.mxu0 0.0
  %3662 = vmatpush2.msra.mxu0 0.0
  %3663 = vmatprep.subr.mxu0 0.0
  %3664 = vmatpush2.msra.mxu0 0.0
  %3665 = vmatprep.subr.mxu0 0.0
  %3666 = vmatpush2.msra.mxu0 0.0
  %3667 = vmatprep.subr.mxu0 0.0
  %3668 = vmatpush2.msra.mxu0 0.0
  %3669 = vmatprep.subr.mxu0 0.0
  %3670 = vmatpush2.msra.mxu0 0.0
  %3671 = vmatprep.subr.mxu0 0.0
  %3672 = vmatpush2.msra.mxu0 0.0
  %3673 = vmatprep.subr.mxu0 0.0
  %3674 = vmatpush2.msra.mxu0 0.0
  %3675 = vmatprep.subr.mxu0 0.0
  %3676 = vmatpush2.msra.mxu0 0.0
  %3677 = vmatprep.subr.mxu0 0.0
  %3678 = vmatpush2.msra.mxu0 0.0
  %3679 = vmatprep.subr.mxu0 0.0
  %3680 = vmatpush2.msra.mxu0 0.0
  %3681 = vmatprep.mubr.f32.mxu0 0.0
  %3682 = vmatmul.mubr.f32.gmra.mxu0 %v162
  %v3683 = vpop.f32.mrf.mxu0
  %v3684 = vadd.f32 0.0, %v3683
  %v3685 = vpop.f32.mrf.mxu0
  %v3686 = vadd.f32 0.0, %v3685
  %3687 = vdwg.mxu0
  %3688 = vmatprep.subr.mxu0 0.0
  %3689 = vmatpush1.msra.mxu0 0.0
  %3690 = vmatprep.subr.mxu0 0.0
  %3691 = vmatpush1.msra.mxu0 0.0
  %3692 = vmatprep.subr.mxu0 0.0
  %3693 = vmatpush1.msra.mxu0 0.0
  %3694 = vmatprep.subr.mxu0 0.0
  %3695 = vmatpush1.msra.mxu0 0.0
  %3696 = vmatprep.subr.mxu0 0.0
  %3697 = vmatpush1.msra.mxu0 0.0
  %3698 = vmatprep.subr.mxu0 0.0
  %3699 = vmatpush1.msra.mxu0 0.0
  %3700 = vmatprep.subr.mxu0 0.0
  %3701 = vmatpush1.msra.mxu0 0.0
  %3702 = vmatprep.subr.mxu0 0.0
  %3703 = vmatpush1.msra.mxu0 0.0
  %3704 = vmatprep.subr.mxu0 0.0
  %3705 = vmatpush1.msra.mxu0 0.0
  %3706 = vmatprep.subr.mxu0 0.0
  %3707 = vmatpush1.msra.mxu0 0.0
  %3708 = vmatprep.subr.mxu0 0.0
  %3709 = vmatpush1.msra.mxu0 0.0
  %3710 = vmatprep.subr.mxu0 0.0
  %3711 = vmatpush1.msra.mxu0 0.0
  %3712 = vmatprep.subr.mxu0 %v3135
  %3713 = vmatpush1.msra.mxu0 %v3132
  %3714 = vmatprep.subr.mxu0 %v3036
  %3715 = vmatpush1.msra.mxu0 %v3035
  %3716 = vmatprep.subr.mxu0 %v3002
  %3717 = vmatpush1.msra.mxu0 %v3001
  %3718 = vmatprep.subr.mxu0 %v2968
  %3719 = vmatpush1.msra.mxu0 %v2967
  %3720 = vmatprep.subr.mxu0 0.0
  %3721 = vmatpush2.msra.mxu0 0.0
  %3722 = vmatprep.subr.mxu0 0.0
  %3723 = vmatpush2.msra.mxu0 0.0
  %3724 = vmatprep.subr.mxu0 0.0
  %3725 = vmatpush2.msra.mxu0 0.0
  %3726 = vmatprep.subr.mxu0 0.0
  %3727 = vmatpush2.msra.mxu0 0.0
  %3728 = vmatprep.subr.mxu0 0.0
  %3729 = vmatpush2.msra.mxu0 0.0
  %3730 = vmatprep.subr.mxu0 0.0
  %3731 = vmatpush2.msra.mxu0 0.0
  %3732 = vmatprep.subr.mxu0 0.0
  %3733 = vmatpush2.msra.mxu0 0.0
  %3734 = vmatprep.subr.mxu0 0.0
  %3735 = vmatpush2.msra.mxu0 0.0
  %3736 = vmatprep.subr.mxu0 0.0
  %3737 = vmatpush2.msra.mxu0 0.0
  %3738 = vmatprep.subr.mxu0 0.0
  %3739 = vmatpush2.msra.mxu0 0.0
  %3740 = vmatprep.subr.mxu0 0.0
  %3741 = vmatpush2.msra.mxu0 0.0
  %3742 = vmatprep.subr.mxu0 0.0
  %3743 = vmatpush2.msra.mxu0 0.0
  %3744 = vmatprep.subr.mxu0 0.0
  %3745 = vmatpush2.msra.mxu0 0.0
  %3746 = vmatprep.subr.mxu0 0.0
  %3747 = vmatpush2.msra.mxu0 0.0
  %3748 = vmatprep.subr.mxu0 0.0
  %3749 = vmatpush2.msra.mxu0 0.0
  %3750 = vmatprep.subr.mxu0 0.0
  %3751 = vmatpush2.msra.mxu0 0.0
  %3752 = vmatprep.mubr.f32.mxu0 0.0
  %3753 = vmatmul.mubr.f32.gmra.mxu0 %v162
  %v3754 = vpop.f32.mrf.mxu0
  %v3755 = vadd.f32 0.0, %v3754
  %v3756 = vpop.f32.mrf.mxu0
  %v3757 = vadd.f32 0.0, %v3756
  %3758 = vdwg.mxu0
  %3759 = vmatprep.subr.mxu0 0.0
  %3760 = vmatpush1.msra.mxu0 0.0
  %3761 = vmatprep.subr.mxu0 0.0
  %3762 = vmatpush1.msra.mxu0 0.0
  %3763 = vmatprep.subr.mxu0 0.0
  %3764 = vmatpush1.msra.mxu0 0.0
  %3765 = vmatprep.subr.mxu0 0.0
  %3766 = vmatpush1.msra.mxu0 0.0
  %3767 = vmatprep.subr.mxu0 0.0
  %3768 = vmatpush1.msra.mxu0 0.0
  %3769 = vmatprep.subr.mxu0 0.0
  %3770 = vmatpush1.msra.mxu0 0.0
  %3771 = vmatprep.subr.mxu0 0.0
  %3772 = vmatpush1.msra.mxu0 0.0
  %3773 = vmatprep.subr.mxu0 0.0
  %3774 = vmatpush1.msra.mxu0 0.0
  %3775 = vmatprep.subr.mxu0 0.0
  %3776 = vmatpush1.msra.mxu0 0.0
  %3777 = vmatprep.subr.mxu0 0.0
  %3778 = vmatpush1.msra.mxu0 0.0
  %3779 = vmatprep.subr.mxu0 0.0
  %3780 = vmatpush1.msra.mxu0 0.0
  %3781 = vmatprep.subr.mxu0 0.0
  %3782 = vmatpush1.msra.mxu0 0.0
  %3783 = vmatprep.subr.mxu0 %v3141
  %3784 = vmatpush1.msra.mxu0 %v3138
  %3785 = vmatprep.subr.mxu0 %v3038
  %3786 = vmatpush1.msra.mxu0 %v3037
  %3787 = vmatprep.subr.mxu0 %v3004
  %3788 = vmatpush1.msra.mxu0 %v3003
  %3789 = vmatprep.subr.mxu0 %v2970
  %3790 = vmatpush1.msra.mxu0 %v2969
  %3791 = vmatprep.subr.mxu0 0.0
  %3792 = vmatpush2.msra.mxu0 0.0
  %3793 = vmatprep.subr.mxu0 0.0
  %3794 = vmatpush2.msra.mxu0 0.0
  %3795 = vmatprep.subr.mxu0 0.0
  %3796 = vmatpush2.msra.mxu0 0.0
  %3797 = vmatprep.subr.mxu0 0.0
  %3798 = vmatpush2.msra.mxu0 0.0
  %3799 = vmatprep.subr.mxu0 0.0
  %3800 = vmatpush2.msra.mxu0 0.0
  %3801 = vmatprep.subr.mxu0 0.0
  %3802 = vmatpush2.msra.mxu0 0.0
  %3803 = vmatprep.subr.mxu0 0.0
  %3804 = vmatpush2.msra.mxu0 0.0
  %3805 = vmatprep.subr.mxu0 0.0
  %3806 = vmatpush2.msra.mxu0 0.0
  %3807 = vmatprep.subr.mxu0 0.0
  %3808 = vmatpush2.msra.mxu0 0.0
  %3809 = vmatprep.subr.mxu0 0.0
  %3810 = vmatpush2.msra.mxu0 0.0
  %3811 = vmatprep.subr.mxu0 0.0
  %3812 = vmatpush2.msra.mxu0 0.0
  %3813 = vmatprep.subr.mxu0 0.0
  %3814 = vmatpush2.msra.mxu0 0.0
  %3815 = vmatprep.subr.mxu0 0.0
  %3816 = vmatpush2.msra.mxu0 0.0
  %3817 = vmatprep.subr.mxu0 0.0
  %3818 = vmatpush2.msra.mxu0 0.0
  %3819 = vmatprep.subr.mxu0 0.0
  %3820 = vmatpush2.msra.mxu0 0.0
  %3821 = vmatprep.subr.mxu0 0.0
  %3822 = vmatpush2.msra.mxu0 0.0
  %3823 = vmatprep.mubr.f32.mxu0 0.0
  %3824 = vmatmul.mubr.f32.gmra.mxu0 %v162
  %v3825 = vpop.f32.mrf.mxu0
  %v3826 = vadd.f32 0.0, %v3825
  %v3827 = vpop.f32.mrf.mxu0
  %v3828 = vadd.f32 0.0, %v3827
  %3829 = vdwg.mxu0
  %3830 = vmatprep.subr.mxu0 0.0
  %3831 = vmatpush1.msra.mxu0 0.0
  %3832 = vmatprep.subr.mxu0 0.0
  %3833 = vmatpush1.msra.mxu0 0.0
  %3834 = vmatprep.subr.mxu0 0.0
  %3835 = vmatpush1.msra.mxu0 0.0
  %3836 = vmatprep.subr.mxu0 0.0
  %3837 = vmatpush1.msra.mxu0 0.0
  %3838 = vmatprep.subr.mxu0 0.0
  %3839 = vmatpush1.msra.mxu0 0.0
  %3840 = vmatprep.subr.mxu0 0.0
  %3841 = vmatpush1.msra.mxu0 0.0
  %3842 = vmatprep.subr.mxu0 0.0
  %3843 = vmatpush1.msra.mxu0 0.0
  %3844 = vmatprep.subr.mxu0 0.0
  %3845 = vmatpush1.msra.mxu0 0.0
  %3846 = vmatprep.subr.mxu0 0.0
  %3847 = vmatpush1.msra.mxu0 0.0
  %3848 = vmatprep.subr.mxu0 0.0
  %3849 = vmatpush1.msra.mxu0 0.0
  %3850 = vmatprep.subr.mxu0 0.0
  %3851 = vmatpush1.msra.mxu0 0.0
  %3852 = vmatprep.subr.mxu0 0.0
  %3853 = vmatpush1.msra.mxu0 0.0
  %3854 = vmatprep.subr.mxu0 %v3147
  %3855 = vmatpush1.msra.mxu0 %v3144
  %3856 = vmatprep.subr.mxu0 %v3040
  %3857 = vmatpush1.msra.mxu0 %v3039
  %3858 = vmatprep.subr.mxu0 %v3006
  %3859 = vmatpush1.msra.mxu0 %v3005
  %3860 = vmatprep.subr.mxu0 %v2972
  %3861 = vmatpush1.msra.mxu0 %v2971
  %3862 = vmatprep.subr.mxu0 0.0
  %3863 = vmatpush2.msra.mxu0 0.0
  %3864 = vmatprep.subr.mxu0 0.0
  %3865 = vmatpush2.msra.mxu0 0.0
  %3866 = vmatprep.subr.mxu0 0.0
  %3867 = vmatpush2.msra.mxu0 0.0
  %3868 = vmatprep.subr.mxu0 0.0
  %3869 = vmatpush2.msra.mxu0 0.0
  %3870 = vmatprep.subr.mxu0 0.0
  %3871 = vmatpush2.msra.mxu0 0.0
  %3872 = vmatprep.subr.mxu0 0.0
  %3873 = vmatpush2.msra.mxu0 0.0
  %3874 = vmatprep.subr.mxu0 0.0
  %3875 = vmatpush2.msra.mxu0 0.0
  %3876 = vmatprep.subr.mxu0 0.0
  %3877 = vmatpush2.msra.mxu0 0.0
  %3878 = vmatprep.subr.mxu0 0.0
  %3879 = vmatpush2.msra.mxu0 0.0
  %3880 = vmatprep.subr.mxu0 0.0
  %3881 = vmatpush2.msra.mxu0 0.0
  %3882 = vmatprep.subr.mxu0 0.0
  %3883 = vmatpush2.msra.mxu0 0.0
  %3884 = vmatprep.subr.mxu0 0.0
  %3885 = vmatpush2.msra.mxu0 0.0
  %3886 = vmatprep.subr.mxu0 0.0
  %3887 = vmatpush2.msra.mxu0 0.0
  %3888 = vmatprep.subr.mxu0 0.0
  %3889 = vmatpush2.msra.mxu0 0.0
  %3890 = vmatprep.subr.mxu0 0.0
  %3891 = vmatpush2.msra.mxu0 0.0
  %3892 = vmatprep.subr.mxu0 0.0
  %3893 = vmatpush2.msra.mxu0 0.0
  %3894 = vmatprep.mubr.f32.mxu0 0.0
  %3895 = vmatmul.mubr.f32.gmra.mxu0 %v162
  %v3896 = vpop.f32.mrf.mxu0
  %v3897 = vadd.f32 0.0, %v3896
  %v3898 = vpop.f32.mrf.mxu0
  %v3899 = vadd.f32 0.0, %v3898
  %3900 = vdwg.mxu0
  %3901 = vmatprep.subr.mxu0 0.0
  %3902 = vmatpush1.msra.mxu0 0.0
  %3903 = vmatprep.subr.mxu0 0.0
  %3904 = vmatpush1.msra.mxu0 0.0
  %3905 = vmatprep.subr.mxu0 0.0
  %3906 = vmatpush1.msra.mxu0 0.0
  %3907 = vmatprep.subr.mxu0 0.0
  %3908 = vmatpush1.msra.mxu0 0.0
  %3909 = vmatprep.subr.mxu0 0.0
  %3910 = vmatpush1.msra.mxu0 0.0
  %3911 = vmatprep.subr.mxu0 0.0
  %3912 = vmatpush1.msra.mxu0 0.0
  %3913 = vmatprep.subr.mxu0 0.0
  %3914 = vmatpush1.msra.mxu0 0.0
  %3915 = vmatprep.subr.mxu0 0.0
  %3916 = vmatpush1.msra.mxu0 0.0
  %3917 = vmatprep.subr.mxu0 0.0
  %3918 = vmatpush1.msra.mxu0 0.0
  %3919 = vmatprep.subr.mxu0 0.0
  %3920 = vmatpush1.msra.mxu0 0.0
  %3921 = vmatprep.subr.mxu0 0.0
  %3922 = vmatpush1.msra.mxu0 0.0
  %3923 = vmatprep.subr.mxu0 0.0
  %3924 = vmatpush1.msra.mxu0 0.0
  %3925 = vmatprep.subr.mxu0 %v3153
  %3926 = vmatpush1.msra.mxu0 %v3150
  %3927 = vmatprep.subr.mxu0 %v3042
  %3928 = vmatpush1.msra.mxu0 %v3041
  %3929 = vmatprep.subr.mxu0 %v3008
  %3930 = vmatpush1.msra.mxu0 %v3007
  %3931 = vmatprep.subr.mxu0 %v2974
  %3932 = vmatpush1.msra.mxu0 %v2973
  %3933 = vmatprep.subr.mxu0 0.0
  %3934 = vmatpush2.msra.mxu0 0.0
  %3935 = vmatprep.subr.mxu0 0.0
  %3936 = vmatpush2.msra.mxu0 0.0
  %3937 = vmatprep.subr.mxu0 0.0
  %3938 = vmatpush2.msra.mxu0 0.0
  %3939 = vmatprep.subr.mxu0 0.0
  %3940 = vmatpush2.msra.mxu0 0.0
  %3941 = vmatprep.subr.mxu0 0.0
  %3942 = vmatpush2.msra.mxu0 0.0
  %3943 = vmatprep.subr.mxu0 0.0
  %3944 = vmatpush2.msra.mxu0 0.0
  %3945 = vmatprep.subr.mxu0 0.0
  %3946 = vmatpush2.msra.mxu0 0.0
  %3947 = vmatprep.subr.mxu0 0.0
  %3948 = vmatpush2.msra.mxu0 0.0
  %3949 = vmatprep.subr.mxu0 0.0
  %3950 = vmatpush2.msra.mxu0 0.0
  %3951 = vmatprep.subr.mxu0 0.0
  %3952 = vmatpush2.msra.mxu0 0.0
  %3953 = vmatprep.subr.mxu0 0.0
  %3954 = vmatpush2.msra.mxu0 0.0
  %3955 = vmatprep.subr.mxu0 0.0
  %3956 = vmatpush2.msra.mxu0 0.0
  %3957 = vmatprep.subr.mxu0 0.0
  %3958 = vmatpush2.msra.mxu0 0.0
  %3959 = vmatprep.subr.mxu0 0.0
  %3960 = vmatpush2.msra.mxu0 0.0
  %3961 = vmatprep.subr.mxu0 0.0
  %3962 = vmatpush2.msra.mxu0 0.0
  %3963 = vmatprep.subr.mxu0 0.0
  %3964 = vmatpush2.msra.mxu0 0.0
  %3965 = vmatprep.mubr.f32.mxu0 0.0
  %3966 = vmatmul.mubr.f32.gmra.mxu0 %v162
  %v3967 = vpop.f32.mrf.mxu0
  %v3968 = vadd.f32 0.0, %v3967
  %v3969 = vpop.f32.mrf.mxu0
  %v3970 = vadd.f32 0.0, %v3969
  %3971 = vdwg.mxu0
  %3972 = vmatprep.subr.mxu0 0.0
  %3973 = vmatpush1.msra.mxu0 0.0
  %3974 = vmatprep.subr.mxu0 0.0
  %3975 = vmatpush1.msra.mxu0 0.0
  %3976 = vmatprep.subr.mxu0 0.0
  %3977 = vmatpush1.msra.mxu0 0.0
  %3978 = vmatprep.subr.mxu0 0.0
  %3979 = vmatpush1.msra.mxu0 0.0
  %3980 = vmatprep.subr.mxu0 0.0
  %3981 = vmatpush1.msra.mxu0 0.0
  %3982 = vmatprep.subr.mxu0 0.0
  %3983 = vmatpush1.msra.mxu0 0.0
  %3984 = vmatprep.subr.mxu0 0.0
  %3985 = vmatpush1.msra.mxu0 0.0
  %3986 = vmatprep.subr.mxu0 0.0
  %3987 = vmatpush1.msra.mxu0 0.0
  %3988 = vmatprep.subr.mxu0 0.0
  %3989 = vmatpush1.msra.mxu0 0.0
  %3990 = vmatprep.subr.mxu0 0.0
  %3991 = vmatpush1.msra.mxu0 0.0
  %3992 = vmatprep.subr.mxu0 0.0
  %3993 = vmatpush1.msra.mxu0 0.0
  %3994 = vmatprep.subr.mxu0 0.0
  %3995 = vmatpush1.msra.mxu0 0.0
  %3996 = vmatprep.subr.mxu0 %v3159
  %3997 = vmatpush1.msra.mxu0 %v3156
  %3998 = vmatprep.subr.mxu0 %v3044
  %3999 = vmatpush1.msra.mxu0 %v3043
  %4000 = vmatprep.subr.mxu0 %v3010
  %4001 = vmatpush1.msra.mxu0 %v3009
  %4002 = vmatprep.subr.mxu0 %v2976
  %4003 = vmatpush1.msra.mxu0 %v2975
  %4004 = vmatprep.subr.mxu0 0.0
  %4005 = vmatpush2.msra.mxu0 0.0
  %4006 = vmatprep.subr.mxu0 0.0
  %4007 = vmatpush2.msra.mxu0 0.0
  %4008 = vmatprep.subr.mxu0 0.0
  %4009 = vmatpush2.msra.mxu0 0.0
  %4010 = vmatprep.subr.mxu0 0.0
  %4011 = vmatpush2.msra.mxu0 0.0
  %4012 = vmatprep.subr.mxu0 0.0
  %4013 = vmatpush2.msra.mxu0 0.0
  %4014 = vmatprep.subr.mxu0 0.0
  %4015 = vmatpush2.msra.mxu0 0.0
  %4016 = vmatprep.subr.mxu0 0.0
  %4017 = vmatpush2.msra.mxu0 0.0
  %4018 = vmatprep.subr.mxu0 0.0
  %4019 = vmatpush2.msra.mxu0 0.0
  %4020 = vmatprep.subr.mxu0 0.0
  %4021 = vmatpush2.msra.mxu0 0.0
  %4022 = vmatprep.subr.mxu0 0.0
  %4023 = vmatpush2.msra.mxu0 0.0
  %4024 = vmatprep.subr.mxu0 0.0
  %4025 = vmatpush2.msra.mxu0 0.0
  %4026 = vmatprep.subr.mxu0 0.0
  %4027 = vmatpush2.msra.mxu0 0.0
  %4028 = vmatprep.subr.mxu0 0.0
  %4029 = vmatpush2.msra.mxu0 0.0
  %4030 = vmatprep.subr.mxu0 0.0
  %4031 = vmatpush2.msra.mxu0 0.0
  %4032 = vmatprep.subr.mxu0 0.0
  %4033 = vmatpush2.msra.mxu0 0.0
  %4034 = vmatprep.subr.mxu0 0.0
  %4035 = vmatpush2.msra.mxu0 0.0
  %4036 = vmatprep.mubr.f32.mxu0 0.0
  %4037 = vmatmul.mubr.f32.gmra.mxu0 %v162
  %v4038 = vpop.f32.mrf.mxu0
  %v4039 = vadd.f32 0.0, %v4038
  %v4040 = vpop.f32.mrf.mxu0
  %v4041 = vadd.f32 0.0, %v4040
  %4042 = vdwg.mxu0
  %4043 = vmatprep.subr.mxu0 0.0
  %4044 = vmatpush1.msra.mxu0 0.0
  %4045 = vmatprep.subr.mxu0 0.0
  %4046 = vmatpush1.msra.mxu0 0.0
  %4047 = vmatprep.subr.mxu0 0.0
  %4048 = vmatpush1.msra.mxu0 0.0
  %4049 = vmatprep.subr.mxu0 0.0
  %4050 = vmatpush1.msra.mxu0 0.0
  %4051 = vmatprep.subr.mxu0 0.0
  %4052 = vmatpush1.msra.mxu0 0.0
  %4053 = vmatprep.subr.mxu0 0.0
  %4054 = vmatpush1.msra.mxu0 0.0
  %4055 = vmatprep.subr.mxu0 0.0
  %4056 = vmatpush1.msra.mxu0 0.0
  %4057 = vmatprep.subr.mxu0 0.0
  %4058 = vmatpush1.msra.mxu0 0.0
  %4059 = vmatprep.subr.mxu0 0.0
  %4060 = vmatpush1.msra.mxu0 0.0
  %4061 = vmatprep.subr.mxu0 0.0
  %4062 = vmatpush1.msra.mxu0 0.0
  %4063 = vmatprep.subr.mxu0 0.0
  %4064 = vmatpush1.msra.mxu0 0.0
  %4065 = vmatprep.subr.mxu0 0.0
  %4066 = vmatpush1.msra.mxu0 0.0
  %4067 = vmatprep.subr.mxu0 %v3165
  %4068 = vmatpush1.msra.mxu0 %v3162
  %4069 = vmatprep.subr.mxu0 %v3046
  %4070 = vmatpush1.msra.mxu0 %v3045
  %4071 = vmatprep.subr.mxu0 %v3012
  %4072 = vmatpush1.msra.mxu0 %v3011
  %4073 = vmatprep.subr.mxu0 %v2978
  %4074 = vmatpush1.msra.mxu0 %v2977
  %4075 = vmatprep.subr.mxu0 0.0
  %4076 = vmatpush2.msra.mxu0 0.0
  %4077 = vmatprep.subr.mxu0 0.0
  %4078 = vmatpush2.msra.mxu0 0.0
  %4079 = vmatprep.subr.mxu0 0.0
  %4080 = vmatpush2.msra.mxu0 0.0
  %4081 = vmatprep.subr.mxu0 0.0
  %4082 = vmatpush2.msra.mxu0 0.0
  %4083 = vmatprep.subr.mxu0 0.0
  %4084 = vmatpush2.msra.mxu0 0.0
  %4085 = vmatprep.subr.mxu0 0.0
  %4086 = vmatpush2.msra.mxu0 0.0
  %4087 = vmatprep.subr.mxu0 0.0
  %4088 = vmatpush2.msra.mxu0 0.0
  %4089 = vmatprep.subr.mxu0 0.0
  %4090 = vmatpush2.msra.mxu0 0.0
  %4091 = vmatprep.subr.mxu0 0.0
  %4092 = vmatpush2.msra.mxu0 0.0
  %4093 = vmatprep.subr.mxu0 0.0
  %4094 = vmatpush2.msra.mxu0 0.0
  %4095 = vmatprep.subr.mxu0 0.0
  %4096 = vmatpush2.msra.mxu0 0.0
  %4097 = vmatprep.subr.mxu0 0.0
  %4098 = vmatpush2.msra.mxu0 0.0
  %4099 = vmatprep.subr.mxu0 0.0
  %4100 = vmatpush2.msra.mxu0 0.0
  %4101 = vmatprep.subr.mxu0 0.0
  %4102 = vmatpush2.msra.mxu0 0.0
  %4103 = vmatprep.subr.mxu0 0.0
  %4104 = vmatpush2.msra.mxu0 0.0
  %4105 = vmatprep.subr.mxu0 0.0
  %4106 = vmatpush2.msra.mxu0 0.0
  %4107 = vmatprep.mubr.f32.mxu0 0.0
  %4108 = vmatmul.mubr.f32.gmra.mxu0 %v162
  %v4109 = vpop.f32.mrf.mxu0
  %v4110 = vadd.f32 0.0, %v4109
  %v4111 = vpop.f32.mrf.mxu0
  %v4112 = vadd.f32 0.0, %v4111
  %4113 = vdwg.mxu0
  %4114 = vmatprep.subr.mxu0 0.0
  %4115 = vmatpush1.msra.mxu0 0.0
  %4116 = vmatprep.subr.mxu0 0.0
  %4117 = vmatpush1.msra.mxu0 0.0
  %4118 = vmatprep.subr.mxu0 0.0
  %4119 = vmatpush1.msra.mxu0 0.0
  %4120 = vmatprep.subr.mxu0 0.0
  %4121 = vmatpush1.msra.mxu0 0.0
  %4122 = vmatprep.subr.mxu0 0.0
  %4123 = vmatpush1.msra.mxu0 0.0
  %4124 = vmatprep.subr.mxu0 0.0
  %4125 = vmatpush1.msra.mxu0 0.0
  %4126 = vmatprep.subr.mxu0 0.0
  %4127 = vmatpush1.msra.mxu0 0.0
  %4128 = vmatprep.subr.mxu0 0.0
  %4129 = vmatpush1.msra.mxu0 0.0
  %4130 = vmatprep.subr.mxu0 0.0
  %4131 = vmatpush1.msra.mxu0 0.0
  %4132 = vmatprep.subr.mxu0 0.0
  %4133 = vmatpush1.msra.mxu0 0.0
  %4134 = vmatprep.subr.mxu0 0.0
  %4135 = vmatpush1.msra.mxu0 0.0
  %4136 = vmatprep.subr.mxu0 0.0
  %4137 = vmatpush1.msra.mxu0 0.0
  %4138 = vmatprep.subr.mxu0 %v3171
  %4139 = vmatpush1.msra.mxu0 %v3168
  %4140 = vmatprep.subr.mxu0 %v3048
  %4141 = vmatpush1.msra.mxu0 %v3047
  %4142 = vmatprep.subr.mxu0 %v3014
  %4143 = vmatpush1.msra.mxu0 %v3013
  %4144 = vmatprep.subr.mxu0 %v2980
  %4145 = vmatpush1.msra.mxu0 %v2979
  %4146 = vmatprep.subr.mxu0 0.0
  %4147 = vmatpush2.msra.mxu0 0.0
  %4148 = vmatprep.subr.mxu0 0.0
  %4149 = vmatpush2.msra.mxu0 0.0
  %4150 = vmatprep.subr.mxu0 0.0
  %4151 = vmatpush2.msra.mxu0 0.0
  %4152 = vmatprep.subr.mxu0 0.0
  %4153 = vmatpush2.msra.mxu0 0.0
  %4154 = vmatprep.subr.mxu0 0.0
  %4155 = vmatpush2.msra.mxu0 0.0
  %4156 = vmatprep.subr.mxu0 0.0
  %4157 = vmatpush2.msra.mxu0 0.0
  %4158 = vmatprep.subr.mxu0 0.0
  %4159 = vmatpush2.msra.mxu0 0.0
  %4160 = vmatprep.subr.mxu0 0.0
  %4161 = vmatpush2.msra.mxu0 0.0
  %4162 = vmatprep.subr.mxu0 0.0
  %4163 = vmatpush2.msra.mxu0 0.0
  %4164 = vmatprep.subr.mxu0 0.0
  %4165 = vmatpush2.msra.mxu0 0.0
  %4166 = vmatprep.subr.mxu0 0.0
  %4167 = vmatpush2.msra.mxu0 0.0
  %4168 = vmatprep.subr.mxu0 0.0
  %4169 = vmatpush2.msra.mxu0 0.0
  %4170 = vmatprep.subr.mxu0 0.0
  %4171 = vmatpush2.msra.mxu0 0.0
  %4172 = vmatprep.subr.mxu0 0.0
  %4173 = vmatpush2.msra.mxu0 0.0
  %4174 = vmatprep.subr.mxu0 0.0
  %4175 = vmatpush2.msra.mxu0 0.0
  %4176 = vmatprep.subr.mxu0 0.0
  %4177 = vmatpush2.msra.mxu0 0.0
  %4178 = vmatprep.mubr.f32.mxu0 0.0
  %4179 = vmatmul.mubr.f32.gmra.mxu0 %v162
  %v4180 = vpop.f32.mrf.mxu0
  %v4181 = vadd.f32 0.0, %v4180
  %v4182 = vpop.f32.mrf.mxu0
  %v4183 = vadd.f32 0.0, %v4182
  %4184 = vdwg.mxu0
  %4185 = vmatprep.subr.mxu0 0.0
  %4186 = vmatpush1.msra.mxu0 0.0
  %4187 = vmatprep.subr.mxu0 0.0
  %4188 = vmatpush1.msra.mxu0 0.0
  %4189 = vmatprep.subr.mxu0 0.0
  %4190 = vmatpush1.msra.mxu0 0.0
  %4191 = vmatprep.subr.mxu0 0.0
  %4192 = vmatpush1.msra.mxu0 0.0
  %4193 = vmatprep.subr.mxu0 0.0
  %4194 = vmatpush1.msra.mxu0 0.0
  %4195 = vmatprep.subr.mxu0 0.0
  %4196 = vmatpush1.msra.mxu0 0.0
  %4197 = vmatprep.subr.mxu0 0.0
  %4198 = vmatpush1.msra.mxu0 0.0
  %4199 = vmatprep.subr.mxu0 0.0
  %4200 = vmatpush1.msra.mxu0 0.0
  %4201 = vmatprep.subr.mxu0 0.0
  %4202 = vmatpush1.msra.mxu0 0.0
  %4203 = vmatprep.subr.mxu0 0.0
  %4204 = vmatpush1.msra.mxu0 0.0
  %4205 = vmatprep.subr.mxu0 0.0
  %4206 = vmatpush1.msra.mxu0 0.0
  %4207 = vmatprep.subr.mxu0 0.0
  %4208 = vmatpush1.msra.mxu0 0.0
  %4209 = vmatprep.subr.mxu0 %v3177
  %4210 = vmatpush1.msra.mxu0 %v3174
  %4211 = vmatprep.subr.mxu0 %v3050
  %4212 = vmatpush1.msra.mxu0 %v3049
  %4213 = vmatprep.subr.mxu0 %v3016
  %4214 = vmatpush1.msra.mxu0 %v3015
  %4215 = vmatprep.subr.mxu0 %v2982
  %4216 = vmatpush1.msra.mxu0 %v2981
  %4217 = vmatprep.subr.mxu0 0.0
  %4218 = vmatpush2.msra.mxu0 0.0
  %4219 = vmatprep.subr.mxu0 0.0
  %4220 = vmatpush2.msra.mxu0 0.0
  %4221 = vmatprep.subr.mxu0 0.0
  %4222 = vmatpush2.msra.mxu0 0.0
  %4223 = vmatprep.subr.mxu0 0.0
  %4224 = vmatpush2.msra.mxu0 0.0
  %4225 = vmatprep.subr.mxu0 0.0
  %4226 = vmatpush2.msra.mxu0 0.0
  %4227 = vmatprep.subr.mxu0 0.0
  %4228 = vmatpush2.msra.mxu0 0.0
  %4229 = vmatprep.subr.mxu0 0.0
  %4230 = vmatpush2.msra.mxu0 0.0
  %4231 = vmatprep.subr.mxu0 0.0
  %4232 = vmatpush2.msra.mxu0 0.0
  %4233 = vmatprep.subr.mxu0 0.0
  %4234 = vmatpush2.msra.mxu0 0.0
  %4235 = vmatprep.subr.mxu0 0.0
  %4236 = vmatpush2.msra.mxu0 0.0
  %4237 = vmatprep.subr.mxu0 0.0
  %4238 = vmatpush2.msra.mxu0 0.0
  %4239 = vmatprep.subr.mxu0 0.0
  %4240 = vmatpush2.msra.mxu0 0.0
  %4241 = vmatprep.subr.mxu0 0.0
  %4242 = vmatpush2.msra.mxu0 0.0
  %4243 = vmatprep.subr.mxu0 0.0
  %4244 = vmatpush2.msra.mxu0 0.0
  %4245 = vmatprep.subr.mxu0 0.0
  %4246 = vmatpush2.msra.mxu0 0.0
  %4247 = vmatprep.subr.mxu0 0.0
  %4248 = vmatpush2.msra.mxu0 0.0
  %4249 = vmatprep.mubr.f32.mxu0 0.0
  %4250 = vmatmul.mubr.f32.gmra.mxu0 %v162
  %v4251 = vpop.f32.mrf.mxu0
  %v4252 = vadd.f32 0.0, %v4251
  %v4253 = vpop.f32.mrf.mxu0
  %v4254 = vadd.f32 0.0, %v4253
  %4255 = vdwg.mxu0
  %4256 = vmatprep.subr.mxu0 0.0
  %4257 = vmatpush1.msra.mxu0 0.0
  %4258 = vmatprep.subr.mxu0 0.0
  %4259 = vmatpush1.msra.mxu0 0.0
  %4260 = vmatprep.subr.mxu0 0.0
  %4261 = vmatpush1.msra.mxu0 0.0
  %4262 = vmatprep.subr.mxu0 0.0
  %4263 = vmatpush1.msra.mxu0 0.0
  %4264 = vmatprep.subr.mxu0 0.0
  %4265 = vmatpush1.msra.mxu0 0.0
  %4266 = vmatprep.subr.mxu0 0.0
  %4267 = vmatpush1.msra.mxu0 0.0
  %4268 = vmatprep.subr.mxu0 0.0
  %4269 = vmatpush1.msra.mxu0 0.0
  %4270 = vmatprep.subr.mxu0 0.0
  %4271 = vmatpush1.msra.mxu0 0.0
  %4272 = vmatprep.subr.mxu0 0.0
  %4273 = vmatpush1.msra.mxu0 0.0
  %4274 = vmatprep.subr.mxu0 0.0
  %4275 = vmatpush1.msra.mxu0 0.0
  %4276 = vmatprep.subr.mxu0 0.0
  %4277 = vmatpush1.msra.mxu0 0.0
  %4278 = vmatprep.subr.mxu0 0.0
  %4279 = vmatpush1.msra.mxu0 0.0
  %4280 = vmatprep.subr.mxu0 %v3183
  %4281 = vmatpush1.msra.mxu0 %v3180
  %4282 = vmatprep.subr.mxu0 %v3052
  %4283 = vmatpush1.msra.mxu0 %v3051
  %4284 = vmatprep.subr.mxu0 %v3018
  %4285 = vmatpush1.msra.mxu0 %v3017
  %4286 = vmatprep.subr.mxu0 %v2984
  %4287 = vmatpush1.msra.mxu0 %v2983
  %4288 = vmatprep.subr.mxu0 0.0
  %4289 = vmatpush2.msra.mxu0 0.0
  %4290 = vmatprep.subr.mxu0 0.0
  %4291 = vmatpush2.msra.mxu0 0.0
  %4292 = vmatprep.subr.mxu0 0.0
  %4293 = vmatpush2.msra.mxu0 0.0
  %4294 = vmatprep.subr.mxu0 0.0
  %4295 = vmatpush2.msra.mxu0 0.0
  %4296 = vmatprep.subr.mxu0 0.0
  %4297 = vmatpush2.msra.mxu0 0.0
  %4298 = vmatprep.subr.mxu0 0.0
  %4299 = vmatpush2.msra.mxu0 0.0
  %4300 = vmatprep.subr.mxu0 0.0
  %4301 = vmatpush2.msra.mxu0 0.0
  %4302 = vmatprep.subr.mxu0 0.0
  %4303 = vmatpush2.msra.mxu0 0.0
  %4304 = vmatprep.subr.mxu0 0.0
  %4305 = vmatpush2.msra.mxu0 0.0
  %4306 = vmatprep.subr.mxu0 0.0
  %4307 = vmatpush2.msra.mxu0 0.0
  %4308 = vmatprep.subr.mxu0 0.0
  %4309 = vmatpush2.msra.mxu0 0.0
  %4310 = vmatprep.subr.mxu0 0.0
  %4311 = vmatpush2.msra.mxu0 0.0
  %4312 = vmatprep.subr.mxu0 0.0
  %4313 = vmatpush2.msra.mxu0 0.0
  %4314 = vmatprep.subr.mxu0 0.0
  %4315 = vmatpush2.msra.mxu0 0.0
  %4316 = vmatprep.subr.mxu0 0.0
  %4317 = vmatpush2.msra.mxu0 0.0
  %4318 = vmatprep.subr.mxu0 0.0
  %4319 = vmatpush2.msra.mxu0 0.0
  %4320 = vmatprep.mubr.f32.mxu0 0.0
  %4321 = vmatmul.mubr.f32.gmra.mxu0 %v162
  %v4322 = vpop.f32.mrf.mxu0
  %v4323 = vadd.f32 0.0, %v4322
  %v4324 = vpop.f32.mrf.mxu0
  %v4325 = vadd.f32 0.0, %v4324
  %4326 = vdwg.mxu0
  %4327 = vmatprep.subr.mxu0 0.0
  %4328 = vmatpush1.msra.mxu0 0.0
  %4329 = vmatprep.subr.mxu0 0.0
  %4330 = vmatpush1.msra.mxu0 0.0
  %4331 = vmatprep.subr.mxu0 0.0
  %4332 = vmatpush1.msra.mxu0 0.0
  %4333 = vmatprep.subr.mxu0 0.0
  %4334 = vmatpush1.msra.mxu0 0.0
  %4335 = vmatprep.subr.mxu0 0.0
  %4336 = vmatpush1.msra.mxu0 0.0
  %4337 = vmatprep.subr.mxu0 0.0
  %4338 = vmatpush1.msra.mxu0 0.0
  %4339 = vmatprep.subr.mxu0 0.0
  %4340 = vmatpush1.msra.mxu0 0.0
  %4341 = vmatprep.subr.mxu0 0.0
  %4342 = vmatpush1.msra.mxu0 0.0
  %4343 = vmatprep.subr.mxu0 0.0
  %4344 = vmatpush1.msra.mxu0 0.0
  %4345 = vmatprep.subr.mxu0 0.0
  %4346 = vmatpush1.msra.mxu0 0.0
  %4347 = vmatprep.subr.mxu0 0.0
  %4348 = vmatpush1.msra.mxu0 0.0
  %4349 = vmatprep.subr.mxu0 0.0
  %4350 = vmatpush1.msra.mxu0 0.0
  %4351 = vmatprep.subr.mxu0 %v3189
  %4352 = vmatpush1.msra.mxu0 %v3186
  %4353 = vmatprep.subr.mxu0 %v3054
  %4354 = vmatpush1.msra.mxu0 %v3053
  %4355 = vmatprep.subr.mxu0 %v3020
  %4356 = vmatpush1.msra.mxu0 %v3019
  %4357 = vmatprep.subr.mxu0 %v2986
  %4358 = vmatpush1.msra.mxu0 %v2985
  %4359 = vmatprep.subr.mxu0 0.0
  %4360 = vmatpush2.msra.mxu0 0.0
  %4361 = vmatprep.subr.mxu0 0.0
  %4362 = vmatpush2.msra.mxu0 0.0
  %4363 = vmatprep.subr.mxu0 0.0
  %4364 = vmatpush2.msra.mxu0 0.0
  %4365 = vmatprep.subr.mxu0 0.0
  %4366 = vmatpush2.msra.mxu0 0.0
  %4367 = vmatprep.subr.mxu0 0.0
  %4368 = vmatpush2.msra.mxu0 0.0
  %4369 = vmatprep.subr.mxu0 0.0
  %4370 = vmatpush2.msra.mxu0 0.0
  %4371 = vmatprep.subr.mxu0 0.0
  %4372 = vmatpush2.msra.mxu0 0.0
  %4373 = vmatprep.subr.mxu0 0.0
  %4374 = vmatpush2.msra.mxu0 0.0
  %4375 = vmatprep.subr.mxu0 0.0
  %4376 = vmatpush2.msra.mxu0 0.0
  %4377 = vmatprep.subr.mxu0 0.0
  %4378 = vmatpush2.msra.mxu0 0.0
  %4379 = vmatprep.subr.mxu0 0.0
  %4380 = vmatpush2.msra.mxu0 0.0
  %4381 = vmatprep.subr.mxu0 0.0
  %4382 = vmatpush2.msra.mxu0 0.0
  %4383 = vmatprep.subr.mxu0 0.0
  %4384 = vmatpush2.msra.mxu0 0.0
  %4385 = vmatprep.subr.mxu0 0.0
  %4386 = vmatpush2.msra.mxu0 0.0
  %4387 = vmatprep.subr.mxu0 0.0
  %4388 = vmatpush2.msra.mxu0 0.0
  %4389 = vmatprep.subr.mxu0 0.0
  %4390 = vmatpush2.msra.mxu0 0.0
  %4391 = vmatprep.mubr.f32.mxu0 0.0
  %4392 = vmatmul.mubr.f32.gmra.mxu0 %v162
  %v4393 = vpop.f32.mrf.mxu0
  %v4394 = vadd.f32 0.0, %v4393
  %v4395 = vpop.f32.mrf.mxu0
  %v4396 = vadd.f32 0.0, %v4395
  %4397 = vdwg.mxu0
  %v4398 = vmax.f32 %v2919, %v3258
  %v4399 = vmax.f32 %v2920, %v3260
  %v4400 = vmax.f32 %v2921, %v3329
  %v4401 = vmax.f32 %v2922, %v3331
  %v4402 = vmax.f32 %v2923, %v3400
  %v4403 = vmax.f32 %v2924, %v3402
  %v4404 = vmax.f32 %v2925, %v3471
  %v4405 = vmax.f32 %v2926, %v3473
  %v4406 = vmax.f32 %v2927, %v3542
  %v4407 = vmax.f32 %v2928, %v3544
  %v4408 = vmax.f32 %v2929, %v3613
  %v4409 = vmax.f32 %v2930, %v3615
  %v4410 = vmax.f32 %v2931, %v3684
  %v4411 = vmax.f32 %v2932, %v3686
  %v4412 = vmax.f32 %v2933, %v3755
  %v4413 = vmax.f32 %v2934, %v3757
  %v4414 = vmax.f32 %v2935, %v3826
  %v4415 = vmax.f32 %v2936, %v3828
  %v4416 = vmax.f32 %v2937, %v3897
  %v4417 = vmax.f32 %v2938, %v3899
  %v4418 = vmax.f32 %v2939, %v3968
  %v4419 = vmax.f32 %v2940, %v3970
  %v4420 = vmax.f32 %v2941, %v4039
  %v4421 = vmax.f32 %v2942, %v4041
  %v4422 = vmax.f32 %v2943, %v4110
  %v4423 = vmax.f32 %v2944, %v4112
  %v4424 = vmax.f32 %v2945, %v4181
  %v4425 = vmax.f32 %v2946, %v4183
  %v4426 = vmax.f32 %v2947, %v4252
  %v4427 = vmax.f32 %v2948, %v4254
  %v4428 = vmax.f32 %v2949, %v4323
  %v4429 = vmax.f32 %v2950, %v4325
  %v4430 = vmax.f32 %v2951, %v4394
  %v4431 = vmax.f32 %v2952, %v4396
  %v4432 = vld [vmem:[%s3] sm:$0xff]
  %v4433 = vld [vmem:[%s3 + $0x8] sm:$0xff]
  %v4434 = vld [vmem:[%s3 + $0x10] sm:$0xff]
  %v4435 = vld [vmem:[%s3 + $0x18] sm:$0xff]
  %v4436 = vld [vmem:[%s3 + $0x20] sm:$0xff]
  %v4437 = vld [vmem:[%s3 + $0x28] sm:$0xff]
  %v4438 = vld [vmem:[%s3 + $0x30] sm:$0xff]
  %v4439 = vld [vmem:[%s3 + $0x38] sm:$0xff]
  %v4440 = vld [vmem:[%s3 + $0x40] sm:$0xff]
  %v4441 = vld [vmem:[%s3 + $0x48] sm:$0xff]
  %v4442 = vld [vmem:[%s3 + $0x50] sm:$0xff]
  %v4443 = vld [vmem:[%s3 + $0x58] sm:$0xff]
  %v4444 = vld [vmem:[%s3 + $0x60] sm:$0xff]
  %v4445 = vld [vmem:[%s3 + $0x68] sm:$0xff]
  %v4446 = vld [vmem:[%s3 + $0x70] sm:$0xff]
  %v4447 = vld [vmem:[%s3 + $0x78] sm:$0xff]
  %v4448 = vld [vmem:[%s3 + $0x80] sm:$0xff]
  %v4449 = vld [vmem:[%s3 + $0x88] sm:$0xff]
  %v4450 = vld [vmem:[%s3 + $0x90] sm:$0xff]
  %v4451 = vld [vmem:[%s3 + $0x98] sm:$0xff]
  %v4452 = vld [vmem:[%s3 + $0xa0] sm:$0xff]
  %v4453 = vld [vmem:[%s3 + $0xa8] sm:$0xff]
  %v4454 = vld [vmem:[%s3 + $0xb0] sm:$0xff]
  %v4455 = vld [vmem:[%s3 + $0xb8] sm:$0xff]
  %v4456 = vld [vmem:[%s3 + $0xc0] sm:$0xff]
  %v4457 = vld [vmem:[%s3 + $0xc8] sm:$0xff]
  %v4458 = vld [vmem:[%s3 + $0xd0] sm:$0xff]
  %v4459 = vld [vmem:[%s3 + $0xd8] sm:$0xff]
  %v4460 = vld [vmem:[%s3 + $0xe0] sm:$0xff]
  %v4461 = vld [vmem:[%s3 + $0xe8] sm:$0xff]
  %v4462 = vld [vmem:[%s3 + $0xf0] sm:$0xff]
  %v4463 = vld [vmem:[%s3 + $0xf8] sm:$0xff]
  %v4464 = vld [vmem:[%s3 + $0x100] sm:$0xff]
  %v4465 = vld [vmem:[%s3 + $0x108] sm:$0xff]
  %v4466 = vld [vmem:[%s3 + $0x110] sm:$0xff]
  %v4467 = vld [vmem:[%s3 + $0x118] sm:$0xff]
  %v4468 = vld [vmem:[%s3 + $0x120] sm:$0xff]
  %v4469 = vld [vmem:[%s3 + $0x128] sm:$0xff]
  %v4470 = vld [vmem:[%s3 + $0x130] sm:$0xff]
  %v4471 = vld [vmem:[%s3 + $0x138] sm:$0xff]
  %v4472 = vld [vmem:[%s3 + $0x140] sm:$0xff]
  %v4473 = vld [vmem:[%s3 + $0x148] sm:$0xff]
  %v4474 = vld [vmem:[%s3 + $0x150] sm:$0xff]
  %v4475 = vld [vmem:[%s3 + $0x158] sm:$0xff]
  %v4476 = vld [vmem:[%s3 + $0x160] sm:$0xff]
  %v4477 = vld [vmem:[%s3 + $0x168] sm:$0xff]
  %v4478 = vld [vmem:[%s3 + $0x170] sm:$0xff]
  %v4479 = vld [vmem:[%s3 + $0x178] sm:$0xff]
  %v4480 = vld [vmem:[%s3 + $0x180] sm:$0xff]
  %v4481 = vld [vmem:[%s3 + $0x188] sm:$0xff]
  %v4482 = vld [vmem:[%s3 + $0x190] sm:$0xff]
  %v4483 = vld [vmem:[%s3 + $0x198] sm:$0xff]
  %v4484 = vld [vmem:[%s3 + $0x1a0] sm:$0xff]
  %v4485 = vld [vmem:[%s3 + $0x1a8] sm:$0xff]
  %v4486 = vld [vmem:[%s3 + $0x1b0] sm:$0xff]
  %v4487 = vld [vmem:[%s3 + $0x1b8] sm:$0xff]
  %v4488 = vld [vmem:[%s3 + $0x1c0] sm:$0xff]
  %v4489 = vld [vmem:[%s3 + $0x1c8] sm:$0xff]
  %v4490 = vld [vmem:[%s3 + $0x1d0] sm:$0xff]
  %v4491 = vld [vmem:[%s3 + $0x1d8] sm:$0xff]
  %v4492 = vld [vmem:[%s3 + $0x1e0] sm:$0xff]
  %v4493 = vld [vmem:[%s3 + $0x1e8] sm:$0xff]
  %v4494 = vld [vmem:[%s3 + $0x1f0] sm:$0xff]
  %v4495 = vld [vmem:[%s3 + $0x1f8] sm:$0xff]
  %v4496 = vld [vmem:[%s3 + $0x200] sm:$0xff]
  %v4497 = vld [vmem:[%s3 + $0x208] sm:$0xff]
  %v4498 = vld [vmem:[%s3 + $0x210] sm:$0xff]
  %v4499 = vld [vmem:[%s3 + $0x218] sm:$0xff]
  %v4500 = vld [vmem:[%s3 + $0x220] sm:$0xff]
  %v4501 = vld [vmem:[%s3 + $0x228] sm:$0xff]
  %v4502 = vld [vmem:[%s3 + $0x230] sm:$0xff]
  %v4503 = vld [vmem:[%s3 + $0x238] sm:$0xff]
  %v4504 = vld [vmem:[%s3 + $0x240] sm:$0xff]
  %v4505 = vld [vmem:[%s3 + $0x248] sm:$0xff]
  %v4506 = vld [vmem:[%s3 + $0x250] sm:$0xff]
  %v4507 = vld [vmem:[%s3 + $0x258] sm:$0xff]
  %v4508 = vld [vmem:[%s3 + $0x260] sm:$0xff]
  %v4509 = vld [vmem:[%s3 + $0x268] sm:$0xff]
  %v4510 = vld [vmem:[%s3 + $0x270] sm:$0xff]
  %v4511 = vld [vmem:[%s3 + $0x278] sm:$0xff]
  %v4512 = vld [vmem:[%s3 + $0x280] sm:$0xff]
  %v4513 = vld [vmem:[%s3 + $0x288] sm:$0xff]
  %v4514 = vld [vmem:[%s3 + $0x290] sm:$0xff]
  %v4515 = vld [vmem:[%s3 + $0x298] sm:$0xff]
  %v4516 = vld [vmem:[%s3 + $0x2a0] sm:$0xff]
  %v4517 = vld [vmem:[%s3 + $0x2a8] sm:$0xff]
  %v4518 = vld [vmem:[%s3 + $0x2b0] sm:$0xff]
  %v4519 = vld [vmem:[%s3 + $0x2b8] sm:$0xff]
  %v4520 = vld [vmem:[%s3 + $0x2c0] sm:$0xff]
  %v4521 = vld [vmem:[%s3 + $0x2c8] sm:$0xff]
  %v4522 = vld [vmem:[%s3 + $0x2d0] sm:$0xff]
  %v4523 = vld [vmem:[%s3 + $0x2d8] sm:$0xff]
  %v4524 = vld [vmem:[%s3 + $0x2e0] sm:$0xff]
  %v4525 = vld [vmem:[%s3 + $0x2e8] sm:$0xff]
  %v4526 = vld [vmem:[%s3 + $0x2f0] sm:$0xff]
  %v4527 = vld [vmem:[%s3 + $0x2f8] sm:$0xff]
  %v4528 = vld [vmem:[%s3 + $0x300] sm:$0xff]
  %v4529 = vld [vmem:[%s3 + $0x308] sm:$0xff]
  %v4530 = vld [vmem:[%s3 + $0x310] sm:$0xff]
  %v4531 = vld [vmem:[%s3 + $0x318] sm:$0xff]
  %v4532 = vld [vmem:[%s3 + $0x320] sm:$0xff]
  %v4533 = vld [vmem:[%s3 + $0x328] sm:$0xff]
  %v4534 = vld [vmem:[%s3 + $0x330] sm:$0x1]
  %v4535 = vld [vmem:[%s3 + $0x338] sm:$0x1]
  %v4536 = vld [vmem:[%s3 + $0x340] sm:$0x1]
  %v4537 = vld [vmem:[%s3 + $0x348] sm:$0x1]
  %v4538 = vld [vmem:[%s3 + $0x350] sm:$0x1]
  %v4539 = vld [vmem:[%s3 + $0x358] sm:$0x1]
  %v4540 = vld [vmem:[%s3 + $0x360] sm:$0x1]
  %v4541 = vld [vmem:[%s3 + $0x368] sm:$0x1]
  %v4542 = vld [vmem:[%s3 + $0x370] sm:$0x1]
  %v4543 = vld [vmem:[%s3 + $0x378] sm:$0x1]
  %v4544 = vld [vmem:[%s3 + $0x380] sm:$0x1]
  %v4545 = vld [vmem:[%s3 + $0x388] sm:$0x1]
  %v4546 = vld [vmem:[%s3 + $0x390] sm:$0x1]
  %v4547 = vld [vmem:[%s3 + $0x398] sm:$0x1]
  %v4548 = vld [vmem:[%s3 + $0x3a0] sm:$0x1]
  %v4549 = vld [vmem:[%s3 + $0x3a8] sm:$0x1]
  %v4550 = vld [vmem:[%s3 + $0x3b0] sm:$0x1]
  %v4551 = vld [vmem:[%s3 + $0x3b8] sm:$0x1]
  %v4552 = vld [vmem:[%s3 + $0x3c0] sm:$0x1]
  %v4553 = vld [vmem:[%s3 + $0x3c8] sm:$0x1]
  %v4554 = vld [vmem:[%s3 + $0x3d0] sm:$0x1]
  %v4555 = vld [vmem:[%s3 + $0x3d8] sm:$0x1]
  %v4556 = vld [vmem:[%s3 + $0x3e0] sm:$0x1]
  %v4557 = vld [vmem:[%s3 + $0x3e8] sm:$0x1]
  %v4558 = vld [vmem:[%s3 + $0x3f0] sm:$0x1]
  %v4559 = vld [vmem:[%s3 + $0x3f8] sm:$0x1]
  %v4560 = vld [vmem:[%s3 + $0x400] sm:$0x1]
  %v4561 = vld [vmem:[%s3 + $0x408] sm:$0x1]
  %v4562 = vld [vmem:[%s3 + $0x410] sm:$0x1]
  %v4563 = vld [vmem:[%s3 + $0x418] sm:$0x1]
  %v4564 = vld [vmem:[%s3 + $0x420] sm:$0x1]
  %v4565 = vld [vmem:[%s3 + $0x428] sm:$0x1]
  %v4566 = vld [vmem:[%s3 + $0x430] sm:$0x1]
  %v4567 = vld [vmem:[%s3 + $0x438] sm:$0x1]
  %v4569 = vsel %vm164, %v4534, 0
  %v4572 = vsel %vm164, %v4535, 0
  %v4575 = vsel %vm164, %v4536, 0
  %v4578 = vsel %vm164, %v4537, 0
  %v4581 = vsel %vm164, %v4538, 0
  %v4584 = vsel %vm164, %v4539, 0
  %v4587 = vsel %vm164, %v4540, 0
  %v4590 = vsel %vm164, %v4541, 0
  %v4593 = vsel %vm164, %v4542, 0
  %v4596 = vsel %vm164, %v4543, 0
  %v4599 = vsel %vm164, %v4544, 0
  %v4602 = vsel %vm164, %v4545, 0
  %v4605 = vsel %vm164, %v4546, 0
  %v4608 = vsel %vm164, %v4547, 0
  %v4611 = vsel %vm164, %v4548, 0
  %v4614 = vsel %vm164, %v4549, 0
  %v4617 = vsel %vm164, %v4550, 0
  %v4620 = vsel %vm164, %v4551, 0
  %v4623 = vsel %vm164, %v4552, 0
  %v4626 = vsel %vm164, %v4553, 0
  %v4629 = vsel %vm164, %v4554, 0
  %v4632 = vsel %vm164, %v4555, 0
  %v4635 = vsel %vm164, %v4556, 0
  %v4638 = vsel %vm164, %v4557, 0
  %v4641 = vsel %vm164, %v4558, 0
  %v4644 = vsel %vm164, %v4559, 0
  %v4647 = vsel %vm164, %v4560, 0
  %v4650 = vsel %vm164, %v4561, 0
  %v4653 = vsel %vm164, %v4562, 0
  %v4656 = vsel %vm164, %v4563, 0
  %v4659 = vsel %vm164, %v4564, 0
  %v4662 = vsel %vm164, %v4565, 0
  %v4665 = vsel %vm164, %v4566, 0
  %v4668 = vsel %vm164, %v4567, 0
  %4670 = vmatprep.subr.mxu0 0.0
  %4671 = vmatpush1.msra.mxu0 0.0
  %4672 = vmatprep.subr.mxu0 0.0
  %4673 = vmatpush1.msra.mxu0 0.0
  %4674 = vmatprep.subr.mxu0 0.0
  %4675 = vmatpush1.msra.mxu0 0.0
  %4676 = vmatprep.subr.mxu0 0.0
  %4677 = vmatpush1.msra.mxu0 0.0
  %4678 = vmatprep.subr.mxu0 0.0
  %4679 = vmatpush1.msra.mxu0 0.0
  %4680 = vmatprep.subr.mxu0 0.0
  %4681 = vmatpush1.msra.mxu0 0.0
  %4682 = vmatprep.subr.mxu0 0.0
  %4683 = vmatpush1.msra.mxu0 0.0
  %4684 = vmatprep.subr.mxu0 0.0
  %4685 = vmatpush1.msra.mxu0 0.0
  %4686 = vmatprep.subr.mxu0 0.0
  %4687 = vmatpush1.msra.mxu0 0.0
  %4688 = vmatprep.subr.mxu0 0.0
  %4689 = vmatpush1.msra.mxu0 0.0
  %4690 = vmatprep.subr.mxu0 0.0
  %4691 = vmatpush1.msra.mxu0 0.0
  %4692 = vmatprep.subr.mxu0 0.0
  %4693 = vmatpush1.msra.mxu0 0.0
  %4694 = vmatprep.subr.mxu0 %v4572
  %4695 = vmatpush1.msra.mxu0 %v4569
  %4696 = vmatprep.subr.mxu0 %v4501
  %4697 = vmatpush1.msra.mxu0 %v4500
  %4698 = vmatprep.subr.mxu0 %v4467
  %4699 = vmatpush1.msra.mxu0 %v4466
  %4700 = vmatprep.subr.mxu0 %v4433
  %4701 = vmatpush1.msra.mxu0 %v4432
  %4702 = vmatprep.subr.mxu0 0.0
  %4703 = vmatpush2.msra.mxu0 0.0
  %4704 = vmatprep.subr.mxu0 0.0
  %4705 = vmatpush2.msra.mxu0 0.0
  %4706 = vmatprep.subr.mxu0 0.0
  %4707 = vmatpush2.msra.mxu0 0.0
  %4708 = vmatprep.subr.mxu0 0.0
  %4709 = vmatpush2.msra.mxu0 0.0
  %4710 = vmatprep.subr.mxu0 0.0
  %4711 = vmatpush2.msra.mxu0 0.0
  %4712 = vmatprep.subr.mxu0 0.0
  %4713 = vmatpush2.msra.mxu0 0.0
  %4714 = vmatprep.subr.mxu0 0.0
  %4715 = vmatpush2.msra.mxu0 0.0
  %4716 = vmatprep.subr.mxu0 0.0
  %4717 = vmatpush2.msra.mxu0 0.0
  %4718 = vmatprep.subr.mxu0 0.0
  %4719 = vmatpush2.msra.mxu0 0.0
  %4720 = vmatprep.subr.mxu0 0.0
  %4721 = vmatpush2.msra.mxu0 0.0
  %4722 = vmatprep.subr.mxu0 0.0
  %4723 = vmatpush2.msra.mxu0 0.0
  %4724 = vmatprep.subr.mxu0 0.0
  %4725 = vmatpush2.msra.mxu0 0.0
  %4726 = vmatprep.subr.mxu0 0.0
  %4727 = vmatpush2.msra.mxu0 0.0
  %4728 = vmatprep.subr.mxu0 0.0
  %4729 = vmatpush2.msra.mxu0 0.0
  %4730 = vmatprep.subr.mxu0 0.0
  %4731 = vmatpush2.msra.mxu0 0.0
  %4732 = vmatprep.subr.mxu0 0.0
  %4733 = vmatpush2.msra.mxu0 0.0
  %4734 = vmatprep.mubr.f32.mxu0 0.0
  %4735 = vmatmul.mubr.f32.gmra.mxu0 %v162
  %v4736 = vpop.f32.mrf.mxu0
  %v4737 = vadd.f32 0.0, %v4736
  %v4738 = vpop.f32.mrf.mxu0
  %v4739 = vadd.f32 0.0, %v4738
  %4740 = vdwg.mxu0
  %4741 = vmatprep.subr.mxu0 0.0
  %4742 = vmatpush1.msra.mxu0 0.0
  %4743 = vmatprep.subr.mxu0 0.0
  %4744 = vmatpush1.msra.mxu0 0.0
  %4745 = vmatprep.subr.mxu0 0.0
  %4746 = vmatpush1.msra.mxu0 0.0
  %4747 = vmatprep.subr.mxu0 0.0
  %4748 = vmatpush1.msra.mxu0 0.0
  %4749 = vmatprep.subr.mxu0 0.0
  %4750 = vmatpush1.msra.mxu0 0.0
  %4751 = vmatprep.subr.mxu0 0.0
  %4752 = vmatpush1.msra.mxu0 0.0
  %4753 = vmatprep.subr.mxu0 0.0
  %4754 = vmatpush1.msra.mxu0 0.0
  %4755 = vmatprep.subr.mxu0 0.0
  %4756 = vmatpush1.msra.mxu0 0.0
  %4757 = vmatprep.subr.mxu0 0.0
  %4758 = vmatpush1.msra.mxu0 0.0
  %4759 = vmatprep.subr.mxu0 0.0
  %4760 = vmatpush1.msra.mxu0 0.0
  %4761 = vmatprep.subr.mxu0 0.0
  %4762 = vmatpush1.msra.mxu0 0.0
  %4763 = vmatprep.subr.mxu0 0.0
  %4764 = vmatpush1.msra.mxu0 0.0
  %4765 = vmatprep.subr.mxu0 %v4578
  %4766 = vmatpush1.msra.mxu0 %v4575
  %4767 = vmatprep.subr.mxu0 %v4503
  %4768 = vmatpush1.msra.mxu0 %v4502
  %4769 = vmatprep.subr.mxu0 %v4469
  %4770 = vmatpush1.msra.mxu0 %v4468
  %4771 = vmatprep.subr.mxu0 %v4435
  %4772 = vmatpush1.msra.mxu0 %v4434
  %4773 = vmatprep.subr.mxu0 0.0
  %4774 = vmatpush2.msra.mxu0 0.0
  %4775 = vmatprep.subr.mxu0 0.0
  %4776 = vmatpush2.msra.mxu0 0.0
  %4777 = vmatprep.subr.mxu0 0.0
  %4778 = vmatpush2.msra.mxu0 0.0
  %4779 = vmatprep.subr.mxu0 0.0
  %4780 = vmatpush2.msra.mxu0 0.0
  %4781 = vmatprep.subr.mxu0 0.0
  %4782 = vmatpush2.msra.mxu0 0.0
  %4783 = vmatprep.subr.mxu0 0.0
  %4784 = vmatpush2.msra.mxu0 0.0
  %4785 = vmatprep.subr.mxu0 0.0
  %4786 = vmatpush2.msra.mxu0 0.0
  %4787 = vmatprep.subr.mxu0 0.0
  %4788 = vmatpush2.msra.mxu0 0.0
  %4789 = vmatprep.subr.mxu0 0.0
  %4790 = vmatpush2.msra.mxu0 0.0
  %4791 = vmatprep.subr.mxu0 0.0
  %4792 = vmatpush2.msra.mxu0 0.0
  %4793 = vmatprep.subr.mxu0 0.0
  %4794 = vmatpush2.msra.mxu0 0.0
  %4795 = vmatprep.subr.mxu0 0.0
  %4796 = vmatpush2.msra.mxu0 0.0
  %4797 = vmatprep.subr.mxu0 0.0
  %4798 = vmatpush2.msra.mxu0 0.0
  %4799 = vmatprep.subr.mxu0 0.0
  %4800 = vmatpush2.msra.mxu0 0.0
  %4801 = vmatprep.subr.mxu0 0.0
  %4802 = vmatpush2.msra.mxu0 0.0
  %4803 = vmatprep.subr.mxu0 0.0
  %4804 = vmatpush2.msra.mxu0 0.0
  %4805 = vmatprep.mubr.f32.mxu0 0.0
  %4806 = vmatmul.mubr.f32.gmra.mxu0 %v162
  %v4807 = vpop.f32.mrf.mxu0
  %v4808 = vadd.f32 0.0, %v4807
  %v4809 = vpop.f32.mrf.mxu0
  %v4810 = vadd.f32 0.0, %v4809
  %4811 = vdwg.mxu0
  %4812 = vmatprep.subr.mxu0 0.0
  %4813 = vmatpush1.msra.mxu0 0.0
  %4814 = vmatprep.subr.mxu0 0.0
  %4815 = vmatpush1.msra.mxu0 0.0
  %4816 = vmatprep.subr.mxu0 0.0
  %4817 = vmatpush1.msra.mxu0 0.0
  %4818 = vmatprep.subr.mxu0 0.0
  %4819 = vmatpush1.msra.mxu0 0.0
  %4820 = vmatprep.subr.mxu0 0.0
  %4821 = vmatpush1.msra.mxu0 0.0
  %4822 = vmatprep.subr.mxu0 0.0
  %4823 = vmatpush1.msra.mxu0 0.0
  %4824 = vmatprep.subr.mxu0 0.0
  %4825 = vmatpush1.msra.mxu0 0.0
  %4826 = vmatprep.subr.mxu0 0.0
  %4827 = vmatpush1.msra.mxu0 0.0
  %4828 = vmatprep.subr.mxu0 0.0
  %4829 = vmatpush1.msra.mxu0 0.0
  %4830 = vmatprep.subr.mxu0 0.0
  %4831 = vmatpush1.msra.mxu0 0.0
  %4832 = vmatprep.subr.mxu0 0.0
  %4833 = vmatpush1.msra.mxu0 0.0
  %4834 = vmatprep.subr.mxu0 0.0
  %4835 = vmatpush1.msra.mxu0 0.0
  %4836 = vmatprep.subr.mxu0 %v4584
  %4837 = vmatpush1.msra.mxu0 %v4581
  %4838 = vmatprep.subr.mxu0 %v4505
  %4839 = vmatpush1.msra.mxu0 %v4504
  %4840 = vmatprep.subr.mxu0 %v4471
  %4841 = vmatpush1.msra.mxu0 %v4470
  %4842 = vmatprep.subr.mxu0 %v4437
  %4843 = vmatpush1.msra.mxu0 %v4436
  %4844 = vmatprep.subr.mxu0 0.0
  %4845 = vmatpush2.msra.mxu0 0.0
  %4846 = vmatprep.subr.mxu0 0.0
  %4847 = vmatpush2.msra.mxu0 0.0
  %4848 = vmatprep.subr.mxu0 0.0
  %4849 = vmatpush2.msra.mxu0 0.0
  %4850 = vmatprep.subr.mxu0 0.0
  %4851 = vmatpush2.msra.mxu0 0.0
  %4852 = vmatprep.subr.mxu0 0.0
  %4853 = vmatpush2.msra.mxu0 0.0
  %4854 = vmatprep.subr.mxu0 0.0
  %4855 = vmatpush2.msra.mxu0 0.0
  %4856 = vmatprep.subr.mxu0 0.0
  %4857 = vmatpush2.msra.mxu0 0.0
  %4858 = vmatprep.subr.mxu0 0.0
  %4859 = vmatpush2.msra.mxu0 0.0
  %4860 = vmatprep.subr.mxu0 0.0
  %4861 = vmatpush2.msra.mxu0 0.0
  %4862 = vmatprep.subr.mxu0 0.0
  %4863 = vmatpush2.msra.mxu0 0.0
  %4864 = vmatprep.subr.mxu0 0.0
  %4865 = vmatpush2.msra.mxu0 0.0
  %4866 = vmatprep.subr.mxu0 0.0
  %4867 = vmatpush2.msra.mxu0 0.0
  %4868 = vmatprep.subr.mxu0 0.0
  %4869 = vmatpush2.msra.mxu0 0.0
  %4870 = vmatprep.subr.mxu0 0.0
  %4871 = vmatpush2.msra.mxu0 0.0
  %4872 = vmatprep.subr.mxu0 0.0
  %4873 = vmatpush2.msra.mxu0 0.0
  %4874 = vmatprep.subr.mxu0 0.0
  %4875 = vmatpush2.msra.mxu0 0.0
  %4876 = vmatprep.mubr.f32.mxu0 0.0
  %4877 = vmatmul.mubr.f32.gmra.mxu0 %v162
  %v4878 = vpop.f32.mrf.mxu0
  %v4879 = vadd.f32 0.0, %v4878
  %v4880 = vpop.f32.mrf.mxu0
  %v4881 = vadd.f32 0.0, %v4880
  %4882 = vdwg.mxu0
  %4883 = vmatprep.subr.mxu0 0.0
  %4884 = vmatpush1.msra.mxu0 0.0
  %4885 = vmatprep.subr.mxu0 0.0
  %4886 = vmatpush1.msra.mxu0 0.0
  %4887 = vmatprep.subr.mxu0 0.0
  %4888 = vmatpush1.msra.mxu0 0.0
  %4889 = vmatprep.subr.mxu0 0.0
  %4890 = vmatpush1.msra.mxu0 0.0
  %4891 = vmatprep.subr.mxu0 0.0
  %4892 = vmatpush1.msra.mxu0 0.0
  %4893 = vmatprep.subr.mxu0 0.0
  %4894 = vmatpush1.msra.mxu0 0.0
  %4895 = vmatprep.subr.mxu0 0.0
  %4896 = vmatpush1.msra.mxu0 0.0
  %4897 = vmatprep.subr.mxu0 0.0
  %4898 = vmatpush1.msra.mxu0 0.0
  %4899 = vmatprep.subr.mxu0 0.0
  %4900 = vmatpush1.msra.mxu0 0.0
  %4901 = vmatprep.subr.mxu0 0.0
  %4902 = vmatpush1.msra.mxu0 0.0
  %4903 = vmatprep.subr.mxu0 0.0
  %4904 = vmatpush1.msra.mxu0 0.0
  %4905 = vmatprep.subr.mxu0 0.0
  %4906 = vmatpush1.msra.mxu0 0.0
  %4907 = vmatprep.subr.mxu0 %v4590
  %4908 = vmatpush1.msra.mxu0 %v4587
  %4909 = vmatprep.subr.mxu0 %v4507
  %4910 = vmatpush1.msra.mxu0 %v4506
  %4911 = vmatprep.subr.mxu0 %v4473
  %4912 = vmatpush1.msra.mxu0 %v4472
  %4913 = vmatprep.subr.mxu0 %v4439
  %4914 = vmatpush1.msra.mxu0 %v4438
  %4915 = vmatprep.subr.mxu0 0.0
  %4916 = vmatpush2.msra.mxu0 0.0
  %4917 = vmatprep.subr.mxu0 0.0
  %4918 = vmatpush2.msra.mxu0 0.0
  %4919 = vmatprep.subr.mxu0 0.0
  %4920 = vmatpush2.msra.mxu0 0.0
  %4921 = vmatprep.subr.mxu0 0.0
  %4922 = vmatpush2.msra.mxu0 0.0
  %4923 = vmatprep.subr.mxu0 0.0
  %4924 = vmatpush2.msra.mxu0 0.0
  %4925 = vmatprep.subr.mxu0 0.0
  %4926 = vmatpush2.msra.mxu0 0.0
  %4927 = vmatprep.subr.mxu0 0.0
  %4928 = vmatpush2.msra.mxu0 0.0
  %4929 = vmatprep.subr.mxu0 0.0
  %4930 = vmatpush2.msra.mxu0 0.0
  %4931 = vmatprep.subr.mxu0 0.0
  %4932 = vmatpush2.msra.mxu0 0.0
  %4933 = vmatprep.subr.mxu0 0.0
  %4934 = vmatpush2.msra.mxu0 0.0
  %4935 = vmatprep.subr.mxu0 0.0
  %4936 = vmatpush2.msra.mxu0 0.0
  %4937 = vmatprep.subr.mxu0 0.0
  %4938 = vmatpush2.msra.mxu0 0.0
  %4939 = vmatprep.subr.mxu0 0.0
  %4940 = vmatpush2.msra.mxu0 0.0
  %4941 = vmatprep.subr.mxu0 0.0
  %4942 = vmatpush2.msra.mxu0 0.0
  %4943 = vmatprep.subr.mxu0 0.0
  %4944 = vmatpush2.msra.mxu0 0.0
  %4945 = vmatprep.subr.mxu0 0.0
  %4946 = vmatpush2.msra.mxu0 0.0
  %4947 = vmatprep.mubr.f32.mxu0 0.0
  %4948 = vmatmul.mubr.f32.gmra.mxu0 %v162
  %v4949 = vpop.f32.mrf.mxu0
  %v4950 = vadd.f32 0.0, %v4949
  %v4951 = vpop.f32.mrf.mxu0
  %v4952 = vadd.f32 0.0, %v4951
  %4953 = vdwg.mxu0
  %4954 = vmatprep.subr.mxu0 0.0
  %4955 = vmatpush1.msra.mxu0 0.0
  %4956 = vmatprep.subr.mxu0 0.0
  %4957 = vmatpush1.msra.mxu0 0.0
  %4958 = vmatprep.subr.mxu0 0.0
  %4959 = vmatpush1.msra.mxu0 0.0
  %4960 = vmatprep.subr.mxu0 0.0
  %4961 = vmatpush1.msra.mxu0 0.0
  %4962 = vmatprep.subr.mxu0 0.0
  %4963 = vmatpush1.msra.mxu0 0.0
  %4964 = vmatprep.subr.mxu0 0.0
  %4965 = vmatpush1.msra.mxu0 0.0
  %4966 = vmatprep.subr.mxu0 0.0
  %4967 = vmatpush1.msra.mxu0 0.0
  %4968 = vmatprep.subr.mxu0 0.0
  %4969 = vmatpush1.msra.mxu0 0.0
  %4970 = vmatprep.subr.mxu0 0.0
  %4971 = vmatpush1.msra.mxu0 0.0
  %4972 = vmatprep.subr.mxu0 0.0
  %4973 = vmatpush1.msra.mxu0 0.0
  %4974 = vmatprep.subr.mxu0 0.0
  %4975 = vmatpush1.msra.mxu0 0.0
  %4976 = vmatprep.subr.mxu0 0.0
  %4977 = vmatpush1.msra.mxu0 0.0
  %4978 = vmatprep.subr.mxu0 %v4596
  %4979 = vmatpush1.msra.mxu0 %v4593
  %4980 = vmatprep.subr.mxu0 %v4509
  %4981 = vmatpush1.msra.mxu0 %v4508
  %4982 = vmatprep.subr.mxu0 %v4475
  %4983 = vmatpush1.msra.mxu0 %v4474
  %4984 = vmatprep.subr.mxu0 %v4441
  %4985 = vmatpush1.msra.mxu0 %v4440
  %4986 = vmatprep.subr.mxu0 0.0
  %4987 = vmatpush2.msra.mxu0 0.0
  %4988 = vmatprep.subr.mxu0 0.0
  %4989 = vmatpush2.msra.mxu0 0.0
  %4990 = vmatprep.subr.mxu0 0.0
  %4991 = vmatpush2.msra.mxu0 0.0
  %4992 = vmatprep.subr.mxu0 0.0
  %4993 = vmatpush2.msra.mxu0 0.0
  %4994 = vmatprep.subr.mxu0 0.0
  %4995 = vmatpush2.msra.mxu0 0.0
  %4996 = vmatprep.subr.mxu0 0.0
  %4997 = vmatpush2.msra.mxu0 0.0
  %4998 = vmatprep.subr.mxu0 0.0
  %4999 = vmatpush2.msra.mxu0 0.0
  %5000 = vmatprep.subr.mxu0 0.0
  %5001 = vmatpush2.msra.mxu0 0.0
  %5002 = vmatprep.subr.mxu0 0.0
  %5003 = vmatpush2.msra.mxu0 0.0
  %5004 = vmatprep.subr.mxu0 0.0
  %5005 = vmatpush2.msra.mxu0 0.0
  %5006 = vmatprep.subr.mxu0 0.0
  %5007 = vmatpush2.msra.mxu0 0.0
  %5008 = vmatprep.subr.mxu0 0.0
  %5009 = vmatpush2.msra.mxu0 0.0
  %5010 = vmatprep.subr.mxu0 0.0
  %5011 = vmatpush2.msra.mxu0 0.0
  %5012 = vmatprep.subr.mxu0 0.0
  %5013 = vmatpush2.msra.mxu0 0.0
  %5014 = vmatprep.subr.mxu0 0.0
  %5015 = vmatpush2.msra.mxu0 0.0
  %5016 = vmatprep.subr.mxu0 0.0
  %5017 = vmatpush2.msra.mxu0 0.0
  %5018 = vmatprep.mubr.f32.mxu0 0.0
  %5019 = vmatmul.mubr.f32.gmra.mxu0 %v162
  %v5020 = vpop.f32.mrf.mxu0
  %v5021 = vadd.f32 0.0, %v5020
  %v5022 = vpop.f32.mrf.mxu0
  %v5023 = vadd.f32 0.0, %v5022
  %5024 = vdwg.mxu0
  %5025 = vmatprep.subr.mxu0 0.0
  %5026 = vmatpush1.msra.mxu0 0.0
  %5027 = vmatprep.subr.mxu0 0.0
  %5028 = vmatpush1.msra.mxu0 0.0
  %5029 = vmatprep.subr.mxu0 0.0
  %5030 = vmatpush1.msra.mxu0 0.0
  %5031 = vmatprep.subr.mxu0 0.0
  %5032 = vmatpush1.msra.mxu0 0.0
  %5033 = vmatprep.subr.mxu0 0.0
  %5034 = vmatpush1.msra.mxu0 0.0
  %5035 = vmatprep.subr.mxu0 0.0
  %5036 = vmatpush1.msra.mxu0 0.0
  %5037 = vmatprep.subr.mxu0 0.0
  %5038 = vmatpush1.msra.mxu0 0.0
  %5039 = vmatprep.subr.mxu0 0.0
  %5040 = vmatpush1.msra.mxu0 0.0
  %5041 = vmatprep.subr.mxu0 0.0
  %5042 = vmatpush1.msra.mxu0 0.0
  %5043 = vmatprep.subr.mxu0 0.0
  %5044 = vmatpush1.msra.mxu0 0.0
  %5045 = vmatprep.subr.mxu0 0.0
  %5046 = vmatpush1.msra.mxu0 0.0
  %5047 = vmatprep.subr.mxu0 0.0
  %5048 = vmatpush1.msra.mxu0 0.0
  %5049 = vmatprep.subr.mxu0 %v4602
  %5050 = vmatpush1.msra.mxu0 %v4599
  %5051 = vmatprep.subr.mxu0 %v4511
  %5052 = vmatpush1.msra.mxu0 %v4510
  %5053 = vmatprep.subr.mxu0 %v4477
  %5054 = vmatpush1.msra.mxu0 %v4476
  %5055 = vmatprep.subr.mxu0 %v4443
  %5056 = vmatpush1.msra.mxu0 %v4442
  %5057 = vmatprep.subr.mxu0 0.0
  %5058 = vmatpush2.msra.mxu0 0.0
  %5059 = vmatprep.subr.mxu0 0.0
  %5060 = vmatpush2.msra.mxu0 0.0
  %5061 = vmatprep.subr.mxu0 0.0
  %5062 = vmatpush2.msra.mxu0 0.0
  %5063 = vmatprep.subr.mxu0 0.0
  %5064 = vmatpush2.msra.mxu0 0.0
  %5065 = vmatprep.subr.mxu0 0.0
  %5066 = vmatpush2.msra.mxu0 0.0
  %5067 = vmatprep.subr.mxu0 0.0
  %5068 = vmatpush2.msra.mxu0 0.0
  %5069 = vmatprep.subr.mxu0 0.0
  %5070 = vmatpush2.msra.mxu0 0.0
  %5071 = vmatprep.subr.mxu0 0.0
  %5072 = vmatpush2.msra.mxu0 0.0
  %5073 = vmatprep.subr.mxu0 0.0
  %5074 = vmatpush2.msra.mxu0 0.0
  %5075 = vmatprep.subr.mxu0 0.0
  %5076 = vmatpush2.msra.mxu0 0.0
  %5077 = vmatprep.subr.mxu0 0.0
  %5078 = vmatpush2.msra.mxu0 0.0
  %5079 = vmatprep.subr.mxu0 0.0
  %5080 = vmatpush2.msra.mxu0 0.0
  %5081 = vmatprep.subr.mxu0 0.0
  %5082 = vmatpush2.msra.mxu0 0.0
  %5083 = vmatprep.subr.mxu0 0.0
  %5084 = vmatpush2.msra.mxu0 0.0
  %5085 = vmatprep.subr.mxu0 0.0
  %5086 = vmatpush2.msra.mxu0 0.0
  %5087 = vmatprep.subr.mxu0 0.0
  %5088 = vmatpush2.msra.mxu0 0.0
  %5089 = vmatprep.mubr.f32.mxu0 0.0
  %5090 = vmatmul.mubr.f32.gmra.mxu0 %v162
  %v5091 = vpop.f32.mrf.mxu0
  %v5092 = vadd.f32 0.0, %v5091
  %v5093 = vpop.f32.mrf.mxu0
  %v5094 = vadd.f32 0.0, %v5093
  %5095 = vdwg.mxu0
  %5096 = vmatprep.subr.mxu0 0.0
  %5097 = vmatpush1.msra.mxu0 0.0
  %5098 = vmatprep.subr.mxu0 0.0
  %5099 = vmatpush1.msra.mxu0 0.0
  %5100 = vmatprep.subr.mxu0 0.0
  %5101 = vmatpush1.msra.mxu0 0.0
  %5102 = vmatprep.subr.mxu0 0.0
  %5103 = vmatpush1.msra.mxu0 0.0
  %5104 = vmatprep.subr.mxu0 0.0
  %5105 = vmatpush1.msra.mxu0 0.0
  %5106 = vmatprep.subr.mxu0 0.0
  %5107 = vmatpush1.msra.mxu0 0.0
  %5108 = vmatprep.subr.mxu0 0.0
  %5109 = vmatpush1.msra.mxu0 0.0
  %5110 = vmatprep.subr.mxu0 0.0
  %5111 = vmatpush1.msra.mxu0 0.0
  %5112 = vmatprep.subr.mxu0 0.0
  %5113 = vmatpush1.msra.mxu0 0.0
  %5114 = vmatprep.subr.mxu0 0.0
  %5115 = vmatpush1.msra.mxu0 0.0
  %5116 = vmatprep.subr.mxu0 0.0
  %5117 = vmatpush1.msra.mxu0 0.0
  %5118 = vmatprep.subr.mxu0 0.0
  %5119 = vmatpush1.msra.mxu0 0.0
  %5120 = vmatprep.subr.mxu0 %v4608
  %5121 = vmatpush1.msra.mxu0 %v4605
  %5122 = vmatprep.subr.mxu0 %v4513
  %5123 = vmatpush1.msra.mxu0 %v4512
  %5124 = vmatprep.subr.mxu0 %v4479
  %5125 = vmatpush1.msra.mxu0 %v4478
  %5126 = vmatprep.subr.mxu0 %v4445
  %5127 = vmatpush1.msra.mxu0 %v4444
  %5128 = vmatprep.subr.mxu0 0.0
  %5129 = vmatpush2.msra.mxu0 0.0
  %5130 = vmatprep.subr.mxu0 0.0
  %5131 = vmatpush2.msra.mxu0 0.0
  %5132 = vmatprep.subr.mxu0 0.0
  %5133 = vmatpush2.msra.mxu0 0.0
  %5134 = vmatprep.subr.mxu0 0.0
  %5135 = vmatpush2.msra.mxu0 0.0
  %5136 = vmatprep.subr.mxu0 0.0
  %5137 = vmatpush2.msra.mxu0 0.0
  %5138 = vmatprep.subr.mxu0 0.0
  %5139 = vmatpush2.msra.mxu0 0.0
  %5140 = vmatprep.subr.mxu0 0.0
  %5141 = vmatpush2.msra.mxu0 0.0
  %5142 = vmatprep.subr.mxu0 0.0
  %5143 = vmatpush2.msra.mxu0 0.0
  %5144 = vmatprep.subr.mxu0 0.0
  %5145 = vmatpush2.msra.mxu0 0.0
  %5146 = vmatprep.subr.mxu0 0.0
  %5147 = vmatpush2.msra.mxu0 0.0
  %5148 = vmatprep.subr.mxu0 0.0
  %5149 = vmatpush2.msra.mxu0 0.0
  %5150 = vmatprep.subr.mxu0 0.0
  %5151 = vmatpush2.msra.mxu0 0.0
  %5152 = vmatprep.subr.mxu0 0.0
  %5153 = vmatpush2.msra.mxu0 0.0
  %5154 = vmatprep.subr.mxu0 0.0
  %5155 = vmatpush2.msra.mxu0 0.0
  %5156 = vmatprep.subr.mxu0 0.0
  %5157 = vmatpush2.msra.mxu0 0.0
  %5158 = vmatprep.subr.mxu0 0.0
  %5159 = vmatpush2.msra.mxu0 0.0
  %5160 = vmatprep.mubr.f32.mxu0 0.0
  %5161 = vmatmul.mubr.f32.gmra.mxu0 %v162
  %v5162 = vpop.f32.mrf.mxu0
  %v5163 = vadd.f32 0.0, %v5162
  %v5164 = vpop.f32.mrf.mxu0
  %v5165 = vadd.f32 0.0, %v5164
  %5166 = vdwg.mxu0
  %5167 = vmatprep.subr.mxu0 0.0
  %5168 = vmatpush1.msra.mxu0 0.0
  %5169 = vmatprep.subr.mxu0 0.0
  %5170 = vmatpush1.msra.mxu0 0.0
  %5171 = vmatprep.subr.mxu0 0.0
  %5172 = vmatpush1.msra.mxu0 0.0
  %5173 = vmatprep.subr.mxu0 0.0
  %5174 = vmatpush1.msra.mxu0 0.0
  %5175 = vmatprep.subr.mxu0 0.0
  %5176 = vmatpush1.msra.mxu0 0.0
  %5177 = vmatprep.subr.mxu0 0.0
  %5178 = vmatpush1.msra.mxu0 0.0
  %5179 = vmatprep.subr.mxu0 0.0
  %5180 = vmatpush1.msra.mxu0 0.0
  %5181 = vmatprep.subr.mxu0 0.0
  %5182 = vmatpush1.msra.mxu0 0.0
  %5183 = vmatprep.subr.mxu0 0.0
  %5184 = vmatpush1.msra.mxu0 0.0
  %5185 = vmatprep.subr.mxu0 0.0
  %5186 = vmatpush1.msra.mxu0 0.0
  %5187 = vmatprep.subr.mxu0 0.0
  %5188 = vmatpush1.msra.mxu0 0.0
  %5189 = vmatprep.subr.mxu0 0.0
  %5190 = vmatpush1.msra.mxu0 0.0
  %5191 = vmatprep.subr.mxu0 %v4614
  %5192 = vmatpush1.msra.mxu0 %v4611
  %5193 = vmatprep.subr.mxu0 %v4515
  %5194 = vmatpush1.msra.mxu0 %v4514
  %5195 = vmatprep.subr.mxu0 %v4481
  %5196 = vmatpush1.msra.mxu0 %v4480
  %5197 = vmatprep.subr.mxu0 %v4447
  %5198 = vmatpush1.msra.mxu0 %v4446
  %5199 = vmatprep.subr.mxu0 0.0
  %5200 = vmatpush2.msra.mxu0 0.0
  %5201 = vmatprep.subr.mxu0 0.0
  %5202 = vmatpush2.msra.mxu0 0.0
  %5203 = vmatprep.subr.mxu0 0.0
  %5204 = vmatpush2.msra.mxu0 0.0
  %5205 = vmatprep.subr.mxu0 0.0
  %5206 = vmatpush2.msra.mxu0 0.0
  %5207 = vmatprep.subr.mxu0 0.0
  %5208 = vmatpush2.msra.mxu0 0.0
  %5209 = vmatprep.subr.mxu0 0.0
  %5210 = vmatpush2.msra.mxu0 0.0
  %5211 = vmatprep.subr.mxu0 0.0
  %5212 = vmatpush2.msra.mxu0 0.0
  %5213 = vmatprep.subr.mxu0 0.0
  %5214 = vmatpush2.msra.mxu0 0.0
  %5215 = vmatprep.subr.mxu0 0.0
  %5216 = vmatpush2.msra.mxu0 0.0
  %5217 = vmatprep.subr.mxu0 0.0
  %5218 = vmatpush2.msra.mxu0 0.0
  %5219 = vmatprep.subr.mxu0 0.0
  %5220 = vmatpush2.msra.mxu0 0.0
  %5221 = vmatprep.subr.mxu0 0.0
  %5222 = vmatpush2.msra.mxu0 0.0
  %5223 = vmatprep.subr.mxu0 0.0
  %5224 = vmatpush2.msra.mxu0 0.0
  %5225 = vmatprep.subr.mxu0 0.0
  %5226 = vmatpush2.msra.mxu0 0.0
  %5227 = vmatprep.subr.mxu0 0.0
  %5228 = vmatpush2.msra.mxu0 0.0
  %5229 = vmatprep.subr.mxu0 0.0
  %5230 = vmatpush2.msra.mxu0 0.0
  %5231 = vmatprep.mubr.f32.mxu0 0.0
  %5232 = vmatmul.mubr.f32.gmra.mxu0 %v162
  %v5233 = vpop.f32.mrf.mxu0
  %v5234 = vadd.f32 0.0, %v5233
  %v5235 = vpop.f32.mrf.mxu0
  %v5236 = vadd.f32 0.0, %v5235
  %5237 = vdwg.mxu0
  %5238 = vmatprep.subr.mxu0 0.0
  %5239 = vmatpush1.msra.mxu0 0.0
  %5240 = vmatprep.subr.mxu0 0.0
  %5241 = vmatpush1.msra.mxu0 0.0
  %5242 = vmatprep.subr.mxu0 0.0
  %5243 = vmatpush1.msra.mxu0 0.0
  %5244 = vmatprep.subr.mxu0 0.0
  %5245 = vmatpush1.msra.mxu0 0.0
  %5246 = vmatprep.subr.mxu0 0.0
  %5247 = vmatpush1.msra.mxu0 0.0
  %5248 = vmatprep.subr.mxu0 0.0
  %5249 = vmatpush1.msra.mxu0 0.0
  %5250 = vmatprep.subr.mxu0 0.0
  %5251 = vmatpush1.msra.mxu0 0.0
  %5252 = vmatprep.subr.mxu0 0.0
  %5253 = vmatpush1.msra.mxu0 0.0
  %5254 = vmatprep.subr.mxu0 0.0
  %5255 = vmatpush1.msra.mxu0 0.0
  %5256 = vmatprep.subr.mxu0 0.0
  %5257 = vmatpush1.msra.mxu0 0.0
  %5258 = vmatprep.subr.mxu0 0.0
  %5259 = vmatpush1.msra.mxu0 0.0
  %5260 = vmatprep.subr.mxu0 0.0
  %5261 = vmatpush1.msra.mxu0 0.0
  %5262 = vmatprep.subr.mxu0 %v4620
  %5263 = vmatpush1.msra.mxu0 %v4617
  %5264 = vmatprep.subr.mxu0 %v4517
  %5265 = vmatpush1.msra.mxu0 %v4516
  %5266 = vmatprep.subr.mxu0 %v4483
  %5267 = vmatpush1.msra.mxu0 %v4482
  %5268 = vmatprep.subr.mxu0 %v4449
  %5269 = vmatpush1.msra.mxu0 %v4448
  %5270 = vmatprep.subr.mxu0 0.0
  %5271 = vmatpush2.msra.mxu0 0.0
  %5272 = vmatprep.subr.mxu0 0.0
  %5273 = vmatpush2.msra.mxu0 0.0
  %5274 = vmatprep.subr.mxu0 0.0
  %5275 = vmatpush2.msra.mxu0 0.0
  %5276 = vmatprep.subr.mxu0 0.0
  %5277 = vmatpush2.msra.mxu0 0.0
  %5278 = vmatprep.subr.mxu0 0.0
  %5279 = vmatpush2.msra.mxu0 0.0
  %5280 = vmatprep.subr.mxu0 0.0
  %5281 = vmatpush2.msra.mxu0 0.0
  %5282 = vmatprep.subr.mxu0 0.0
  %5283 = vmatpush2.msra.mxu0 0.0
  %5284 = vmatprep.subr.mxu0 0.0
  %5285 = vmatpush2.msra.mxu0 0.0
  %5286 = vmatprep.subr.mxu0 0.0
  %5287 = vmatpush2.msra.mxu0 0.0
  %5288 = vmatprep.subr.mxu0 0.0
  %5289 = vmatpush2.msra.mxu0 0.0
  %5290 = vmatprep.subr.mxu0 0.0
  %5291 = vmatpush2.msra.mxu0 0.0
  %5292 = vmatprep.subr.mxu0 0.0
  %5293 = vmatpush2.msra.mxu0 0.0
  %5294 = vmatprep.subr.mxu0 0.0
  %5295 = vmatpush2.msra.mxu0 0.0
  %5296 = vmatprep.subr.mxu0 0.0
  %5297 = vmatpush2.msra.mxu0 0.0
  %5298 = vmatprep.subr.mxu0 0.0
  %5299 = vmatpush2.msra.mxu0 0.0
  %5300 = vmatprep.subr.mxu0 0.0
  %5301 = vmatpush2.msra.mxu0 0.0
  %5302 = vmatprep.mubr.f32.mxu0 0.0
  %5303 = vmatmul.mubr.f32.gmra.mxu0 %v162
  %v5304 = vpop.f32.mrf.mxu0
  %v5305 = vadd.f32 0.0, %v5304
  %v5306 = vpop.f32.mrf.mxu0
  %v5307 = vadd.f32 0.0, %v5306
  %5308 = vdwg.mxu0
  %5309 = vmatprep.subr.mxu0 0.0
  %5310 = vmatpush1.msra.mxu0 0.0
  %5311 = vmatprep.subr.mxu0 0.0
  %5312 = vmatpush1.msra.mxu0 0.0
  %5313 = vmatprep.subr.mxu0 0.0
  %5314 = vmatpush1.msra.mxu0 0.0
  %5315 = vmatprep.subr.mxu0 0.0
  %5316 = vmatpush1.msra.mxu0 0.0
  %5317 = vmatprep.subr.mxu0 0.0
  %5318 = vmatpush1.msra.mxu0 0.0
  %5319 = vmatprep.subr.mxu0 0.0
  %5320 = vmatpush1.msra.mxu0 0.0
  %5321 = vmatprep.subr.mxu0 0.0
  %5322 = vmatpush1.msra.mxu0 0.0
  %5323 = vmatprep.subr.mxu0 0.0
  %5324 = vmatpush1.msra.mxu0 0.0
  %5325 = vmatprep.subr.mxu0 0.0
  %5326 = vmatpush1.msra.mxu0 0.0
  %5327 = vmatprep.subr.mxu0 0.0
  %5328 = vmatpush1.msra.mxu0 0.0
  %5329 = vmatprep.subr.mxu0 0.0
  %5330 = vmatpush1.msra.mxu0 0.0
  %5331 = vmatprep.subr.mxu0 0.0
  %5332 = vmatpush1.msra.mxu0 0.0
  %5333 = vmatprep.subr.mxu0 %v4626
  %5334 = vmatpush1.msra.mxu0 %v4623
  %5335 = vmatprep.subr.mxu0 %v4519
  %5336 = vmatpush1.msra.mxu0 %v4518
  %5337 = vmatprep.subr.mxu0 %v4485
  %5338 = vmatpush1.msra.mxu0 %v4484
  %5339 = vmatprep.subr.mxu0 %v4451
  %5340 = vmatpush1.msra.mxu0 %v4450
  %5341 = vmatprep.subr.mxu0 0.0
  %5342 = vmatpush2.msra.mxu0 0.0
  %5343 = vmatprep.subr.mxu0 0.0
  %5344 = vmatpush2.msra.mxu0 0.0
  %5345 = vmatprep.subr.mxu0 0.0
  %5346 = vmatpush2.msra.mxu0 0.0
  %5347 = vmatprep.subr.mxu0 0.0
  %5348 = vmatpush2.msra.mxu0 0.0
  %5349 = vmatprep.subr.mxu0 0.0
  %5350 = vmatpush2.msra.mxu0 0.0
  %5351 = vmatprep.subr.mxu0 0.0
  %5352 = vmatpush2.msra.mxu0 0.0
  %5353 = vmatprep.subr.mxu0 0.0
  %5354 = vmatpush2.msra.mxu0 0.0
  %5355 = vmatprep.subr.mxu0 0.0
  %5356 = vmatpush2.msra.mxu0 0.0
  %5357 = vmatprep.subr.mxu0 0.0
  %5358 = vmatpush2.msra.mxu0 0.0
  %5359 = vmatprep.subr.mxu0 0.0
  %5360 = vmatpush2.msra.mxu0 0.0
  %5361 = vmatprep.subr.mxu0 0.0
  %5362 = vmatpush2.msra.mxu0 0.0
  %5363 = vmatprep.subr.mxu0 0.0
  %5364 = vmatpush2.msra.mxu0 0.0
  %5365 = vmatprep.subr.mxu0 0.0
  %5366 = vmatpush2.msra.mxu0 0.0
  %5367 = vmatprep.subr.mxu0 0.0
  %5368 = vmatpush2.msra.mxu0 0.0
  %5369 = vmatprep.subr.mxu0 0.0
  %5370 = vmatpush2.msra.mxu0 0.0
  %5371 = vmatprep.subr.mxu0 0.0
  %5372 = vmatpush2.msra.mxu0 0.0
  %5373 = vmatprep.mubr.f32.mxu0 0.0
  %5374 = vmatmul.mubr.f32.gmra.mxu0 %v162
  %v5375 = vpop.f32.mrf.mxu0
  %v5376 = vadd.f32 0.0, %v5375
  %v5377 = vpop.f32.mrf.mxu0
  %v5378 = vadd.f32 0.0, %v5377
  %5379 = vdwg.mxu0
  %5380 = vmatprep.subr.mxu0 0.0
  %5381 = vmatpush1.msra.mxu0 0.0
  %5382 = vmatprep.subr.mxu0 0.0
  %5383 = vmatpush1.msra.mxu0 0.0
  %5384 = vmatprep.subr.mxu0 0.0
  %5385 = vmatpush1.msra.mxu0 0.0
  %5386 = vmatprep.subr.mxu0 0.0
  %5387 = vmatpush1.msra.mxu0 0.0
  %5388 = vmatprep.subr.mxu0 0.0
  %5389 = vmatpush1.msra.mxu0 0.0
  %5390 = vmatprep.subr.mxu0 0.0
  %5391 = vmatpush1.msra.mxu0 0.0
  %5392 = vmatprep.subr.mxu0 0.0
  %5393 = vmatpush1.msra.mxu0 0.0
  %5394 = vmatprep.subr.mxu0 0.0
  %5395 = vmatpush1.msra.mxu0 0.0
  %5396 = vmatprep.subr.mxu0 0.0
  %5397 = vmatpush1.msra.mxu0 0.0
  %5398 = vmatprep.subr.mxu0 0.0
  %5399 = vmatpush1.msra.mxu0 0.0
  %5400 = vmatprep.subr.mxu0 0.0
  %5401 = vmatpush1.msra.mxu0 0.0
  %5402 = vmatprep.subr.mxu0 0.0
  %5403 = vmatpush1.msra.mxu0 0.0
  %5404 = vmatprep.subr.mxu0 %v4632
  %5405 = vmatpush1.msra.mxu0 %v4629
  %5406 = vmatprep.subr.mxu0 %v4521
  %5407 = vmatpush1.msra.mxu0 %v4520
  %5408 = vmatprep.subr.mxu0 %v4487
  %5409 = vmatpush1.msra.mxu0 %v4486
  %5410 = vmatprep.subr.mxu0 %v4453
  %5411 = vmatpush1.msra.mxu0 %v4452
  %5412 = vmatprep.subr.mxu0 0.0
  %5413 = vmatpush2.msra.mxu0 0.0
  %5414 = vmatprep.subr.mxu0 0.0
  %5415 = vmatpush2.msra.mxu0 0.0
  %5416 = vmatprep.subr.mxu0 0.0
  %5417 = vmatpush2.msra.mxu0 0.0
  %5418 = vmatprep.subr.mxu0 0.0
  %5419 = vmatpush2.msra.mxu0 0.0
  %5420 = vmatprep.subr.mxu0 0.0
  %5421 = vmatpush2.msra.mxu0 0.0
  %5422 = vmatprep.subr.mxu0 0.0
  %5423 = vmatpush2.msra.mxu0 0.0
  %5424 = vmatprep.subr.mxu0 0.0
  %5425 = vmatpush2.msra.mxu0 0.0
  %5426 = vmatprep.subr.mxu0 0.0
  %5427 = vmatpush2.msra.mxu0 0.0
  %5428 = vmatprep.subr.mxu0 0.0
  %5429 = vmatpush2.msra.mxu0 0.0
  %5430 = vmatprep.subr.mxu0 0.0
  %5431 = vmatpush2.msra.mxu0 0.0
  %5432 = vmatprep.subr.mxu0 0.0
  %5433 = vmatpush2.msra.mxu0 0.0
  %5434 = vmatprep.subr.mxu0 0.0
  %5435 = vmatpush2.msra.mxu0 0.0
  %5436 = vmatprep.subr.mxu0 0.0
  %5437 = vmatpush2.msra.mxu0 0.0
  %5438 = vmatprep.subr.mxu0 0.0
  %5439 = vmatpush2.msra.mxu0 0.0
  %5440 = vmatprep.subr.mxu0 0.0
  %5441 = vmatpush2.msra.mxu0 0.0
  %5442 = vmatprep.subr.mxu0 0.0
  %5443 = vmatpush2.msra.mxu0 0.0
  %5444 = vmatprep.mubr.f32.mxu0 0.0
  %5445 = vmatmul.mubr.f32.gmra.mxu0 %v162
  %v5446 = vpop.f32.mrf.mxu0
  %v5447 = vadd.f32 0.0, %v5446
  %v5448 = vpop.f32.mrf.mxu0
  %v5449 = vadd.f32 0.0, %v5448
  %5450 = vdwg.mxu0
  %5451 = vmatprep.subr.mxu0 0.0
  %5452 = vmatpush1.msra.mxu0 0.0
  %5453 = vmatprep.subr.mxu0 0.0
  %5454 = vmatpush1.msra.mxu0 0.0
  %5455 = vmatprep.subr.mxu0 0.0
  %5456 = vmatpush1.msra.mxu0 0.0
  %5457 = vmatprep.subr.mxu0 0.0
  %5458 = vmatpush1.msra.mxu0 0.0
  %5459 = vmatprep.subr.mxu0 0.0
  %5460 = vmatpush1.msra.mxu0 0.0
  %5461 = vmatprep.subr.mxu0 0.0
  %5462 = vmatpush1.msra.mxu0 0.0
  %5463 = vmatprep.subr.mxu0 0.0
  %5464 = vmatpush1.msra.mxu0 0.0
  %5465 = vmatprep.subr.mxu0 0.0
  %5466 = vmatpush1.msra.mxu0 0.0
  %5467 = vmatprep.subr.mxu0 0.0
  %5468 = vmatpush1.msra.mxu0 0.0
  %5469 = vmatprep.subr.mxu0 0.0
  %5470 = vmatpush1.msra.mxu0 0.0
  %5471 = vmatprep.subr.mxu0 0.0
  %5472 = vmatpush1.msra.mxu0 0.0
  %5473 = vmatprep.subr.mxu0 0.0
  %5474 = vmatpush1.msra.mxu0 0.0
  %5475 = vmatprep.subr.mxu0 %v4638
  %5476 = vmatpush1.msra.mxu0 %v4635
  %5477 = vmatprep.subr.mxu0 %v4523
  %5478 = vmatpush1.msra.mxu0 %v4522
  %5479 = vmatprep.subr.mxu0 %v4489
  %5480 = vmatpush1.msra.mxu0 %v4488
  %5481 = vmatprep.subr.mxu0 %v4455
  %5482 = vmatpush1.msra.mxu0 %v4454
  %5483 = vmatprep.subr.mxu0 0.0
  %5484 = vmatpush2.msra.mxu0 0.0
  %5485 = vmatprep.subr.mxu0 0.0
  %5486 = vmatpush2.msra.mxu0 0.0
  %5487 = vmatprep.subr.mxu0 0.0
  %5488 = vmatpush2.msra.mxu0 0.0
  %5489 = vmatprep.subr.mxu0 0.0
  %5490 = vmatpush2.msra.mxu0 0.0
  %5491 = vmatprep.subr.mxu0 0.0
  %5492 = vmatpush2.msra.mxu0 0.0
  %5493 = vmatprep.subr.mxu0 0.0
  %5494 = vmatpush2.msra.mxu0 0.0
  %5495 = vmatprep.subr.mxu0 0.0
  %5496 = vmatpush2.msra.mxu0 0.0
  %5497 = vmatprep.subr.mxu0 0.0
  %5498 = vmatpush2.msra.mxu0 0.0
  %5499 = vmatprep.subr.mxu0 0.0
  %5500 = vmatpush2.msra.mxu0 0.0
  %5501 = vmatprep.subr.mxu0 0.0
  %5502 = vmatpush2.msra.mxu0 0.0
  %5503 = vmatprep.subr.mxu0 0.0
  %5504 = vmatpush2.msra.mxu0 0.0
  %5505 = vmatprep.subr.mxu0 0.0
  %5506 = vmatpush2.msra.mxu0 0.0
  %5507 = vmatprep.subr.mxu0 0.0
  %5508 = vmatpush2.msra.mxu0 0.0
  %5509 = vmatprep.subr.mxu0 0.0
  %5510 = vmatpush2.msra.mxu0 0.0
  %5511 = vmatprep.subr.mxu0 0.0
  %5512 = vmatpush2.msra.mxu0 0.0
  %5513 = vmatprep.subr.mxu0 0.0
  %5514 = vmatpush2.msra.mxu0 0.0
  %5515 = vmatprep.mubr.f32.mxu0 0.0
  %5516 = vmatmul.mubr.f32.gmra.mxu0 %v162
  %v5517 = vpop.f32.mrf.mxu0
  %v5518 = vadd.f32 0.0, %v5517
  %v5519 = vpop.f32.mrf.mxu0
  %v5520 = vadd.f32 0.0, %v5519
  %5521 = vdwg.mxu0
  %5522 = vmatprep.subr.mxu0 0.0
  %5523 = vmatpush1.msra.mxu0 0.0
  %5524 = vmatprep.subr.mxu0 0.0
  %5525 = vmatpush1.msra.mxu0 0.0
  %5526 = vmatprep.subr.mxu0 0.0
  %5527 = vmatpush1.msra.mxu0 0.0
  %5528 = vmatprep.subr.mxu0 0.0
  %5529 = vmatpush1.msra.mxu0 0.0
  %5530 = vmatprep.subr.mxu0 0.0
  %5531 = vmatpush1.msra.mxu0 0.0
  %5532 = vmatprep.subr.mxu0 0.0
  %5533 = vmatpush1.msra.mxu0 0.0
  %5534 = vmatprep.subr.mxu0 0.0
  %5535 = vmatpush1.msra.mxu0 0.0
  %5536 = vmatprep.subr.mxu0 0.0
  %5537 = vmatpush1.msra.mxu0 0.0
  %5538 = vmatprep.subr.mxu0 0.0
  %5539 = vmatpush1.msra.mxu0 0.0
  %5540 = vmatprep.subr.mxu0 0.0
  %5541 = vmatpush1.msra.mxu0 0.0
  %5542 = vmatprep.subr.mxu0 0.0
  %5543 = vmatpush1.msra.mxu0 0.0
  %5544 = vmatprep.subr.mxu0 0.0
  %5545 = vmatpush1.msra.mxu0 0.0
  %5546 = vmatprep.subr.mxu0 %v4644
  %5547 = vmatpush1.msra.mxu0 %v4641
  %5548 = vmatprep.subr.mxu0 %v4525
  %5549 = vmatpush1.msra.mxu0 %v4524
  %5550 = vmatprep.subr.mxu0 %v4491
  %5551 = vmatpush1.msra.mxu0 %v4490
  %5552 = vmatprep.subr.mxu0 %v4457
  %5553 = vmatpush1.msra.mxu0 %v4456
  %5554 = vmatprep.subr.mxu0 0.0
  %5555 = vmatpush2.msra.mxu0 0.0
  %5556 = vmatprep.subr.mxu0 0.0
  %5557 = vmatpush2.msra.mxu0 0.0
  %5558 = vmatprep.subr.mxu0 0.0
  %5559 = vmatpush2.msra.mxu0 0.0
  %5560 = vmatprep.subr.mxu0 0.0
  %5561 = vmatpush2.msra.mxu0 0.0
  %5562 = vmatprep.subr.mxu0 0.0
  %5563 = vmatpush2.msra.mxu0 0.0
  %5564 = vmatprep.subr.mxu0 0.0
  %5565 = vmatpush2.msra.mxu0 0.0
  %5566 = vmatprep.subr.mxu0 0.0
  %5567 = vmatpush2.msra.mxu0 0.0
  %5568 = vmatprep.subr.mxu0 0.0
  %5569 = vmatpush2.msra.mxu0 0.0
  %5570 = vmatprep.subr.mxu0 0.0
  %5571 = vmatpush2.msra.mxu0 0.0
  %5572 = vmatprep.subr.mxu0 0.0
  %5573 = vmatpush2.msra.mxu0 0.0
  %5574 = vmatprep.subr.mxu0 0.0
  %5575 = vmatpush2.msra.mxu0 0.0
  %5576 = vmatprep.subr.mxu0 0.0
  %5577 = vmatpush2.msra.mxu0 0.0
  %5578 = vmatprep.subr.mxu0 0.0
  %5579 = vmatpush2.msra.mxu0 0.0
  %5580 = vmatprep.subr.mxu0 0.0
  %5581 = vmatpush2.msra.mxu0 0.0
  %5582 = vmatprep.subr.mxu0 0.0
  %5583 = vmatpush2.msra.mxu0 0.0
  %5584 = vmatprep.subr.mxu0 0.0
  %5585 = vmatpush2.msra.mxu0 0.0
  %5586 = vmatprep.mubr.f32.mxu0 0.0
  %5587 = vmatmul.mubr.f32.gmra.mxu0 %v162
  %v5588 = vpop.f32.mrf.mxu0
  %v5589 = vadd.f32 0.0, %v5588
  %v5590 = vpop.f32.mrf.mxu0
  %v5591 = vadd.f32 0.0, %v5590
  %5592 = vdwg.mxu0
  %5593 = vmatprep.subr.mxu0 0.0
  %5594 = vmatpush1.msra.mxu0 0.0
  %5595 = vmatprep.subr.mxu0 0.0
  %5596 = vmatpush1.msra.mxu0 0.0
  %5597 = vmatprep.subr.mxu0 0.0
  %5598 = vmatpush1.msra.mxu0 0.0
  %5599 = vmatprep.subr.mxu0 0.0
  %5600 = vmatpush1.msra.mxu0 0.0
  %5601 = vmatprep.subr.mxu0 0.0
  %5602 = vmatpush1.msra.mxu0 0.0
  %5603 = vmatprep.subr.mxu0 0.0
  %5604 = vmatpush1.msra.mxu0 0.0
  %5605 = vmatprep.subr.mxu0 0.0
  %5606 = vmatpush1.msra.mxu0 0.0
  %5607 = vmatprep.subr.mxu0 0.0
  %5608 = vmatpush1.msra.mxu0 0.0
  %5609 = vmatprep.subr.mxu0 0.0
  %5610 = vmatpush1.msra.mxu0 0.0
  %5611 = vmatprep.subr.mxu0 0.0
  %5612 = vmatpush1.msra.mxu0 0.0
  %5613 = vmatprep.subr.mxu0 0.0
  %5614 = vmatpush1.msra.mxu0 0.0
  %5615 = vmatprep.subr.mxu0 0.0
  %5616 = vmatpush1.msra.mxu0 0.0
  %5617 = vmatprep.subr.mxu0 %v4650
  %5618 = vmatpush1.msra.mxu0 %v4647
  %5619 = vmatprep.subr.mxu0 %v4527
  %5620 = vmatpush1.msra.mxu0 %v4526
  %5621 = vmatprep.subr.mxu0 %v4493
  %5622 = vmatpush1.msra.mxu0 %v4492
  %5623 = vmatprep.subr.mxu0 %v4459
  %5624 = vmatpush1.msra.mxu0 %v4458
  %5625 = vmatprep.subr.mxu0 0.0
  %5626 = vmatpush2.msra.mxu0 0.0
  %5627 = vmatprep.subr.mxu0 0.0
  %5628 = vmatpush2.msra.mxu0 0.0
  %5629 = vmatprep.subr.mxu0 0.0
  %5630 = vmatpush2.msra.mxu0 0.0
  %5631 = vmatprep.subr.mxu0 0.0
  %5632 = vmatpush2.msra.mxu0 0.0
  %5633 = vmatprep.subr.mxu0 0.0
  %5634 = vmatpush2.msra.mxu0 0.0
  %5635 = vmatprep.subr.mxu0 0.0
  %5636 = vmatpush2.msra.mxu0 0.0
  %5637 = vmatprep.subr.mxu0 0.0
  %5638 = vmatpush2.msra.mxu0 0.0
  %5639 = vmatprep.subr.mxu0 0.0
  %5640 = vmatpush2.msra.mxu0 0.0
  %5641 = vmatprep.subr.mxu0 0.0
  %5642 = vmatpush2.msra.mxu0 0.0
  %5643 = vmatprep.subr.mxu0 0.0
  %5644 = vmatpush2.msra.mxu0 0.0
  %5645 = vmatprep.subr.mxu0 0.0
  %5646 = vmatpush2.msra.mxu0 0.0
  %5647 = vmatprep.subr.mxu0 0.0
  %5648 = vmatpush2.msra.mxu0 0.0
  %5649 = vmatprep.subr.mxu0 0.0
  %5650 = vmatpush2.msra.mxu0 0.0
  %5651 = vmatprep.subr.mxu0 0.0
  %5652 = vmatpush2.msra.mxu0 0.0
  %5653 = vmatprep.subr.mxu0 0.0
  %5654 = vmatpush2.msra.mxu0 0.0
  %5655 = vmatprep.subr.mxu0 0.0
  %5656 = vmatpush2.msra.mxu0 0.0
  %5657 = vmatprep.mubr.f32.mxu0 0.0
  %5658 = vmatmul.mubr.f32.gmra.mxu0 %v162
  %v5659 = vpop.f32.mrf.mxu0
  %v5660 = vadd.f32 0.0, %v5659
  %v5661 = vpop.f32.mrf.mxu0
  %v5662 = vadd.f32 0.0, %v5661
  %5663 = vdwg.mxu0
  %5664 = vmatprep.subr.mxu0 0.0
  %5665 = vmatpush1.msra.mxu0 0.0
  %5666 = vmatprep.subr.mxu0 0.0
  %5667 = vmatpush1.msra.mxu0 0.0
  %5668 = vmatprep.subr.mxu0 0.0
  %5669 = vmatpush1.msra.mxu0 0.0
  %5670 = vmatprep.subr.mxu0 0.0
  %5671 = vmatpush1.msra.mxu0 0.0
  %5672 = vmatprep.subr.mxu0 0.0
  %5673 = vmatpush1.msra.mxu0 0.0
  %5674 = vmatprep.subr.mxu0 0.0
  %5675 = vmatpush1.msra.mxu0 0.0
  %5676 = vmatprep.subr.mxu0 0.0
  %5677 = vmatpush1.msra.mxu0 0.0
  %5678 = vmatprep.subr.mxu0 0.0
  %5679 = vmatpush1.msra.mxu0 0.0
  %5680 = vmatprep.subr.mxu0 0.0
  %5681 = vmatpush1.msra.mxu0 0.0
  %5682 = vmatprep.subr.mxu0 0.0
  %5683 = vmatpush1.msra.mxu0 0.0
  %5684 = vmatprep.subr.mxu0 0.0
  %5685 = vmatpush1.msra.mxu0 0.0
  %5686 = vmatprep.subr.mxu0 0.0
  %5687 = vmatpush1.msra.mxu0 0.0
  %5688 = vmatprep.subr.mxu0 %v4656
  %5689 = vmatpush1.msra.mxu0 %v4653
  %5690 = vmatprep.subr.mxu0 %v4529
  %5691 = vmatpush1.msra.mxu0 %v4528
  %5692 = vmatprep.subr.mxu0 %v4495
  %5693 = vmatpush1.msra.mxu0 %v4494
  %5694 = vmatprep.subr.mxu0 %v4461
  %5695 = vmatpush1.msra.mxu0 %v4460
  %5696 = vmatprep.subr.mxu0 0.0
  %5697 = vmatpush2.msra.mxu0 0.0
  %5698 = vmatprep.subr.mxu0 0.0
  %5699 = vmatpush2.msra.mxu0 0.0
  %5700 = vmatprep.subr.mxu0 0.0
  %5701 = vmatpush2.msra.mxu0 0.0
  %5702 = vmatprep.subr.mxu0 0.0
  %5703 = vmatpush2.msra.mxu0 0.0
  %5704 = vmatprep.subr.mxu0 0.0
  %5705 = vmatpush2.msra.mxu0 0.0
  %5706 = vmatprep.subr.mxu0 0.0
  %5707 = vmatpush2.msra.mxu0 0.0
  %5708 = vmatprep.subr.mxu0 0.0
  %5709 = vmatpush2.msra.mxu0 0.0
  %5710 = vmatprep.subr.mxu0 0.0
  %5711 = vmatpush2.msra.mxu0 0.0
  %5712 = vmatprep.subr.mxu0 0.0
  %5713 = vmatpush2.msra.mxu0 0.0
  %5714 = vmatprep.subr.mxu0 0.0
  %5715 = vmatpush2.msra.mxu0 0.0
  %5716 = vmatprep.subr.mxu0 0.0
  %5717 = vmatpush2.msra.mxu0 0.0
  %5718 = vmatprep.subr.mxu0 0.0
  %5719 = vmatpush2.msra.mxu0 0.0
  %5720 = vmatprep.subr.mxu0 0.0
  %5721 = vmatpush2.msra.mxu0 0.0
  %5722 = vmatprep.subr.mxu0 0.0
  %5723 = vmatpush2.msra.mxu0 0.0
  %5724 = vmatprep.subr.mxu0 0.0
  %5725 = vmatpush2.msra.mxu0 0.0
  %5726 = vmatprep.subr.mxu0 0.0
  %5727 = vmatpush2.msra.mxu0 0.0
  %5728 = vmatprep.mubr.f32.mxu0 0.0
  %5729 = vmatmul.mubr.f32.gmra.mxu0 %v162
  %v5730 = vpop.f32.mrf.mxu0
  %v5731 = vadd.f32 0.0, %v5730
  %v5732 = vpop.f32.mrf.mxu0
  %v5733 = vadd.f32 0.0, %v5732
  %5734 = vdwg.mxu0
  %5735 = vmatprep.subr.mxu0 0.0
  %5736 = vmatpush1.msra.mxu0 0.0
  %5737 = vmatprep.subr.mxu0 0.0
  %5738 = vmatpush1.msra.mxu0 0.0
  %5739 = vmatprep.subr.mxu0 0.0
  %5740 = vmatpush1.msra.mxu0 0.0
  %5741 = vmatprep.subr.mxu0 0.0
  %5742 = vmatpush1.msra.mxu0 0.0
  %5743 = vmatprep.subr.mxu0 0.0
  %5744 = vmatpush1.msra.mxu0 0.0
  %5745 = vmatprep.subr.mxu0 0.0
  %5746 = vmatpush1.msra.mxu0 0.0
  %5747 = vmatprep.subr.mxu0 0.0
  %5748 = vmatpush1.msra.mxu0 0.0
  %5749 = vmatprep.subr.mxu0 0.0
  %5750 = vmatpush1.msra.mxu0 0.0
  %5751 = vmatprep.subr.mxu0 0.0
  %5752 = vmatpush1.msra.mxu0 0.0
  %5753 = vmatprep.subr.mxu0 0.0
  %5754 = vmatpush1.msra.mxu0 0.0
  %5755 = vmatprep.subr.mxu0 0.0
  %5756 = vmatpush1.msra.mxu0 0.0
  %5757 = vmatprep.subr.mxu0 0.0
  %5758 = vmatpush1.msra.mxu0 0.0
  %5759 = vmatprep.subr.mxu0 %v4662
  %5760 = vmatpush1.msra.mxu0 %v4659
  %5761 = vmatprep.subr.mxu0 %v4531
  %5762 = vmatpush1.msra.mxu0 %v4530
  %5763 = vmatprep.subr.mxu0 %v4497
  %5764 = vmatpush1.msra.mxu0 %v4496
  %5765 = vmatprep.subr.mxu0 %v4463
  %5766 = vmatpush1.msra.mxu0 %v4462
  %5767 = vmatprep.subr.mxu0 0.0
  %5768 = vmatpush2.msra.mxu0 0.0
  %5769 = vmatprep.subr.mxu0 0.0
  %5770 = vmatpush2.msra.mxu0 0.0
  %5771 = vmatprep.subr.mxu0 0.0
  %5772 = vmatpush2.msra.mxu0 0.0
  %5773 = vmatprep.subr.mxu0 0.0
  %5774 = vmatpush2.msra.mxu0 0.0
  %5775 = vmatprep.subr.mxu0 0.0
  %5776 = vmatpush2.msra.mxu0 0.0
  %5777 = vmatprep.subr.mxu0 0.0
  %5778 = vmatpush2.msra.mxu0 0.0
  %5779 = vmatprep.subr.mxu0 0.0
  %5780 = vmatpush2.msra.mxu0 0.0
  %5781 = vmatprep.subr.mxu0 0.0
  %5782 = vmatpush2.msra.mxu0 0.0
  %5783 = vmatprep.subr.mxu0 0.0
  %5784 = vmatpush2.msra.mxu0 0.0
  %5785 = vmatprep.subr.mxu0 0.0
  %5786 = vmatpush2.msra.mxu0 0.0
  %5787 = vmatprep.subr.mxu0 0.0
  %5788 = vmatpush2.msra.mxu0 0.0
  %5789 = vmatprep.subr.mxu0 0.0
  %5790 = vmatpush2.msra.mxu0 0.0
  %5791 = vmatprep.subr.mxu0 0.0
  %5792 = vmatpush2.msra.mxu0 0.0
  %5793 = vmatprep.subr.mxu0 0.0
  %5794 = vmatpush2.msra.mxu0 0.0
  %5795 = vmatprep.subr.mxu0 0.0
  %5796 = vmatpush2.msra.mxu0 0.0
  %5797 = vmatprep.subr.mxu0 0.0
  %5798 = vmatpush2.msra.mxu0 0.0
  %5799 = vmatprep.mubr.f32.mxu0 0.0
  %5800 = vmatmul.mubr.f32.gmra.mxu0 %v162
  %v5801 = vpop.f32.mrf.mxu0
  %v5802 = vadd.f32 0.0, %v5801
  %v5803 = vpop.f32.mrf.mxu0
  %v5804 = vadd.f32 0.0, %v5803
  %5805 = vdwg.mxu0
  %5806 = vmatprep.subr.mxu0 0.0
  %5807 = vmatpush1.msra.mxu0 0.0
  %5808 = vmatprep.subr.mxu0 0.0
  %5809 = vmatpush1.msra.mxu0 0.0
  %5810 = vmatprep.subr.mxu0 0.0
  %5811 = vmatpush1.msra.mxu0 0.0
  %5812 = vmatprep.subr.mxu0 0.0
  %5813 = vmatpush1.msra.mxu0 0.0
  %5814 = vmatprep.subr.mxu0 0.0
  %5815 = vmatpush1.msra.mxu0 0.0
  %5816 = vmatprep.subr.mxu0 0.0
  %5817 = vmatpush1.msra.mxu0 0.0
  %5818 = vmatprep.subr.mxu0 0.0
  %5819 = vmatpush1.msra.mxu0 0.0
  %5820 = vmatprep.subr.mxu0 0.0
  %5821 = vmatpush1.msra.mxu0 0.0
  %5822 = vmatprep.subr.mxu0 0.0
  %5823 = vmatpush1.msra.mxu0 0.0
  %5824 = vmatprep.subr.mxu0 0.0
  %5825 = vmatpush1.msra.mxu0 0.0
  %5826 = vmatprep.subr.mxu0 0.0
  %5827 = vmatpush1.msra.mxu0 0.0
  %5828 = vmatprep.subr.mxu0 0.0
  %5829 = vmatpush1.msra.mxu0 0.0
  %5830 = vmatprep.subr.mxu0 %v4668
  %5831 = vmatpush1.msra.mxu0 %v4665
  %5832 = vmatprep.subr.mxu0 %v4533
  %5833 = vmatpush1.msra.mxu0 %v4532
  %5834 = vmatprep.subr.mxu0 %v4499
  %5835 = vmatpush1.msra.mxu0 %v4498
  %5836 = vmatprep.subr.mxu0 %v4465
  %5837 = vmatpush1.msra.mxu0 %v4464
  %5838 = vmatprep.subr.mxu0 0.0
  %5839 = vmatpush2.msra.mxu0 0.0
  %5840 = vmatprep.subr.mxu0 0.0
  %5841 = vmatpush2.msra.mxu0 0.0
  %5842 = vmatprep.subr.mxu0 0.0
  %5843 = vmatpush2.msra.mxu0 0.0
  %5844 = vmatprep.subr.mxu0 0.0
  %5845 = vmatpush2.msra.mxu0 0.0
  %5846 = vmatprep.subr.mxu0 0.0
  %5847 = vmatpush2.msra.mxu0 0.0
  %5848 = vmatprep.subr.mxu0 0.0
  %5849 = vmatpush2.msra.mxu0 0.0
  %5850 = vmatprep.subr.mxu0 0.0
  %5851 = vmatpush2.msra.mxu0 0.0
  %5852 = vmatprep.subr.mxu0 0.0
  %5853 = vmatpush2.msra.mxu0 0.0
  %5854 = vmatprep.subr.mxu0 0.0
  %5855 = vmatpush2.msra.mxu0 0.0
  %5856 = vmatprep.subr.mxu0 0.0
  %5857 = vmatpush2.msra.mxu0 0.0
  %5858 = vmatprep.subr.mxu0 0.0
  %5859 = vmatpush2.msra.mxu0 0.0
  %5860 = vmatprep.subr.mxu0 0.0
  %5861 = vmatpush2.msra.mxu0 0.0
  %5862 = vmatprep.subr.mxu0 0.0
  %5863 = vmatpush2.msra.mxu0 0.0
  %5864 = vmatprep.subr.mxu0 0.0
  %5865 = vmatpush2.msra.mxu0 0.0
  %5866 = vmatprep.subr.mxu0 0.0
  %5867 = vmatpush2.msra.mxu0 0.0
  %5868 = vmatprep.subr.mxu0 0.0
  %5869 = vmatpush2.msra.mxu0 0.0
  %5870 = vmatprep.mubr.f32.mxu0 0.0
  %5871 = vmatmul.mubr.f32.gmra.mxu0 %v162
  %v5872 = vpop.f32.mrf.mxu0
  %v5873 = vadd.f32 0.0, %v5872
  %v5874 = vpop.f32.mrf.mxu0
  %v5875 = vadd.f32 0.0, %v5874
  %5876 = vdwg.mxu0
  %v5877 = vmax.f32 %v4398, %v4737
  %v5878 = vmax.f32 %v4399, %v4739
  %v5879 = vmax.f32 %v4400, %v4808
  %v5880 = vmax.f32 %v4401, %v4810
  %v5881 = vmax.f32 %v4402, %v4879
  %v5882 = vmax.f32 %v4403, %v4881
  %v5883 = vmax.f32 %v4404, %v4950
  %v5884 = vmax.f32 %v4405, %v4952
  %v5885 = vmax.f32 %v4406, %v5021
  %v5886 = vmax.f32 %v4407, %v5023
  %v5887 = vmax.f32 %v4408, %v5092
  %v5888 = vmax.f32 %v4409, %v5094
  %v5889 = vmax.f32 %v4410, %v5163
  %v5890 = vmax.f32 %v4411, %v5165
  %v5891 = vmax.f32 %v4412, %v5234
  %v5892 = vmax.f32 %v4413, %v5236
  %v5893 = vmax.f32 %v4414, %v5305
  %v5894 = vmax.f32 %v4415, %v5307
  %v5895 = vmax.f32 %v4416, %v5376
  %v5896 = vmax.f32 %v4417, %v5378
  %v5897 = vmax.f32 %v4418, %v5447
  %v5898 = vmax.f32 %v4419, %v5449
  %v5899 = vmax.f32 %v4420, %v5518
  %v5900 = vmax.f32 %v4421, %v5520
  %v5901 = vmax.f32 %v4422, %v5589
  %v5902 = vmax.f32 %v4423, %v5591
  %v5903 = vmax.f32 %v4424, %v5660
  %v5904 = vmax.f32 %v4425, %v5662
  %v5905 = vmax.f32 %v4426, %v5731
  %v5906 = vmax.f32 %v4427, %v5733
  %v5907 = vmax.f32 %v4428, %v5802
  %v5908 = vmax.f32 %v4429, %v5804
  %v5909 = vmax.f32 %v4430, %v5873
  %v5910 = vmax.f32 %v4431, %v5875
  %v5911 = vld [vmem:[%s5] sm:$0xf]
  %5913 = vset.pattern.permute.xlu0 0
  %5914 = vperm.xlu0 %5913, %v5911
  %v5915 = vpop.permute.xlu0 %5914
  %v5917 = vadd.f32 %v5877, %v5915
  %v5918 = vadd.f32 %v5878, %v5915
  %v5919 = vadd.f32 %v5879, %v5915
  %v5920 = vadd.f32 %v5880, %v5915
  %v5921 = vadd.f32 %v5881, %v5915
  %v5922 = vadd.f32 %v5882, %v5915
  %v5923 = vadd.f32 %v5883, %v5915
  %v5924 = vadd.f32 %v5884, %v5915
  %v5925 = vadd.f32 %v5885, %v5915
  %v5926 = vadd.f32 %v5886, %v5915
  %v5927 = vadd.f32 %v5887, %v5915
  %v5928 = vadd.f32 %v5888, %v5915
  %v5929 = vadd.f32 %v5889, %v5915
  %v5930 = vadd.f32 %v5890, %v5915
  %v5931 = vadd.f32 %v5891, %v5915
  %v5932 = vadd.f32 %v5892, %v5915
  %v5933 = vadd.f32 %v5893, %v5915
  %v5934 = vadd.f32 %v5894, %v5915
  %v5935 = vadd.f32 %v5895, %v5915
  %v5936 = vadd.f32 %v5896, %v5915
  %v5937 = vadd.f32 %v5897, %v5915
  %v5938 = vadd.f32 %v5898, %v5915
  %v5939 = vadd.f32 %v5899, %v5915
  %v5940 = vadd.f32 %v5900, %v5915
  %v5941 = vadd.f32 %v5901, %v5915
  %v5942 = vadd.f32 %v5902, %v5915
  %v5943 = vadd.f32 %v5903, %v5915
  %v5944 = vadd.f32 %v5904, %v5915
  %v5945 = vadd.f32 %v5905, %v5915
  %v5946 = vadd.f32 %v5906, %v5915
  %v5947 = vadd.f32 %v5907, %v5915
  %v5948 = vadd.f32 %v5908, %v5915
  %v5949 = vadd.f32 %v5909, %v5915
  %v5950 = vadd.f32 %v5910, %v5915
  %v5951 = vmax.f32 %v5917, 0.0
  %v5952 = vmax.f32 %v5918, 0.0
  %v5953 = vmax.f32 %v5919, 0.0
  %v5954 = vmax.f32 %v5920, 0.0
  %v5955 = vmax.f32 %v5921, 0.0
  %v5956 = vmax.f32 %v5922, 0.0
  %v5957 = vmax.f32 %v5923, 0.0
  %v5958 = vmax.f32 %v5924, 0.0
  %v5959 = vmax.f32 %v5925, 0.0
  %v5960 = vmax.f32 %v5926, 0.0
  %v5961 = vmax.f32 %v5927, 0.0
  %v5962 = vmax.f32 %v5928, 0.0
  %v5963 = vmax.f32 %v5929, 0.0
  %v5964 = vmax.f32 %v5930, 0.0
  %v5965 = vmax.f32 %v5931, 0.0
  %v5966 = vmax.f32 %v5932, 0.0
  %v5967 = vmax.f32 %v5933, 0.0
  %v5968 = vmax.f32 %v5934, 0.0
  %v5969 = vmax.f32 %v5935, 0.0
  %v5970 = vmax.f32 %v5936, 0.0
  %v5971 = vmax.f32 %v5937, 0.0
  %v5972 = vmax.f32 %v5938, 0.0
  %v5973 = vmax.f32 %v5939, 0.0
  %v5974 = vmax.f32 %v5940, 0.0
  %v5975 = vmax.f32 %v5941, 0.0
  %v5976 = vmax.f32 %v5942, 0.0
  %v5977 = vmax.f32 %v5943, 0.0
  %v5978 = vmax.f32 %v5944, 0.0
  %v5979 = vmax.f32 %v5945, 0.0
  %v5980 = vmax.f32 %v5946, 0.0
  %v5981 = vmax.f32 %v5947, 0.0
  %v5982 = vmax.f32 %v5948, 0.0
  %v5983 = vmax.f32 %v5949, 0.0
  %v5984 = vmax.f32 %v5950, 0.0
  %v6019 = vcombine.low %v5951, %v5952
  %v6020 = vcombine.low %v5953, %v5954
  %v6021 = vcombine.low %v5955, %v5956
  %v6022 = vcombine.low %v5957, %v5958
  %v6023 = vcombine.low %v5959, %v5960
  %v6024 = vcombine.low %v5961, %v5962
  %v6025 = vcombine.low %v5963, %v5964
  %v6026 = vcombine.low %v5965, %v5966
  %v6027 = vcombine.low %v5967, %v5968
  %v6028 = vcombine.low %v5969, %v5970
  %v6029 = vcombine.low %v5971, %v5972
  %v6030 = vcombine.low %v5973, %v5974
  %v6031 = vcombine.low %v5975, %v5976
  %v6032 = vcombine.low %v5977, %v5978
  %v6033 = vcombine.low %v5979, %v5980
  %v6034 = vcombine.low %v5981, %v5982
  %v6035 = vcombine.low %v5983, %v5984
  %6053 = vst [vmem:[%s6] sm:$0xff] %v6019
  %6054 = vst [vmem:[%s6 + $0x8] sm:$0xff] %v6020
  %6055 = vst [vmem:[%s6 + $0x10] sm:$0xff] %v6021
  %6056 = vst [vmem:[%s6 + $0x18] sm:$0xff] %v6022
  %6057 = vst [vmem:[%s6 + $0x20] sm:$0xff] %v6023
  %6058 = vst [vmem:[%s6 + $0x28] sm:$0xff] %v6024
  %6059 = vst [vmem:[%s6 + $0x30] sm:$0xff] %v6025
  %6060 = vst [vmem:[%s6 + $0x38] sm:$0xff] %v6026
  %6061 = vst [vmem:[%s6 + $0x40] sm:$0xff] %v6027
  %6062 = vst [vmem:[%s6 + $0x48] sm:$0xff] %v6028
  %6063 = vst [vmem:[%s6 + $0x50] sm:$0xff] %v6029
  %6064 = vst [vmem:[%s6 + $0x58] sm:$0xff] %v6030
  %6065 = vst [vmem:[%s6 + $0x60] sm:$0xff] %v6031
  %6066 = vst [vmem:[%s6 + $0x68] sm:$0xff] %v6032
  %6067 = vst [vmem:[%s6 + $0x70] sm:$0xff] %v6033
  %6068 = vst [vmem:[%s6 + $0x78] sm:$0xff] %v6034
  %vm6069 = vcmask 1043456
  %vm6070 = vcmask 64516
  %vm6071 = vmor %vm6070, %vm6069
  %6072 = vst.msk [vmem:[%s6 + $0x80] sm:$0xff] %vm6071, %v6035
  // Predicated region
  $region26: #{agent_forward.4} parent=0 // pred_check
    _
  $region27: #{agent_forward.4} parent=0 // pred_check_branch
    %6074 = sbr.rel (0) target = $region29
  $region28: #{agent_forward.4} parent=0 // pred_region
    _
  $region29: #{agent_forward.4} parent=0 // pred_fallthru
    _
  // Predicated region
  $region30: #{agent_forward.4} parent=0 // pred_check
    _
  $region31: #{agent_forward.4} parent=0 // pred_check_branch
    %6076 = sbr.rel (0) target = $region33
  $region32: #{agent_forward.4} parent=0 // pred_region
    _
  $region33: #{agent_forward.4} parent=0 // pred_fallthru
    _

// kernel: agent_forward.5
$region0: #{agent_forward.5}
  #allocation0 [shape = 'u32[]', space=smem, size = 0x4, offset = 0x4, fixed_abs, tag = 'smem constant byte address 0x4 - core index']
  #allocation1 [shape = 'u32[144,128]{1,0:T(1,128)}', space=vmem, size = 0x12000, scoped, tag = 'internal scratch']
  %s0 = inlined_call_operand.vmem [shape: f32[100,882], index: 0, kind: input, shape index: {}]
  %s1 = inlined_call_operand.vmem [shape: f32[100,882], index: 1, kind: input, shape index: {}]
  %s2 = inlined_call_operand.vmem [shape: f32[100,882], index: 2, kind: input, shape index: {}]
  %s3 = inlined_call_operand.vmem [shape: f32[100,882], index: 3, kind: input, shape index: {}]
  %s4 = inlined_call_operand.vmem [shape: f32[8,100], index: 4, kind: input, shape index: {}]
  %s5 = inlined_call_operand.vmem [shape: f32[8,1], index: 5, kind: input, shape index: {}]
  %s6 = inlined_call_operand.vmem [shape: f32[8,882], index: 6, kind: output, shape index: {}]
  %s7 = sld [smem:[#allocation0]]
  $region34: #{agent_forward.5} parent=0
    _
  %s9 = ssub.s32 1, %s7
  %s10 = scalar_select 0, %s9, %s7
  // Predicated region
  $region2: #{agent_forward.5} parent=0 // pred_check
    _
  $region3: #{agent_forward.5} parent=0 // pred_check_branch
    %12 = sbr.rel (0) target = $region5
  $region4: #{agent_forward.5} parent=0 // pred_region
    _
  $region5: #{agent_forward.5} parent=0 // pred_fallthru
    _
  // Predicated region
  $region6: #{agent_forward.5} parent=0 // pred_check
    _
  $region7: #{agent_forward.5} parent=0 // pred_check_branch
    %14 = sbr.rel (0) target = $region9
  $region8: #{agent_forward.5} parent=0 // pred_region
    _
  $region9: #{agent_forward.5} parent=0 // pred_fallthru
    _
  // Predicated region
  $region10: #{agent_forward.5} parent=0 // pred_check
    _
  $region11: #{agent_forward.5} parent=0 // pred_check_branch
    %16 = sbr.rel (0) target = $region13
  $region12: #{agent_forward.5} parent=0 // pred_region
    _
  $region13: #{agent_forward.5} parent=0 // pred_fallthru
    _
  // Predicated region
  $region14: #{agent_forward.5} parent=0 // pred_check
    _
  $region15: #{agent_forward.5} parent=0 // pred_check_branch
    %18 = sbr.rel (0) target = $region17
  $region16: #{agent_forward.5} parent=0 // pred_region
    _
  $region17: #{agent_forward.5} parent=0 // pred_fallthru
    _
  // Predicated region
  $region18: #{agent_forward.5} parent=0 // pred_check
    _
  $region19: #{agent_forward.5} parent=0 // pred_check_branch
    %20 = sbr.rel (0) target = $region21
  $region20: #{agent_forward.5} parent=0 // pred_region
    _
  $region21: #{agent_forward.5} parent=0 // pred_fallthru
    _
  // Predicated region
  $region22: #{agent_forward.5} parent=0 // pred_check
    _
  $region23: #{agent_forward.5} parent=0 // pred_check_branch
    %22 = sbr.rel (0) target = $region25
  $region24: #{agent_forward.5} parent=0 // pred_region
    _
  $region25: #{agent_forward.5} parent=0 // pred_fallthru
    _
  %v23 = vld [vmem:[%s4] sm:$0xff]
  %v24 = vld [vmem:[%s0] sm:$0xff]
  %v25 = vld [vmem:[%s0 + $0x8] sm:$0xff]
  %v26 = vld [vmem:[%s0 + $0x10] sm:$0xff]
  %v27 = vld [vmem:[%s0 + $0x18] sm:$0xff]
  %v28 = vld [vmem:[%s0 + $0x20] sm:$0xff]
  %v29 = vld [vmem:[%s0 + $0x28] sm:$0xff]
  %v30 = vld [vmem:[%s0 + $0x30] sm:$0xff]
  %v31 = vld [vmem:[%s0 + $0x38] sm:$0xff]
  %v32 = vld [vmem:[%s0 + $0x40] sm:$0xff]
  %v33 = vld [vmem:[%s0 + $0x48] sm:$0xff]
  %v34 = vld [vmem:[%s0 + $0x50] sm:$0xff]
  %v35 = vld [vmem:[%s0 + $0x58] sm:$0xff]
  %v36 = vld [vmem:[%s0 + $0x60] sm:$0xff]
  %v37 = vld [vmem:[%s0 + $0x68] sm:$0xff]
  %v38 = vld [vmem:[%s0 + $0x70] sm:$0xff]
  %v39 = vld [vmem:[%s0 + $0x78] sm:$0xff]
  %v40 = vld [vmem:[%s0 + $0x80] sm:$0xff]
  %v41 = vld [vmem:[%s0 + $0x88] sm:$0xff]
  %v42 = vld [vmem:[%s0 + $0x90] sm:$0xff]
  %v43 = vld [vmem:[%s0 + $0x98] sm:$0xff]
  %v44 = vld [vmem:[%s0 + $0xa0] sm:$0xff]
  %v45 = vld [vmem:[%s0 + $0xa8] sm:$0xff]
  %v46 = vld [vmem:[%s0 + $0xb0] sm:$0xff]
  %v47 = vld [vmem:[%s0 + $0xb8] sm:$0xff]
  %v48 = vld [vmem:[%s0 + $0xc0] sm:$0xff]
  %v49 = vld [vmem:[%s0 + $0xc8] sm:$0xff]
  %v50 = vld [vmem:[%s0 + $0xd0] sm:$0xff]
  %v51 = vld [vmem:[%s0 + $0xd8] sm:$0xff]
  %v52 = vld [vmem:[%s0 + $0xe0] sm:$0xff]
  %v53 = vld [vmem:[%s0 + $0xe8] sm:$0xff]
  %v54 = vld [vmem:[%s0 + $0xf0] sm:$0xff]
  %v55 = vld [vmem:[%s0 + $0xf8] sm:$0xff]
  %v56 = vld [vmem:[%s0 + $0x100] sm:$0xff]
  %v57 = vld [vmem:[%s0 + $0x108] sm:$0xff]
  %v58 = vld [vmem:[%s0 + $0x110] sm:$0xff]
  %v59 = vld [vmem:[%s0 + $0x118] sm:$0xff]
  %v60 = vld [vmem:[%s0 + $0x120] sm:$0xff]
  %v61 = vld [vmem:[%s0 + $0x128] sm:$0xff]
  %v62 = vld [vmem:[%s0 + $0x130] sm:$0xff]
  %v63 = vld [vmem:[%s0 + $0x138] sm:$0xff]
  %v64 = vld [vmem:[%s0 + $0x140] sm:$0xff]
  %v65 = vld [vmem:[%s0 + $0x148] sm:$0xff]
  %v66 = vld [vmem:[%s0 + $0x150] sm:$0xff]
  %v67 = vld [vmem:[%s0 + $0x158] sm:$0xff]
  %v68 = vld [vmem:[%s0 + $0x160] sm:$0xff]
  %v69 = vld [vmem:[%s0 + $0x168] sm:$0xff]
  %v70 = vld [vmem:[%s0 + $0x170] sm:$0xff]
  %v71 = vld [vmem:[%s0 + $0x178] sm:$0xff]
  %v72 = vld [vmem:[%s0 + $0x180] sm:$0xff]
  %v73 = vld [vmem:[%s0 + $0x188] sm:$0xff]
  %v74 = vld [vmem:[%s0 + $0x190] sm:$0xff]
  %v75 = vld [vmem:[%s0 + $0x198] sm:$0xff]
  %v76 = vld [vmem:[%s0 + $0x1a0] sm:$0xff]
  %v77 = vld [vmem:[%s0 + $0x1a8] sm:$0xff]
  %v78 = vld [vmem:[%s0 + $0x1b0] sm:$0xff]
  %v79 = vld [vmem:[%s0 + $0x1b8] sm:$0xff]
  %v80 = vld [vmem:[%s0 + $0x1c0] sm:$0xff]
  %v81 = vld [vmem:[%s0 + $0x1c8] sm:$0xff]
  %v82 = vld [vmem:[%s0 + $0x1d0] sm:$0xff]
  %v83 = vld [vmem:[%s0 + $0x1d8] sm:$0xff]
  %v84 = vld [vmem:[%s0 + $0x1e0] sm:$0xff]
  %v85 = vld [vmem:[%s0 + $0x1e8] sm:$0xff]
  %v86 = vld [vmem:[%s0 + $0x1f0] sm:$0xff]
  %v87 = vld [vmem:[%s0 + $0x1f8] sm:$0xff]
  %v88 = vld [vmem:[%s0 + $0x200] sm:$0xff]
  %v89 = vld [vmem:[%s0 + $0x208] sm:$0xff]
  %v90 = vld [vmem:[%s0 + $0x210] sm:$0xff]
  %v91 = vld [vmem:[%s0 + $0x218] sm:$0xff]
  %v92 = vld [vmem:[%s0 + $0x220] sm:$0xff]
  %v93 = vld [vmem:[%s0 + $0x228] sm:$0xff]
  %v94 = vld [vmem:[%s0 + $0x230] sm:$0xff]
  %v95 = vld [vmem:[%s0 + $0x238] sm:$0xff]
  %v96 = vld [vmem:[%s0 + $0x240] sm:$0xff]
  %v97 = vld [vmem:[%s0 + $0x248] sm:$0xff]
  %v98 = vld [vmem:[%s0 + $0x250] sm:$0xff]
  %v99 = vld [vmem:[%s0 + $0x258] sm:$0xff]
  %v100 = vld [vmem:[%s0 + $0x260] sm:$0xff]
  %v101 = vld [vmem:[%s0 + $0x268] sm:$0xff]
  %v102 = vld [vmem:[%s0 + $0x270] sm:$0xff]
  %v103 = vld [vmem:[%s0 + $0x278] sm:$0xff]
  %v104 = vld [vmem:[%s0 + $0x280] sm:$0xff]
  %v105 = vld [vmem:[%s0 + $0x288] sm:$0xff]
  %v106 = vld [vmem:[%s0 + $0x290] sm:$0xff]
  %v107 = vld [vmem:[%s0 + $0x298] sm:$0xff]
  %v108 = vld [vmem:[%s0 + $0x2a0] sm:$0xf]
  %v109 = vld [vmem:[%s0 + $0x2a8] sm:$0xf]
  %v110 = vld [vmem:[%s0 + $0x2b0] sm:$0xf]
  %v111 = vld [vmem:[%s0 + $0x2b8] sm:$0xf]
  %v112 = vld [vmem:[%s0 + $0x2c0] sm:$0xf]
  %v113 = vld [vmem:[%s0 + $0x2c8] sm:$0xf]
  %v114 = vld [vmem:[%s0 + $0x2d0] sm:$0xf]
  %vm115 = vcmask 818176
  %v117 = vsel %vm115, %v23, 0
  %vm119 = vcmask 1043456
  %v121 = vsel %vm119, %v108, 0
  %v124 = vsel %vm119, %v109, 0
  %v127 = vsel %vm119, %v110, 0
  %v130 = vsel %vm119, %v111, 0
  %v133 = vsel %vm119, %v112, 0
  %v136 = vsel %vm119, %v113, 0
  %v139 = vsel %vm119, %v114, 0
  %141 = vmatprep.subr.mxu0 0.0
  %142 = vmatpush1.msra.mxu0 0.0
  %143 = vmatprep.subr.mxu0 0.0
  %144 = vmatpush1.msra.mxu0 0.0
  %145 = vmatprep.subr.mxu0 0.0
  %146 = vmatpush1.msra.mxu0 0.0
  %147 = vmatprep.subr.mxu0 %v124
  %148 = vmatpush1.msra.mxu0 %v121
  %149 = vmatprep.subr.mxu0 %v102
  %150 = vmatpush1.msra.mxu0 %v101
  %151 = vmatprep.subr.mxu0 %v95
  %152 = vmatpush1.msra.mxu0 %v94
  %153 = vmatprep.subr.mxu0 %v88
  %154 = vmatpush1.msra.mxu0 %v87
  %155 = vmatprep.subr.mxu0 %v81
  %156 = vmatpush1.msra.mxu0 %v80
  %157 = vmatprep.subr.mxu0 %v74
  %158 = vmatpush1.msra.mxu0 %v73
  %159 = vmatprep.subr.mxu0 %v67
  %160 = vmatpush1.msra.mxu0 %v66
  %161 = vmatprep.subr.mxu0 %v60
  %162 = vmatpush1.msra.mxu0 %v59
  %163 = vmatprep.subr.mxu0 %v53
  %164 = vmatpush1.msra.mxu0 %v52
  %165 = vmatprep.subr.mxu0 %v46
  %166 = vmatpush1.msra.mxu0 %v45
  %167 = vmatprep.subr.mxu0 %v39
  %168 = vmatpush1.msra.mxu0 %v38
  %169 = vmatprep.subr.mxu0 %v32
  %170 = vmatpush1.msra.mxu0 %v31
  %171 = vmatprep.subr.mxu0 %v25
  %172 = vmatpush1.msra.mxu0 %v24
  %173 = vmatprep.subr.mxu0 0.0
  %174 = vmatpush2.msra.mxu0 0.0
  %175 = vmatprep.subr.mxu0 0.0
  %176 = vmatpush2.msra.mxu0 0.0
  %177 = vmatprep.subr.mxu0 0.0
  %178 = vmatpush2.msra.mxu0 0.0
  %179 = vmatprep.subr.mxu0 0.0
  %180 = vmatpush2.msra.mxu0 0.0
  %181 = vmatprep.subr.mxu0 0.0
  %182 = vmatpush2.msra.mxu0 0.0
  %183 = vmatprep.subr.mxu0 0.0
  %184 = vmatpush2.msra.mxu0 0.0
  %185 = vmatprep.subr.mxu0 0.0
  %186 = vmatpush2.msra.mxu0 0.0
  %187 = vmatprep.subr.mxu0 0.0
  %188 = vmatpush2.msra.mxu0 0.0
  %189 = vmatprep.subr.mxu0 0.0
  %190 = vmatpush2.msra.mxu0 0.0
  %191 = vmatprep.subr.mxu0 0.0
  %192 = vmatpush2.msra.mxu0 0.0
  %193 = vmatprep.subr.mxu0 0.0
  %194 = vmatpush2.msra.mxu0 0.0
  %195 = vmatprep.subr.mxu0 0.0
  %196 = vmatpush2.msra.mxu0 0.0
  %197 = vmatprep.subr.mxu0 0.0
  %198 = vmatpush2.msra.mxu0 0.0
  %199 = vmatprep.subr.mxu0 0.0
  %200 = vmatpush2.msra.mxu0 0.0
  %201 = vmatprep.subr.mxu0 0.0
  %202 = vmatpush2.msra.mxu0 0.0
  %203 = vmatprep.subr.mxu0 0.0
  %204 = vmatpush2.msra.mxu0 0.0
  %205 = vmatprep.mubr.f32.mxu0 0.0
  %206 = vmatmul.mubr.f32.gmra.mxu0 %v117
  %v207 = vpop.f32.mrf.mxu0
  %v208 = vadd.f32 0.0, %v207
  %v209 = vpop.f32.mrf.mxu0
  %v210 = vadd.f32 0.0, %v209
  %211 = vdwg.mxu0
  %212 = vmatprep.subr.mxu0 0.0
  %213 = vmatpush1.msra.mxu0 0.0
  %214 = vmatprep.subr.mxu0 0.0
  %215 = vmatpush1.msra.mxu0 0.0
  %216 = vmatprep.subr.mxu0 0.0
  %217 = vmatpush1.msra.mxu0 0.0
  %218 = vmatprep.subr.mxu0 %v130
  %219 = vmatpush1.msra.mxu0 %v127
  %220 = vmatprep.subr.mxu0 %v104
  %221 = vmatpush1.msra.mxu0 %v103
  %222 = vmatprep.subr.mxu0 %v97
  %223 = vmatpush1.msra.mxu0 %v96
  %224 = vmatprep.subr.mxu0 %v90
  %225 = vmatpush1.msra.mxu0 %v89
  %226 = vmatprep.subr.mxu0 %v83
  %227 = vmatpush1.msra.mxu0 %v82
  %228 = vmatprep.subr.mxu0 %v76
  %229 = vmatpush1.msra.mxu0 %v75
  %230 = vmatprep.subr.mxu0 %v69
  %231 = vmatpush1.msra.mxu0 %v68
  %232 = vmatprep.subr.mxu0 %v62
  %233 = vmatpush1.msra.mxu0 %v61
  %234 = vmatprep.subr.mxu0 %v55
  %235 = vmatpush1.msra.mxu0 %v54
  %236 = vmatprep.subr.mxu0 %v48
  %237 = vmatpush1.msra.mxu0 %v47
  %238 = vmatprep.subr.mxu0 %v41
  %239 = vmatpush1.msra.mxu0 %v40
  %240 = vmatprep.subr.mxu0 %v34
  %241 = vmatpush1.msra.mxu0 %v33
  %242 = vmatprep.subr.mxu0 %v27
  %243 = vmatpush1.msra.mxu0 %v26
  %244 = vmatprep.subr.mxu0 0.0
  %245 = vmatpush2.msra.mxu0 0.0
  %246 = vmatprep.subr.mxu0 0.0
  %247 = vmatpush2.msra.mxu0 0.0
  %248 = vmatprep.subr.mxu0 0.0
  %249 = vmatpush2.msra.mxu0 0.0
  %250 = vmatprep.subr.mxu0 0.0
  %251 = vmatpush2.msra.mxu0 0.0
  %252 = vmatprep.subr.mxu0 0.0
  %253 = vmatpush2.msra.mxu0 0.0
  %254 = vmatprep.subr.mxu0 0.0
  %255 = vmatpush2.msra.mxu0 0.0
  %256 = vmatprep.subr.mxu0 0.0
  %257 = vmatpush2.msra.mxu0 0.0
  %258 = vmatprep.subr.mxu0 0.0
  %259 = vmatpush2.msra.mxu0 0.0
  %260 = vmatprep.subr.mxu0 0.0
  %261 = vmatpush2.msra.mxu0 0.0
  %262 = vmatprep.subr.mxu0 0.0
  %263 = vmatpush2.msra.mxu0 0.0
  %264 = vmatprep.subr.mxu0 0.0
  %265 = vmatpush2.msra.mxu0 0.0
  %266 = vmatprep.subr.mxu0 0.0
  %267 = vmatpush2.msra.mxu0 0.0
  %268 = vmatprep.subr.mxu0 0.0
  %269 = vmatpush2.msra.mxu0 0.0
  %270 = vmatprep.subr.mxu0 0.0
  %271 = vmatpush2.msra.mxu0 0.0
  %272 = vmatprep.subr.mxu0 0.0
  %273 = vmatpush2.msra.mxu0 0.0
  %274 = vmatprep.subr.mxu0 0.0
  %275 = vmatpush2.msra.mxu0 0.0
  %276 = vmatprep.mubr.f32.mxu0 0.0
  %277 = vmatmul.mubr.f32.gmra.mxu0 %v117
  %v278 = vpop.f32.mrf.mxu0
  %v279 = vadd.f32 0.0, %v278
  %v280 = vpop.f32.mrf.mxu0
  %v281 = vadd.f32 0.0, %v280
  %282 = vdwg.mxu0
  %283 = vmatprep.subr.mxu0 0.0
  %284 = vmatpush1.msra.mxu0 0.0
  %285 = vmatprep.subr.mxu0 0.0
  %286 = vmatpush1.msra.mxu0 0.0
  %287 = vmatprep.subr.mxu0 0.0
  %288 = vmatpush1.msra.mxu0 0.0
  %289 = vmatprep.subr.mxu0 %v136
  %290 = vmatpush1.msra.mxu0 %v133
  %291 = vmatprep.subr.mxu0 %v106
  %292 = vmatpush1.msra.mxu0 %v105
  %293 = vmatprep.subr.mxu0 %v99
  %294 = vmatpush1.msra.mxu0 %v98
  %295 = vmatprep.subr.mxu0 %v92
  %296 = vmatpush1.msra.mxu0 %v91
  %297 = vmatprep.subr.mxu0 %v85
  %298 = vmatpush1.msra.mxu0 %v84
  %299 = vmatprep.subr.mxu0 %v78
  %300 = vmatpush1.msra.mxu0 %v77
  %301 = vmatprep.subr.mxu0 %v71
  %302 = vmatpush1.msra.mxu0 %v70
  %303 = vmatprep.subr.mxu0 %v64
  %304 = vmatpush1.msra.mxu0 %v63
  %305 = vmatprep.subr.mxu0 %v57
  %306 = vmatpush1.msra.mxu0 %v56
  %307 = vmatprep.subr.mxu0 %v50
  %308 = vmatpush1.msra.mxu0 %v49
  %309 = vmatprep.subr.mxu0 %v43
  %310 = vmatpush1.msra.mxu0 %v42
  %311 = vmatprep.subr.mxu0 %v36
  %312 = vmatpush1.msra.mxu0 %v35
  %313 = vmatprep.subr.mxu0 %v29
  %314 = vmatpush1.msra.mxu0 %v28
  %315 = vmatprep.subr.mxu0 0.0
  %316 = vmatpush2.msra.mxu0 0.0
  %317 = vmatprep.subr.mxu0 0.0
  %318 = vmatpush2.msra.mxu0 0.0
  %319 = vmatprep.subr.mxu0 0.0
  %320 = vmatpush2.msra.mxu0 0.0
  %321 = vmatprep.subr.mxu0 0.0
  %322 = vmatpush2.msra.mxu0 0.0
  %323 = vmatprep.subr.mxu0 0.0
  %324 = vmatpush2.msra.mxu0 0.0
  %325 = vmatprep.subr.mxu0 0.0
  %326 = vmatpush2.msra.mxu0 0.0
  %327 = vmatprep.subr.mxu0 0.0
  %328 = vmatpush2.msra.mxu0 0.0
  %329 = vmatprep.subr.mxu0 0.0
  %330 = vmatpush2.msra.mxu0 0.0
  %331 = vmatprep.subr.mxu0 0.0
  %332 = vmatpush2.msra.mxu0 0.0
  %333 = vmatprep.subr.mxu0 0.0
  %334 = vmatpush2.msra.mxu0 0.0
  %335 = vmatprep.subr.mxu0 0.0
  %336 = vmatpush2.msra.mxu0 0.0
  %337 = vmatprep.subr.mxu0 0.0
  %338 = vmatpush2.msra.mxu0 0.0
  %339 = vmatprep.subr.mxu0 0.0
  %340 = vmatpush2.msra.mxu0 0.0
  %341 = vmatprep.subr.mxu0 0.0
  %342 = vmatpush2.msra.mxu0 0.0
  %343 = vmatprep.subr.mxu0 0.0
  %344 = vmatpush2.msra.mxu0 0.0
  %345 = vmatprep.subr.mxu0 0.0
  %346 = vmatpush2.msra.mxu0 0.0
  %347 = vmatprep.mubr.f32.mxu0 0.0
  %348 = vmatmul.mubr.f32.gmra.mxu0 %v117
  %v349 = vpop.f32.mrf.mxu0
  %v350 = vadd.f32 0.0, %v349
  %v351 = vpop.f32.mrf.mxu0
  %v352 = vadd.f32 0.0, %v351
  %353 = vdwg.mxu0
  %354 = vmatprep.subr.mxu0 0.0
  %355 = vmatpush1.msra.mxu0 0.0
  %356 = vmatprep.subr.mxu0 0.0
  %357 = vmatpush1.msra.mxu0 0.0
  %358 = vmatprep.subr.mxu0 0.0
  %359 = vmatpush1.msra.mxu0 0.0
  %360 = vmatprep.subr.mxu0 0.0
  %361 = vmatpush1.msra.mxu0 %v139
  %362 = vmatprep.subr.mxu0 0.0
  %363 = vmatpush1.msra.mxu0 %v107
  %364 = vmatprep.subr.mxu0 0.0
  %365 = vmatpush1.msra.mxu0 %v100
  %366 = vmatprep.subr.mxu0 0.0
  %367 = vmatpush1.msra.mxu0 %v93
  %368 = vmatprep.subr.mxu0 0.0
  %369 = vmatpush1.msra.mxu0 %v86
  %370 = vmatprep.subr.mxu0 0.0
  %371 = vmatpush1.msra.mxu0 %v79
  %372 = vmatprep.subr.mxu0 0.0
  %373 = vmatpush1.msra.mxu0 %v72
  %374 = vmatprep.subr.mxu0 0.0
  %375 = vmatpush1.msra.mxu0 %v65
  %376 = vmatprep.subr.mxu0 0.0
  %377 = vmatpush1.msra.mxu0 %v58
  %378 = vmatprep.subr.mxu0 0.0
  %379 = vmatpush1.msra.mxu0 %v51
  %380 = vmatprep.subr.mxu0 0.0
  %381 = vmatpush1.msra.mxu0 %v44
  %382 = vmatprep.subr.mxu0 0.0
  %383 = vmatpush1.msra.mxu0 %v37
  %384 = vmatprep.subr.mxu0 0.0
  %385 = vmatpush1.msra.mxu0 %v30
  %386 = vmatprep.subr.mxu0 0.0
  %387 = vmatpush2.msra.mxu0 0.0
  %388 = vmatprep.subr.mxu0 0.0
  %389 = vmatpush2.msra.mxu0 0.0
  %390 = vmatprep.subr.mxu0 0.0
  %391 = vmatpush2.msra.mxu0 0.0
  %392 = vmatprep.subr.mxu0 0.0
  %393 = vmatpush2.msra.mxu0 0.0
  %394 = vmatprep.subr.mxu0 0.0
  %395 = vmatpush2.msra.mxu0 0.0
  %396 = vmatprep.subr.mxu0 0.0
  %397 = vmatpush2.msra.mxu0 0.0
  %398 = vmatprep.subr.mxu0 0.0
  %399 = vmatpush2.msra.mxu0 0.0
  %400 = vmatprep.subr.mxu0 0.0
  %401 = vmatpush2.msra.mxu0 0.0
  %402 = vmatprep.subr.mxu0 0.0
  %403 = vmatpush2.msra.mxu0 0.0
  %404 = vmatprep.subr.mxu0 0.0
  %405 = vmatpush2.msra.mxu0 0.0
  %406 = vmatprep.subr.mxu0 0.0
  %407 = vmatpush2.msra.mxu0 0.0
  %408 = vmatprep.subr.mxu0 0.0
  %409 = vmatpush2.msra.mxu0 0.0
  %410 = vmatprep.subr.mxu0 0.0
  %411 = vmatpush2.msra.mxu0 0.0
  %412 = vmatprep.subr.mxu0 0.0
  %413 = vmatpush2.msra.mxu0 0.0
  %414 = vmatprep.subr.mxu0 0.0
  %415 = vmatpush2.msra.mxu0 0.0
  %416 = vmatprep.subr.mxu0 0.0
  %417 = vmatpush2.msra.mxu0 0.0
  %418 = vmatprep.mubr.f32.mxu0 0.0
  %419 = vmatmul.mubr.f32.gmra.mxu0 %v117
  %v420 = vpop.f32.mrf.mxu0
  %v421 = vadd.f32 0.0, %v420
  %v422 = vpop.f32.mrf.mxu0
  %423 = vdwg.mxu0
  %v424 = vld [vmem:[%s1] sm:$0xff]
  %v425 = vld [vmem:[%s1 + $0x8] sm:$0xff]
  %v426 = vld [vmem:[%s1 + $0x10] sm:$0xff]
  %v427 = vld [vmem:[%s1 + $0x18] sm:$0xff]
  %v428 = vld [vmem:[%s1 + $0x20] sm:$0xff]
  %v429 = vld [vmem:[%s1 + $0x28] sm:$0xff]
  %v430 = vld [vmem:[%s1 + $0x30] sm:$0xff]
  %v431 = vld [vmem:[%s1 + $0x38] sm:$0xff]
  %v432 = vld [vmem:[%s1 + $0x40] sm:$0xff]
  %v433 = vld [vmem:[%s1 + $0x48] sm:$0xff]
  %v434 = vld [vmem:[%s1 + $0x50] sm:$0xff]
  %v435 = vld [vmem:[%s1 + $0x58] sm:$0xff]
  %v436 = vld [vmem:[%s1 + $0x60] sm:$0xff]
  %v437 = vld [vmem:[%s1 + $0x68] sm:$0xff]
  %v438 = vld [vmem:[%s1 + $0x70] sm:$0xff]
  %v439 = vld [vmem:[%s1 + $0x78] sm:$0xff]
  %v440 = vld [vmem:[%s1 + $0x80] sm:$0xff]
  %v441 = vld [vmem:[%s1 + $0x88] sm:$0xff]
  %v442 = vld [vmem:[%s1 + $0x90] sm:$0xff]
  %v443 = vld [vmem:[%s1 + $0x98] sm:$0xff]
  %v444 = vld [vmem:[%s1 + $0xa0] sm:$0xff]
  %v445 = vld [vmem:[%s1 + $0xa8] sm:$0xff]
  %v446 = vld [vmem:[%s1 + $0xb0] sm:$0xff]
  %v447 = vld [vmem:[%s1 + $0xb8] sm:$0xff]
  %v448 = vld [vmem:[%s1 + $0xc0] sm:$0xff]
  %v449 = vld [vmem:[%s1 + $0xc8] sm:$0xff]
  %v450 = vld [vmem:[%s1 + $0xd0] sm:$0xff]
  %v451 = vld [vmem:[%s1 + $0xd8] sm:$0xff]
  %v452 = vld [vmem:[%s1 + $0xe0] sm:$0xff]
  %v453 = vld [vmem:[%s1 + $0xe8] sm:$0xff]
  %v454 = vld [vmem:[%s1 + $0xf0] sm:$0xff]
  %v455 = vld [vmem:[%s1 + $0xf8] sm:$0xff]
  %v456 = vld [vmem:[%s1 + $0x100] sm:$0xff]
  %v457 = vld [vmem:[%s1 + $0x108] sm:$0xff]
  %v458 = vld [vmem:[%s1 + $0x110] sm:$0xff]
  %v459 = vld [vmem:[%s1 + $0x118] sm:$0xff]
  %v460 = vld [vmem:[%s1 + $0x120] sm:$0xff]
  %v461 = vld [vmem:[%s1 + $0x128] sm:$0xff]
  %v462 = vld [vmem:[%s1 + $0x130] sm:$0xff]
  %v463 = vld [vmem:[%s1 + $0x138] sm:$0xff]
  %v464 = vld [vmem:[%s1 + $0x140] sm:$0xff]
  %v465 = vld [vmem:[%s1 + $0x148] sm:$0xff]
  %v466 = vld [vmem:[%s1 + $0x150] sm:$0xff]
  %v467 = vld [vmem:[%s1 + $0x158] sm:$0xff]
  %v468 = vld [vmem:[%s1 + $0x160] sm:$0xff]
  %v469 = vld [vmem:[%s1 + $0x168] sm:$0xff]
  %v470 = vld [vmem:[%s1 + $0x170] sm:$0xff]
  %v471 = vld [vmem:[%s1 + $0x178] sm:$0xff]
  %v472 = vld [vmem:[%s1 + $0x180] sm:$0xff]
  %v473 = vld [vmem:[%s1 + $0x188] sm:$0xff]
  %v474 = vld [vmem:[%s1 + $0x190] sm:$0xff]
  %v475 = vld [vmem:[%s1 + $0x198] sm:$0xff]
  %v476 = vld [vmem:[%s1 + $0x1a0] sm:$0xff]
  %v477 = vld [vmem:[%s1 + $0x1a8] sm:$0xff]
  %v478 = vld [vmem:[%s1 + $0x1b0] sm:$0xff]
  %v479 = vld [vmem:[%s1 + $0x1b8] sm:$0xff]
  %v480 = vld [vmem:[%s1 + $0x1c0] sm:$0xff]
  %v481 = vld [vmem:[%s1 + $0x1c8] sm:$0xff]
  %v482 = vld [vmem:[%s1 + $0x1d0] sm:$0xff]
  %v483 = vld [vmem:[%s1 + $0x1d8] sm:$0xff]
  %v484 = vld [vmem:[%s1 + $0x1e0] sm:$0xff]
  %v485 = vld [vmem:[%s1 + $0x1e8] sm:$0xff]
  %v486 = vld [vmem:[%s1 + $0x1f0] sm:$0xff]
  %v487 = vld [vmem:[%s1 + $0x1f8] sm:$0xff]
  %v488 = vld [vmem:[%s1 + $0x200] sm:$0xff]
  %v489 = vld [vmem:[%s1 + $0x208] sm:$0xff]
  %v490 = vld [vmem:[%s1 + $0x210] sm:$0xff]
  %v491 = vld [vmem:[%s1 + $0x218] sm:$0xff]
  %v492 = vld [vmem:[%s1 + $0x220] sm:$0xff]
  %v493 = vld [vmem:[%s1 + $0x228] sm:$0xff]
  %v494 = vld [vmem:[%s1 + $0x230] sm:$0xff]
  %v495 = vld [vmem:[%s1 + $0x238] sm:$0xff]
  %v496 = vld [vmem:[%s1 + $0x240] sm:$0xff]
  %v497 = vld [vmem:[%s1 + $0x248] sm:$0xff]
  %v498 = vld [vmem:[%s1 + $0x250] sm:$0xff]
  %v499 = vld [vmem:[%s1 + $0x258] sm:$0xff]
  %v500 = vld [vmem:[%s1 + $0x260] sm:$0xff]
  %v501 = vld [vmem:[%s1 + $0x268] sm:$0xff]
  %v502 = vld [vmem:[%s1 + $0x270] sm:$0xff]
  %v503 = vld [vmem:[%s1 + $0x278] sm:$0xff]
  %v504 = vld [vmem:[%s1 + $0x280] sm:$0xff]
  %v505 = vld [vmem:[%s1 + $0x288] sm:$0xff]
  %v506 = vld [vmem:[%s1 + $0x290] sm:$0xff]
  %v507 = vld [vmem:[%s1 + $0x298] sm:$0xff]
  %v508 = vld [vmem:[%s1 + $0x2a0] sm:$0xf]
  %v509 = vld [vmem:[%s1 + $0x2a8] sm:$0xf]
  %v510 = vld [vmem:[%s1 + $0x2b0] sm:$0xf]
  %v511 = vld [vmem:[%s1 + $0x2b8] sm:$0xf]
  %v512 = vld [vmem:[%s1 + $0x2c0] sm:$0xf]
  %v513 = vld [vmem:[%s1 + $0x2c8] sm:$0xf]
  %v514 = vld [vmem:[%s1 + $0x2d0] sm:$0xf]
  %v516 = vsel %vm119, %v508, 0
  %v519 = vsel %vm119, %v509, 0
  %v522 = vsel %vm119, %v510, 0
  %v525 = vsel %vm119, %v511, 0
  %v528 = vsel %vm119, %v512, 0
  %v531 = vsel %vm119, %v513, 0
  %v534 = vsel %vm119, %v514, 0
  %536 = vmatprep.subr.mxu0 0.0
  %537 = vmatpush1.msra.mxu0 0.0
  %538 = vmatprep.subr.mxu0 0.0
  %539 = vmatpush1.msra.mxu0 0.0
  %540 = vmatprep.subr.mxu0 0.0
  %541 = vmatpush1.msra.mxu0 0.0
  %542 = vmatprep.subr.mxu0 %v519
  %543 = vmatpush1.msra.mxu0 %v516
  %544 = vmatprep.subr.mxu0 %v502
  %545 = vmatpush1.msra.mxu0 %v501
  %546 = vmatprep.subr.mxu0 %v495
  %547 = vmatpush1.msra.mxu0 %v494
  %548 = vmatprep.subr.mxu0 %v488
  %549 = vmatpush1.msra.mxu0 %v487
  %550 = vmatprep.subr.mxu0 %v481
  %551 = vmatpush1.msra.mxu0 %v480
  %552 = vmatprep.subr.mxu0 %v474
  %553 = vmatpush1.msra.mxu0 %v473
  %554 = vmatprep.subr.mxu0 %v467
  %555 = vmatpush1.msra.mxu0 %v466
  %556 = vmatprep.subr.mxu0 %v460
  %557 = vmatpush1.msra.mxu0 %v459
  %558 = vmatprep.subr.mxu0 %v453
  %559 = vmatpush1.msra.mxu0 %v452
  %560 = vmatprep.subr.mxu0 %v446
  %561 = vmatpush1.msra.mxu0 %v445
  %562 = vmatprep.subr.mxu0 %v439
  %563 = vmatpush1.msra.mxu0 %v438
  %564 = vmatprep.subr.mxu0 %v432
  %565 = vmatpush1.msra.mxu0 %v431
  %566 = vmatprep.subr.mxu0 %v425
  %567 = vmatpush1.msra.mxu0 %v424
  %568 = vmatprep.subr.mxu0 0.0
  %569 = vmatpush2.msra.mxu0 0.0
  %570 = vmatprep.subr.mxu0 0.0
  %571 = vmatpush2.msra.mxu0 0.0
  %572 = vmatprep.subr.mxu0 0.0
  %573 = vmatpush2.msra.mxu0 0.0
  %574 = vmatprep.subr.mxu0 0.0
  %575 = vmatpush2.msra.mxu0 0.0
  %576 = vmatprep.subr.mxu0 0.0
  %577 = vmatpush2.msra.mxu0 0.0
  %578 = vmatprep.subr.mxu0 0.0
  %579 = vmatpush2.msra.mxu0 0.0
  %580 = vmatprep.subr.mxu0 0.0
  %581 = vmatpush2.msra.mxu0 0.0
  %582 = vmatprep.subr.mxu0 0.0
  %583 = vmatpush2.msra.mxu0 0.0
  %584 = vmatprep.subr.mxu0 0.0
  %585 = vmatpush2.msra.mxu0 0.0
  %586 = vmatprep.subr.mxu0 0.0
  %587 = vmatpush2.msra.mxu0 0.0
  %588 = vmatprep.subr.mxu0 0.0
  %589 = vmatpush2.msra.mxu0 0.0
  %590 = vmatprep.subr.mxu0 0.0
  %591 = vmatpush2.msra.mxu0 0.0
  %592 = vmatprep.subr.mxu0 0.0
  %593 = vmatpush2.msra.mxu0 0.0
  %594 = vmatprep.subr.mxu0 0.0
  %595 = vmatpush2.msra.mxu0 0.0
  %596 = vmatprep.subr.mxu0 0.0
  %597 = vmatpush2.msra.mxu0 0.0
  %598 = vmatprep.subr.mxu0 0.0
  %599 = vmatpush2.msra.mxu0 0.0
  %600 = vmatprep.mubr.f32.mxu0 0.0
  %601 = vmatmul.mubr.f32.gmra.mxu0 %v117
  %v602 = vpop.f32.mrf.mxu0
  %v603 = vadd.f32 0.0, %v602
  %v604 = vpop.f32.mrf.mxu0
  %v605 = vadd.f32 0.0, %v604
  %606 = vdwg.mxu0
  %607 = vmatprep.subr.mxu0 0.0
  %608 = vmatpush1.msra.mxu0 0.0
  %609 = vmatprep.subr.mxu0 0.0
  %610 = vmatpush1.msra.mxu0 0.0
  %611 = vmatprep.subr.mxu0 0.0
  %612 = vmatpush1.msra.mxu0 0.0
  %613 = vmatprep.subr.mxu0 %v525
  %614 = vmatpush1.msra.mxu0 %v522
  %615 = vmatprep.subr.mxu0 %v504
  %616 = vmatpush1.msra.mxu0 %v503
  %617 = vmatprep.subr.mxu0 %v497
  %618 = vmatpush1.msra.mxu0 %v496
  %619 = vmatprep.subr.mxu0 %v490
  %620 = vmatpush1.msra.mxu0 %v489
  %621 = vmatprep.subr.mxu0 %v483
  %622 = vmatpush1.msra.mxu0 %v482
  %623 = vmatprep.subr.mxu0 %v476
  %624 = vmatpush1.msra.mxu0 %v475
  %625 = vmatprep.subr.mxu0 %v469
  %626 = vmatpush1.msra.mxu0 %v468
  %627 = vmatprep.subr.mxu0 %v462
  %628 = vmatpush1.msra.mxu0 %v461
  %629 = vmatprep.subr.mxu0 %v455
  %630 = vmatpush1.msra.mxu0 %v454
  %631 = vmatprep.subr.mxu0 %v448
  %632 = vmatpush1.msra.mxu0 %v447
  %633 = vmatprep.subr.mxu0 %v441
  %634 = vmatpush1.msra.mxu0 %v440
  %635 = vmatprep.subr.mxu0 %v434
  %636 = vmatpush1.msra.mxu0 %v433
  %637 = vmatprep.subr.mxu0 %v427
  %638 = vmatpush1.msra.mxu0 %v426
  %639 = vmatprep.subr.mxu0 0.0
  %640 = vmatpush2.msra.mxu0 0.0
  %641 = vmatprep.subr.mxu0 0.0
  %642 = vmatpush2.msra.mxu0 0.0
  %643 = vmatprep.subr.mxu0 0.0
  %644 = vmatpush2.msra.mxu0 0.0
  %645 = vmatprep.subr.mxu0 0.0
  %646 = vmatpush2.msra.mxu0 0.0
  %647 = vmatprep.subr.mxu0 0.0
  %648 = vmatpush2.msra.mxu0 0.0
  %649 = vmatprep.subr.mxu0 0.0
  %650 = vmatpush2.msra.mxu0 0.0
  %651 = vmatprep.subr.mxu0 0.0
  %652 = vmatpush2.msra.mxu0 0.0
  %653 = vmatprep.subr.mxu0 0.0
  %654 = vmatpush2.msra.mxu0 0.0
  %655 = vmatprep.subr.mxu0 0.0
  %656 = vmatpush2.msra.mxu0 0.0
  %657 = vmatprep.subr.mxu0 0.0
  %658 = vmatpush2.msra.mxu0 0.0
  %659 = vmatprep.subr.mxu0 0.0
  %660 = vmatpush2.msra.mxu0 0.0
  %661 = vmatprep.subr.mxu0 0.0
  %662 = vmatpush2.msra.mxu0 0.0
  %663 = vmatprep.subr.mxu0 0.0
  %664 = vmatpush2.msra.mxu0 0.0
  %665 = vmatprep.subr.mxu0 0.0
  %666 = vmatpush2.msra.mxu0 0.0
  %667 = vmatprep.subr.mxu0 0.0
  %668 = vmatpush2.msra.mxu0 0.0
  %669 = vmatprep.subr.mxu0 0.0
  %670 = vmatpush2.msra.mxu0 0.0
  %671 = vmatprep.mubr.f32.mxu0 0.0
  %672 = vmatmul.mubr.f32.gmra.mxu0 %v117
  %v673 = vpop.f32.mrf.mxu0
  %v674 = vadd.f32 0.0, %v673
  %v675 = vpop.f32.mrf.mxu0
  %v676 = vadd.f32 0.0, %v675
  %677 = vdwg.mxu0
  %678 = vmatprep.subr.mxu0 0.0
  %679 = vmatpush1.msra.mxu0 0.0
  %680 = vmatprep.subr.mxu0 0.0
  %681 = vmatpush1.msra.mxu0 0.0
  %682 = vmatprep.subr.mxu0 0.0
  %683 = vmatpush1.msra.mxu0 0.0
  %684 = vmatprep.subr.mxu0 %v531
  %685 = vmatpush1.msra.mxu0 %v528
  %686 = vmatprep.subr.mxu0 %v506
  %687 = vmatpush1.msra.mxu0 %v505
  %688 = vmatprep.subr.mxu0 %v499
  %689 = vmatpush1.msra.mxu0 %v498
  %690 = vmatprep.subr.mxu0 %v492
  %691 = vmatpush1.msra.mxu0 %v491
  %692 = vmatprep.subr.mxu0 %v485
  %693 = vmatpush1.msra.mxu0 %v484
  %694 = vmatprep.subr.mxu0 %v478
  %695 = vmatpush1.msra.mxu0 %v477
  %696 = vmatprep.subr.mxu0 %v471
  %697 = vmatpush1.msra.mxu0 %v470
  %698 = vmatprep.subr.mxu0 %v464
  %699 = vmatpush1.msra.mxu0 %v463
  %700 = vmatprep.subr.mxu0 %v457
  %701 = vmatpush1.msra.mxu0 %v456
  %702 = vmatprep.subr.mxu0 %v450
  %703 = vmatpush1.msra.mxu0 %v449
  %704 = vmatprep.subr.mxu0 %v443
  %705 = vmatpush1.msra.mxu0 %v442
  %706 = vmatprep.subr.mxu0 %v436
  %707 = vmatpush1.msra.mxu0 %v435
  %708 = vmatprep.subr.mxu0 %v429
  %709 = vmatpush1.msra.mxu0 %v428
  %710 = vmatprep.subr.mxu0 0.0
  %711 = vmatpush2.msra.mxu0 0.0
  %712 = vmatprep.subr.mxu0 0.0
  %713 = vmatpush2.msra.mxu0 0.0
  %714 = vmatprep.subr.mxu0 0.0
  %715 = vmatpush2.msra.mxu0 0.0
  %716 = vmatprep.subr.mxu0 0.0
  %717 = vmatpush2.msra.mxu0 0.0
  %718 = vmatprep.subr.mxu0 0.0
  %719 = vmatpush2.msra.mxu0 0.0
  %720 = vmatprep.subr.mxu0 0.0
  %721 = vmatpush2.msra.mxu0 0.0
  %722 = vmatprep.subr.mxu0 0.0
  %723 = vmatpush2.msra.mxu0 0.0
  %724 = vmatprep.subr.mxu0 0.0
  %725 = vmatpush2.msra.mxu0 0.0
  %726 = vmatprep.subr.mxu0 0.0
  %727 = vmatpush2.msra.mxu0 0.0
  %728 = vmatprep.subr.mxu0 0.0
  %729 = vmatpush2.msra.mxu0 0.0
  %730 = vmatprep.subr.mxu0 0.0
  %731 = vmatpush2.msra.mxu0 0.0
  %732 = vmatprep.subr.mxu0 0.0
  %733 = vmatpush2.msra.mxu0 0.0
  %734 = vmatprep.subr.mxu0 0.0
  %735 = vmatpush2.msra.mxu0 0.0
  %736 = vmatprep.subr.mxu0 0.0
  %737 = vmatpush2.msra.mxu0 0.0
  %738 = vmatprep.subr.mxu0 0.0
  %739 = vmatpush2.msra.mxu0 0.0
  %740 = vmatprep.subr.mxu0 0.0
  %741 = vmatpush2.msra.mxu0 0.0
  %742 = vmatprep.mubr.f32.mxu0 0.0
  %743 = vmatmul.mubr.f32.gmra.mxu0 %v117
  %v744 = vpop.f32.mrf.mxu0
  %v745 = vadd.f32 0.0, %v744
  %v746 = vpop.f32.mrf.mxu0
  %v747 = vadd.f32 0.0, %v746
  %748 = vdwg.mxu0
  %749 = vmatprep.subr.mxu0 0.0
  %750 = vmatpush1.msra.mxu0 0.0
  %751 = vmatprep.subr.mxu0 0.0
  %752 = vmatpush1.msra.mxu0 0.0
  %753 = vmatprep.subr.mxu0 0.0
  %754 = vmatpush1.msra.mxu0 0.0
  %755 = vmatprep.subr.mxu0 0.0
  %756 = vmatpush1.msra.mxu0 %v534
  %757 = vmatprep.subr.mxu0 0.0
  %758 = vmatpush1.msra.mxu0 %v507
  %759 = vmatprep.subr.mxu0 0.0
  %760 = vmatpush1.msra.mxu0 %v500
  %761 = vmatprep.subr.mxu0 0.0
  %762 = vmatpush1.msra.mxu0 %v493
  %763 = vmatprep.subr.mxu0 0.0
  %764 = vmatpush1.msra.mxu0 %v486
  %765 = vmatprep.subr.mxu0 0.0
  %766 = vmatpush1.msra.mxu0 %v479
  %767 = vmatprep.subr.mxu0 0.0
  %768 = vmatpush1.msra.mxu0 %v472
  %769 = vmatprep.subr.mxu0 0.0
  %770 = vmatpush1.msra.mxu0 %v465
  %771 = vmatprep.subr.mxu0 0.0
  %772 = vmatpush1.msra.mxu0 %v458
  %773 = vmatprep.subr.mxu0 0.0
  %774 = vmatpush1.msra.mxu0 %v451
  %775 = vmatprep.subr.mxu0 0.0
  %776 = vmatpush1.msra.mxu0 %v444
  %777 = vmatprep.subr.mxu0 0.0
  %778 = vmatpush1.msra.mxu0 %v437
  %779 = vmatprep.subr.mxu0 0.0
  %780 = vmatpush1.msra.mxu0 %v430
  %781 = vmatprep.subr.mxu0 0.0
  %782 = vmatpush2.msra.mxu0 0.0
  %783 = vmatprep.subr.mxu0 0.0
  %784 = vmatpush2.msra.mxu0 0.0
  %785 = vmatprep.subr.mxu0 0.0
  %786 = vmatpush2.msra.mxu0 0.0
  %787 = vmatprep.subr.mxu0 0.0
  %788 = vmatpush2.msra.mxu0 0.0
  %789 = vmatprep.subr.mxu0 0.0
  %790 = vmatpush2.msra.mxu0 0.0
  %791 = vmatprep.subr.mxu0 0.0
  %792 = vmatpush2.msra.mxu0 0.0
  %793 = vmatprep.subr.mxu0 0.0
  %794 = vmatpush2.msra.mxu0 0.0
  %795 = vmatprep.subr.mxu0 0.0
  %796 = vmatpush2.msra.mxu0 0.0
  %797 = vmatprep.subr.mxu0 0.0
  %798 = vmatpush2.msra.mxu0 0.0
  %799 = vmatprep.subr.mxu0 0.0
  %800 = vmatpush2.msra.mxu0 0.0
  %801 = vmatprep.subr.mxu0 0.0
  %802 = vmatpush2.msra.mxu0 0.0
  %803 = vmatprep.subr.mxu0 0.0
  %804 = vmatpush2.msra.mxu0 0.0
  %805 = vmatprep.subr.mxu0 0.0
  %806 = vmatpush2.msra.mxu0 0.0
  %807 = vmatprep.subr.mxu0 0.0
  %808 = vmatpush2.msra.mxu0 0.0
  %809 = vmatprep.subr.mxu0 0.0
  %810 = vmatpush2.msra.mxu0 0.0
  %811 = vmatprep.subr.mxu0 0.0
  %812 = vmatpush2.msra.mxu0 0.0
  %813 = vmatprep.mubr.f32.mxu0 0.0
  %814 = vmatmul.mubr.f32.gmra.mxu0 %v117
  %v815 = vpop.f32.mrf.mxu0
  %v816 = vadd.f32 0.0, %v815
  %v817 = vpop.f32.mrf.mxu0
  %818 = vdwg.mxu0
  %v819 = vmax.f32 %v208, %v603
  %v820 = vmax.f32 %v210, %v605
  %v821 = vmax.f32 %v279, %v674
  %v822 = vmax.f32 %v281, %v676
  %v823 = vmax.f32 %v350, %v745
  %v824 = vmax.f32 %v352, %v747
  %v825 = vmax.f32 %v421, %v816
  %v826 = vld [vmem:[%s2] sm:$0xff]
  %v827 = vld [vmem:[%s2 + $0x8] sm:$0xff]
  %v828 = vld [vmem:[%s2 + $0x10] sm:$0xff]
  %v829 = vld [vmem:[%s2 + $0x18] sm:$0xff]
  %v830 = vld [vmem:[%s2 + $0x20] sm:$0xff]
  %v831 = vld [vmem:[%s2 + $0x28] sm:$0xff]
  %v832 = vld [vmem:[%s2 + $0x30] sm:$0xff]
  %v833 = vld [vmem:[%s2 + $0x38] sm:$0xff]
  %v834 = vld [vmem:[%s2 + $0x40] sm:$0xff]
  %v835 = vld [vmem:[%s2 + $0x48] sm:$0xff]
  %v836 = vld [vmem:[%s2 + $0x50] sm:$0xff]
  %v837 = vld [vmem:[%s2 + $0x58] sm:$0xff]
  %v838 = vld [vmem:[%s2 + $0x60] sm:$0xff]
  %v839 = vld [vmem:[%s2 + $0x68] sm:$0xff]
  %v840 = vld [vmem:[%s2 + $0x70] sm:$0xff]
  %v841 = vld [vmem:[%s2 + $0x78] sm:$0xff]
  %v842 = vld [vmem:[%s2 + $0x80] sm:$0xff]
  %v843 = vld [vmem:[%s2 + $0x88] sm:$0xff]
  %v844 = vld [vmem:[%s2 + $0x90] sm:$0xff]
  %v845 = vld [vmem:[%s2 + $0x98] sm:$0xff]
  %v846 = vld [vmem:[%s2 + $0xa0] sm:$0xff]
  %v847 = vld [vmem:[%s2 + $0xa8] sm:$0xff]
  %v848 = vld [vmem:[%s2 + $0xb0] sm:$0xff]
  %v849 = vld [vmem:[%s2 + $0xb8] sm:$0xff]
  %v850 = vld [vmem:[%s2 + $0xc0] sm:$0xff]
  %v851 = vld [vmem:[%s2 + $0xc8] sm:$0xff]
  %v852 = vld [vmem:[%s2 + $0xd0] sm:$0xff]
  %v853 = vld [vmem:[%s2 + $0xd8] sm:$0xff]
  %v854 = vld [vmem:[%s2 + $0xe0] sm:$0xff]
  %v855 = vld [vmem:[%s2 + $0xe8] sm:$0xff]
  %v856 = vld [vmem:[%s2 + $0xf0] sm:$0xff]
  %v857 = vld [vmem:[%s2 + $0xf8] sm:$0xff]
  %v858 = vld [vmem:[%s2 + $0x100] sm:$0xff]
  %v859 = vld [vmem:[%s2 + $0x108] sm:$0xff]
  %v860 = vld [vmem:[%s2 + $0x110] sm:$0xff]
  %v861 = vld [vmem:[%s2 + $0x118] sm:$0xff]
  %v862 = vld [vmem:[%s2 + $0x120] sm:$0xff]
  %v863 = vld [vmem:[%s2 + $0x128] sm:$0xff]
  %v864 = vld [vmem:[%s2 + $0x130] sm:$0xff]
  %v865 = vld [vmem:[%s2 + $0x138] sm:$0xff]
  %v866 = vld [vmem:[%s2 + $0x140] sm:$0xff]
  %v867 = vld [vmem:[%s2 + $0x148] sm:$0xff]
  %v868 = vld [vmem:[%s2 + $0x150] sm:$0xff]
  %v869 = vld [vmem:[%s2 + $0x158] sm:$0xff]
  %v870 = vld [vmem:[%s2 + $0x160] sm:$0xff]
  %v871 = vld [vmem:[%s2 + $0x168] sm:$0xff]
  %v872 = vld [vmem:[%s2 + $0x170] sm:$0xff]
  %v873 = vld [vmem:[%s2 + $0x178] sm:$0xff]
  %v874 = vld [vmem:[%s2 + $0x180] sm:$0xff]
  %v875 = vld [vmem:[%s2 + $0x188] sm:$0xff]
  %v876 = vld [vmem:[%s2 + $0x190] sm:$0xff]
  %v877 = vld [vmem:[%s2 + $0x198] sm:$0xff]
  %v878 = vld [vmem:[%s2 + $0x1a0] sm:$0xff]
  %v879 = vld [vmem:[%s2 + $0x1a8] sm:$0xff]
  %v880 = vld [vmem:[%s2 + $0x1b0] sm:$0xff]
  %v881 = vld [vmem:[%s2 + $0x1b8] sm:$0xff]
  %v882 = vld [vmem:[%s2 + $0x1c0] sm:$0xff]
  %v883 = vld [vmem:[%s2 + $0x1c8] sm:$0xff]
  %v884 = vld [vmem:[%s2 + $0x1d0] sm:$0xff]
  %v885 = vld [vmem:[%s2 + $0x1d8] sm:$0xff]
  %v886 = vld [vmem:[%s2 + $0x1e0] sm:$0xff]
  %v887 = vld [vmem:[%s2 + $0x1e8] sm:$0xff]
  %v888 = vld [vmem:[%s2 + $0x1f0] sm:$0xff]
  %v889 = vld [vmem:[%s2 + $0x1f8] sm:$0xff]
  %v890 = vld [vmem:[%s2 + $0x200] sm:$0xff]
  %v891 = vld [vmem:[%s2 + $0x208] sm:$0xff]
  %v892 = vld [vmem:[%s2 + $0x210] sm:$0xff]
  %v893 = vld [vmem:[%s2 + $0x218] sm:$0xff]
  %v894 = vld [vmem:[%s2 + $0x220] sm:$0xff]
  %v895 = vld [vmem:[%s2 + $0x228] sm:$0xff]
  %v896 = vld [vmem:[%s2 + $0x230] sm:$0xff]
  %v897 = vld [vmem:[%s2 + $0x238] sm:$0xff]
  %v898 = vld [vmem:[%s2 + $0x240] sm:$0xff]
  %v899 = vld [vmem:[%s2 + $0x248] sm:$0xff]
  %v900 = vld [vmem:[%s2 + $0x250] sm:$0xff]
  %v901 = vld [vmem:[%s2 + $0x258] sm:$0xff]
  %v902 = vld [vmem:[%s2 + $0x260] sm:$0xff]
  %v903 = vld [vmem:[%s2 + $0x268] sm:$0xff]
  %v904 = vld [vmem:[%s2 + $0x270] sm:$0xff]
  %v905 = vld [vmem:[%s2 + $0x278] sm:$0xff]
  %v906 = vld [vmem:[%s2 + $0x280] sm:$0xff]
  %v907 = vld [vmem:[%s2 + $0x288] sm:$0xff]
  %v908 = vld [vmem:[%s2 + $0x290] sm:$0xff]
  %v909 = vld [vmem:[%s2 + $0x298] sm:$0xff]
  %v910 = vld [vmem:[%s2 + $0x2a0] sm:$0xf]
  %v911 = vld [vmem:[%s2 + $0x2a8] sm:$0xf]
  %v912 = vld [vmem:[%s2 + $0x2b0] sm:$0xf]
  %v913 = vld [vmem:[%s2 + $0x2b8] sm:$0xf]
  %v914 = vld [vmem:[%s2 + $0x2c0] sm:$0xf]
  %v915 = vld [vmem:[%s2 + $0x2c8] sm:$0xf]
  %v916 = vld [vmem:[%s2 + $0x2d0] sm:$0xf]
  %v918 = vsel %vm119, %v910, 0
  %v921 = vsel %vm119, %v911, 0
  %v924 = vsel %vm119, %v912, 0
  %v927 = vsel %vm119, %v913, 0
  %v930 = vsel %vm119, %v914, 0
  %v933 = vsel %vm119, %v915, 0
  %v936 = vsel %vm119, %v916, 0
  %938 = vmatprep.subr.mxu0 0.0
  %939 = vmatpush1.msra.mxu0 0.0
  %940 = vmatprep.subr.mxu0 0.0
  %941 = vmatpush1.msra.mxu0 0.0
  %942 = vmatprep.subr.mxu0 0.0
  %943 = vmatpush1.msra.mxu0 0.0
  %944 = vmatprep.subr.mxu0 %v921
  %945 = vmatpush1.msra.mxu0 %v918
  %946 = vmatprep.subr.mxu0 %v904
  %947 = vmatpush1.msra.mxu0 %v903
  %948 = vmatprep.subr.mxu0 %v897
  %949 = vmatpush1.msra.mxu0 %v896
  %950 = vmatprep.subr.mxu0 %v890
  %951 = vmatpush1.msra.mxu0 %v889
  %952 = vmatprep.subr.mxu0 %v883
  %953 = vmatpush1.msra.mxu0 %v882
  %954 = vmatprep.subr.mxu0 %v876
  %955 = vmatpush1.msra.mxu0 %v875
  %956 = vmatprep.subr.mxu0 %v869
  %957 = vmatpush1.msra.mxu0 %v868
  %958 = vmatprep.subr.mxu0 %v862
  %959 = vmatpush1.msra.mxu0 %v861
  %960 = vmatprep.subr.mxu0 %v855
  %961 = vmatpush1.msra.mxu0 %v854
  %962 = vmatprep.subr.mxu0 %v848
  %963 = vmatpush1.msra.mxu0 %v847
  %964 = vmatprep.subr.mxu0 %v841
  %965 = vmatpush1.msra.mxu0 %v840
  %966 = vmatprep.subr.mxu0 %v834
  %967 = vmatpush1.msra.mxu0 %v833
  %968 = vmatprep.subr.mxu0 %v827
  %969 = vmatpush1.msra.mxu0 %v826
  %970 = vmatprep.subr.mxu0 0.0
  %971 = vmatpush2.msra.mxu0 0.0
  %972 = vmatprep.subr.mxu0 0.0
  %973 = vmatpush2.msra.mxu0 0.0
  %974 = vmatprep.subr.mxu0 0.0
  %975 = vmatpush2.msra.mxu0 0.0
  %976 = vmatprep.subr.mxu0 0.0
  %977 = vmatpush2.msra.mxu0 0.0
  %978 = vmatprep.subr.mxu0 0.0
  %979 = vmatpush2.msra.mxu0 0.0
  %980 = vmatprep.subr.mxu0 0.0
  %981 = vmatpush2.msra.mxu0 0.0
  %982 = vmatprep.subr.mxu0 0.0
  %983 = vmatpush2.msra.mxu0 0.0
  %984 = vmatprep.subr.mxu0 0.0
  %985 = vmatpush2.msra.mxu0 0.0
  %986 = vmatprep.subr.mxu0 0.0
  %987 = vmatpush2.msra.mxu0 0.0
  %988 = vmatprep.subr.mxu0 0.0
  %989 = vmatpush2.msra.mxu0 0.0
  %990 = vmatprep.subr.mxu0 0.0
  %991 = vmatpush2.msra.mxu0 0.0
  %992 = vmatprep.subr.mxu0 0.0
  %993 = vmatpush2.msra.mxu0 0.0
  %994 = vmatprep.subr.mxu0 0.0
  %995 = vmatpush2.msra.mxu0 0.0
  %996 = vmatprep.subr.mxu0 0.0
  %997 = vmatpush2.msra.mxu0 0.0
  %998 = vmatprep.subr.mxu0 0.0
  %999 = vmatpush2.msra.mxu0 0.0
  %1000 = vmatprep.subr.mxu0 0.0
  %1001 = vmatpush2.msra.mxu0 0.0
  %1002 = vmatprep.mubr.f32.mxu0 0.0
  %1003 = vmatmul.mubr.f32.gmra.mxu0 %v117
  %v1004 = vpop.f32.mrf.mxu0
  %v1005 = vadd.f32 0.0, %v1004
  %v1006 = vpop.f32.mrf.mxu0
  %v1007 = vadd.f32 0.0, %v1006
  %1008 = vdwg.mxu0
  %1009 = vmatprep.subr.mxu0 0.0
  %1010 = vmatpush1.msra.mxu0 0.0
  %1011 = vmatprep.subr.mxu0 0.0
  %1012 = vmatpush1.msra.mxu0 0.0
  %1013 = vmatprep.subr.mxu0 0.0
  %1014 = vmatpush1.msra.mxu0 0.0
  %1015 = vmatprep.subr.mxu0 %v927
  %1016 = vmatpush1.msra.mxu0 %v924
  %1017 = vmatprep.subr.mxu0 %v906
  %1018 = vmatpush1.msra.mxu0 %v905
  %1019 = vmatprep.subr.mxu0 %v899
  %1020 = vmatpush1.msra.mxu0 %v898
  %1021 = vmatprep.subr.mxu0 %v892
  %1022 = vmatpush1.msra.mxu0 %v891
  %1023 = vmatprep.subr.mxu0 %v885
  %1024 = vmatpush1.msra.mxu0 %v884
  %1025 = vmatprep.subr.mxu0 %v878
  %1026 = vmatpush1.msra.mxu0 %v877
  %1027 = vmatprep.subr.mxu0 %v871
  %1028 = vmatpush1.msra.mxu0 %v870
  %1029 = vmatprep.subr.mxu0 %v864
  %1030 = vmatpush1.msra.mxu0 %v863
  %1031 = vmatprep.subr.mxu0 %v857
  %1032 = vmatpush1.msra.mxu0 %v856
  %1033 = vmatprep.subr.mxu0 %v850
  %1034 = vmatpush1.msra.mxu0 %v849
  %1035 = vmatprep.subr.mxu0 %v843
  %1036 = vmatpush1.msra.mxu0 %v842
  %1037 = vmatprep.subr.mxu0 %v836
  %1038 = vmatpush1.msra.mxu0 %v835
  %1039 = vmatprep.subr.mxu0 %v829
  %1040 = vmatpush1.msra.mxu0 %v828
  %1041 = vmatprep.subr.mxu0 0.0
  %1042 = vmatpush2.msra.mxu0 0.0
  %1043 = vmatprep.subr.mxu0 0.0
  %1044 = vmatpush2.msra.mxu0 0.0
  %1045 = vmatprep.subr.mxu0 0.0
  %1046 = vmatpush2.msra.mxu0 0.0
  %1047 = vmatprep.subr.mxu0 0.0
  %1048 = vmatpush2.msra.mxu0 0.0
  %1049 = vmatprep.subr.mxu0 0.0
  %1050 = vmatpush2.msra.mxu0 0.0
  %1051 = vmatprep.subr.mxu0 0.0
  %1052 = vmatpush2.msra.mxu0 0.0
  %1053 = vmatprep.subr.mxu0 0.0
  %1054 = vmatpush2.msra.mxu0 0.0
  %1055 = vmatprep.subr.mxu0 0.0
  %1056 = vmatpush2.msra.mxu0 0.0
  %1057 = vmatprep.subr.mxu0 0.0
  %1058 = vmatpush2.msra.mxu0 0.0
  %1059 = vmatprep.subr.mxu0 0.0
  %1060 = vmatpush2.msra.mxu0 0.0
  %1061 = vmatprep.subr.mxu0 0.0
  %1062 = vmatpush2.msra.mxu0 0.0
  %1063 = vmatprep.subr.mxu0 0.0
  %1064 = vmatpush2.msra.mxu0 0.0
  %1065 = vmatprep.subr.mxu0 0.0
  %1066 = vmatpush2.msra.mxu0 0.0
  %1067 = vmatprep.subr.mxu0 0.0
  %1068 = vmatpush2.msra.mxu0 0.0
  %1069 = vmatprep.subr.mxu0 0.0
  %1070 = vmatpush2.msra.mxu0 0.0
  %1071 = vmatprep.subr.mxu0 0.0
  %1072 = vmatpush2.msra.mxu0 0.0
  %1073 = vmatprep.mubr.f32.mxu0 0.0
  %1074 = vmatmul.mubr.f32.gmra.mxu0 %v117
  %v1075 = vpop.f32.mrf.mxu0
  %v1076 = vadd.f32 0.0, %v1075
  %v1077 = vpop.f32.mrf.mxu0
  %v1078 = vadd.f32 0.0, %v1077
  %1079 = vdwg.mxu0
  %1080 = vmatprep.subr.mxu0 0.0
  %1081 = vmatpush1.msra.mxu0 0.0
  %1082 = vmatprep.subr.mxu0 0.0
  %1083 = vmatpush1.msra.mxu0 0.0
  %1084 = vmatprep.subr.mxu0 0.0
  %1085 = vmatpush1.msra.mxu0 0.0
  %1086 = vmatprep.subr.mxu0 %v933
  %1087 = vmatpush1.msra.mxu0 %v930
  %1088 = vmatprep.subr.mxu0 %v908
  %1089 = vmatpush1.msra.mxu0 %v907
  %1090 = vmatprep.subr.mxu0 %v901
  %1091 = vmatpush1.msra.mxu0 %v900
  %1092 = vmatprep.subr.mxu0 %v894
  %1093 = vmatpush1.msra.mxu0 %v893
  %1094 = vmatprep.subr.mxu0 %v887
  %1095 = vmatpush1.msra.mxu0 %v886
  %1096 = vmatprep.subr.mxu0 %v880
  %1097 = vmatpush1.msra.mxu0 %v879
  %1098 = vmatprep.subr.mxu0 %v873
  %1099 = vmatpush1.msra.mxu0 %v872
  %1100 = vmatprep.subr.mxu0 %v866
  %1101 = vmatpush1.msra.mxu0 %v865
  %1102 = vmatprep.subr.mxu0 %v859
  %1103 = vmatpush1.msra.mxu0 %v858
  %1104 = vmatprep.subr.mxu0 %v852
  %1105 = vmatpush1.msra.mxu0 %v851
  %1106 = vmatprep.subr.mxu0 %v845
  %1107 = vmatpush1.msra.mxu0 %v844
  %1108 = vmatprep.subr.mxu0 %v838
  %1109 = vmatpush1.msra.mxu0 %v837
  %1110 = vmatprep.subr.mxu0 %v831
  %1111 = vmatpush1.msra.mxu0 %v830
  %1112 = vmatprep.subr.mxu0 0.0
  %1113 = vmatpush2.msra.mxu0 0.0
  %1114 = vmatprep.subr.mxu0 0.0
  %1115 = vmatpush2.msra.mxu0 0.0
  %1116 = vmatprep.subr.mxu0 0.0
  %1117 = vmatpush2.msra.mxu0 0.0
  %1118 = vmatprep.subr.mxu0 0.0
  %1119 = vmatpush2.msra.mxu0 0.0
  %1120 = vmatprep.subr.mxu0 0.0
  %1121 = vmatpush2.msra.mxu0 0.0
  %1122 = vmatprep.subr.mxu0 0.0
  %1123 = vmatpush2.msra.mxu0 0.0
  %1124 = vmatprep.subr.mxu0 0.0
  %1125 = vmatpush2.msra.mxu0 0.0
  %1126 = vmatprep.subr.mxu0 0.0
  %1127 = vmatpush2.msra.mxu0 0.0
  %1128 = vmatprep.subr.mxu0 0.0
  %1129 = vmatpush2.msra.mxu0 0.0
  %1130 = vmatprep.subr.mxu0 0.0
  %1131 = vmatpush2.msra.mxu0 0.0
  %1132 = vmatprep.subr.mxu0 0.0
  %1133 = vmatpush2.msra.mxu0 0.0
  %1134 = vmatprep.subr.mxu0 0.0
  %1135 = vmatpush2.msra.mxu0 0.0
  %1136 = vmatprep.subr.mxu0 0.0
  %1137 = vmatpush2.msra.mxu0 0.0
  %1138 = vmatprep.subr.mxu0 0.0
  %1139 = vmatpush2.msra.mxu0 0.0
  %1140 = vmatprep.subr.mxu0 0.0
  %1141 = vmatpush2.msra.mxu0 0.0
  %1142 = vmatprep.subr.mxu0 0.0
  %1143 = vmatpush2.msra.mxu0 0.0
  %1144 = vmatprep.mubr.f32.mxu0 0.0
  %1145 = vmatmul.mubr.f32.gmra.mxu0 %v117
  %v1146 = vpop.f32.mrf.mxu0
  %v1147 = vadd.f32 0.0, %v1146
  %v1148 = vpop.f32.mrf.mxu0
  %v1149 = vadd.f32 0.0, %v1148
  %1150 = vdwg.mxu0
  %1151 = vmatprep.subr.mxu0 0.0
  %1152 = vmatpush1.msra.mxu0 0.0
  %1153 = vmatprep.subr.mxu0 0.0
  %1154 = vmatpush1.msra.mxu0 0.0
  %1155 = vmatprep.subr.mxu0 0.0
  %1156 = vmatpush1.msra.mxu0 0.0
  %1157 = vmatprep.subr.mxu0 0.0
  %1158 = vmatpush1.msra.mxu0 %v936
  %1159 = vmatprep.subr.mxu0 0.0
  %1160 = vmatpush1.msra.mxu0 %v909
  %1161 = vmatprep.subr.mxu0 0.0
  %1162 = vmatpush1.msra.mxu0 %v902
  %1163 = vmatprep.subr.mxu0 0.0
  %1164 = vmatpush1.msra.mxu0 %v895
  %1165 = vmatprep.subr.mxu0 0.0
  %1166 = vmatpush1.msra.mxu0 %v888
  %1167 = vmatprep.subr.mxu0 0.0
  %1168 = vmatpush1.msra.mxu0 %v881
  %1169 = vmatprep.subr.mxu0 0.0
  %1170 = vmatpush1.msra.mxu0 %v874
  %1171 = vmatprep.subr.mxu0 0.0
  %1172 = vmatpush1.msra.mxu0 %v867
  %1173 = vmatprep.subr.mxu0 0.0
  %1174 = vmatpush1.msra.mxu0 %v860
  %1175 = vmatprep.subr.mxu0 0.0
  %1176 = vmatpush1.msra.mxu0 %v853
  %1177 = vmatprep.subr.mxu0 0.0
  %1178 = vmatpush1.msra.mxu0 %v846
  %1179 = vmatprep.subr.mxu0 0.0
  %1180 = vmatpush1.msra.mxu0 %v839
  %1181 = vmatprep.subr.mxu0 0.0
  %1182 = vmatpush1.msra.mxu0 %v832
  %1183 = vmatprep.subr.mxu0 0.0
  %1184 = vmatpush2.msra.mxu0 0.0
  %1185 = vmatprep.subr.mxu0 0.0
  %1186 = vmatpush2.msra.mxu0 0.0
  %1187 = vmatprep.subr.mxu0 0.0
  %1188 = vmatpush2.msra.mxu0 0.0
  %1189 = vmatprep.subr.mxu0 0.0
  %1190 = vmatpush2.msra.mxu0 0.0
  %1191 = vmatprep.subr.mxu0 0.0
  %1192 = vmatpush2.msra.mxu0 0.0
  %1193 = vmatprep.subr.mxu0 0.0
  %1194 = vmatpush2.msra.mxu0 0.0
  %1195 = vmatprep.subr.mxu0 0.0
  %1196 = vmatpush2.msra.mxu0 0.0
  %1197 = vmatprep.subr.mxu0 0.0
  %1198 = vmatpush2.msra.mxu0 0.0
  %1199 = vmatprep.subr.mxu0 0.0
  %1200 = vmatpush2.msra.mxu0 0.0
  %1201 = vmatprep.subr.mxu0 0.0
  %1202 = vmatpush2.msra.mxu0 0.0
  %1203 = vmatprep.subr.mxu0 0.0
  %1204 = vmatpush2.msra.mxu0 0.0
  %1205 = vmatprep.subr.mxu0 0.0
  %1206 = vmatpush2.msra.mxu0 0.0
  %1207 = vmatprep.subr.mxu0 0.0
  %1208 = vmatpush2.msra.mxu0 0.0
  %1209 = vmatprep.subr.mxu0 0.0
  %1210 = vmatpush2.msra.mxu0 0.0
  %1211 = vmatprep.subr.mxu0 0.0
  %1212 = vmatpush2.msra.mxu0 0.0
  %1213 = vmatprep.subr.mxu0 0.0
  %1214 = vmatpush2.msra.mxu0 0.0
  %1215 = vmatprep.mubr.f32.mxu0 0.0
  %1216 = vmatmul.mubr.f32.gmra.mxu0 %v117
  %v1217 = vpop.f32.mrf.mxu0
  %v1218 = vadd.f32 0.0, %v1217
  %v1219 = vpop.f32.mrf.mxu0
  %1220 = vdwg.mxu0
  %v1221 = vmax.f32 %v819, %v1005
  %v1222 = vmax.f32 %v820, %v1007
  %v1223 = vmax.f32 %v821, %v1076
  %v1224 = vmax.f32 %v822, %v1078
  %v1225 = vmax.f32 %v823, %v1147
  %v1226 = vmax.f32 %v824, %v1149
  %v1227 = vmax.f32 %v825, %v1218
  %v1228 = vld [vmem:[%s3] sm:$0xff]
  %v1229 = vld [vmem:[%s3 + $0x8] sm:$0xff]
  %v1230 = vld [vmem:[%s3 + $0x10] sm:$0xff]
  %v1231 = vld [vmem:[%s3 + $0x18] sm:$0xff]
  %v1232 = vld [vmem:[%s3 + $0x20] sm:$0xff]
  %v1233 = vld [vmem:[%s3 + $0x28] sm:$0xff]
  %v1234 = vld [vmem:[%s3 + $0x30] sm:$0xff]
  %v1235 = vld [vmem:[%s3 + $0x38] sm:$0xff]
  %v1236 = vld [vmem:[%s3 + $0x40] sm:$0xff]
  %v1237 = vld [vmem:[%s3 + $0x48] sm:$0xff]
  %v1238 = vld [vmem:[%s3 + $0x50] sm:$0xff]
  %v1239 = vld [vmem:[%s3 + $0x58] sm:$0xff]
  %v1240 = vld [vmem:[%s3 + $0x60] sm:$0xff]
  %v1241 = vld [vmem:[%s3 + $0x68] sm:$0xff]
  %v1242 = vld [vmem:[%s3 + $0x70] sm:$0xff]
  %v1243 = vld [vmem:[%s3 + $0x78] sm:$0xff]
  %v1244 = vld [vmem:[%s3 + $0x80] sm:$0xff]
  %v1245 = vld [vmem:[%s3 + $0x88] sm:$0xff]
  %v1246 = vld [vmem:[%s3 + $0x90] sm:$0xff]
  %v1247 = vld [vmem:[%s3 + $0x98] sm:$0xff]
  %v1248 = vld [vmem:[%s3 + $0xa0] sm:$0xff]
  %v1249 = vld [vmem:[%s3 + $0xa8] sm:$0xff]
  %v1250 = vld [vmem:[%s3 + $0xb0] sm:$0xff]
  %v1251 = vld [vmem:[%s3 + $0xb8] sm:$0xff]
  %v1252 = vld [vmem:[%s3 + $0xc0] sm:$0xff]
  %v1253 = vld [vmem:[%s3 + $0xc8] sm:$0xff]
  %v1254 = vld [vmem:[%s3 + $0xd0] sm:$0xff]
  %v1255 = vld [vmem:[%s3 + $0xd8] sm:$0xff]
  %v1256 = vld [vmem:[%s3 + $0xe0] sm:$0xff]
  %v1257 = vld [vmem:[%s3 + $0xe8] sm:$0xff]
  %v1258 = vld [vmem:[%s3 + $0xf0] sm:$0xff]
  %v1259 = vld [vmem:[%s3 + $0xf8] sm:$0xff]
  %v1260 = vld [vmem:[%s3 + $0x100] sm:$0xff]
  %v1261 = vld [vmem:[%s3 + $0x108] sm:$0xff]
  %v1262 = vld [vmem:[%s3 + $0x110] sm:$0xff]
  %v1263 = vld [vmem:[%s3 + $0x118] sm:$0xff]
  %v1264 = vld [vmem:[%s3 + $0x120] sm:$0xff]
  %v1265 = vld [vmem:[%s3 + $0x128] sm:$0xff]
  %v1266 = vld [vmem:[%s3 + $0x130] sm:$0xff]
  %v1267 = vld [vmem:[%s3 + $0x138] sm:$0xff]
  %v1268 = vld [vmem:[%s3 + $0x140] sm:$0xff]
  %v1269 = vld [vmem:[%s3 + $0x148] sm:$0xff]
  %v1270 = vld [vmem:[%s3 + $0x150] sm:$0xff]
  %v1271 = vld [vmem:[%s3 + $0x158] sm:$0xff]
  %v1272 = vld [vmem:[%s3 + $0x160] sm:$0xff]
  %v1273 = vld [vmem:[%s3 + $0x168] sm:$0xff]
  %v1274 = vld [vmem:[%s3 + $0x170] sm:$0xff]
  %v1275 = vld [vmem:[%s3 + $0x178] sm:$0xff]
  %v1276 = vld [vmem:[%s3 + $0x180] sm:$0xff]
  %v1277 = vld [vmem:[%s3 + $0x188] sm:$0xff]
  %v1278 = vld [vmem:[%s3 + $0x190] sm:$0xff]
  %v1279 = vld [vmem:[%s3 + $0x198] sm:$0xff]
  %v1280 = vld [vmem:[%s3 + $0x1a0] sm:$0xff]
  %v1281 = vld [vmem:[%s3 + $0x1a8] sm:$0xff]
  %v1282 = vld [vmem:[%s3 + $0x1b0] sm:$0xff]
  %v1283 = vld [vmem:[%s3 + $0x1b8] sm:$0xff]
  %v1284 = vld [vmem:[%s3 + $0x1c0] sm:$0xff]
  %v1285 = vld [vmem:[%s3 + $0x1c8] sm:$0xff]
  %v1286 = vld [vmem:[%s3 + $0x1d0] sm:$0xff]
  %v1287 = vld [vmem:[%s3 + $0x1d8] sm:$0xff]
  %v1288 = vld [vmem:[%s3 + $0x1e0] sm:$0xff]
  %v1289 = vld [vmem:[%s3 + $0x1e8] sm:$0xff]
  %v1290 = vld [vmem:[%s3 + $0x1f0] sm:$0xff]
  %v1291 = vld [vmem:[%s3 + $0x1f8] sm:$0xff]
  %v1292 = vld [vmem:[%s3 + $0x200] sm:$0xff]
  %v1293 = vld [vmem:[%s3 + $0x208] sm:$0xff]
  %v1294 = vld [vmem:[%s3 + $0x210] sm:$0xff]
  %v1295 = vld [vmem:[%s3 + $0x218] sm:$0xff]
  %v1296 = vld [vmem:[%s3 + $0x220] sm:$0xff]
  %v1297 = vld [vmem:[%s3 + $0x228] sm:$0xff]
  %v1298 = vld [vmem:[%s3 + $0x230] sm:$0xff]
  %v1299 = vld [vmem:[%s3 + $0x238] sm:$0xff]
  %v1300 = vld [vmem:[%s3 + $0x240] sm:$0xff]
  %v1301 = vld [vmem:[%s3 + $0x248] sm:$0xff]
  %v1302 = vld [vmem:[%s3 + $0x250] sm:$0xff]
  %v1303 = vld [vmem:[%s3 + $0x258] sm:$0xff]
  %v1304 = vld [vmem:[%s3 + $0x260] sm:$0xff]
  %v1305 = vld [vmem:[%s3 + $0x268] sm:$0xff]
  %v1306 = vld [vmem:[%s3 + $0x270] sm:$0xff]
  %v1307 = vld [vmem:[%s3 + $0x278] sm:$0xff]
  %v1308 = vld [vmem:[%s3 + $0x280] sm:$0xff]
  %v1309 = vld [vmem:[%s3 + $0x288] sm:$0xff]
  %v1310 = vld [vmem:[%s3 + $0x290] sm:$0xff]
  %v1311 = vld [vmem:[%s3 + $0x298] sm:$0xff]
  %v1312 = vld [vmem:[%s3 + $0x2a0] sm:$0xf]
  %v1313 = vld [vmem:[%s3 + $0x2a8] sm:$0xf]
  %v1314 = vld [vmem:[%s3 + $0x2b0] sm:$0xf]
  %v1315 = vld [vmem:[%s3 + $0x2b8] sm:$0xf]
  %v1316 = vld [vmem:[%s3 + $0x2c0] sm:$0xf]
  %v1317 = vld [vmem:[%s3 + $0x2c8] sm:$0xf]
  %v1318 = vld [vmem:[%s3 + $0x2d0] sm:$0xf]
  %v1320 = vsel %vm119, %v1312, 0
  %v1323 = vsel %vm119, %v1313, 0
  %v1326 = vsel %vm119, %v1314, 0
  %v1329 = vsel %vm119, %v1315, 0
  %v1332 = vsel %vm119, %v1316, 0
  %v1335 = vsel %vm119, %v1317, 0
  %v1338 = vsel %vm119, %v1318, 0
  %1340 = vmatprep.subr.mxu0 0.0
  %1341 = vmatpush1.msra.mxu0 0.0
  %1342 = vmatprep.subr.mxu0 0.0
  %1343 = vmatpush1.msra.mxu0 0.0
  %1344 = vmatprep.subr.mxu0 0.0
  %1345 = vmatpush1.msra.mxu0 0.0
  %1346 = vmatprep.subr.mxu0 %v1323
  %1347 = vmatpush1.msra.mxu0 %v1320
  %1348 = vmatprep.subr.mxu0 %v1306
  %1349 = vmatpush1.msra.mxu0 %v1305
  %1350 = vmatprep.subr.mxu0 %v1299
  %1351 = vmatpush1.msra.mxu0 %v1298
  %1352 = vmatprep.subr.mxu0 %v1292
  %1353 = vmatpush1.msra.mxu0 %v1291
  %1354 = vmatprep.subr.mxu0 %v1285
  %1355 = vmatpush1.msra.mxu0 %v1284
  %1356 = vmatprep.subr.mxu0 %v1278
  %1357 = vmatpush1.msra.mxu0 %v1277
  %1358 = vmatprep.subr.mxu0 %v1271
  %1359 = vmatpush1.msra.mxu0 %v1270
  %1360 = vmatprep.subr.mxu0 %v1264
  %1361 = vmatpush1.msra.mxu0 %v1263
  %1362 = vmatprep.subr.mxu0 %v1257
  %1363 = vmatpush1.msra.mxu0 %v1256
  %1364 = vmatprep.subr.mxu0 %v1250
  %1365 = vmatpush1.msra.mxu0 %v1249
  %1366 = vmatprep.subr.mxu0 %v1243
  %1367 = vmatpush1.msra.mxu0 %v1242
  %1368 = vmatprep.subr.mxu0 %v1236
  %1369 = vmatpush1.msra.mxu0 %v1235
  %1370 = vmatprep.subr.mxu0 %v1229
  %1371 = vmatpush1.msra.mxu0 %v1228
  %1372 = vmatprep.subr.mxu0 0.0
  %1373 = vmatpush2.msra.mxu0 0.0
  %1374 = vmatprep.subr.mxu0 0.0
  %1375 = vmatpush2.msra.mxu0 0.0
  %1376 = vmatprep.subr.mxu0 0.0
  %1377 = vmatpush2.msra.mxu0 0.0
  %1378 = vmatprep.subr.mxu0 0.0
  %1379 = vmatpush2.msra.mxu0 0.0
  %1380 = vmatprep.subr.mxu0 0.0
  %1381 = vmatpush2.msra.mxu0 0.0
  %1382 = vmatprep.subr.mxu0 0.0
  %1383 = vmatpush2.msra.mxu0 0.0
  %1384 = vmatprep.subr.mxu0 0.0
  %1385 = vmatpush2.msra.mxu0 0.0
  %1386 = vmatprep.subr.mxu0 0.0
  %1387 = vmatpush2.msra.mxu0 0.0
  %1388 = vmatprep.subr.mxu0 0.0
  %1389 = vmatpush2.msra.mxu0 0.0
  %1390 = vmatprep.subr.mxu0 0.0
  %1391 = vmatpush2.msra.mxu0 0.0
  %1392 = vmatprep.subr.mxu0 0.0
  %1393 = vmatpush2.msra.mxu0 0.0
  %1394 = vmatprep.subr.mxu0 0.0
  %1395 = vmatpush2.msra.mxu0 0.0
  %1396 = vmatprep.subr.mxu0 0.0
  %1397 = vmatpush2.msra.mxu0 0.0
  %1398 = vmatprep.subr.mxu0 0.0
  %1399 = vmatpush2.msra.mxu0 0.0
  %1400 = vmatprep.subr.mxu0 0.0
  %1401 = vmatpush2.msra.mxu0 0.0
  %1402 = vmatprep.subr.mxu0 0.0
  %1403 = vmatpush2.msra.mxu0 0.0
  %1404 = vmatprep.mubr.f32.mxu0 0.0
  %1405 = vmatmul.mubr.f32.gmra.mxu0 %v117
  %v1406 = vpop.f32.mrf.mxu0
  %v1407 = vadd.f32 0.0, %v1406
  %v1408 = vpop.f32.mrf.mxu0
  %v1409 = vadd.f32 0.0, %v1408
  %1410 = vdwg.mxu0
  %1411 = vmatprep.subr.mxu0 0.0
  %1412 = vmatpush1.msra.mxu0 0.0
  %1413 = vmatprep.subr.mxu0 0.0
  %1414 = vmatpush1.msra.mxu0 0.0
  %1415 = vmatprep.subr.mxu0 0.0
  %1416 = vmatpush1.msra.mxu0 0.0
  %1417 = vmatprep.subr.mxu0 %v1329
  %1418 = vmatpush1.msra.mxu0 %v1326
  %1419 = vmatprep.subr.mxu0 %v1308
  %1420 = vmatpush1.msra.mxu0 %v1307
  %1421 = vmatprep.subr.mxu0 %v1301
  %1422 = vmatpush1.msra.mxu0 %v1300
  %1423 = vmatprep.subr.mxu0 %v1294
  %1424 = vmatpush1.msra.mxu0 %v1293
  %1425 = vmatprep.subr.mxu0 %v1287
  %1426 = vmatpush1.msra.mxu0 %v1286
  %1427 = vmatprep.subr.mxu0 %v1280
  %1428 = vmatpush1.msra.mxu0 %v1279
  %1429 = vmatprep.subr.mxu0 %v1273
  %1430 = vmatpush1.msra.mxu0 %v1272
  %1431 = vmatprep.subr.mxu0 %v1266
  %1432 = vmatpush1.msra.mxu0 %v1265
  %1433 = vmatprep.subr.mxu0 %v1259
  %1434 = vmatpush1.msra.mxu0 %v1258
  %1435 = vmatprep.subr.mxu0 %v1252
  %1436 = vmatpush1.msra.mxu0 %v1251
  %1437 = vmatprep.subr.mxu0 %v1245
  %1438 = vmatpush1.msra.mxu0 %v1244
  %1439 = vmatprep.subr.mxu0 %v1238
  %1440 = vmatpush1.msra.mxu0 %v1237
  %1441 = vmatprep.subr.mxu0 %v1231
  %1442 = vmatpush1.msra.mxu0 %v1230
  %1443 = vmatprep.subr.mxu0 0.0
  %1444 = vmatpush2.msra.mxu0 0.0
  %1445 = vmatprep.subr.mxu0 0.0
  %1446 = vmatpush2.msra.mxu0 0.0
  %1447 = vmatprep.subr.mxu0 0.0
  %1448 = vmatpush2.msra.mxu0 0.0
  %1449 = vmatprep.subr.mxu0 0.0
  %1450 = vmatpush2.msra.mxu0 0.0
  %1451 = vmatprep.subr.mxu0 0.0
  %1452 = vmatpush2.msra.mxu0 0.0
  %1453 = vmatprep.subr.mxu0 0.0
  %1454 = vmatpush2.msra.mxu0 0.0
  %1455 = vmatprep.subr.mxu0 0.0
  %1456 = vmatpush2.msra.mxu0 0.0
  %1457 = vmatprep.subr.mxu0 0.0
  %1458 = vmatpush2.msra.mxu0 0.0
  %1459 = vmatprep.subr.mxu0 0.0
  %1460 = vmatpush2.msra.mxu0 0.0
  %1461 = vmatprep.subr.mxu0 0.0
  %1462 = vmatpush2.msra.mxu0 0.0
  %1463 = vmatprep.subr.mxu0 0.0
  %1464 = vmatpush2.msra.mxu0 0.0
  %1465 = vmatprep.subr.mxu0 0.0
  %1466 = vmatpush2.msra.mxu0 0.0
  %1467 = vmatprep.subr.mxu0 0.0
  %1468 = vmatpush2.msra.mxu0 0.0
  %1469 = vmatprep.subr.mxu0 0.0
  %1470 = vmatpush2.msra.mxu0 0.0
  %1471 = vmatprep.subr.mxu0 0.0
  %1472 = vmatpush2.msra.mxu0 0.0
  %1473 = vmatprep.subr.mxu0 0.0
  %1474 = vmatpush2.msra.mxu0 0.0
  %1475 = vmatprep.mubr.f32.mxu0 0.0
  %1476 = vmatmul.mubr.f32.gmra.mxu0 %v117
  %v1477 = vpop.f32.mrf.mxu0
  %v1478 = vadd.f32 0.0, %v1477
  %v1479 = vpop.f32.mrf.mxu0
  %v1480 = vadd.f32 0.0, %v1479
  %1481 = vdwg.mxu0
  %1482 = vmatprep.subr.mxu0 0.0
  %1483 = vmatpush1.msra.mxu0 0.0
  %1484 = vmatprep.subr.mxu0 0.0
  %1485 = vmatpush1.msra.mxu0 0.0
  %1486 = vmatprep.subr.mxu0 0.0
  %1487 = vmatpush1.msra.mxu0 0.0
  %1488 = vmatprep.subr.mxu0 %v1335
  %1489 = vmatpush1.msra.mxu0 %v1332
  %1490 = vmatprep.subr.mxu0 %v1310
  %1491 = vmatpush1.msra.mxu0 %v1309
  %1492 = vmatprep.subr.mxu0 %v1303
  %1493 = vmatpush1.msra.mxu0 %v1302
  %1494 = vmatprep.subr.mxu0 %v1296
  %1495 = vmatpush1.msra.mxu0 %v1295
  %1496 = vmatprep.subr.mxu0 %v1289
  %1497 = vmatpush1.msra.mxu0 %v1288
  %1498 = vmatprep.subr.mxu0 %v1282
  %1499 = vmatpush1.msra.mxu0 %v1281
  %1500 = vmatprep.subr.mxu0 %v1275
  %1501 = vmatpush1.msra.mxu0 %v1274
  %1502 = vmatprep.subr.mxu0 %v1268
  %1503 = vmatpush1.msra.mxu0 %v1267
  %1504 = vmatprep.subr.mxu0 %v1261
  %1505 = vmatpush1.msra.mxu0 %v1260
  %1506 = vmatprep.subr.mxu0 %v1254
  %1507 = vmatpush1.msra.mxu0 %v1253
  %1508 = vmatprep.subr.mxu0 %v1247
  %1509 = vmatpush1.msra.mxu0 %v1246
  %1510 = vmatprep.subr.mxu0 %v1240
  %1511 = vmatpush1.msra.mxu0 %v1239
  %1512 = vmatprep.subr.mxu0 %v1233
  %1513 = vmatpush1.msra.mxu0 %v1232
  %1514 = vmatprep.subr.mxu0 0.0
  %1515 = vmatpush2.msra.mxu0 0.0
  %1516 = vmatprep.subr.mxu0 0.0
  %1517 = vmatpush2.msra.mxu0 0.0
  %1518 = vmatprep.subr.mxu0 0.0
  %1519 = vmatpush2.msra.mxu0 0.0
  %1520 = vmatprep.subr.mxu0 0.0
  %1521 = vmatpush2.msra.mxu0 0.0
  %1522 = vmatprep.subr.mxu0 0.0
  %1523 = vmatpush2.msra.mxu0 0.0
  %1524 = vmatprep.subr.mxu0 0.0
  %1525 = vmatpush2.msra.mxu0 0.0
  %1526 = vmatprep.subr.mxu0 0.0
  %1527 = vmatpush2.msra.mxu0 0.0
  %1528 = vmatprep.subr.mxu0 0.0
  %1529 = vmatpush2.msra.mxu0 0.0
  %1530 = vmatprep.subr.mxu0 0.0
  %1531 = vmatpush2.msra.mxu0 0.0
  %1532 = vmatprep.subr.mxu0 0.0
  %1533 = vmatpush2.msra.mxu0 0.0
  %1534 = vmatprep.subr.mxu0 0.0
  %1535 = vmatpush2.msra.mxu0 0.0
  %1536 = vmatprep.subr.mxu0 0.0
  %1537 = vmatpush2.msra.mxu0 0.0
  %1538 = vmatprep.subr.mxu0 0.0
  %1539 = vmatpush2.msra.mxu0 0.0
  %1540 = vmatprep.subr.mxu0 0.0
  %1541 = vmatpush2.msra.mxu0 0.0
  %1542 = vmatprep.subr.mxu0 0.0
  %1543 = vmatpush2.msra.mxu0 0.0
  %1544 = vmatprep.subr.mxu0 0.0
  %1545 = vmatpush2.msra.mxu0 0.0
  %1546 = vmatprep.mubr.f32.mxu0 0.0
  %1547 = vmatmul.mubr.f32.gmra.mxu0 %v117
  %v1548 = vpop.f32.mrf.mxu0
  %v1549 = vadd.f32 0.0, %v1548
  %v1550 = vpop.f32.mrf.mxu0
  %v1551 = vadd.f32 0.0, %v1550
  %1552 = vdwg.mxu0
  %1553 = vmatprep.subr.mxu0 0.0
  %1554 = vmatpush1.msra.mxu0 0.0
  %1555 = vmatprep.subr.mxu0 0.0
  %1556 = vmatpush1.msra.mxu0 0.0
  %1557 = vmatprep.subr.mxu0 0.0
  %1558 = vmatpush1.msra.mxu0 0.0
  %1559 = vmatprep.subr.mxu0 0.0
  %1560 = vmatpush1.msra.mxu0 %v1338
  %1561 = vmatprep.subr.mxu0 0.0
  %1562 = vmatpush1.msra.mxu0 %v1311
  %1563 = vmatprep.subr.mxu0 0.0
  %1564 = vmatpush1.msra.mxu0 %v1304
  %1565 = vmatprep.subr.mxu0 0.0
  %1566 = vmatpush1.msra.mxu0 %v1297
  %1567 = vmatprep.subr.mxu0 0.0
  %1568 = vmatpush1.msra.mxu0 %v1290
  %1569 = vmatprep.subr.mxu0 0.0
  %1570 = vmatpush1.msra.mxu0 %v1283
  %1571 = vmatprep.subr.mxu0 0.0
  %1572 = vmatpush1.msra.mxu0 %v1276
  %1573 = vmatprep.subr.mxu0 0.0
  %1574 = vmatpush1.msra.mxu0 %v1269
  %1575 = vmatprep.subr.mxu0 0.0
  %1576 = vmatpush1.msra.mxu0 %v1262
  %1577 = vmatprep.subr.mxu0 0.0
  %1578 = vmatpush1.msra.mxu0 %v1255
  %1579 = vmatprep.subr.mxu0 0.0
  %1580 = vmatpush1.msra.mxu0 %v1248
  %1581 = vmatprep.subr.mxu0 0.0
  %1582 = vmatpush1.msra.mxu0 %v1241
  %1583 = vmatprep.subr.mxu0 0.0
  %1584 = vmatpush1.msra.mxu0 %v1234
  %1585 = vmatprep.subr.mxu0 0.0
  %1586 = vmatpush2.msra.mxu0 0.0
  %1587 = vmatprep.subr.mxu0 0.0
  %1588 = vmatpush2.msra.mxu0 0.0
  %1589 = vmatprep.subr.mxu0 0.0
  %1590 = vmatpush2.msra.mxu0 0.0
  %1591 = vmatprep.subr.mxu0 0.0
  %1592 = vmatpush2.msra.mxu0 0.0
  %1593 = vmatprep.subr.mxu0 0.0
  %1594 = vmatpush2.msra.mxu0 0.0
  %1595 = vmatprep.subr.mxu0 0.0
  %1596 = vmatpush2.msra.mxu0 0.0
  %1597 = vmatprep.subr.mxu0 0.0
  %1598 = vmatpush2.msra.mxu0 0.0
  %1599 = vmatprep.subr.mxu0 0.0
  %1600 = vmatpush2.msra.mxu0 0.0
  %1601 = vmatprep.subr.mxu0 0.0
  %1602 = vmatpush2.msra.mxu0 0.0
  %1603 = vmatprep.subr.mxu0 0.0
  %1604 = vmatpush2.msra.mxu0 0.0
  %1605 = vmatprep.subr.mxu0 0.0
  %1606 = vmatpush2.msra.mxu0 0.0
  %1607 = vmatprep.subr.mxu0 0.0
  %1608 = vmatpush2.msra.mxu0 0.0
  %1609 = vmatprep.subr.mxu0 0.0
  %1610 = vmatpush2.msra.mxu0 0.0
  %1611 = vmatprep.subr.mxu0 0.0
  %1612 = vmatpush2.msra.mxu0 0.0
  %1613 = vmatprep.subr.mxu0 0.0
  %1614 = vmatpush2.msra.mxu0 0.0
  %1615 = vmatprep.subr.mxu0 0.0
  %1616 = vmatpush2.msra.mxu0 0.0
  %1617 = vmatprep.mubr.f32.mxu0 0.0
  %1618 = vmatmul.mubr.f32.gmra.mxu0 %v117
  %v1619 = vpop.f32.mrf.mxu0
  %v1620 = vadd.f32 0.0, %v1619
  %v1621 = vpop.f32.mrf.mxu0
  %1622 = vdwg.mxu0
  %v1623 = vmax.f32 %v1221, %v1407
  %v1624 = vmax.f32 %v1222, %v1409
  %v1625 = vmax.f32 %v1223, %v1478
  %v1626 = vmax.f32 %v1224, %v1480
  %v1627 = vmax.f32 %v1225, %v1549
  %v1628 = vmax.f32 %v1226, %v1551
  %v1629 = vmax.f32 %v1227, %v1620
  %v1630 = vld [vmem:[%s5] sm:$0xff]
  %1632 = vset.pattern.permute.xlu0 0
  %1633 = vperm.xlu0 %1632, %v1630
  %v1634 = vpop.permute.xlu0 %1633
  %v1636 = vadd.f32 %v1623, %v1634
  %v1637 = vadd.f32 %v1624, %v1634
  %v1638 = vadd.f32 %v1625, %v1634
  %v1639 = vadd.f32 %v1626, %v1634
  %v1640 = vadd.f32 %v1627, %v1634
  %v1641 = vadd.f32 %v1628, %v1634
  %v1642 = vadd.f32 %v1629, %v1634
  %v1643 = vmax.f32 %v1636, 0.0
  %v1644 = vmax.f32 %v1637, 0.0
  %v1645 = vmax.f32 %v1638, 0.0
  %v1646 = vmax.f32 %v1639, 0.0
  %v1647 = vmax.f32 %v1640, 0.0
  %v1648 = vmax.f32 %v1641, 0.0
  %v1649 = vmax.f32 %v1642, 0.0
  %1650 = vst [vmem:[%s6] sm:$0xff] %v1643
  %1651 = vst [vmem:[%s6 + $0x8] sm:$0xff] %v1644
  %1652 = vst [vmem:[%s6 + $0x10] sm:$0xff] %v1645
  %1653 = vst [vmem:[%s6 + $0x18] sm:$0xff] %v1646
  %1654 = vst [vmem:[%s6 + $0x20] sm:$0xff] %v1647
  %1655 = vst [vmem:[%s6 + $0x28] sm:$0xff] %v1648
  %vm1656 = vcmask 932864
  %1657 = vst.msk [vmem:[%s6 + $0x30] sm:$0xff] %vm1656, %v1649
  // Predicated region
  $region26: #{agent_forward.5} parent=0 // pred_check
    _
  $region27: #{agent_forward.5} parent=0 // pred_check_branch
    %1659 = sbr.rel (0) target = $region29
  $region28: #{agent_forward.5} parent=0 // pred_region
    _
  $region29: #{agent_forward.5} parent=0 // pred_fallthru
    _
  // Predicated region
  $region30: #{agent_forward.5} parent=0 // pred_check
    _
  $region31: #{agent_forward.5} parent=0 // pred_check_branch
    %1661 = sbr.rel (0) target = $region33
  $region32: #{agent_forward.5} parent=0 // pred_region
    _
  $region33: #{agent_forward.5} parent=0 // pred_fallthru
    _

// kernel: agent_forward.6
$region0: #{agent_forward.6}
  #allocation0 [shape = 'u32[]', space=smem, size = 0x4, offset = 0x4, fixed_abs, tag = 'smem constant byte address 0x4 - core index']
  #allocation1 [shape = 'u32[144,128]{1,0:T(1,128)}', space=vmem, size = 0x12000, scoped, tag = 'internal scratch']
  %s0 = inlined_call_operand.vmem [shape: f32[288,128], index: 0, kind: input, shape index: {}]
  %s1 = inlined_call_operand.vmem [shape: f32[288,128], index: 1, kind: input, shape index: {}]
  %s2 = inlined_call_operand.vmem [shape: f32[288,128], index: 2, kind: input, shape index: {}]
  %s3 = inlined_call_operand.vmem [shape: f32[288,128], index: 3, kind: input, shape index: {}]
  %s4 = inlined_call_operand.vmem [shape: f32[16,288], index: 4, kind: input, shape index: {}]
  %s5 = inlined_call_operand.vmem [shape: f32[16,1], index: 5, kind: input, shape index: {}]
  %s6 = inlined_call_operand.vmem [shape: f32[16,128], index: 6, kind: output, shape index: {}]
  %s7 = sld [smem:[#allocation0]]
  $region34: #{agent_forward.6} parent=0
    _
  %s9 = ssub.s32 1, %s7
  %s10 = scalar_select 0, %s9, %s7
  // Predicated region
  $region2: #{agent_forward.6} parent=0 // pred_check
    _
  $region3: #{agent_forward.6} parent=0 // pred_check_branch
    %12 = sbr.rel (0) target = $region5
  $region4: #{agent_forward.6} parent=0 // pred_region
    _
  $region5: #{agent_forward.6} parent=0 // pred_fallthru
    _
  // Predicated region
  $region6: #{agent_forward.6} parent=0 // pred_check
    _
  $region7: #{agent_forward.6} parent=0 // pred_check_branch
    %14 = sbr.rel (0) target = $region9
  $region8: #{agent_forward.6} parent=0 // pred_region
    _
  $region9: #{agent_forward.6} parent=0 // pred_fallthru
    _
  // Predicated region
  $region10: #{agent_forward.6} parent=0 // pred_check
    _
  $region11: #{agent_forward.6} parent=0 // pred_check_branch
    %16 = sbr.rel (0) target = $region13
  $region12: #{agent_forward.6} parent=0 // pred_region
    _
  $region13: #{agent_forward.6} parent=0 // pred_fallthru
    _
  // Predicated region
  $region14: #{agent_forward.6} parent=0 // pred_check
    _
  $region15: #{agent_forward.6} parent=0 // pred_check_branch
    %18 = sbr.rel (0) target = $region17
  $region16: #{agent_forward.6} parent=0 // pred_region
    _
  $region17: #{agent_forward.6} parent=0 // pred_fallthru
    _
  // Predicated region
  $region18: #{agent_forward.6} parent=0 // pred_check
    _
  $region19: #{agent_forward.6} parent=0 // pred_check_branch
    %20 = sbr.rel (0) target = $region21
  $region20: #{agent_forward.6} parent=0 // pred_region
    _
  $region21: #{agent_forward.6} parent=0 // pred_fallthru
    _
  // Predicated region
  $region22: #{agent_forward.6} parent=0 // pred_check
    _
  $region23: #{agent_forward.6} parent=0 // pred_check_branch
    %22 = sbr.rel (0) target = $region25
  $region24: #{agent_forward.6} parent=0 // pred_region
    _
  $region25: #{agent_forward.6} parent=0 // pred_fallthru
    _
  %v23 = vld [vmem:[%s4] sm:$0xff]
  %v24 = vld [vmem:[%s4 + $0x8] sm:$0xff]
  %v25 = vld [vmem:[%s4 + $0x10] sm:$0xff]
  %v26 = vld [vmem:[%s4 + $0x18] sm:$0xff]
  %v27 = vld [vmem:[%s4 + $0x20] sm:$0xff]
  %v28 = vld [vmem:[%s4 + $0x28] sm:$0xff]
  %v29 = vld [vmem:[%s0] sm:$0xff]
  %v30 = vld [vmem:[%s0 + $0x8] sm:$0xff]
  %v31 = vld [vmem:[%s0 + $0x10] sm:$0xff]
  %v32 = vld [vmem:[%s0 + $0x18] sm:$0xff]
  %v33 = vld [vmem:[%s0 + $0x20] sm:$0xff]
  %v34 = vld [vmem:[%s0 + $0x28] sm:$0xff]
  %v35 = vld [vmem:[%s0 + $0x30] sm:$0xff]
  %v36 = vld [vmem:[%s0 + $0x38] sm:$0xff]
  %v37 = vld [vmem:[%s0 + $0x40] sm:$0xff]
  %v38 = vld [vmem:[%s0 + $0x48] sm:$0xff]
  %v39 = vld [vmem:[%s0 + $0x50] sm:$0xff]
  %v40 = vld [vmem:[%s0 + $0x58] sm:$0xff]
  %v41 = vld [vmem:[%s0 + $0x60] sm:$0xff]
  %v42 = vld [vmem:[%s0 + $0x68] sm:$0xff]
  %v43 = vld [vmem:[%s0 + $0x70] sm:$0xff]
  %v44 = vld [vmem:[%s0 + $0x78] sm:$0xff]
  %v45 = vld [vmem:[%s0 + $0x80] sm:$0xff]
  %v46 = vld [vmem:[%s0 + $0x88] sm:$0xff]
  %v47 = vld [vmem:[%s0 + $0x90] sm:$0xff]
  %v48 = vld [vmem:[%s0 + $0x98] sm:$0xff]
  %v49 = vld [vmem:[%s0 + $0xa0] sm:$0xff]
  %v50 = vld [vmem:[%s0 + $0xa8] sm:$0xff]
  %v51 = vld [vmem:[%s0 + $0xb0] sm:$0xff]
  %v52 = vld [vmem:[%s0 + $0xb8] sm:$0xff]
  %v53 = vld [vmem:[%s0 + $0xc0] sm:$0xff]
  %v54 = vld [vmem:[%s0 + $0xc8] sm:$0xff]
  %v55 = vld [vmem:[%s0 + $0xd0] sm:$0xff]
  %v56 = vld [vmem:[%s0 + $0xd8] sm:$0xff]
  %v57 = vld [vmem:[%s0 + $0xe0] sm:$0xff]
  %v58 = vld [vmem:[%s0 + $0xe8] sm:$0xff]
  %v59 = vld [vmem:[%s0 + $0xf0] sm:$0xff]
  %v60 = vld [vmem:[%s0 + $0xf8] sm:$0xff]
  %v61 = vld [vmem:[%s0 + $0x100] sm:$0xff]
  %v62 = vld [vmem:[%s0 + $0x108] sm:$0xff]
  %v63 = vld [vmem:[%s0 + $0x110] sm:$0xff]
  %v64 = vld [vmem:[%s0 + $0x118] sm:$0xff]
  %vm65 = vcmask 261120
  %v67 = vsel %vm65, %v25, 0
  %v70 = vsel %vm65, %v28, 0
  %72 = vmatprep.subr.mxu0 0.0
  %73 = vmatpush1.msra.mxu0 %v44
  %74 = vmatprep.subr.mxu0 0.0
  %75 = vmatpush1.msra.mxu0 %v43
  %76 = vmatprep.subr.mxu0 0.0
  %77 = vmatpush1.msra.mxu0 %v42
  %78 = vmatprep.subr.mxu0 0.0
  %79 = vmatpush1.msra.mxu0 %v41
  %80 = vmatprep.subr.mxu0 0.0
  %81 = vmatpush1.msra.mxu0 %v40
  %82 = vmatprep.subr.mxu0 0.0
  %83 = vmatpush1.msra.mxu0 %v39
  %84 = vmatprep.subr.mxu0 0.0
  %85 = vmatpush1.msra.mxu0 %v38
  %86 = vmatprep.subr.mxu0 0.0
  %87 = vmatpush1.msra.mxu0 %v37
  %88 = vmatprep.subr.mxu0 0.0
  %89 = vmatpush1.msra.mxu0 %v36
  %90 = vmatprep.subr.mxu0 0.0
  %91 = vmatpush1.msra.mxu0 %v35
  %92 = vmatprep.subr.mxu0 0.0
  %93 = vmatpush1.msra.mxu0 %v34
  %94 = vmatprep.subr.mxu0 0.0
  %95 = vmatpush1.msra.mxu0 %v33
  %96 = vmatprep.subr.mxu0 0.0
  %97 = vmatpush1.msra.mxu0 %v32
  %98 = vmatprep.subr.mxu0 0.0
  %99 = vmatpush1.msra.mxu0 %v31
  %100 = vmatprep.subr.mxu0 0.0
  %101 = vmatpush1.msra.mxu0 %v30
  %102 = vmatprep.subr.mxu0 0.0
  %103 = vmatpush1.msra.mxu0 %v29
  %104 = vmatprep.subr.mxu0 0.0
  %105 = vmatpush2.msra.mxu0 %v60
  %106 = vmatprep.subr.mxu0 0.0
  %107 = vmatpush2.msra.mxu0 %v59
  %108 = vmatprep.subr.mxu0 0.0
  %109 = vmatpush2.msra.mxu0 %v58
  %110 = vmatprep.subr.mxu0 0.0
  %111 = vmatpush2.msra.mxu0 %v57
  %112 = vmatprep.subr.mxu0 0.0
  %113 = vmatpush2.msra.mxu0 %v56
  %114 = vmatprep.subr.mxu0 0.0
  %115 = vmatpush2.msra.mxu0 %v55
  %116 = vmatprep.subr.mxu0 0.0
  %117 = vmatpush2.msra.mxu0 %v54
  %118 = vmatprep.subr.mxu0 0.0
  %119 = vmatpush2.msra.mxu0 %v53
  %120 = vmatprep.subr.mxu0 0.0
  %121 = vmatpush2.msra.mxu0 %v52
  %122 = vmatprep.subr.mxu0 0.0
  %123 = vmatpush2.msra.mxu0 %v51
  %124 = vmatprep.subr.mxu0 0.0
  %125 = vmatpush2.msra.mxu0 %v50
  %126 = vmatprep.subr.mxu0 0.0
  %127 = vmatpush2.msra.mxu0 %v49
  %128 = vmatprep.subr.mxu0 0.0
  %129 = vmatpush2.msra.mxu0 %v48
  %130 = vmatprep.subr.mxu0 0.0
  %131 = vmatpush2.msra.mxu0 %v47
  %132 = vmatprep.subr.mxu0 0.0
  %133 = vmatpush2.msra.mxu0 %v46
  %134 = vmatprep.subr.mxu0 0.0
  %135 = vmatpush2.msra.mxu0 %v45
  %136 = vmatprep.mubr.f32.mxu0 %v24
  %137 = vmatmul.mubr.f32.gmra.mxu0 %v23
  %v138 = vpop.f32.mrf.mxu0
  %v139 = vadd.f32 0.0, %v138
  %v140 = vpop.f32.mrf.mxu0
  %141 = vmatprep.mubr.f32.mxu0 %v27
  %142 = vmatmul.mubr.f32.gmra.mxu0 %v26
  %v143 = vpop.f32.mrf.mxu0
  %v144 = vadd.f32 0.0, %v143
  %v145 = vpop.f32.mrf.mxu0
  %146 = vdwg.mxu0
  %147 = vmatprep.subr.mxu0 0.0
  %148 = vmatpush1.msra.mxu0 0.0
  %149 = vmatprep.subr.mxu0 0.0
  %150 = vmatpush1.msra.mxu0 0.0
  %151 = vmatprep.subr.mxu0 0.0
  %152 = vmatpush1.msra.mxu0 0.0
  %153 = vmatprep.subr.mxu0 0.0
  %154 = vmatpush1.msra.mxu0 0.0
  %155 = vmatprep.subr.mxu0 0.0
  %156 = vmatpush1.msra.mxu0 0.0
  %157 = vmatprep.subr.mxu0 0.0
  %158 = vmatpush1.msra.mxu0 0.0
  %159 = vmatprep.subr.mxu0 0.0
  %160 = vmatpush1.msra.mxu0 0.0
  %161 = vmatprep.subr.mxu0 0.0
  %162 = vmatpush1.msra.mxu0 0.0
  %163 = vmatprep.subr.mxu0 0.0
  %164 = vmatpush1.msra.mxu0 0.0
  %165 = vmatprep.subr.mxu0 0.0
  %166 = vmatpush1.msra.mxu0 0.0
  %167 = vmatprep.subr.mxu0 0.0
  %168 = vmatpush1.msra.mxu0 0.0
  %169 = vmatprep.subr.mxu0 0.0
  %170 = vmatpush1.msra.mxu0 0.0
  %171 = vmatprep.subr.mxu0 0.0
  %172 = vmatpush1.msra.mxu0 %v64
  %173 = vmatprep.subr.mxu0 0.0
  %174 = vmatpush1.msra.mxu0 %v63
  %175 = vmatprep.subr.mxu0 0.0
  %176 = vmatpush1.msra.mxu0 %v62
  %177 = vmatprep.subr.mxu0 0.0
  %178 = vmatpush1.msra.mxu0 %v61
  %179 = vmatprep.subr.mxu0 0.0
  %180 = vmatpush2.msra.mxu0 0.0
  %181 = vmatprep.subr.mxu0 0.0
  %182 = vmatpush2.msra.mxu0 0.0
  %183 = vmatprep.subr.mxu0 0.0
  %184 = vmatpush2.msra.mxu0 0.0
  %185 = vmatprep.subr.mxu0 0.0
  %186 = vmatpush2.msra.mxu0 0.0
  %187 = vmatprep.subr.mxu0 0.0
  %188 = vmatpush2.msra.mxu0 0.0
  %189 = vmatprep.subr.mxu0 0.0
  %190 = vmatpush2.msra.mxu0 0.0
  %191 = vmatprep.subr.mxu0 0.0
  %192 = vmatpush2.msra.mxu0 0.0
  %193 = vmatprep.subr.mxu0 0.0
  %194 = vmatpush2.msra.mxu0 0.0
  %195 = vmatprep.subr.mxu0 0.0
  %196 = vmatpush2.msra.mxu0 0.0
  %197 = vmatprep.subr.mxu0 0.0
  %198 = vmatpush2.msra.mxu0 0.0
  %199 = vmatprep.subr.mxu0 0.0
  %200 = vmatpush2.msra.mxu0 0.0
  %201 = vmatprep.subr.mxu0 0.0
  %202 = vmatpush2.msra.mxu0 0.0
  %203 = vmatprep.subr.mxu0 0.0
  %204 = vmatpush2.msra.mxu0 0.0
  %205 = vmatprep.subr.mxu0 0.0
  %206 = vmatpush2.msra.mxu0 0.0
  %207 = vmatprep.subr.mxu0 0.0
  %208 = vmatpush2.msra.mxu0 0.0
  %209 = vmatprep.subr.mxu0 0.0
  %210 = vmatpush2.msra.mxu0 0.0
  %211 = vmatprep.mubr.f32.mxu0 0.0
  %212 = vmatmul.mubr.f32.gmra.mxu0 %v67
  %v213 = vpop.f32.mrf.mxu0
  %v214 = vadd.f32 %v139, %v213
  %v215 = vpop.f32.mrf.mxu0
  %216 = vmatprep.mubr.f32.mxu0 0.0
  %217 = vmatmul.mubr.f32.gmra.mxu0 %v70
  %v218 = vpop.f32.mrf.mxu0
  %v219 = vadd.f32 %v144, %v218
  %v220 = vpop.f32.mrf.mxu0
  %221 = vdwg.mxu0
  %v222 = vld [vmem:[%s1] sm:$0xff]
  %v223 = vld [vmem:[%s1 + $0x8] sm:$0xff]
  %v224 = vld [vmem:[%s1 + $0x10] sm:$0xff]
  %v225 = vld [vmem:[%s1 + $0x18] sm:$0xff]
  %v226 = vld [vmem:[%s1 + $0x20] sm:$0xff]
  %v227 = vld [vmem:[%s1 + $0x28] sm:$0xff]
  %v228 = vld [vmem:[%s1 + $0x30] sm:$0xff]
  %v229 = vld [vmem:[%s1 + $0x38] sm:$0xff]
  %v230 = vld [vmem:[%s1 + $0x40] sm:$0xff]
  %v231 = vld [vmem:[%s1 + $0x48] sm:$0xff]
  %v232 = vld [vmem:[%s1 + $0x50] sm:$0xff]
  %v233 = vld [vmem:[%s1 + $0x58] sm:$0xff]
  %v234 = vld [vmem:[%s1 + $0x60] sm:$0xff]
  %v235 = vld [vmem:[%s1 + $0x68] sm:$0xff]
  %v236 = vld [vmem:[%s1 + $0x70] sm:$0xff]
  %v237 = vld [vmem:[%s1 + $0x78] sm:$0xff]
  %v238 = vld [vmem:[%s1 + $0x80] sm:$0xff]
  %v239 = vld [vmem:[%s1 + $0x88] sm:$0xff]
  %v240 = vld [vmem:[%s1 + $0x90] sm:$0xff]
  %v241 = vld [vmem:[%s1 + $0x98] sm:$0xff]
  %v242 = vld [vmem:[%s1 + $0xa0] sm:$0xff]
  %v243 = vld [vmem:[%s1 + $0xa8] sm:$0xff]
  %v244 = vld [vmem:[%s1 + $0xb0] sm:$0xff]
  %v245 = vld [vmem:[%s1 + $0xb8] sm:$0xff]
  %v246 = vld [vmem:[%s1 + $0xc0] sm:$0xff]
  %v247 = vld [vmem:[%s1 + $0xc8] sm:$0xff]
  %v248 = vld [vmem:[%s1 + $0xd0] sm:$0xff]
  %v249 = vld [vmem:[%s1 + $0xd8] sm:$0xff]
  %v250 = vld [vmem:[%s1 + $0xe0] sm:$0xff]
  %v251 = vld [vmem:[%s1 + $0xe8] sm:$0xff]
  %v252 = vld [vmem:[%s1 + $0xf0] sm:$0xff]
  %v253 = vld [vmem:[%s1 + $0xf8] sm:$0xff]
  %v254 = vld [vmem:[%s1 + $0x100] sm:$0xff]
  %v255 = vld [vmem:[%s1 + $0x108] sm:$0xff]
  %v256 = vld [vmem:[%s1 + $0x110] sm:$0xff]
  %v257 = vld [vmem:[%s1 + $0x118] sm:$0xff]
  %258 = vmatprep.subr.mxu0 0.0
  %259 = vmatpush1.msra.mxu0 %v237
  %260 = vmatprep.subr.mxu0 0.0
  %261 = vmatpush1.msra.mxu0 %v236
  %262 = vmatprep.subr.mxu0 0.0
  %263 = vmatpush1.msra.mxu0 %v235
  %264 = vmatprep.subr.mxu0 0.0
  %265 = vmatpush1.msra.mxu0 %v234
  %266 = vmatprep.subr.mxu0 0.0
  %267 = vmatpush1.msra.mxu0 %v233
  %268 = vmatprep.subr.mxu0 0.0
  %269 = vmatpush1.msra.mxu0 %v232
  %270 = vmatprep.subr.mxu0 0.0
  %271 = vmatpush1.msra.mxu0 %v231
  %272 = vmatprep.subr.mxu0 0.0
  %273 = vmatpush1.msra.mxu0 %v230
  %274 = vmatprep.subr.mxu0 0.0
  %275 = vmatpush1.msra.mxu0 %v229
  %276 = vmatprep.subr.mxu0 0.0
  %277 = vmatpush1.msra.mxu0 %v228
  %278 = vmatprep.subr.mxu0 0.0
  %279 = vmatpush1.msra.mxu0 %v227
  %280 = vmatprep.subr.mxu0 0.0
  %281 = vmatpush1.msra.mxu0 %v226
  %282 = vmatprep.subr.mxu0 0.0
  %283 = vmatpush1.msra.mxu0 %v225
  %284 = vmatprep.subr.mxu0 0.0
  %285 = vmatpush1.msra.mxu0 %v224
  %286 = vmatprep.subr.mxu0 0.0
  %287 = vmatpush1.msra.mxu0 %v223
  %288 = vmatprep.subr.mxu0 0.0
  %289 = vmatpush1.msra.mxu0 %v222
  %290 = vmatprep.subr.mxu0 0.0
  %291 = vmatpush2.msra.mxu0 %v253
  %292 = vmatprep.subr.mxu0 0.0
  %293 = vmatpush2.msra.mxu0 %v252
  %294 = vmatprep.subr.mxu0 0.0
  %295 = vmatpush2.msra.mxu0 %v251
  %296 = vmatprep.subr.mxu0 0.0
  %297 = vmatpush2.msra.mxu0 %v250
  %298 = vmatprep.subr.mxu0 0.0
  %299 = vmatpush2.msra.mxu0 %v249
  %300 = vmatprep.subr.mxu0 0.0
  %301 = vmatpush2.msra.mxu0 %v248
  %302 = vmatprep.subr.mxu0 0.0
  %303 = vmatpush2.msra.mxu0 %v247
  %304 = vmatprep.subr.mxu0 0.0
  %305 = vmatpush2.msra.mxu0 %v246
  %306 = vmatprep.subr.mxu0 0.0
  %307 = vmatpush2.msra.mxu0 %v245
  %308 = vmatprep.subr.mxu0 0.0
  %309 = vmatpush2.msra.mxu0 %v244
  %310 = vmatprep.subr.mxu0 0.0
  %311 = vmatpush2.msra.mxu0 %v243
  %312 = vmatprep.subr.mxu0 0.0
  %313 = vmatpush2.msra.mxu0 %v242
  %314 = vmatprep.subr.mxu0 0.0
  %315 = vmatpush2.msra.mxu0 %v241
  %316 = vmatprep.subr.mxu0 0.0
  %317 = vmatpush2.msra.mxu0 %v240
  %318 = vmatprep.subr.mxu0 0.0
  %319 = vmatpush2.msra.mxu0 %v239
  %320 = vmatprep.subr.mxu0 0.0
  %321 = vmatpush2.msra.mxu0 %v238
  %322 = vmatprep.mubr.f32.mxu0 %v24
  %323 = vmatmul.mubr.f32.gmra.mxu0 %v23
  %v324 = vpop.f32.mrf.mxu0
  %v325 = vadd.f32 0.0, %v324
  %v326 = vpop.f32.mrf.mxu0
  %327 = vmatprep.mubr.f32.mxu0 %v27
  %328 = vmatmul.mubr.f32.gmra.mxu0 %v26
  %v329 = vpop.f32.mrf.mxu0
  %v330 = vadd.f32 0.0, %v329
  %v331 = vpop.f32.mrf.mxu0
  %332 = vdwg.mxu0
  %333 = vmatprep.subr.mxu0 0.0
  %334 = vmatpush1.msra.mxu0 0.0
  %335 = vmatprep.subr.mxu0 0.0
  %336 = vmatpush1.msra.mxu0 0.0
  %337 = vmatprep.subr.mxu0 0.0
  %338 = vmatpush1.msra.mxu0 0.0
  %339 = vmatprep.subr.mxu0 0.0
  %340 = vmatpush1.msra.mxu0 0.0
  %341 = vmatprep.subr.mxu0 0.0
  %342 = vmatpush1.msra.mxu0 0.0
  %343 = vmatprep.subr.mxu0 0.0
  %344 = vmatpush1.msra.mxu0 0.0
  %345 = vmatprep.subr.mxu0 0.0
  %346 = vmatpush1.msra.mxu0 0.0
  %347 = vmatprep.subr.mxu0 0.0
  %348 = vmatpush1.msra.mxu0 0.0
  %349 = vmatprep.subr.mxu0 0.0
  %350 = vmatpush1.msra.mxu0 0.0
  %351 = vmatprep.subr.mxu0 0.0
  %352 = vmatpush1.msra.mxu0 0.0
  %353 = vmatprep.subr.mxu0 0.0
  %354 = vmatpush1.msra.mxu0 0.0
  %355 = vmatprep.subr.mxu0 0.0
  %356 = vmatpush1.msra.mxu0 0.0
  %357 = vmatprep.subr.mxu0 0.0
  %358 = vmatpush1.msra.mxu0 %v257
  %359 = vmatprep.subr.mxu0 0.0
  %360 = vmatpush1.msra.mxu0 %v256
  %361 = vmatprep.subr.mxu0 0.0
  %362 = vmatpush1.msra.mxu0 %v255
  %363 = vmatprep.subr.mxu0 0.0
  %364 = vmatpush1.msra.mxu0 %v254
  %365 = vmatprep.subr.mxu0 0.0
  %366 = vmatpush2.msra.mxu0 0.0
  %367 = vmatprep.subr.mxu0 0.0
  %368 = vmatpush2.msra.mxu0 0.0
  %369 = vmatprep.subr.mxu0 0.0
  %370 = vmatpush2.msra.mxu0 0.0
  %371 = vmatprep.subr.mxu0 0.0
  %372 = vmatpush2.msra.mxu0 0.0
  %373 = vmatprep.subr.mxu0 0.0
  %374 = vmatpush2.msra.mxu0 0.0
  %375 = vmatprep.subr.mxu0 0.0
  %376 = vmatpush2.msra.mxu0 0.0
  %377 = vmatprep.subr.mxu0 0.0
  %378 = vmatpush2.msra.mxu0 0.0
  %379 = vmatprep.subr.mxu0 0.0
  %380 = vmatpush2.msra.mxu0 0.0
  %381 = vmatprep.subr.mxu0 0.0
  %382 = vmatpush2.msra.mxu0 0.0
  %383 = vmatprep.subr.mxu0 0.0
  %384 = vmatpush2.msra.mxu0 0.0
  %385 = vmatprep.subr.mxu0 0.0
  %386 = vmatpush2.msra.mxu0 0.0
  %387 = vmatprep.subr.mxu0 0.0
  %388 = vmatpush2.msra.mxu0 0.0
  %389 = vmatprep.subr.mxu0 0.0
  %390 = vmatpush2.msra.mxu0 0.0
  %391 = vmatprep.subr.mxu0 0.0
  %392 = vmatpush2.msra.mxu0 0.0
  %393 = vmatprep.subr.mxu0 0.0
  %394 = vmatpush2.msra.mxu0 0.0
  %395 = vmatprep.subr.mxu0 0.0
  %396 = vmatpush2.msra.mxu0 0.0
  %397 = vmatprep.mubr.f32.mxu0 0.0
  %398 = vmatmul.mubr.f32.gmra.mxu0 %v67
  %v399 = vpop.f32.mrf.mxu0
  %v400 = vadd.f32 %v325, %v399
  %v401 = vpop.f32.mrf.mxu0
  %402 = vmatprep.mubr.f32.mxu0 0.0
  %403 = vmatmul.mubr.f32.gmra.mxu0 %v70
  %v404 = vpop.f32.mrf.mxu0
  %v405 = vadd.f32 %v330, %v404
  %v406 = vpop.f32.mrf.mxu0
  %407 = vdwg.mxu0
  %v408 = vmax.f32 %v214, %v400
  %v409 = vmax.f32 %v219, %v405
  %v410 = vld [vmem:[%s2] sm:$0xff]
  %v411 = vld [vmem:[%s2 + $0x8] sm:$0xff]
  %v412 = vld [vmem:[%s2 + $0x10] sm:$0xff]
  %v413 = vld [vmem:[%s2 + $0x18] sm:$0xff]
  %v414 = vld [vmem:[%s2 + $0x20] sm:$0xff]
  %v415 = vld [vmem:[%s2 + $0x28] sm:$0xff]
  %v416 = vld [vmem:[%s2 + $0x30] sm:$0xff]
  %v417 = vld [vmem:[%s2 + $0x38] sm:$0xff]
  %v418 = vld [vmem:[%s2 + $0x40] sm:$0xff]
  %v419 = vld [vmem:[%s2 + $0x48] sm:$0xff]
  %v420 = vld [vmem:[%s2 + $0x50] sm:$0xff]
  %v421 = vld [vmem:[%s2 + $0x58] sm:$0xff]
  %v422 = vld [vmem:[%s2 + $0x60] sm:$0xff]
  %v423 = vld [vmem:[%s2 + $0x68] sm:$0xff]
  %v424 = vld [vmem:[%s2 + $0x70] sm:$0xff]
  %v425 = vld [vmem:[%s2 + $0x78] sm:$0xff]
  %v426 = vld [vmem:[%s2 + $0x80] sm:$0xff]
  %v427 = vld [vmem:[%s2 + $0x88] sm:$0xff]
  %v428 = vld [vmem:[%s2 + $0x90] sm:$0xff]
  %v429 = vld [vmem:[%s2 + $0x98] sm:$0xff]
  %v430 = vld [vmem:[%s2 + $0xa0] sm:$0xff]
  %v431 = vld [vmem:[%s2 + $0xa8] sm:$0xff]
  %v432 = vld [vmem:[%s2 + $0xb0] sm:$0xff]
  %v433 = vld [vmem:[%s2 + $0xb8] sm:$0xff]
  %v434 = vld [vmem:[%s2 + $0xc0] sm:$0xff]
  %v435 = vld [vmem:[%s2 + $0xc8] sm:$0xff]
  %v436 = vld [vmem:[%s2 + $0xd0] sm:$0xff]
  %v437 = vld [vmem:[%s2 + $0xd8] sm:$0xff]
  %v438 = vld [vmem:[%s2 + $0xe0] sm:$0xff]
  %v439 = vld [vmem:[%s2 + $0xe8] sm:$0xff]
  %v440 = vld [vmem:[%s2 + $0xf0] sm:$0xff]
  %v441 = vld [vmem:[%s2 + $0xf8] sm:$0xff]
  %v442 = vld [vmem:[%s2 + $0x100] sm:$0xff]
  %v443 = vld [vmem:[%s2 + $0x108] sm:$0xff]
  %v444 = vld [vmem:[%s2 + $0x110] sm:$0xff]
  %v445 = vld [vmem:[%s2 + $0x118] sm:$0xff]
  %446 = vmatprep.subr.mxu0 0.0
  %447 = vmatpush1.msra.mxu0 %v425
  %448 = vmatprep.subr.mxu0 0.0
  %449 = vmatpush1.msra.mxu0 %v424
  %450 = vmatprep.subr.mxu0 0.0
  %451 = vmatpush1.msra.mxu0 %v423
  %452 = vmatprep.subr.mxu0 0.0
  %453 = vmatpush1.msra.mxu0 %v422
  %454 = vmatprep.subr.mxu0 0.0
  %455 = vmatpush1.msra.mxu0 %v421
  %456 = vmatprep.subr.mxu0 0.0
  %457 = vmatpush1.msra.mxu0 %v420
  %458 = vmatprep.subr.mxu0 0.0
  %459 = vmatpush1.msra.mxu0 %v419
  %460 = vmatprep.subr.mxu0 0.0
  %461 = vmatpush1.msra.mxu0 %v418
  %462 = vmatprep.subr.mxu0 0.0
  %463 = vmatpush1.msra.mxu0 %v417
  %464 = vmatprep.subr.mxu0 0.0
  %465 = vmatpush1.msra.mxu0 %v416
  %466 = vmatprep.subr.mxu0 0.0
  %467 = vmatpush1.msra.mxu0 %v415
  %468 = vmatprep.subr.mxu0 0.0
  %469 = vmatpush1.msra.mxu0 %v414
  %470 = vmatprep.subr.mxu0 0.0
  %471 = vmatpush1.msra.mxu0 %v413
  %472 = vmatprep.subr.mxu0 0.0
  %473 = vmatpush1.msra.mxu0 %v412
  %474 = vmatprep.subr.mxu0 0.0
  %475 = vmatpush1.msra.mxu0 %v411
  %476 = vmatprep.subr.mxu0 0.0
  %477 = vmatpush1.msra.mxu0 %v410
  %478 = vmatprep.subr.mxu0 0.0
  %479 = vmatpush2.msra.mxu0 %v441
  %480 = vmatprep.subr.mxu0 0.0
  %481 = vmatpush2.msra.mxu0 %v440
  %482 = vmatprep.subr.mxu0 0.0
  %483 = vmatpush2.msra.mxu0 %v439
  %484 = vmatprep.subr.mxu0 0.0
  %485 = vmatpush2.msra.mxu0 %v438
  %486 = vmatprep.subr.mxu0 0.0
  %487 = vmatpush2.msra.mxu0 %v437
  %488 = vmatprep.subr.mxu0 0.0
  %489 = vmatpush2.msra.mxu0 %v436
  %490 = vmatprep.subr.mxu0 0.0
  %491 = vmatpush2.msra.mxu0 %v435
  %492 = vmatprep.subr.mxu0 0.0
  %493 = vmatpush2.msra.mxu0 %v434
  %494 = vmatprep.subr.mxu0 0.0
  %495 = vmatpush2.msra.mxu0 %v433
  %496 = vmatprep.subr.mxu0 0.0
  %497 = vmatpush2.msra.mxu0 %v432
  %498 = vmatprep.subr.mxu0 0.0
  %499 = vmatpush2.msra.mxu0 %v431
  %500 = vmatprep.subr.mxu0 0.0
  %501 = vmatpush2.msra.mxu0 %v430
  %502 = vmatprep.subr.mxu0 0.0
  %503 = vmatpush2.msra.mxu0 %v429
  %504 = vmatprep.subr.mxu0 0.0
  %505 = vmatpush2.msra.mxu0 %v428
  %506 = vmatprep.subr.mxu0 0.0
  %507 = vmatpush2.msra.mxu0 %v427
  %508 = vmatprep.subr.mxu0 0.0
  %509 = vmatpush2.msra.mxu0 %v426
  %510 = vmatprep.mubr.f32.mxu0 %v24
  %511 = vmatmul.mubr.f32.gmra.mxu0 %v23
  %v512 = vpop.f32.mrf.mxu0
  %v513 = vadd.f32 0.0, %v512
  %v514 = vpop.f32.mrf.mxu0
  %515 = vmatprep.mubr.f32.mxu0 %v27
  %516 = vmatmul.mubr.f32.gmra.mxu0 %v26
  %v517 = vpop.f32.mrf.mxu0
  %v518 = vadd.f32 0.0, %v517
  %v519 = vpop.f32.mrf.mxu0
  %520 = vdwg.mxu0
  %521 = vmatprep.subr.mxu0 0.0
  %522 = vmatpush1.msra.mxu0 0.0
  %523 = vmatprep.subr.mxu0 0.0
  %524 = vmatpush1.msra.mxu0 0.0
  %525 = vmatprep.subr.mxu0 0.0
  %526 = vmatpush1.msra.mxu0 0.0
  %527 = vmatprep.subr.mxu0 0.0
  %528 = vmatpush1.msra.mxu0 0.0
  %529 = vmatprep.subr.mxu0 0.0
  %530 = vmatpush1.msra.mxu0 0.0
  %531 = vmatprep.subr.mxu0 0.0
  %532 = vmatpush1.msra.mxu0 0.0
  %533 = vmatprep.subr.mxu0 0.0
  %534 = vmatpush1.msra.mxu0 0.0
  %535 = vmatprep.subr.mxu0 0.0
  %536 = vmatpush1.msra.mxu0 0.0
  %537 = vmatprep.subr.mxu0 0.0
  %538 = vmatpush1.msra.mxu0 0.0
  %539 = vmatprep.subr.mxu0 0.0
  %540 = vmatpush1.msra.mxu0 0.0
  %541 = vmatprep.subr.mxu0 0.0
  %542 = vmatpush1.msra.mxu0 0.0
  %543 = vmatprep.subr.mxu0 0.0
  %544 = vmatpush1.msra.mxu0 0.0
  %545 = vmatprep.subr.mxu0 0.0
  %546 = vmatpush1.msra.mxu0 %v445
  %547 = vmatprep.subr.mxu0 0.0
  %548 = vmatpush1.msra.mxu0 %v444
  %549 = vmatprep.subr.mxu0 0.0
  %550 = vmatpush1.msra.mxu0 %v443
  %551 = vmatprep.subr.mxu0 0.0
  %552 = vmatpush1.msra.mxu0 %v442
  %553 = vmatprep.subr.mxu0 0.0
  %554 = vmatpush2.msra.mxu0 0.0
  %555 = vmatprep.subr.mxu0 0.0
  %556 = vmatpush2.msra.mxu0 0.0
  %557 = vmatprep.subr.mxu0 0.0
  %558 = vmatpush2.msra.mxu0 0.0
  %559 = vmatprep.subr.mxu0 0.0
  %560 = vmatpush2.msra.mxu0 0.0
  %561 = vmatprep.subr.mxu0 0.0
  %562 = vmatpush2.msra.mxu0 0.0
  %563 = vmatprep.subr.mxu0 0.0
  %564 = vmatpush2.msra.mxu0 0.0
  %565 = vmatprep.subr.mxu0 0.0
  %566 = vmatpush2.msra.mxu0 0.0
  %567 = vmatprep.subr.mxu0 0.0
  %568 = vmatpush2.msra.mxu0 0.0
  %569 = vmatprep.subr.mxu0 0.0
  %570 = vmatpush2.msra.mxu0 0.0
  %571 = vmatprep.subr.mxu0 0.0
  %572 = vmatpush2.msra.mxu0 0.0
  %573 = vmatprep.subr.mxu0 0.0
  %574 = vmatpush2.msra.mxu0 0.0
  %575 = vmatprep.subr.mxu0 0.0
  %576 = vmatpush2.msra.mxu0 0.0
  %577 = vmatprep.subr.mxu0 0.0
  %578 = vmatpush2.msra.mxu0 0.0
  %579 = vmatprep.subr.mxu0 0.0
  %580 = vmatpush2.msra.mxu0 0.0
  %581 = vmatprep.subr.mxu0 0.0
  %582 = vmatpush2.msra.mxu0 0.0
  %583 = vmatprep.subr.mxu0 0.0
  %584 = vmatpush2.msra.mxu0 0.0
  %585 = vmatprep.mubr.f32.mxu0 0.0
  %586 = vmatmul.mubr.f32.gmra.mxu0 %v67
  %v587 = vpop.f32.mrf.mxu0
  %v588 = vadd.f32 %v513, %v587
  %v589 = vpop.f32.mrf.mxu0
  %590 = vmatprep.mubr.f32.mxu0 0.0
  %591 = vmatmul.mubr.f32.gmra.mxu0 %v70
  %v592 = vpop.f32.mrf.mxu0
  %v593 = vadd.f32 %v518, %v592
  %v594 = vpop.f32.mrf.mxu0
  %595 = vdwg.mxu0
  %v596 = vmax.f32 %v408, %v588
  %v597 = vmax.f32 %v409, %v593
  %v598 = vld [vmem:[%s3] sm:$0xff]
  %v599 = vld [vmem:[%s3 + $0x8] sm:$0xff]
  %v600 = vld [vmem:[%s3 + $0x10] sm:$0xff]
  %v601 = vld [vmem:[%s3 + $0x18] sm:$0xff]
  %v602 = vld [vmem:[%s3 + $0x20] sm:$0xff]
  %v603 = vld [vmem:[%s3 + $0x28] sm:$0xff]
  %v604 = vld [vmem:[%s3 + $0x30] sm:$0xff]
  %v605 = vld [vmem:[%s3 + $0x38] sm:$0xff]
  %v606 = vld [vmem:[%s3 + $0x40] sm:$0xff]
  %v607 = vld [vmem:[%s3 + $0x48] sm:$0xff]
  %v608 = vld [vmem:[%s3 + $0x50] sm:$0xff]
  %v609 = vld [vmem:[%s3 + $0x58] sm:$0xff]
  %v610 = vld [vmem:[%s3 + $0x60] sm:$0xff]
  %v611 = vld [vmem:[%s3 + $0x68] sm:$0xff]
  %v612 = vld [vmem:[%s3 + $0x70] sm:$0xff]
  %v613 = vld [vmem:[%s3 + $0x78] sm:$0xff]
  %v614 = vld [vmem:[%s3 + $0x80] sm:$0xff]
  %v615 = vld [vmem:[%s3 + $0x88] sm:$0xff]
  %v616 = vld [vmem:[%s3 + $0x90] sm:$0xff]
  %v617 = vld [vmem:[%s3 + $0x98] sm:$0xff]
  %v618 = vld [vmem:[%s3 + $0xa0] sm:$0xff]
  %v619 = vld [vmem:[%s3 + $0xa8] sm:$0xff]
  %v620 = vld [vmem:[%s3 + $0xb0] sm:$0xff]
  %v621 = vld [vmem:[%s3 + $0xb8] sm:$0xff]
  %v622 = vld [vmem:[%s3 + $0xc0] sm:$0xff]
  %v623 = vld [vmem:[%s3 + $0xc8] sm:$0xff]
  %v624 = vld [vmem:[%s3 + $0xd0] sm:$0xff]
  %v625 = vld [vmem:[%s3 + $0xd8] sm:$0xff]
  %v626 = vld [vmem:[%s3 + $0xe0] sm:$0xff]
  %v627 = vld [vmem:[%s3 + $0xe8] sm:$0xff]
  %v628 = vld [vmem:[%s3 + $0xf0] sm:$0xff]
  %v629 = vld [vmem:[%s3 + $0xf8] sm:$0xff]
  %v630 = vld [vmem:[%s3 + $0x100] sm:$0xff]
  %v631 = vld [vmem:[%s3 + $0x108] sm:$0xff]
  %v632 = vld [vmem:[%s3 + $0x110] sm:$0xff]
  %v633 = vld [vmem:[%s3 + $0x118] sm:$0xff]
  %634 = vmatprep.subr.mxu0 0.0
  %635 = vmatpush1.msra.mxu0 %v613
  %636 = vmatprep.subr.mxu0 0.0
  %637 = vmatpush1.msra.mxu0 %v612
  %638 = vmatprep.subr.mxu0 0.0
  %639 = vmatpush1.msra.mxu0 %v611
  %640 = vmatprep.subr.mxu0 0.0
  %641 = vmatpush1.msra.mxu0 %v610
  %642 = vmatprep.subr.mxu0 0.0
  %643 = vmatpush1.msra.mxu0 %v609
  %644 = vmatprep.subr.mxu0 0.0
  %645 = vmatpush1.msra.mxu0 %v608
  %646 = vmatprep.subr.mxu0 0.0
  %647 = vmatpush1.msra.mxu0 %v607
  %648 = vmatprep.subr.mxu0 0.0
  %649 = vmatpush1.msra.mxu0 %v606
  %650 = vmatprep.subr.mxu0 0.0
  %651 = vmatpush1.msra.mxu0 %v605
  %652 = vmatprep.subr.mxu0 0.0
  %653 = vmatpush1.msra.mxu0 %v604
  %654 = vmatprep.subr.mxu0 0.0
  %655 = vmatpush1.msra.mxu0 %v603
  %656 = vmatprep.subr.mxu0 0.0
  %657 = vmatpush1.msra.mxu0 %v602
  %658 = vmatprep.subr.mxu0 0.0
  %659 = vmatpush1.msra.mxu0 %v601
  %660 = vmatprep.subr.mxu0 0.0
  %661 = vmatpush1.msra.mxu0 %v600
  %662 = vmatprep.subr.mxu0 0.0
  %663 = vmatpush1.msra.mxu0 %v599
  %664 = vmatprep.subr.mxu0 0.0
  %665 = vmatpush1.msra.mxu0 %v598
  %666 = vmatprep.subr.mxu0 0.0
  %667 = vmatpush2.msra.mxu0 %v629
  %668 = vmatprep.subr.mxu0 0.0
  %669 = vmatpush2.msra.mxu0 %v628
  %670 = vmatprep.subr.mxu0 0.0
  %671 = vmatpush2.msra.mxu0 %v627
  %672 = vmatprep.subr.mxu0 0.0
  %673 = vmatpush2.msra.mxu0 %v626
  %674 = vmatprep.subr.mxu0 0.0
  %675 = vmatpush2.msra.mxu0 %v625
  %676 = vmatprep.subr.mxu0 0.0
  %677 = vmatpush2.msra.mxu0 %v624
  %678 = vmatprep.subr.mxu0 0.0
  %679 = vmatpush2.msra.mxu0 %v623
  %680 = vmatprep.subr.mxu0 0.0
  %681 = vmatpush2.msra.mxu0 %v622
  %682 = vmatprep.subr.mxu0 0.0
  %683 = vmatpush2.msra.mxu0 %v621
  %684 = vmatprep.subr.mxu0 0.0
  %685 = vmatpush2.msra.mxu0 %v620
  %686 = vmatprep.subr.mxu0 0.0
  %687 = vmatpush2.msra.mxu0 %v619
  %688 = vmatprep.subr.mxu0 0.0
  %689 = vmatpush2.msra.mxu0 %v618
  %690 = vmatprep.subr.mxu0 0.0
  %691 = vmatpush2.msra.mxu0 %v617
  %692 = vmatprep.subr.mxu0 0.0
  %693 = vmatpush2.msra.mxu0 %v616
  %694 = vmatprep.subr.mxu0 0.0
  %695 = vmatpush2.msra.mxu0 %v615
  %696 = vmatprep.subr.mxu0 0.0
  %697 = vmatpush2.msra.mxu0 %v614
  %698 = vmatprep.mubr.f32.mxu0 %v24
  %699 = vmatmul.mubr.f32.gmra.mxu0 %v23
  %v700 = vpop.f32.mrf.mxu0
  %v701 = vadd.f32 0.0, %v700
  %v702 = vpop.f32.mrf.mxu0
  %703 = vmatprep.mubr.f32.mxu0 %v27
  %704 = vmatmul.mubr.f32.gmra.mxu0 %v26
  %v705 = vpop.f32.mrf.mxu0
  %v706 = vadd.f32 0.0, %v705
  %v707 = vpop.f32.mrf.mxu0
  %708 = vdwg.mxu0
  %709 = vmatprep.subr.mxu0 0.0
  %710 = vmatpush1.msra.mxu0 0.0
  %711 = vmatprep.subr.mxu0 0.0
  %712 = vmatpush1.msra.mxu0 0.0
  %713 = vmatprep.subr.mxu0 0.0
  %714 = vmatpush1.msra.mxu0 0.0
  %715 = vmatprep.subr.mxu0 0.0
  %716 = vmatpush1.msra.mxu0 0.0
  %717 = vmatprep.subr.mxu0 0.0
  %718 = vmatpush1.msra.mxu0 0.0
  %719 = vmatprep.subr.mxu0 0.0
  %720 = vmatpush1.msra.mxu0 0.0
  %721 = vmatprep.subr.mxu0 0.0
  %722 = vmatpush1.msra.mxu0 0.0
  %723 = vmatprep.subr.mxu0 0.0
  %724 = vmatpush1.msra.mxu0 0.0
  %725 = vmatprep.subr.mxu0 0.0
  %726 = vmatpush1.msra.mxu0 0.0
  %727 = vmatprep.subr.mxu0 0.0
  %728 = vmatpush1.msra.mxu0 0.0
  %729 = vmatprep.subr.mxu0 0.0
  %730 = vmatpush1.msra.mxu0 0.0
  %731 = vmatprep.subr.mxu0 0.0
  %732 = vmatpush1.msra.mxu0 0.0
  %733 = vmatprep.subr.mxu0 0.0
  %734 = vmatpush1.msra.mxu0 %v633
  %735 = vmatprep.subr.mxu0 0.0
  %736 = vmatpush1.msra.mxu0 %v632
  %737 = vmatprep.subr.mxu0 0.0
  %738 = vmatpush1.msra.mxu0 %v631
  %739 = vmatprep.subr.mxu0 0.0
  %740 = vmatpush1.msra.mxu0 %v630
  %741 = vmatprep.subr.mxu0 0.0
  %742 = vmatpush2.msra.mxu0 0.0
  %743 = vmatprep.subr.mxu0 0.0
  %744 = vmatpush2.msra.mxu0 0.0
  %745 = vmatprep.subr.mxu0 0.0
  %746 = vmatpush2.msra.mxu0 0.0
  %747 = vmatprep.subr.mxu0 0.0
  %748 = vmatpush2.msra.mxu0 0.0
  %749 = vmatprep.subr.mxu0 0.0
  %750 = vmatpush2.msra.mxu0 0.0
  %751 = vmatprep.subr.mxu0 0.0
  %752 = vmatpush2.msra.mxu0 0.0
  %753 = vmatprep.subr.mxu0 0.0
  %754 = vmatpush2.msra.mxu0 0.0
  %755 = vmatprep.subr.mxu0 0.0
  %756 = vmatpush2.msra.mxu0 0.0
  %757 = vmatprep.subr.mxu0 0.0
  %758 = vmatpush2.msra.mxu0 0.0
  %759 = vmatprep.subr.mxu0 0.0
  %760 = vmatpush2.msra.mxu0 0.0
  %761 = vmatprep.subr.mxu0 0.0
  %762 = vmatpush2.msra.mxu0 0.0
  %763 = vmatprep.subr.mxu0 0.0
  %764 = vmatpush2.msra.mxu0 0.0
  %765 = vmatprep.subr.mxu0 0.0
  %766 = vmatpush2.msra.mxu0 0.0
  %767 = vmatprep.subr.mxu0 0.0
  %768 = vmatpush2.msra.mxu0 0.0
  %769 = vmatprep.subr.mxu0 0.0
  %770 = vmatpush2.msra.mxu0 0.0
  %771 = vmatprep.subr.mxu0 0.0
  %772 = vmatpush2.msra.mxu0 0.0
  %773 = vmatprep.mubr.f32.mxu0 0.0
  %774 = vmatmul.mubr.f32.gmra.mxu0 %v67
  %v775 = vpop.f32.mrf.mxu0
  %v776 = vadd.f32 %v701, %v775
  %v777 = vpop.f32.mrf.mxu0
  %778 = vmatprep.mubr.f32.mxu0 0.0
  %779 = vmatmul.mubr.f32.gmra.mxu0 %v70
  %v780 = vpop.f32.mrf.mxu0
  %v781 = vadd.f32 %v706, %v780
  %v782 = vpop.f32.mrf.mxu0
  %783 = vdwg.mxu0
  %v784 = vmax.f32 %v596, %v776
  %v785 = vmax.f32 %v597, %v781
  %v786 = vld [vmem:[%s5] sm:$0xff]
  %v787 = vld [vmem:[%s5 + $0x8] sm:$0xff]
  %789 = vset.pattern.permute.xlu0 0
  %790 = vperm.xlu0 %789, %v786
  %v791 = vpop.permute.xlu0 %790
  %794 = vset.pattern.permute.xlu0 0
  %795 = vperm.xlu0 %794, %v787
  %v796 = vpop.permute.xlu0 %795
  %v798 = vadd.f32 %v784, %v791
  %v799 = vadd.f32 %v785, %v796
  %v800 = vmax.f32 %v798, 0.0
  %v801 = vmax.f32 %v799, 0.0
  %802 = vst [vmem:[%s6] sm:$0xff] %v800
  %803 = vst [vmem:[%s6 + $0x8] sm:$0xff] %v801
  // Predicated region
  $region26: #{agent_forward.6} parent=0 // pred_check
    _
  $region27: #{agent_forward.6} parent=0 // pred_check_branch
    %805 = sbr.rel (0) target = $region29
  $region28: #{agent_forward.6} parent=0 // pred_region
    _
  $region29: #{agent_forward.6} parent=0 // pred_fallthru
    _
  // Predicated region
  $region30: #{agent_forward.6} parent=0 // pred_check
    _
  $region31: #{agent_forward.6} parent=0 // pred_check_branch
    %807 = sbr.rel (0) target = $region33
  $region32: #{agent_forward.6} parent=0 // pred_region
    _
  $region33: #{agent_forward.6} parent=0 // pred_fallthru
    _

// kernel: agent_forward.7
$region0: #{agent_forward.7}
  #allocation0 [shape = 'u32[]', space=smem, size = 0x4, offset = 0x4, fixed_abs, tag = 'smem constant byte address 0x4 - core index']
  #allocation1 [shape = 'u32[144,128]{1,0:T(1,128)}', space=vmem, size = 0x12000, scoped, tag = 'internal scratch']
  %s0 = inlined_call_operand.vmem [shape: f32[2,1024], index: 0, kind: input, shape index: {}]
  %s1 = inlined_call_operand.vmem [shape: f32[1024,768], index: 1, kind: input, shape index: {}]
  %s2 = inlined_call_operand.vmem [shape: f32[1,768], index: 2, kind: input, shape index: {}]
  %s3 = inlined_call_operand.vmem [shape: f32[768,64], index: 3, kind: input, shape index: {}]
  %s4 = inlined_call_operand.vmem [shape: f32[1,64], index: 4, kind: input, shape index: {}]
  %s5 = inlined_call_operand.vmem [shape: f32[64,16], index: 5, kind: input, shape index: {}]
  %s6 = inlined_call_operand.vmem [shape: f32[1,16], index: 6, kind: input, shape index: {}]
  %s7 = inlined_call_operand.vmem [shape: f32[16,3], index: 7, kind: input, shape index: {}]
  %s8 = inlined_call_operand.vmem [shape: f32[1,3], index: 8, kind: input, shape index: {}]
  %s9 = inlined_call_operand.hbm [shape: f32[2,3], index: 9, kind: output, shape index: {}]
  %s10 = sld [smem:[#allocation0]]
  $region46: #{agent_forward.7} parent=0
    _
  %s12 = ssub.s32 1, %s10
  %s13 = scalar_select 0, %s12, %s10
  $region1: #{agent_forward.7} parent=0
    #allocation2 [shape = 'u8[1024]{0}', space=vmem, size = 0x400, scoped, tag = 'output window, operand 0, single buffered']
    #allocation3 [shape = 's32[1]{0}', space=sflag, size = 0x4, scoped, tag = 'scoped memory for agent_forward.7']
    %14 = vsyncpa [#allocation3], 0
    // Predicated region
    $region2: #{agent_forward.7} parent=1 // pred_check
      _
    $region3: #{agent_forward.7} parent=1 // pred_check_branch
      %16 = sbr.rel (0) target = $region5
    $region4: #{agent_forward.7} parent=1 // pred_region
      _
    $region5: #{agent_forward.7} parent=1 // pred_fallthru
      _
    // Predicated region
    $region6: #{agent_forward.7} parent=1 // pred_check
      _
    $region7: #{agent_forward.7} parent=1 // pred_check_branch
      %18 = sbr.rel (0) target = $region9
    $region8: #{agent_forward.7} parent=1 // pred_region
      _
    $region9: #{agent_forward.7} parent=1 // pred_fallthru
      _
    // Predicated region
    $region10: #{agent_forward.7} parent=1 // pred_check
      _
    $region11: #{agent_forward.7} parent=1 // pred_check_branch
      %20 = sbr.rel (0) target = $region13
    $region12: #{agent_forward.7} parent=1 // pred_region
      _
    $region13: #{agent_forward.7} parent=1 // pred_fallthru
      _
    // Predicated region
    $region14: #{agent_forward.7} parent=1 // pred_check
      _
    $region15: #{agent_forward.7} parent=1 // pred_check_branch
      %22 = sbr.rel (0) target = $region17
    $region16: #{agent_forward.7} parent=1 // pred_region
      _
    $region17: #{agent_forward.7} parent=1 // pred_fallthru
      _
    // Predicated region
    $region18: #{agent_forward.7} parent=1 // pred_check
      _
    $region19: #{agent_forward.7} parent=1 // pred_check_branch
      %24 = sbr.rel (0) target = $region21
    $region20: #{agent_forward.7} parent=1 // pred_region
      _
    $region21: #{agent_forward.7} parent=1 // pred_fallthru
      _
    // Predicated region
    $region22: #{agent_forward.7} parent=1 // pred_check
      _
    $region23: #{agent_forward.7} parent=1 // pred_check_branch
      %26 = sbr.rel (0) target = $region25
    $region24: #{agent_forward.7} parent=1 // pred_region
      _
    $region25: #{agent_forward.7} parent=1 // pred_fallthru
      _
    // Predicated region
    $region26: #{agent_forward.7} parent=1 // pred_check
      _
    $region27: #{agent_forward.7} parent=1 // pred_check_branch
      %28 = sbr.rel (0) target = $region29
    $region28: #{agent_forward.7} parent=1 // pred_region
      _
    $region29: #{agent_forward.7} parent=1 // pred_fallthru
      _
    // Predicated region
    $region30: #{agent_forward.7} parent=1 // pred_check
      _
    $region31: #{agent_forward.7} parent=1 // pred_check_branch
      %30 = sbr.rel (0) target = $region33
    $region32: #{agent_forward.7} parent=1 // pred_region
      _
    $region33: #{agent_forward.7} parent=1 // pred_fallthru
      _
    // Predicated region
    $region34: #{agent_forward.7} parent=1 // pred_check
      _
    $region35: #{agent_forward.7} parent=1 // pred_check_branch
      %32 = sbr.rel (0) target = $region37
    $region36: #{agent_forward.7} parent=1 // pred_region
      _
    $region37: #{agent_forward.7} parent=1 // pred_fallthru
      _
    %v33 = vld [vmem:[%s0] sm:$0xff]
    %v34 = vld [vmem:[%s0 + $0x8] sm:$0xff]
    %v35 = vld [vmem:[%s1] sm:$0xff]
    %v36 = vld [vmem:[%s1 + $0x8] sm:$0xff]
    %v37 = vld [vmem:[%s1 + $0x10] sm:$0xff]
    %v38 = vld [vmem:[%s1 + $0x18] sm:$0xff]
    %v39 = vld [vmem:[%s1 + $0x20] sm:$0xff]
    %v40 = vld [vmem:[%s1 + $0x28] sm:$0xff]
    %v41 = vld [vmem:[%s1 + $0x30] sm:$0xff]
    %v42 = vld [vmem:[%s1 + $0x38] sm:$0xff]
    %v43 = vld [vmem:[%s1 + $0x40] sm:$0xff]
    %v44 = vld [vmem:[%s1 + $0x48] sm:$0xff]
    %v45 = vld [vmem:[%s1 + $0x50] sm:$0xff]
    %v46 = vld [vmem:[%s1 + $0x58] sm:$0xff]
    %v47 = vld [vmem:[%s1 + $0x60] sm:$0xff]
    %v48 = vld [vmem:[%s1 + $0x68] sm:$0xff]
    %v49 = vld [vmem:[%s1 + $0x70] sm:$0xff]
    %v50 = vld [vmem:[%s1 + $0x78] sm:$0xff]
    %v51 = vld [vmem:[%s1 + $0x80] sm:$0xff]
    %v52 = vld [vmem:[%s1 + $0x88] sm:$0xff]
    %v53 = vld [vmem:[%s1 + $0x90] sm:$0xff]
    %v54 = vld [vmem:[%s1 + $0x98] sm:$0xff]
    %v55 = vld [vmem:[%s1 + $0xa0] sm:$0xff]
    %v56 = vld [vmem:[%s1 + $0xa8] sm:$0xff]
    %v57 = vld [vmem:[%s1 + $0xb0] sm:$0xff]
    %v58 = vld [vmem:[%s1 + $0xb8] sm:$0xff]
    %v59 = vld [vmem:[%s1 + $0xc0] sm:$0xff]
    %v60 = vld [vmem:[%s1 + $0xc8] sm:$0xff]
    %v61 = vld [vmem:[%s1 + $0xd0] sm:$0xff]
    %v62 = vld [vmem:[%s1 + $0xd8] sm:$0xff]
    %v63 = vld [vmem:[%s1 + $0xe0] sm:$0xff]
    %v64 = vld [vmem:[%s1 + $0xe8] sm:$0xff]
    %v65 = vld [vmem:[%s1 + $0xf0] sm:$0xff]
    %v66 = vld [vmem:[%s1 + $0xf8] sm:$0xff]
    %v67 = vld [vmem:[%s1 + $0x100] sm:$0xff]
    %v68 = vld [vmem:[%s1 + $0x108] sm:$0xff]
    %v69 = vld [vmem:[%s1 + $0x110] sm:$0xff]
    %v70 = vld [vmem:[%s1 + $0x118] sm:$0xff]
    %v71 = vld [vmem:[%s1 + $0x120] sm:$0xff]
    %v72 = vld [vmem:[%s1 + $0x128] sm:$0xff]
    %v73 = vld [vmem:[%s1 + $0x130] sm:$0xff]
    %v74 = vld [vmem:[%s1 + $0x138] sm:$0xff]
    %v75 = vld [vmem:[%s1 + $0x140] sm:$0xff]
    %v76 = vld [vmem:[%s1 + $0x148] sm:$0xff]
    %v77 = vld [vmem:[%s1 + $0x150] sm:$0xff]
    %v78 = vld [vmem:[%s1 + $0x158] sm:$0xff]
    %v79 = vld [vmem:[%s1 + $0x160] sm:$0xff]
    %v80 = vld [vmem:[%s1 + $0x168] sm:$0xff]
    %v81 = vld [vmem:[%s1 + $0x170] sm:$0xff]
    %v82 = vld [vmem:[%s1 + $0x178] sm:$0xff]
    %v83 = vld [vmem:[%s1 + $0x180] sm:$0xff]
    %v84 = vld [vmem:[%s1 + $0x188] sm:$0xff]
    %v85 = vld [vmem:[%s1 + $0x190] sm:$0xff]
    %v86 = vld [vmem:[%s1 + $0x198] sm:$0xff]
    %v87 = vld [vmem:[%s1 + $0x1a0] sm:$0xff]
    %v88 = vld [vmem:[%s1 + $0x1a8] sm:$0xff]
    %v89 = vld [vmem:[%s1 + $0x1b0] sm:$0xff]
    %v90 = vld [vmem:[%s1 + $0x1b8] sm:$0xff]
    %v91 = vld [vmem:[%s1 + $0x1c0] sm:$0xff]
    %v92 = vld [vmem:[%s1 + $0x1c8] sm:$0xff]
    %v93 = vld [vmem:[%s1 + $0x1d0] sm:$0xff]
    %v94 = vld [vmem:[%s1 + $0x1d8] sm:$0xff]
    %v95 = vld [vmem:[%s1 + $0x1e0] sm:$0xff]
    %v96 = vld [vmem:[%s1 + $0x1e8] sm:$0xff]
    %v97 = vld [vmem:[%s1 + $0x1f0] sm:$0xff]
    %v98 = vld [vmem:[%s1 + $0x1f8] sm:$0xff]
    %v99 = vld [vmem:[%s1 + $0x200] sm:$0xff]
    %v100 = vld [vmem:[%s1 + $0x208] sm:$0xff]
    %v101 = vld [vmem:[%s1 + $0x210] sm:$0xff]
    %v102 = vld [vmem:[%s1 + $0x218] sm:$0xff]
    %v103 = vld [vmem:[%s1 + $0x220] sm:$0xff]
    %v104 = vld [vmem:[%s1 + $0x228] sm:$0xff]
    %v105 = vld [vmem:[%s1 + $0x230] sm:$0xff]
    %v106 = vld [vmem:[%s1 + $0x238] sm:$0xff]
    %v107 = vld [vmem:[%s1 + $0x240] sm:$0xff]
    %v108 = vld [vmem:[%s1 + $0x248] sm:$0xff]
    %v109 = vld [vmem:[%s1 + $0x250] sm:$0xff]
    %v110 = vld [vmem:[%s1 + $0x258] sm:$0xff]
    %v111 = vld [vmem:[%s1 + $0x260] sm:$0xff]
    %v112 = vld [vmem:[%s1 + $0x268] sm:$0xff]
    %v113 = vld [vmem:[%s1 + $0x270] sm:$0xff]
    %v114 = vld [vmem:[%s1 + $0x278] sm:$0xff]
    %v115 = vld [vmem:[%s1 + $0x280] sm:$0xff]
    %v116 = vld [vmem:[%s1 + $0x288] sm:$0xff]
    %v117 = vld [vmem:[%s1 + $0x290] sm:$0xff]
    %v118 = vld [vmem:[%s1 + $0x298] sm:$0xff]
    %v119 = vld [vmem:[%s1 + $0x2a0] sm:$0xff]
    %v120 = vld [vmem:[%s1 + $0x2a8] sm:$0xff]
    %v121 = vld [vmem:[%s1 + $0x2b0] sm:$0xff]
    %v122 = vld [vmem:[%s1 + $0x2b8] sm:$0xff]
    %v123 = vld [vmem:[%s1 + $0x2c0] sm:$0xff]
    %v124 = vld [vmem:[%s1 + $0x2c8] sm:$0xff]
    %v125 = vld [vmem:[%s1 + $0x2d0] sm:$0xff]
    %v126 = vld [vmem:[%s1 + $0x2d8] sm:$0xff]
    %v127 = vld [vmem:[%s1 + $0x2e0] sm:$0xff]
    %v128 = vld [vmem:[%s1 + $0x2e8] sm:$0xff]
    %v129 = vld [vmem:[%s1 + $0x2f0] sm:$0xff]
    %v130 = vld [vmem:[%s1 + $0x2f8] sm:$0xff]
    %v131 = vld [vmem:[%s1 + $0x300] sm:$0xff]
    %v132 = vld [vmem:[%s1 + $0x308] sm:$0xff]
    %v133 = vld [vmem:[%s1 + $0x310] sm:$0xff]
    %v134 = vld [vmem:[%s1 + $0x318] sm:$0xff]
    %v135 = vld [vmem:[%s1 + $0x320] sm:$0xff]
    %v136 = vld [vmem:[%s1 + $0x328] sm:$0xff]
    %v137 = vld [vmem:[%s1 + $0x330] sm:$0xff]
    %v138 = vld [vmem:[%s1 + $0x338] sm:$0xff]
    %v139 = vld [vmem:[%s1 + $0x340] sm:$0xff]
    %v140 = vld [vmem:[%s1 + $0x348] sm:$0xff]
    %v141 = vld [vmem:[%s1 + $0x350] sm:$0xff]
    %v142 = vld [vmem:[%s1 + $0x358] sm:$0xff]
    %v143 = vld [vmem:[%s1 + $0x360] sm:$0xff]
    %v144 = vld [vmem:[%s1 + $0x368] sm:$0xff]
    %v145 = vld [vmem:[%s1 + $0x370] sm:$0xff]
    %v146 = vld [vmem:[%s1 + $0x378] sm:$0xff]
    %v147 = vld [vmem:[%s1 + $0x380] sm:$0xff]
    %v148 = vld [vmem:[%s1 + $0x388] sm:$0xff]
    %v149 = vld [vmem:[%s1 + $0x390] sm:$0xff]
    %v150 = vld [vmem:[%s1 + $0x398] sm:$0xff]
    %v151 = vld [vmem:[%s1 + $0x3a0] sm:$0xff]
    %v152 = vld [vmem:[%s1 + $0x3a8] sm:$0xff]
    %v153 = vld [vmem:[%s1 + $0x3b0] sm:$0xff]
    %v154 = vld [vmem:[%s1 + $0x3b8] sm:$0xff]
    %v155 = vld [vmem:[%s1 + $0x3c0] sm:$0xff]
    %v156 = vld [vmem:[%s1 + $0x3c8] sm:$0xff]
    %v157 = vld [vmem:[%s1 + $0x3d0] sm:$0xff]
    %v158 = vld [vmem:[%s1 + $0x3d8] sm:$0xff]
    %v159 = vld [vmem:[%s1 + $0x3e0] sm:$0xff]
    %v160 = vld [vmem:[%s1 + $0x3e8] sm:$0xff]
    %v161 = vld [vmem:[%s1 + $0x3f0] sm:$0xff]
    %v162 = vld [vmem:[%s1 + $0x3f8] sm:$0xff]
    %v163 = vld [vmem:[%s1 + $0x400] sm:$0xff]
    %v164 = vld [vmem:[%s1 + $0x408] sm:$0xff]
    %v165 = vld [vmem:[%s1 + $0x410] sm:$0xff]
    %v166 = vld [vmem:[%s1 + $0x418] sm:$0xff]
    %v167 = vld [vmem:[%s1 + $0x420] sm:$0xff]
    %v168 = vld [vmem:[%s1 + $0x428] sm:$0xff]
    %v169 = vld [vmem:[%s1 + $0x430] sm:$0xff]
    %v170 = vld [vmem:[%s1 + $0x438] sm:$0xff]
    %v171 = vld [vmem:[%s1 + $0x440] sm:$0xff]
    %v172 = vld [vmem:[%s1 + $0x448] sm:$0xff]
    %v173 = vld [vmem:[%s1 + $0x450] sm:$0xff]
    %v174 = vld [vmem:[%s1 + $0x458] sm:$0xff]
    %v175 = vld [vmem:[%s1 + $0x460] sm:$0xff]
    %v176 = vld [vmem:[%s1 + $0x468] sm:$0xff]
    %v177 = vld [vmem:[%s1 + $0x470] sm:$0xff]
    %v178 = vld [vmem:[%s1 + $0x478] sm:$0xff]
    %v179 = vld [vmem:[%s1 + $0x480] sm:$0xff]
    %v180 = vld [vmem:[%s1 + $0x488] sm:$0xff]
    %v181 = vld [vmem:[%s1 + $0x490] sm:$0xff]
    %v182 = vld [vmem:[%s1 + $0x498] sm:$0xff]
    %v183 = vld [vmem:[%s1 + $0x4a0] sm:$0xff]
    %v184 = vld [vmem:[%s1 + $0x4a8] sm:$0xff]
    %v185 = vld [vmem:[%s1 + $0x4b0] sm:$0xff]
    %v186 = vld [vmem:[%s1 + $0x4b8] sm:$0xff]
    %v187 = vld [vmem:[%s1 + $0x4c0] sm:$0xff]
    %v188 = vld [vmem:[%s1 + $0x4c8] sm:$0xff]
    %v189 = vld [vmem:[%s1 + $0x4d0] sm:$0xff]
    %v190 = vld [vmem:[%s1 + $0x4d8] sm:$0xff]
    %v191 = vld [vmem:[%s1 + $0x4e0] sm:$0xff]
    %v192 = vld [vmem:[%s1 + $0x4e8] sm:$0xff]
    %v193 = vld [vmem:[%s1 + $0x4f0] sm:$0xff]
    %v194 = vld [vmem:[%s1 + $0x4f8] sm:$0xff]
    %v195 = vld [vmem:[%s1 + $0x500] sm:$0xff]
    %v196 = vld [vmem:[%s1 + $0x508] sm:$0xff]
    %v197 = vld [vmem:[%s1 + $0x510] sm:$0xff]
    %v198 = vld [vmem:[%s1 + $0x518] sm:$0xff]
    %v199 = vld [vmem:[%s1 + $0x520] sm:$0xff]
    %v200 = vld [vmem:[%s1 + $0x528] sm:$0xff]
    %v201 = vld [vmem:[%s1 + $0x530] sm:$0xff]
    %v202 = vld [vmem:[%s1 + $0x538] sm:$0xff]
    %v203 = vld [vmem:[%s1 + $0x540] sm:$0xff]
    %v204 = vld [vmem:[%s1 + $0x548] sm:$0xff]
    %v205 = vld [vmem:[%s1 + $0x550] sm:$0xff]
    %v206 = vld [vmem:[%s1 + $0x558] sm:$0xff]
    %v207 = vld [vmem:[%s1 + $0x560] sm:$0xff]
    %v208 = vld [vmem:[%s1 + $0x568] sm:$0xff]
    %v209 = vld [vmem:[%s1 + $0x570] sm:$0xff]
    %v210 = vld [vmem:[%s1 + $0x578] sm:$0xff]
    %v211 = vld [vmem:[%s1 + $0x580] sm:$0xff]
    %v212 = vld [vmem:[%s1 + $0x588] sm:$0xff]
    %v213 = vld [vmem:[%s1 + $0x590] sm:$0xff]
    %v214 = vld [vmem:[%s1 + $0x598] sm:$0xff]
    %v215 = vld [vmem:[%s1 + $0x5a0] sm:$0xff]
    %v216 = vld [vmem:[%s1 + $0x5a8] sm:$0xff]
    %v217 = vld [vmem:[%s1 + $0x5b0] sm:$0xff]
    %v218 = vld [vmem:[%s1 + $0x5b8] sm:$0xff]
    %v219 = vld [vmem:[%s1 + $0x5c0] sm:$0xff]
    %v220 = vld [vmem:[%s1 + $0x5c8] sm:$0xff]
    %v221 = vld [vmem:[%s1 + $0x5d0] sm:$0xff]
    %v222 = vld [vmem:[%s1 + $0x5d8] sm:$0xff]
    %v223 = vld [vmem:[%s1 + $0x5e0] sm:$0xff]
    %v224 = vld [vmem:[%s1 + $0x5e8] sm:$0xff]
    %v225 = vld [vmem:[%s1 + $0x5f0] sm:$0xff]
    %v226 = vld [vmem:[%s1 + $0x5f8] sm:$0xff]
    %v227 = vld [vmem:[%s1 + $0x600] sm:$0xff]
    %v228 = vld [vmem:[%s1 + $0x608] sm:$0xff]
    %v229 = vld [vmem:[%s1 + $0x610] sm:$0xff]
    %v230 = vld [vmem:[%s1 + $0x618] sm:$0xff]
    %v231 = vld [vmem:[%s1 + $0x620] sm:$0xff]
    %v232 = vld [vmem:[%s1 + $0x628] sm:$0xff]
    %v233 = vld [vmem:[%s1 + $0x630] sm:$0xff]
    %v234 = vld [vmem:[%s1 + $0x638] sm:$0xff]
    %v235 = vld [vmem:[%s1 + $0x640] sm:$0xff]
    %v236 = vld [vmem:[%s1 + $0x648] sm:$0xff]
    %v237 = vld [vmem:[%s1 + $0x650] sm:$0xff]
    %v238 = vld [vmem:[%s1 + $0x658] sm:$0xff]
    %v239 = vld [vmem:[%s1 + $0x660] sm:$0xff]
    %v240 = vld [vmem:[%s1 + $0x668] sm:$0xff]
    %v241 = vld [vmem:[%s1 + $0x670] sm:$0xff]
    %v242 = vld [vmem:[%s1 + $0x678] sm:$0xff]
    %v243 = vld [vmem:[%s1 + $0x680] sm:$0xff]
    %v244 = vld [vmem:[%s1 + $0x688] sm:$0xff]
    %v245 = vld [vmem:[%s1 + $0x690] sm:$0xff]
    %v246 = vld [vmem:[%s1 + $0x698] sm:$0xff]
    %v247 = vld [vmem:[%s1 + $0x6a0] sm:$0xff]
    %v248 = vld [vmem:[%s1 + $0x6a8] sm:$0xff]
    %v249 = vld [vmem:[%s1 + $0x6b0] sm:$0xff]
    %v250 = vld [vmem:[%s1 + $0x6b8] sm:$0xff]
    %v251 = vld [vmem:[%s1 + $0x6c0] sm:$0xff]
    %v252 = vld [vmem:[%s1 + $0x6c8] sm:$0xff]
    %v253 = vld [vmem:[%s1 + $0x6d0] sm:$0xff]
    %v254 = vld [vmem:[%s1 + $0x6d8] sm:$0xff]
    %v255 = vld [vmem:[%s1 + $0x6e0] sm:$0xff]
    %v256 = vld [vmem:[%s1 + $0x6e8] sm:$0xff]
    %v257 = vld [vmem:[%s1 + $0x6f0] sm:$0xff]
    %v258 = vld [vmem:[%s1 + $0x6f8] sm:$0xff]
    %v259 = vld [vmem:[%s1 + $0x700] sm:$0xff]
    %v260 = vld [vmem:[%s1 + $0x708] sm:$0xff]
    %v261 = vld [vmem:[%s1 + $0x710] sm:$0xff]
    %v262 = vld [vmem:[%s1 + $0x718] sm:$0xff]
    %v263 = vld [vmem:[%s1 + $0x720] sm:$0xff]
    %v264 = vld [vmem:[%s1 + $0x728] sm:$0xff]
    %v265 = vld [vmem:[%s1 + $0x730] sm:$0xff]
    %v266 = vld [vmem:[%s1 + $0x738] sm:$0xff]
    %v267 = vld [vmem:[%s1 + $0x740] sm:$0xff]
    %v268 = vld [vmem:[%s1 + $0x748] sm:$0xff]
    %v269 = vld [vmem:[%s1 + $0x750] sm:$0xff]
    %v270 = vld [vmem:[%s1 + $0x758] sm:$0xff]
    %v271 = vld [vmem:[%s1 + $0x760] sm:$0xff]
    %v272 = vld [vmem:[%s1 + $0x768] sm:$0xff]
    %v273 = vld [vmem:[%s1 + $0x770] sm:$0xff]
    %v274 = vld [vmem:[%s1 + $0x778] sm:$0xff]
    %v275 = vld [vmem:[%s1 + $0x780] sm:$0xff]
    %v276 = vld [vmem:[%s1 + $0x788] sm:$0xff]
    %v277 = vld [vmem:[%s1 + $0x790] sm:$0xff]
    %v278 = vld [vmem:[%s1 + $0x798] sm:$0xff]
    %v279 = vld [vmem:[%s1 + $0x7a0] sm:$0xff]
    %v280 = vld [vmem:[%s1 + $0x7a8] sm:$0xff]
    %v281 = vld [vmem:[%s1 + $0x7b0] sm:$0xff]
    %v282 = vld [vmem:[%s1 + $0x7b8] sm:$0xff]
    %v283 = vld [vmem:[%s1 + $0x7c0] sm:$0xff]
    %v284 = vld [vmem:[%s1 + $0x7c8] sm:$0xff]
    %v285 = vld [vmem:[%s1 + $0x7d0] sm:$0xff]
    %v286 = vld [vmem:[%s1 + $0x7d8] sm:$0xff]
    %v287 = vld [vmem:[%s1 + $0x7e0] sm:$0xff]
    %v288 = vld [vmem:[%s1 + $0x7e8] sm:$0xff]
    %v289 = vld [vmem:[%s1 + $0x7f0] sm:$0xff]
    %v290 = vld [vmem:[%s1 + $0x7f8] sm:$0xff]
    %v291 = vld [vmem:[%s1 + $0x800] sm:$0xff]
    %v292 = vld [vmem:[%s1 + $0x808] sm:$0xff]
    %v293 = vld [vmem:[%s1 + $0x810] sm:$0xff]
    %v294 = vld [vmem:[%s1 + $0x818] sm:$0xff]
    %v295 = vld [vmem:[%s1 + $0x820] sm:$0xff]
    %v296 = vld [vmem:[%s1 + $0x828] sm:$0xff]
    %v297 = vld [vmem:[%s1 + $0x830] sm:$0xff]
    %v298 = vld [vmem:[%s1 + $0x838] sm:$0xff]
    %v299 = vld [vmem:[%s1 + $0x840] sm:$0xff]
    %v300 = vld [vmem:[%s1 + $0x848] sm:$0xff]
    %v301 = vld [vmem:[%s1 + $0x850] sm:$0xff]
    %v302 = vld [vmem:[%s1 + $0x858] sm:$0xff]
    %v303 = vld [vmem:[%s1 + $0x860] sm:$0xff]
    %v304 = vld [vmem:[%s1 + $0x868] sm:$0xff]
    %v305 = vld [vmem:[%s1 + $0x870] sm:$0xff]
    %v306 = vld [vmem:[%s1 + $0x878] sm:$0xff]
    %v307 = vld [vmem:[%s1 + $0x880] sm:$0xff]
    %v308 = vld [vmem:[%s1 + $0x888] sm:$0xff]
    %v309 = vld [vmem:[%s1 + $0x890] sm:$0xff]
    %v310 = vld [vmem:[%s1 + $0x898] sm:$0xff]
    %v311 = vld [vmem:[%s1 + $0x8a0] sm:$0xff]
    %v312 = vld [vmem:[%s1 + $0x8a8] sm:$0xff]
    %v313 = vld [vmem:[%s1 + $0x8b0] sm:$0xff]
    %v314 = vld [vmem:[%s1 + $0x8b8] sm:$0xff]
    %v315 = vld [vmem:[%s1 + $0x8c0] sm:$0xff]
    %v316 = vld [vmem:[%s1 + $0x8c8] sm:$0xff]
    %v317 = vld [vmem:[%s1 + $0x8d0] sm:$0xff]
    %v318 = vld [vmem:[%s1 + $0x8d8] sm:$0xff]
    %v319 = vld [vmem:[%s1 + $0x8e0] sm:$0xff]
    %v320 = vld [vmem:[%s1 + $0x8e8] sm:$0xff]
    %v321 = vld [vmem:[%s1 + $0x8f0] sm:$0xff]
    %v322 = vld [vmem:[%s1 + $0x8f8] sm:$0xff]
    %v323 = vld [vmem:[%s1 + $0x900] sm:$0xff]
    %v324 = vld [vmem:[%s1 + $0x908] sm:$0xff]
    %v325 = vld [vmem:[%s1 + $0x910] sm:$0xff]
    %v326 = vld [vmem:[%s1 + $0x918] sm:$0xff]
    %v327 = vld [vmem:[%s1 + $0x920] sm:$0xff]
    %v328 = vld [vmem:[%s1 + $0x928] sm:$0xff]
    %v329 = vld [vmem:[%s1 + $0x930] sm:$0xff]
    %v330 = vld [vmem:[%s1 + $0x938] sm:$0xff]
    %v331 = vld [vmem:[%s1 + $0x940] sm:$0xff]
    %v332 = vld [vmem:[%s1 + $0x948] sm:$0xff]
    %v333 = vld [vmem:[%s1 + $0x950] sm:$0xff]
    %v334 = vld [vmem:[%s1 + $0x958] sm:$0xff]
    %v335 = vld [vmem:[%s1 + $0x960] sm:$0xff]
    %v336 = vld [vmem:[%s1 + $0x968] sm:$0xff]
    %v337 = vld [vmem:[%s1 + $0x970] sm:$0xff]
    %v338 = vld [vmem:[%s1 + $0x978] sm:$0xff]
    %v339 = vld [vmem:[%s1 + $0x980] sm:$0xff]
    %v340 = vld [vmem:[%s1 + $0x988] sm:$0xff]
    %v341 = vld [vmem:[%s1 + $0x990] sm:$0xff]
    %v342 = vld [vmem:[%s1 + $0x998] sm:$0xff]
    %v343 = vld [vmem:[%s1 + $0x9a0] sm:$0xff]
    %v344 = vld [vmem:[%s1 + $0x9a8] sm:$0xff]
    %v345 = vld [vmem:[%s1 + $0x9b0] sm:$0xff]
    %v346 = vld [vmem:[%s1 + $0x9b8] sm:$0xff]
    %v347 = vld [vmem:[%s1 + $0x9c0] sm:$0xff]
    %v348 = vld [vmem:[%s1 + $0x9c8] sm:$0xff]
    %v349 = vld [vmem:[%s1 + $0x9d0] sm:$0xff]
    %v350 = vld [vmem:[%s1 + $0x9d8] sm:$0xff]
    %v351 = vld [vmem:[%s1 + $0x9e0] sm:$0xff]
    %v352 = vld [vmem:[%s1 + $0x9e8] sm:$0xff]
    %v353 = vld [vmem:[%s1 + $0x9f0] sm:$0xff]
    %v354 = vld [vmem:[%s1 + $0x9f8] sm:$0xff]
    %v355 = vld [vmem:[%s1 + $0xa00] sm:$0xff]
    %v356 = vld [vmem:[%s1 + $0xa08] sm:$0xff]
    %v357 = vld [vmem:[%s1 + $0xa10] sm:$0xff]
    %v358 = vld [vmem:[%s1 + $0xa18] sm:$0xff]
    %v359 = vld [vmem:[%s1 + $0xa20] sm:$0xff]
    %v360 = vld [vmem:[%s1 + $0xa28] sm:$0xff]
    %v361 = vld [vmem:[%s1 + $0xa30] sm:$0xff]
    %v362 = vld [vmem:[%s1 + $0xa38] sm:$0xff]
    %v363 = vld [vmem:[%s1 + $0xa40] sm:$0xff]
    %v364 = vld [vmem:[%s1 + $0xa48] sm:$0xff]
    %v365 = vld [vmem:[%s1 + $0xa50] sm:$0xff]
    %v366 = vld [vmem:[%s1 + $0xa58] sm:$0xff]
    %v367 = vld [vmem:[%s1 + $0xa60] sm:$0xff]
    %v368 = vld [vmem:[%s1 + $0xa68] sm:$0xff]
    %v369 = vld [vmem:[%s1 + $0xa70] sm:$0xff]
    %v370 = vld [vmem:[%s1 + $0xa78] sm:$0xff]
    %v371 = vld [vmem:[%s1 + $0xa80] sm:$0xff]
    %v372 = vld [vmem:[%s1 + $0xa88] sm:$0xff]
    %v373 = vld [vmem:[%s1 + $0xa90] sm:$0xff]
    %v374 = vld [vmem:[%s1 + $0xa98] sm:$0xff]
    %v375 = vld [vmem:[%s1 + $0xaa0] sm:$0xff]
    %v376 = vld [vmem:[%s1 + $0xaa8] sm:$0xff]
    %v377 = vld [vmem:[%s1 + $0xab0] sm:$0xff]
    %v378 = vld [vmem:[%s1 + $0xab8] sm:$0xff]
    %v379 = vld [vmem:[%s1 + $0xac0] sm:$0xff]
    %v380 = vld [vmem:[%s1 + $0xac8] sm:$0xff]
    %v381 = vld [vmem:[%s1 + $0xad0] sm:$0xff]
    %v382 = vld [vmem:[%s1 + $0xad8] sm:$0xff]
    %v383 = vld [vmem:[%s1 + $0xae0] sm:$0xff]
    %v384 = vld [vmem:[%s1 + $0xae8] sm:$0xff]
    %v385 = vld [vmem:[%s1 + $0xaf0] sm:$0xff]
    %v386 = vld [vmem:[%s1 + $0xaf8] sm:$0xff]
    %v387 = vld [vmem:[%s1 + $0xb00] sm:$0xff]
    %v388 = vld [vmem:[%s1 + $0xb08] sm:$0xff]
    %v389 = vld [vmem:[%s1 + $0xb10] sm:$0xff]
    %v390 = vld [vmem:[%s1 + $0xb18] sm:$0xff]
    %v391 = vld [vmem:[%s1 + $0xb20] sm:$0xff]
    %v392 = vld [vmem:[%s1 + $0xb28] sm:$0xff]
    %v393 = vld [vmem:[%s1 + $0xb30] sm:$0xff]
    %v394 = vld [vmem:[%s1 + $0xb38] sm:$0xff]
    %v395 = vld [vmem:[%s1 + $0xb40] sm:$0xff]
    %v396 = vld [vmem:[%s1 + $0xb48] sm:$0xff]
    %v397 = vld [vmem:[%s1 + $0xb50] sm:$0xff]
    %v398 = vld [vmem:[%s1 + $0xb58] sm:$0xff]
    %v399 = vld [vmem:[%s1 + $0xb60] sm:$0xff]
    %v400 = vld [vmem:[%s1 + $0xb68] sm:$0xff]
    %v401 = vld [vmem:[%s1 + $0xb70] sm:$0xff]
    %v402 = vld [vmem:[%s1 + $0xb78] sm:$0xff]
    %v403 = vld [vmem:[%s1 + $0xb80] sm:$0xff]
    %v404 = vld [vmem:[%s1 + $0xb88] sm:$0xff]
    %v405 = vld [vmem:[%s1 + $0xb90] sm:$0xff]
    %v406 = vld [vmem:[%s1 + $0xb98] sm:$0xff]
    %v407 = vld [vmem:[%s1 + $0xba0] sm:$0xff]
    %v408 = vld [vmem:[%s1 + $0xba8] sm:$0xff]
    %v409 = vld [vmem:[%s1 + $0xbb0] sm:$0xff]
    %v410 = vld [vmem:[%s1 + $0xbb8] sm:$0xff]
    %v411 = vld [vmem:[%s1 + $0xbc0] sm:$0xff]
    %v412 = vld [vmem:[%s1 + $0xbc8] sm:$0xff]
    %v413 = vld [vmem:[%s1 + $0xbd0] sm:$0xff]
    %v414 = vld [vmem:[%s1 + $0xbd8] sm:$0xff]
    %v415 = vld [vmem:[%s1 + $0xbe0] sm:$0xff]
    %v416 = vld [vmem:[%s1 + $0xbe8] sm:$0xff]
    %v417 = vld [vmem:[%s1 + $0xbf0] sm:$0xff]
    %v418 = vld [vmem:[%s1 + $0xbf8] sm:$0xff]
    %v419 = vld [vmem:[%s1 + $0xc00] sm:$0xff]
    %v420 = vld [vmem:[%s1 + $0xc08] sm:$0xff]
    %v421 = vld [vmem:[%s1 + $0xc10] sm:$0xff]
    %v422 = vld [vmem:[%s1 + $0xc18] sm:$0xff]
    %v423 = vld [vmem:[%s1 + $0xc20] sm:$0xff]
    %v424 = vld [vmem:[%s1 + $0xc28] sm:$0xff]
    %v425 = vld [vmem:[%s1 + $0xc30] sm:$0xff]
    %v426 = vld [vmem:[%s1 + $0xc38] sm:$0xff]
    %v427 = vld [vmem:[%s1 + $0xc40] sm:$0xff]
    %v428 = vld [vmem:[%s1 + $0xc48] sm:$0xff]
    %v429 = vld [vmem:[%s1 + $0xc50] sm:$0xff]
    %v430 = vld [vmem:[%s1 + $0xc58] sm:$0xff]
    %v431 = vld [vmem:[%s1 + $0xc60] sm:$0xff]
    %v432 = vld [vmem:[%s1 + $0xc68] sm:$0xff]
    %v433 = vld [vmem:[%s1 + $0xc70] sm:$0xff]
    %v434 = vld [vmem:[%s1 + $0xc78] sm:$0xff]
    %v435 = vld [vmem:[%s1 + $0xc80] sm:$0xff]
    %v436 = vld [vmem:[%s1 + $0xc88] sm:$0xff]
    %v437 = vld [vmem:[%s1 + $0xc90] sm:$0xff]
    %v438 = vld [vmem:[%s1 + $0xc98] sm:$0xff]
    %v439 = vld [vmem:[%s1 + $0xca0] sm:$0xff]
    %v440 = vld [vmem:[%s1 + $0xca8] sm:$0xff]
    %v441 = vld [vmem:[%s1 + $0xcb0] sm:$0xff]
    %v442 = vld [vmem:[%s1 + $0xcb8] sm:$0xff]
    %v443 = vld [vmem:[%s1 + $0xcc0] sm:$0xff]
    %v444 = vld [vmem:[%s1 + $0xcc8] sm:$0xff]
    %v445 = vld [vmem:[%s1 + $0xcd0] sm:$0xff]
    %v446 = vld [vmem:[%s1 + $0xcd8] sm:$0xff]
    %v447 = vld [vmem:[%s1 + $0xce0] sm:$0xff]
    %v448 = vld [vmem:[%s1 + $0xce8] sm:$0xff]
    %v449 = vld [vmem:[%s1 + $0xcf0] sm:$0xff]
    %v450 = vld [vmem:[%s1 + $0xcf8] sm:$0xff]
    %v451 = vld [vmem:[%s1 + $0xd00] sm:$0xff]
    %v452 = vld [vmem:[%s1 + $0xd08] sm:$0xff]
    %v453 = vld [vmem:[%s1 + $0xd10] sm:$0xff]
    %v454 = vld [vmem:[%s1 + $0xd18] sm:$0xff]
    %v455 = vld [vmem:[%s1 + $0xd20] sm:$0xff]
    %v456 = vld [vmem:[%s1 + $0xd28] sm:$0xff]
    %v457 = vld [vmem:[%s1 + $0xd30] sm:$0xff]
    %v458 = vld [vmem:[%s1 + $0xd38] sm:$0xff]
    %v459 = vld [vmem:[%s1 + $0xd40] sm:$0xff]
    %v460 = vld [vmem:[%s1 + $0xd48] sm:$0xff]
    %v461 = vld [vmem:[%s1 + $0xd50] sm:$0xff]
    %v462 = vld [vmem:[%s1 + $0xd58] sm:$0xff]
    %v463 = vld [vmem:[%s1 + $0xd60] sm:$0xff]
    %v464 = vld [vmem:[%s1 + $0xd68] sm:$0xff]
    %v465 = vld [vmem:[%s1 + $0xd70] sm:$0xff]
    %v466 = vld [vmem:[%s1 + $0xd78] sm:$0xff]
    %v467 = vld [vmem:[%s1 + $0xd80] sm:$0xff]
    %v468 = vld [vmem:[%s1 + $0xd88] sm:$0xff]
    %v469 = vld [vmem:[%s1 + $0xd90] sm:$0xff]
    %v470 = vld [vmem:[%s1 + $0xd98] sm:$0xff]
    %v471 = vld [vmem:[%s1 + $0xda0] sm:$0xff]
    %v472 = vld [vmem:[%s1 + $0xda8] sm:$0xff]
    %v473 = vld [vmem:[%s1 + $0xdb0] sm:$0xff]
    %v474 = vld [vmem:[%s1 + $0xdb8] sm:$0xff]
    %v475 = vld [vmem:[%s1 + $0xdc0] sm:$0xff]
    %v476 = vld [vmem:[%s1 + $0xdc8] sm:$0xff]
    %v477 = vld [vmem:[%s1 + $0xdd0] sm:$0xff]
    %v478 = vld [vmem:[%s1 + $0xdd8] sm:$0xff]
    %v479 = vld [vmem:[%s1 + $0xde0] sm:$0xff]
    %v480 = vld [vmem:[%s1 + $0xde8] sm:$0xff]
    %v481 = vld [vmem:[%s1 + $0xdf0] sm:$0xff]
    %v482 = vld [vmem:[%s1 + $0xdf8] sm:$0xff]
    %v483 = vld [vmem:[%s1 + $0xe00] sm:$0xff]
    %v484 = vld [vmem:[%s1 + $0xe08] sm:$0xff]
    %v485 = vld [vmem:[%s1 + $0xe10] sm:$0xff]
    %v486 = vld [vmem:[%s1 + $0xe18] sm:$0xff]
    %v487 = vld [vmem:[%s1 + $0xe20] sm:$0xff]
    %v488 = vld [vmem:[%s1 + $0xe28] sm:$0xff]
    %v489 = vld [vmem:[%s1 + $0xe30] sm:$0xff]
    %v490 = vld [vmem:[%s1 + $0xe38] sm:$0xff]
    %v491 = vld [vmem:[%s1 + $0xe40] sm:$0xff]
    %v492 = vld [vmem:[%s1 + $0xe48] sm:$0xff]
    %v493 = vld [vmem:[%s1 + $0xe50] sm:$0xff]
    %v494 = vld [vmem:[%s1 + $0xe58] sm:$0xff]
    %v495 = vld [vmem:[%s1 + $0xe60] sm:$0xff]
    %v496 = vld [vmem:[%s1 + $0xe68] sm:$0xff]
    %v497 = vld [vmem:[%s1 + $0xe70] sm:$0xff]
    %v498 = vld [vmem:[%s1 + $0xe78] sm:$0xff]
    %v499 = vld [vmem:[%s1 + $0xe80] sm:$0xff]
    %v500 = vld [vmem:[%s1 + $0xe88] sm:$0xff]
    %v501 = vld [vmem:[%s1 + $0xe90] sm:$0xff]
    %v502 = vld [vmem:[%s1 + $0xe98] sm:$0xff]
    %v503 = vld [vmem:[%s1 + $0xea0] sm:$0xff]
    %v504 = vld [vmem:[%s1 + $0xea8] sm:$0xff]
    %v505 = vld [vmem:[%s1 + $0xeb0] sm:$0xff]
    %v506 = vld [vmem:[%s1 + $0xeb8] sm:$0xff]
    %v507 = vld [vmem:[%s1 + $0xec0] sm:$0xff]
    %v508 = vld [vmem:[%s1 + $0xec8] sm:$0xff]
    %v509 = vld [vmem:[%s1 + $0xed0] sm:$0xff]
    %v510 = vld [vmem:[%s1 + $0xed8] sm:$0xff]
    %v511 = vld [vmem:[%s1 + $0xee0] sm:$0xff]
    %v512 = vld [vmem:[%s1 + $0xee8] sm:$0xff]
    %v513 = vld [vmem:[%s1 + $0xef0] sm:$0xff]
    %v514 = vld [vmem:[%s1 + $0xef8] sm:$0xff]
    %v515 = vld [vmem:[%s1 + $0xf00] sm:$0xff]
    %v516 = vld [vmem:[%s1 + $0xf08] sm:$0xff]
    %v517 = vld [vmem:[%s1 + $0xf10] sm:$0xff]
    %v518 = vld [vmem:[%s1 + $0xf18] sm:$0xff]
    %v519 = vld [vmem:[%s1 + $0xf20] sm:$0xff]
    %v520 = vld [vmem:[%s1 + $0xf28] sm:$0xff]
    %v521 = vld [vmem:[%s1 + $0xf30] sm:$0xff]
    %v522 = vld [vmem:[%s1 + $0xf38] sm:$0xff]
    %v523 = vld [vmem:[%s1 + $0xf40] sm:$0xff]
    %v524 = vld [vmem:[%s1 + $0xf48] sm:$0xff]
    %v525 = vld [vmem:[%s1 + $0xf50] sm:$0xff]
    %v526 = vld [vmem:[%s1 + $0xf58] sm:$0xff]
    %v527 = vld [vmem:[%s1 + $0xf60] sm:$0xff]
    %v528 = vld [vmem:[%s1 + $0xf68] sm:$0xff]
    %v529 = vld [vmem:[%s1 + $0xf70] sm:$0xff]
    %v530 = vld [vmem:[%s1 + $0xf78] sm:$0xff]
    %v531 = vld [vmem:[%s1 + $0xf80] sm:$0xff]
    %v532 = vld [vmem:[%s1 + $0xf88] sm:$0xff]
    %v533 = vld [vmem:[%s1 + $0xf90] sm:$0xff]
    %v534 = vld [vmem:[%s1 + $0xf98] sm:$0xff]
    %v535 = vld [vmem:[%s1 + $0xfa0] sm:$0xff]
    %v536 = vld [vmem:[%s1 + $0xfa8] sm:$0xff]
    %v537 = vld [vmem:[%s1 + $0xfb0] sm:$0xff]
    %v538 = vld [vmem:[%s1 + $0xfb8] sm:$0xff]
    %v539 = vld [vmem:[%s1 + $0xfc0] sm:$0xff]
    %v540 = vld [vmem:[%s1 + $0xfc8] sm:$0xff]
    %v541 = vld [vmem:[%s1 + $0xfd0] sm:$0xff]
    %v542 = vld [vmem:[%s1 + $0xfd8] sm:$0xff]
    %v543 = vld [vmem:[%s1 + $0xfe0] sm:$0xff]
    %v544 = vld [vmem:[%s1 + $0xfe8] sm:$0xff]
    %v545 = vld [vmem:[%s1 + $0xff0] sm:$0xff]
    %v546 = vld [vmem:[%s1 + $0xff8] sm:$0xff]
    %v547 = vld [vmem:[%s1 + $0x1000] sm:$0xff]
    %v548 = vld [vmem:[%s1 + $0x1008] sm:$0xff]
    %v549 = vld [vmem:[%s1 + $0x1010] sm:$0xff]
    %v550 = vld [vmem:[%s1 + $0x1018] sm:$0xff]
    %v551 = vld [vmem:[%s1 + $0x1020] sm:$0xff]
    %v552 = vld [vmem:[%s1 + $0x1028] sm:$0xff]
    %v553 = vld [vmem:[%s1 + $0x1030] sm:$0xff]
    %v554 = vld [vmem:[%s1 + $0x1038] sm:$0xff]
    %v555 = vld [vmem:[%s1 + $0x1040] sm:$0xff]
    %v556 = vld [vmem:[%s1 + $0x1048] sm:$0xff]
    %v557 = vld [vmem:[%s1 + $0x1050] sm:$0xff]
    %v558 = vld [vmem:[%s1 + $0x1058] sm:$0xff]
    %v559 = vld [vmem:[%s1 + $0x1060] sm:$0xff]
    %v560 = vld [vmem:[%s1 + $0x1068] sm:$0xff]
    %v561 = vld [vmem:[%s1 + $0x1070] sm:$0xff]
    %v562 = vld [vmem:[%s1 + $0x1078] sm:$0xff]
    %v563 = vld [vmem:[%s1 + $0x1080] sm:$0xff]
    %v564 = vld [vmem:[%s1 + $0x1088] sm:$0xff]
    %v565 = vld [vmem:[%s1 + $0x1090] sm:$0xff]
    %v566 = vld [vmem:[%s1 + $0x1098] sm:$0xff]
    %v567 = vld [vmem:[%s1 + $0x10a0] sm:$0xff]
    %v568 = vld [vmem:[%s1 + $0x10a8] sm:$0xff]
    %v569 = vld [vmem:[%s1 + $0x10b0] sm:$0xff]
    %v570 = vld [vmem:[%s1 + $0x10b8] sm:$0xff]
    %v571 = vld [vmem:[%s1 + $0x10c0] sm:$0xff]
    %v572 = vld [vmem:[%s1 + $0x10c8] sm:$0xff]
    %v573 = vld [vmem:[%s1 + $0x10d0] sm:$0xff]
    %v574 = vld [vmem:[%s1 + $0x10d8] sm:$0xff]
    %v575 = vld [vmem:[%s1 + $0x10e0] sm:$0xff]
    %v576 = vld [vmem:[%s1 + $0x10e8] sm:$0xff]
    %v577 = vld [vmem:[%s1 + $0x10f0] sm:$0xff]
    %v578 = vld [vmem:[%s1 + $0x10f8] sm:$0xff]
    %v579 = vld [vmem:[%s1 + $0x1100] sm:$0xff]
    %v580 = vld [vmem:[%s1 + $0x1108] sm:$0xff]
    %v581 = vld [vmem:[%s1 + $0x1110] sm:$0xff]
    %v582 = vld [vmem:[%s1 + $0x1118] sm:$0xff]
    %v583 = vld [vmem:[%s1 + $0x1120] sm:$0xff]
    %v584 = vld [vmem:[%s1 + $0x1128] sm:$0xff]
    %v585 = vld [vmem:[%s1 + $0x1130] sm:$0xff]
    %v586 = vld [vmem:[%s1 + $0x1138] sm:$0xff]
    %v587 = vld [vmem:[%s1 + $0x1140] sm:$0xff]
    %v588 = vld [vmem:[%s1 + $0x1148] sm:$0xff]
    %v589 = vld [vmem:[%s1 + $0x1150] sm:$0xff]
    %v590 = vld [vmem:[%s1 + $0x1158] sm:$0xff]
    %v591 = vld [vmem:[%s1 + $0x1160] sm:$0xff]
    %v592 = vld [vmem:[%s1 + $0x1168] sm:$0xff]
    %v593 = vld [vmem:[%s1 + $0x1170] sm:$0xff]
    %v594 = vld [vmem:[%s1 + $0x1178] sm:$0xff]
    %v595 = vld [vmem:[%s1 + $0x1180] sm:$0xff]
    %v596 = vld [vmem:[%s1 + $0x1188] sm:$0xff]
    %v597 = vld [vmem:[%s1 + $0x1190] sm:$0xff]
    %v598 = vld [vmem:[%s1 + $0x1198] sm:$0xff]
    %v599 = vld [vmem:[%s1 + $0x11a0] sm:$0xff]
    %v600 = vld [vmem:[%s1 + $0x11a8] sm:$0xff]
    %v601 = vld [vmem:[%s1 + $0x11b0] sm:$0xff]
    %v602 = vld [vmem:[%s1 + $0x11b8] sm:$0xff]
    %v603 = vld [vmem:[%s1 + $0x11c0] sm:$0xff]
    %v604 = vld [vmem:[%s1 + $0x11c8] sm:$0xff]
    %v605 = vld [vmem:[%s1 + $0x11d0] sm:$0xff]
    %v606 = vld [vmem:[%s1 + $0x11d8] sm:$0xff]
    %v607 = vld [vmem:[%s1 + $0x11e0] sm:$0xff]
    %v608 = vld [vmem:[%s1 + $0x11e8] sm:$0xff]
    %v609 = vld [vmem:[%s1 + $0x11f0] sm:$0xff]
    %v610 = vld [vmem:[%s1 + $0x11f8] sm:$0xff]
    %v611 = vld [vmem:[%s1 + $0x1200] sm:$0xff]
    %v612 = vld [vmem:[%s1 + $0x1208] sm:$0xff]
    %v613 = vld [vmem:[%s1 + $0x1210] sm:$0xff]
    %v614 = vld [vmem:[%s1 + $0x1218] sm:$0xff]
    %v615 = vld [vmem:[%s1 + $0x1220] sm:$0xff]
    %v616 = vld [vmem:[%s1 + $0x1228] sm:$0xff]
    %v617 = vld [vmem:[%s1 + $0x1230] sm:$0xff]
    %v618 = vld [vmem:[%s1 + $0x1238] sm:$0xff]
    %v619 = vld [vmem:[%s1 + $0x1240] sm:$0xff]
    %v620 = vld [vmem:[%s1 + $0x1248] sm:$0xff]
    %v621 = vld [vmem:[%s1 + $0x1250] sm:$0xff]
    %v622 = vld [vmem:[%s1 + $0x1258] sm:$0xff]
    %v623 = vld [vmem:[%s1 + $0x1260] sm:$0xff]
    %v624 = vld [vmem:[%s1 + $0x1268] sm:$0xff]
    %v625 = vld [vmem:[%s1 + $0x1270] sm:$0xff]
    %v626 = vld [vmem:[%s1 + $0x1278] sm:$0xff]
    %v627 = vld [vmem:[%s1 + $0x1280] sm:$0xff]
    %v628 = vld [vmem:[%s1 + $0x1288] sm:$0xff]
    %v629 = vld [vmem:[%s1 + $0x1290] sm:$0xff]
    %v630 = vld [vmem:[%s1 + $0x1298] sm:$0xff]
    %v631 = vld [vmem:[%s1 + $0x12a0] sm:$0xff]
    %v632 = vld [vmem:[%s1 + $0x12a8] sm:$0xff]
    %v633 = vld [vmem:[%s1 + $0x12b0] sm:$0xff]
    %v634 = vld [vmem:[%s1 + $0x12b8] sm:$0xff]
    %v635 = vld [vmem:[%s1 + $0x12c0] sm:$0xff]
    %v636 = vld [vmem:[%s1 + $0x12c8] sm:$0xff]
    %v637 = vld [vmem:[%s1 + $0x12d0] sm:$0xff]
    %v638 = vld [vmem:[%s1 + $0x12d8] sm:$0xff]
    %v639 = vld [vmem:[%s1 + $0x12e0] sm:$0xff]
    %v640 = vld [vmem:[%s1 + $0x12e8] sm:$0xff]
    %v641 = vld [vmem:[%s1 + $0x12f0] sm:$0xff]
    %v642 = vld [vmem:[%s1 + $0x12f8] sm:$0xff]
    %v643 = vld [vmem:[%s1 + $0x1300] sm:$0xff]
    %v644 = vld [vmem:[%s1 + $0x1308] sm:$0xff]
    %v645 = vld [vmem:[%s1 + $0x1310] sm:$0xff]
    %v646 = vld [vmem:[%s1 + $0x1318] sm:$0xff]
    %v647 = vld [vmem:[%s1 + $0x1320] sm:$0xff]
    %v648 = vld [vmem:[%s1 + $0x1328] sm:$0xff]
    %v649 = vld [vmem:[%s1 + $0x1330] sm:$0xff]
    %v650 = vld [vmem:[%s1 + $0x1338] sm:$0xff]
    %v651 = vld [vmem:[%s1 + $0x1340] sm:$0xff]
    %v652 = vld [vmem:[%s1 + $0x1348] sm:$0xff]
    %v653 = vld [vmem:[%s1 + $0x1350] sm:$0xff]
    %v654 = vld [vmem:[%s1 + $0x1358] sm:$0xff]
    %v655 = vld [vmem:[%s1 + $0x1360] sm:$0xff]
    %v656 = vld [vmem:[%s1 + $0x1368] sm:$0xff]
    %v657 = vld [vmem:[%s1 + $0x1370] sm:$0xff]
    %v658 = vld [vmem:[%s1 + $0x1378] sm:$0xff]
    %v659 = vld [vmem:[%s1 + $0x1380] sm:$0xff]
    %v660 = vld [vmem:[%s1 + $0x1388] sm:$0xff]
    %v661 = vld [vmem:[%s1 + $0x1390] sm:$0xff]
    %v662 = vld [vmem:[%s1 + $0x1398] sm:$0xff]
    %v663 = vld [vmem:[%s1 + $0x13a0] sm:$0xff]
    %v664 = vld [vmem:[%s1 + $0x13a8] sm:$0xff]
    %v665 = vld [vmem:[%s1 + $0x13b0] sm:$0xff]
    %v666 = vld [vmem:[%s1 + $0x13b8] sm:$0xff]
    %v667 = vld [vmem:[%s1 + $0x13c0] sm:$0xff]
    %v668 = vld [vmem:[%s1 + $0x13c8] sm:$0xff]
    %v669 = vld [vmem:[%s1 + $0x13d0] sm:$0xff]
    %v670 = vld [vmem:[%s1 + $0x13d8] sm:$0xff]
    %v671 = vld [vmem:[%s1 + $0x13e0] sm:$0xff]
    %v672 = vld [vmem:[%s1 + $0x13e8] sm:$0xff]
    %v673 = vld [vmem:[%s1 + $0x13f0] sm:$0xff]
    %v674 = vld [vmem:[%s1 + $0x13f8] sm:$0xff]
    %v675 = vld [vmem:[%s1 + $0x1400] sm:$0xff]
    %v676 = vld [vmem:[%s1 + $0x1408] sm:$0xff]
    %v677 = vld [vmem:[%s1 + $0x1410] sm:$0xff]
    %v678 = vld [vmem:[%s1 + $0x1418] sm:$0xff]
    %v679 = vld [vmem:[%s1 + $0x1420] sm:$0xff]
    %v680 = vld [vmem:[%s1 + $0x1428] sm:$0xff]
    %v681 = vld [vmem:[%s1 + $0x1430] sm:$0xff]
    %v682 = vld [vmem:[%s1 + $0x1438] sm:$0xff]
    %v683 = vld [vmem:[%s1 + $0x1440] sm:$0xff]
    %v684 = vld [vmem:[%s1 + $0x1448] sm:$0xff]
    %v685 = vld [vmem:[%s1 + $0x1450] sm:$0xff]
    %v686 = vld [vmem:[%s1 + $0x1458] sm:$0xff]
    %v687 = vld [vmem:[%s1 + $0x1460] sm:$0xff]
    %v688 = vld [vmem:[%s1 + $0x1468] sm:$0xff]
    %v689 = vld [vmem:[%s1 + $0x1470] sm:$0xff]
    %v690 = vld [vmem:[%s1 + $0x1478] sm:$0xff]
    %v691 = vld [vmem:[%s1 + $0x1480] sm:$0xff]
    %v692 = vld [vmem:[%s1 + $0x1488] sm:$0xff]
    %v693 = vld [vmem:[%s1 + $0x1490] sm:$0xff]
    %v694 = vld [vmem:[%s1 + $0x1498] sm:$0xff]
    %v695 = vld [vmem:[%s1 + $0x14a0] sm:$0xff]
    %v696 = vld [vmem:[%s1 + $0x14a8] sm:$0xff]
    %v697 = vld [vmem:[%s1 + $0x14b0] sm:$0xff]
    %v698 = vld [vmem:[%s1 + $0x14b8] sm:$0xff]
    %v699 = vld [vmem:[%s1 + $0x14c0] sm:$0xff]
    %v700 = vld [vmem:[%s1 + $0x14c8] sm:$0xff]
    %v701 = vld [vmem:[%s1 + $0x14d0] sm:$0xff]
    %v702 = vld [vmem:[%s1 + $0x14d8] sm:$0xff]
    %v703 = vld [vmem:[%s1 + $0x14e0] sm:$0xff]
    %v704 = vld [vmem:[%s1 + $0x14e8] sm:$0xff]
    %v705 = vld [vmem:[%s1 + $0x14f0] sm:$0xff]
    %v706 = vld [vmem:[%s1 + $0x14f8] sm:$0xff]
    %v707 = vld [vmem:[%s1 + $0x1500] sm:$0xff]
    %v708 = vld [vmem:[%s1 + $0x1508] sm:$0xff]
    %v709 = vld [vmem:[%s1 + $0x1510] sm:$0xff]
    %v710 = vld [vmem:[%s1 + $0x1518] sm:$0xff]
    %v711 = vld [vmem:[%s1 + $0x1520] sm:$0xff]
    %v712 = vld [vmem:[%s1 + $0x1528] sm:$0xff]
    %v713 = vld [vmem:[%s1 + $0x1530] sm:$0xff]
    %v714 = vld [vmem:[%s1 + $0x1538] sm:$0xff]
    %v715 = vld [vmem:[%s1 + $0x1540] sm:$0xff]
    %v716 = vld [vmem:[%s1 + $0x1548] sm:$0xff]
    %v717 = vld [vmem:[%s1 + $0x1550] sm:$0xff]
    %v718 = vld [vmem:[%s1 + $0x1558] sm:$0xff]
    %v719 = vld [vmem:[%s1 + $0x1560] sm:$0xff]
    %v720 = vld [vmem:[%s1 + $0x1568] sm:$0xff]
    %v721 = vld [vmem:[%s1 + $0x1570] sm:$0xff]
    %v722 = vld [vmem:[%s1 + $0x1578] sm:$0xff]
    %v723 = vld [vmem:[%s1 + $0x1580] sm:$0xff]
    %v724 = vld [vmem:[%s1 + $0x1588] sm:$0xff]
    %v725 = vld [vmem:[%s1 + $0x1590] sm:$0xff]
    %v726 = vld [vmem:[%s1 + $0x1598] sm:$0xff]
    %v727 = vld [vmem:[%s1 + $0x15a0] sm:$0xff]
    %v728 = vld [vmem:[%s1 + $0x15a8] sm:$0xff]
    %v729 = vld [vmem:[%s1 + $0x15b0] sm:$0xff]
    %v730 = vld [vmem:[%s1 + $0x15b8] sm:$0xff]
    %v731 = vld [vmem:[%s1 + $0x15c0] sm:$0xff]
    %v732 = vld [vmem:[%s1 + $0x15c8] sm:$0xff]
    %v733 = vld [vmem:[%s1 + $0x15d0] sm:$0xff]
    %v734 = vld [vmem:[%s1 + $0x15d8] sm:$0xff]
    %v735 = vld [vmem:[%s1 + $0x15e0] sm:$0xff]
    %v736 = vld [vmem:[%s1 + $0x15e8] sm:$0xff]
    %v737 = vld [vmem:[%s1 + $0x15f0] sm:$0xff]
    %v738 = vld [vmem:[%s1 + $0x15f8] sm:$0xff]
    %v739 = vld [vmem:[%s1 + $0x1600] sm:$0xff]
    %v740 = vld [vmem:[%s1 + $0x1608] sm:$0xff]
    %v741 = vld [vmem:[%s1 + $0x1610] sm:$0xff]
    %v742 = vld [vmem:[%s1 + $0x1618] sm:$0xff]
    %v743 = vld [vmem:[%s1 + $0x1620] sm:$0xff]
    %v744 = vld [vmem:[%s1 + $0x1628] sm:$0xff]
    %v745 = vld [vmem:[%s1 + $0x1630] sm:$0xff]
    %v746 = vld [vmem:[%s1 + $0x1638] sm:$0xff]
    %v747 = vld [vmem:[%s1 + $0x1640] sm:$0xff]
    %v748 = vld [vmem:[%s1 + $0x1648] sm:$0xff]
    %v749 = vld [vmem:[%s1 + $0x1650] sm:$0xff]
    %v750 = vld [vmem:[%s1 + $0x1658] sm:$0xff]
    %v751 = vld [vmem:[%s1 + $0x1660] sm:$0xff]
    %v752 = vld [vmem:[%s1 + $0x1668] sm:$0xff]
    %v753 = vld [vmem:[%s1 + $0x1670] sm:$0xff]
    %v754 = vld [vmem:[%s1 + $0x1678] sm:$0xff]
    %v755 = vld [vmem:[%s1 + $0x1680] sm:$0xff]
    %v756 = vld [vmem:[%s1 + $0x1688] sm:$0xff]
    %v757 = vld [vmem:[%s1 + $0x1690] sm:$0xff]
    %v758 = vld [vmem:[%s1 + $0x1698] sm:$0xff]
    %v759 = vld [vmem:[%s1 + $0x16a0] sm:$0xff]
    %v760 = vld [vmem:[%s1 + $0x16a8] sm:$0xff]
    %v761 = vld [vmem:[%s1 + $0x16b0] sm:$0xff]
    %v762 = vld [vmem:[%s1 + $0x16b8] sm:$0xff]
    %v763 = vld [vmem:[%s1 + $0x16c0] sm:$0xff]
    %v764 = vld [vmem:[%s1 + $0x16c8] sm:$0xff]
    %v765 = vld [vmem:[%s1 + $0x16d0] sm:$0xff]
    %v766 = vld [vmem:[%s1 + $0x16d8] sm:$0xff]
    %v767 = vld [vmem:[%s1 + $0x16e0] sm:$0xff]
    %v768 = vld [vmem:[%s1 + $0x16e8] sm:$0xff]
    %v769 = vld [vmem:[%s1 + $0x16f0] sm:$0xff]
    %v770 = vld [vmem:[%s1 + $0x16f8] sm:$0xff]
    %v771 = vld [vmem:[%s1 + $0x1700] sm:$0xff]
    %v772 = vld [vmem:[%s1 + $0x1708] sm:$0xff]
    %v773 = vld [vmem:[%s1 + $0x1710] sm:$0xff]
    %v774 = vld [vmem:[%s1 + $0x1718] sm:$0xff]
    %v775 = vld [vmem:[%s1 + $0x1720] sm:$0xff]
    %v776 = vld [vmem:[%s1 + $0x1728] sm:$0xff]
    %v777 = vld [vmem:[%s1 + $0x1730] sm:$0xff]
    %v778 = vld [vmem:[%s1 + $0x1738] sm:$0xff]
    %v779 = vld [vmem:[%s1 + $0x1740] sm:$0xff]
    %v780 = vld [vmem:[%s1 + $0x1748] sm:$0xff]
    %v781 = vld [vmem:[%s1 + $0x1750] sm:$0xff]
    %v782 = vld [vmem:[%s1 + $0x1758] sm:$0xff]
    %v783 = vld [vmem:[%s1 + $0x1760] sm:$0xff]
    %v784 = vld [vmem:[%s1 + $0x1768] sm:$0xff]
    %v785 = vld [vmem:[%s1 + $0x1770] sm:$0xff]
    %v786 = vld [vmem:[%s1 + $0x1778] sm:$0xff]
    %v787 = vld [vmem:[%s1 + $0x1780] sm:$0xff]
    %v788 = vld [vmem:[%s1 + $0x1788] sm:$0xff]
    %v789 = vld [vmem:[%s1 + $0x1790] sm:$0xff]
    %v790 = vld [vmem:[%s1 + $0x1798] sm:$0xff]
    %v791 = vld [vmem:[%s1 + $0x17a0] sm:$0xff]
    %v792 = vld [vmem:[%s1 + $0x17a8] sm:$0xff]
    %v793 = vld [vmem:[%s1 + $0x17b0] sm:$0xff]
    %v794 = vld [vmem:[%s1 + $0x17b8] sm:$0xff]
    %v795 = vld [vmem:[%s1 + $0x17c0] sm:$0xff]
    %v796 = vld [vmem:[%s1 + $0x17c8] sm:$0xff]
    %v797 = vld [vmem:[%s1 + $0x17d0] sm:$0xff]
    %v798 = vld [vmem:[%s1 + $0x17d8] sm:$0xff]
    %v799 = vld [vmem:[%s1 + $0x17e0] sm:$0xff]
    %v800 = vld [vmem:[%s1 + $0x17e8] sm:$0xff]
    %v801 = vld [vmem:[%s1 + $0x17f0] sm:$0xff]
    %v802 = vld [vmem:[%s1 + $0x17f8] sm:$0xff]
    %v803 = vld [vmem:[%s2] sm:$0x3f]
    %v805 = vlaneseq
    %v806 = vshrl.u32 %v805, 7
    %v807 = vsub.s32 0, %v806
    %v808 = vrot.slane %v803, %v807
    %v809 = vlaneseq
    %v810 = vshrl.u32 %v809, 7
    %v811 = vsub.s32 1, %v810
    %v812 = vrot.slane %v803, %v811
    %v813 = vlaneseq
    %v814 = vshrl.u32 %v813, 7
    %v815 = vsub.s32 2, %v814
    %v816 = vrot.slane %v803, %v815
    %v817 = vlaneseq
    %v818 = vshrl.u32 %v817, 7
    %v819 = vsub.s32 3, %v818
    %v820 = vrot.slane %v803, %v819
    %v821 = vlaneseq
    %v822 = vshrl.u32 %v821, 7
    %v823 = vsub.s32 4, %v822
    %v824 = vrot.slane %v803, %v823
    %v825 = vlaneseq
    %v826 = vshrl.u32 %v825, 7
    %v827 = vsub.s32 5, %v826
    %v828 = vrot.slane %v803, %v827
    %v837 = vcombine.high %v33, %v33
    %v839 = vunpack.c.l.s4 1983009808
    %v840 = vunpack.c.0.s8 %v839
    %v841 = vlaneseq
    %v842 = vshrl.u32 %v841, 7
    %v843 = vsub.s32 %v840, %v842
    %v844 = vrot.slane %v33, %v843
    %v846 = vunpack.c.l.s4 1983009808
    %v847 = vunpack.c.0.s8 %v846
    %v848 = vlaneseq
    %v849 = vshrl.u32 %v848, 7
    %v850 = vsub.s32 %v847, %v849
    %v851 = vrot.slane %v837, %v850
    %v852 = vcombine.high %v844, %v844
    %v853 = vcombine.high %v851, %v851
    %v854 = vcombine.high %v34, %v34
    %v856 = vunpack.c.l.s4 1983009808
    %v857 = vunpack.c.0.s8 %v856
    %v858 = vlaneseq
    %v859 = vshrl.u32 %v858, 7
    %v860 = vsub.s32 %v857, %v859
    %v861 = vrot.slane %v34, %v860
    %v863 = vunpack.c.l.s4 1983009808
    %v864 = vunpack.c.0.s8 %v863
    %v865 = vlaneseq
    %v866 = vshrl.u32 %v865, 7
    %v867 = vsub.s32 %v864, %v866
    %v868 = vrot.slane %v854, %v867
    %v869 = vcombine.high %v861, %v861
    %v870 = vcombine.high %v868, %v868
    %879 = vmatprep.subr.mxu0 %v126
    %880 = vmatpush1.msra.mxu0 %v125
    %881 = vmatprep.subr.mxu0 %v120
    %882 = vmatpush1.msra.mxu0 %v119
    %883 = vmatprep.subr.mxu0 %v114
    %884 = vmatpush1.msra.mxu0 %v113
    %885 = vmatprep.subr.mxu0 %v108
    %886 = vmatpush1.msra.mxu0 %v107
    %887 = vmatprep.subr.mxu0 %v102
    %888 = vmatpush1.msra.mxu0 %v101
    %889 = vmatprep.subr.mxu0 %v96
    %890 = vmatpush1.msra.mxu0 %v95
    %891 = vmatprep.subr.mxu0 %v90
    %892 = vmatpush1.msra.mxu0 %v89
    %893 = vmatprep.subr.mxu0 %v84
    %894 = vmatpush1.msra.mxu0 %v83
    %895 = vmatprep.subr.mxu0 %v78
    %896 = vmatpush1.msra.mxu0 %v77
    %897 = vmatprep.subr.mxu0 %v72
    %898 = vmatpush1.msra.mxu0 %v71
    %899 = vmatprep.subr.mxu0 %v66
    %900 = vmatpush1.msra.mxu0 %v65
    %901 = vmatprep.subr.mxu0 %v60
    %902 = vmatpush1.msra.mxu0 %v59
    %903 = vmatprep.subr.mxu0 %v54
    %904 = vmatpush1.msra.mxu0 %v53
    %905 = vmatprep.subr.mxu0 %v48
    %906 = vmatpush1.msra.mxu0 %v47
    %907 = vmatprep.subr.mxu0 %v42
    %908 = vmatpush1.msra.mxu0 %v41
    %909 = vmatprep.subr.mxu0 %v36
    %910 = vmatpush1.msra.mxu0 %v35
    %911 = vmatprep.subr.mxu0 %v222
    %912 = vmatpush2.msra.mxu0 %v221
    %913 = vmatprep.subr.mxu0 %v216
    %914 = vmatpush2.msra.mxu0 %v215
    %915 = vmatprep.subr.mxu0 %v210
    %916 = vmatpush2.msra.mxu0 %v209
    %917 = vmatprep.subr.mxu0 %v204
    %918 = vmatpush2.msra.mxu0 %v203
    %919 = vmatprep.subr.mxu0 %v198
    %920 = vmatpush2.msra.mxu0 %v197
    %921 = vmatprep.subr.mxu0 %v192
    %922 = vmatpush2.msra.mxu0 %v191
    %923 = vmatprep.subr.mxu0 %v186
    %924 = vmatpush2.msra.mxu0 %v185
    %925 = vmatprep.subr.mxu0 %v180
    %926 = vmatpush2.msra.mxu0 %v179
    %927 = vmatprep.subr.mxu0 %v174
    %928 = vmatpush2.msra.mxu0 %v173
    %929 = vmatprep.subr.mxu0 %v168
    %930 = vmatpush2.msra.mxu0 %v167
    %931 = vmatprep.subr.mxu0 %v162
    %932 = vmatpush2.msra.mxu0 %v161
    %933 = vmatprep.subr.mxu0 %v156
    %934 = vmatpush2.msra.mxu0 %v155
    %935 = vmatprep.subr.mxu0 %v150
    %936 = vmatpush2.msra.mxu0 %v149
    %937 = vmatprep.subr.mxu0 %v144
    %938 = vmatpush2.msra.mxu0 %v143
    %939 = vmatprep.subr.mxu0 %v138
    %940 = vmatpush2.msra.mxu0 %v137
    %941 = vmatprep.subr.mxu0 %v132
    %942 = vmatpush2.msra.mxu0 %v131
    %943 = vmatprep.mubr.f32.mxu0 %v852
    %944 = vmatmul.mubr.f32.gmra.mxu0 %v844
    %v945 = vpop.f32.mrf.mxu0
    %v946 = vadd.f32 %v808, %v945
    %v947 = vpop.f32.mrf.mxu0
    %v948 = vadd.f32 %v812, %v947
    %949 = vdwg.mxu0
    %950 = vmatprep.subr.mxu0 %v318
    %951 = vmatpush1.msra.mxu0 %v317
    %952 = vmatprep.subr.mxu0 %v312
    %953 = vmatpush1.msra.mxu0 %v311
    %954 = vmatprep.subr.mxu0 %v306
    %955 = vmatpush1.msra.mxu0 %v305
    %956 = vmatprep.subr.mxu0 %v300
    %957 = vmatpush1.msra.mxu0 %v299
    %958 = vmatprep.subr.mxu0 %v294
    %959 = vmatpush1.msra.mxu0 %v293
    %960 = vmatprep.subr.mxu0 %v288
    %961 = vmatpush1.msra.mxu0 %v287
    %962 = vmatprep.subr.mxu0 %v282
    %963 = vmatpush1.msra.mxu0 %v281
    %964 = vmatprep.subr.mxu0 %v276
    %965 = vmatpush1.msra.mxu0 %v275
    %966 = vmatprep.subr.mxu0 %v270
    %967 = vmatpush1.msra.mxu0 %v269
    %968 = vmatprep.subr.mxu0 %v264
    %969 = vmatpush1.msra.mxu0 %v263
    %970 = vmatprep.subr.mxu0 %v258
    %971 = vmatpush1.msra.mxu0 %v257
    %972 = vmatprep.subr.mxu0 %v252
    %973 = vmatpush1.msra.mxu0 %v251
    %974 = vmatprep.subr.mxu0 %v246
    %975 = vmatpush1.msra.mxu0 %v245
    %976 = vmatprep.subr.mxu0 %v240
    %977 = vmatpush1.msra.mxu0 %v239
    %978 = vmatprep.subr.mxu0 %v234
    %979 = vmatpush1.msra.mxu0 %v233
    %980 = vmatprep.subr.mxu0 %v228
    %981 = vmatpush1.msra.mxu0 %v227
    %982 = vmatprep.subr.mxu0 %v414
    %983 = vmatpush2.msra.mxu0 %v413
    %984 = vmatprep.subr.mxu0 %v408
    %985 = vmatpush2.msra.mxu0 %v407
    %986 = vmatprep.subr.mxu0 %v402
    %987 = vmatpush2.msra.mxu0 %v401
    %988 = vmatprep.subr.mxu0 %v396
    %989 = vmatpush2.msra.mxu0 %v395
    %990 = vmatprep.subr.mxu0 %v390
    %991 = vmatpush2.msra.mxu0 %v389
    %992 = vmatprep.subr.mxu0 %v384
    %993 = vmatpush2.msra.mxu0 %v383
    %994 = vmatprep.subr.mxu0 %v378
    %995 = vmatpush2.msra.mxu0 %v377
    %996 = vmatprep.subr.mxu0 %v372
    %997 = vmatpush2.msra.mxu0 %v371
    %998 = vmatprep.subr.mxu0 %v366
    %999 = vmatpush2.msra.mxu0 %v365
    %1000 = vmatprep.subr.mxu0 %v360
    %1001 = vmatpush2.msra.mxu0 %v359
    %1002 = vmatprep.subr.mxu0 %v354
    %1003 = vmatpush2.msra.mxu0 %v353
    %1004 = vmatprep.subr.mxu0 %v348
    %1005 = vmatpush2.msra.mxu0 %v347
    %1006 = vmatprep.subr.mxu0 %v342
    %1007 = vmatpush2.msra.mxu0 %v341
    %1008 = vmatprep.subr.mxu0 %v336
    %1009 = vmatpush2.msra.mxu0 %v335
    %1010 = vmatprep.subr.mxu0 %v330
    %1011 = vmatpush2.msra.mxu0 %v329
    %1012 = vmatprep.subr.mxu0 %v324
    %1013 = vmatpush2.msra.mxu0 %v323
    %1014 = vmatprep.mubr.f32.mxu0 %v853
    %1015 = vmatmul.mubr.f32.gmra.mxu0 %v851
    %v1016 = vpop.f32.mrf.mxu0
    %v1017 = vadd.f32 %v946, %v1016
    %v1018 = vpop.f32.mrf.mxu0
    %v1019 = vadd.f32 %v948, %v1018
    %1020 = vdwg.mxu0
    %1021 = vmatprep.subr.mxu0 %v510
    %1022 = vmatpush1.msra.mxu0 %v509
    %1023 = vmatprep.subr.mxu0 %v504
    %1024 = vmatpush1.msra.mxu0 %v503
    %1025 = vmatprep.subr.mxu0 %v498
    %1026 = vmatpush1.msra.mxu0 %v497
    %1027 = vmatprep.subr.mxu0 %v492
    %1028 = vmatpush1.msra.mxu0 %v491
    %1029 = vmatprep.subr.mxu0 %v486
    %1030 = vmatpush1.msra.mxu0 %v485
    %1031 = vmatprep.subr.mxu0 %v480
    %1032 = vmatpush1.msra.mxu0 %v479
    %1033 = vmatprep.subr.mxu0 %v474
    %1034 = vmatpush1.msra.mxu0 %v473
    %1035 = vmatprep.subr.mxu0 %v468
    %1036 = vmatpush1.msra.mxu0 %v467
    %1037 = vmatprep.subr.mxu0 %v462
    %1038 = vmatpush1.msra.mxu0 %v461
    %1039 = vmatprep.subr.mxu0 %v456
    %1040 = vmatpush1.msra.mxu0 %v455
    %1041 = vmatprep.subr.mxu0 %v450
    %1042 = vmatpush1.msra.mxu0 %v449
    %1043 = vmatprep.subr.mxu0 %v444
    %1044 = vmatpush1.msra.mxu0 %v443
    %1045 = vmatprep.subr.mxu0 %v438
    %1046 = vmatpush1.msra.mxu0 %v437
    %1047 = vmatprep.subr.mxu0 %v432
    %1048 = vmatpush1.msra.mxu0 %v431
    %1049 = vmatprep.subr.mxu0 %v426
    %1050 = vmatpush1.msra.mxu0 %v425
    %1051 = vmatprep.subr.mxu0 %v420
    %1052 = vmatpush1.msra.mxu0 %v419
    %1053 = vmatprep.subr.mxu0 %v606
    %1054 = vmatpush2.msra.mxu0 %v605
    %1055 = vmatprep.subr.mxu0 %v600
    %1056 = vmatpush2.msra.mxu0 %v599
    %1057 = vmatprep.subr.mxu0 %v594
    %1058 = vmatpush2.msra.mxu0 %v593
    %1059 = vmatprep.subr.mxu0 %v588
    %1060 = vmatpush2.msra.mxu0 %v587
    %1061 = vmatprep.subr.mxu0 %v582
    %1062 = vmatpush2.msra.mxu0 %v581
    %1063 = vmatprep.subr.mxu0 %v576
    %1064 = vmatpush2.msra.mxu0 %v575
    %1065 = vmatprep.subr.mxu0 %v570
    %1066 = vmatpush2.msra.mxu0 %v569
    %1067 = vmatprep.subr.mxu0 %v564
    %1068 = vmatpush2.msra.mxu0 %v563
    %1069 = vmatprep.subr.mxu0 %v558
    %1070 = vmatpush2.msra.mxu0 %v557
    %1071 = vmatprep.subr.mxu0 %v552
    %1072 = vmatpush2.msra.mxu0 %v551
    %1073 = vmatprep.subr.mxu0 %v546
    %1074 = vmatpush2.msra.mxu0 %v545
    %1075 = vmatprep.subr.mxu0 %v540
    %1076 = vmatpush2.msra.mxu0 %v539
    %1077 = vmatprep.subr.mxu0 %v534
    %1078 = vmatpush2.msra.mxu0 %v533
    %1079 = vmatprep.subr.mxu0 %v528
    %1080 = vmatpush2.msra.mxu0 %v527
    %1081 = vmatprep.subr.mxu0 %v522
    %1082 = vmatpush2.msra.mxu0 %v521
    %1083 = vmatprep.subr.mxu0 %v516
    %1084 = vmatpush2.msra.mxu0 %v515
    %1085 = vmatprep.mubr.f32.mxu0 %v869
    %1086 = vmatmul.mubr.f32.gmra.mxu0 %v861
    %v1087 = vpop.f32.mrf.mxu0
    %v1088 = vadd.f32 %v1017, %v1087
    %v1089 = vpop.f32.mrf.mxu0
    %v1090 = vadd.f32 %v1019, %v1089
    %1091 = vdwg.mxu0
    %1092 = vmatprep.subr.mxu0 %v702
    %1093 = vmatpush1.msra.mxu0 %v701
    %1094 = vmatprep.subr.mxu0 %v696
    %1095 = vmatpush1.msra.mxu0 %v695
    %1096 = vmatprep.subr.mxu0 %v690
    %1097 = vmatpush1.msra.mxu0 %v689
    %1098 = vmatprep.subr.mxu0 %v684
    %1099 = vmatpush1.msra.mxu0 %v683
    %1100 = vmatprep.subr.mxu0 %v678
    %1101 = vmatpush1.msra.mxu0 %v677
    %1102 = vmatprep.subr.mxu0 %v672
    %1103 = vmatpush1.msra.mxu0 %v671
    %1104 = vmatprep.subr.mxu0 %v666
    %1105 = vmatpush1.msra.mxu0 %v665
    %1106 = vmatprep.subr.mxu0 %v660
    %1107 = vmatpush1.msra.mxu0 %v659
    %1108 = vmatprep.subr.mxu0 %v654
    %1109 = vmatpush1.msra.mxu0 %v653
    %1110 = vmatprep.subr.mxu0 %v648
    %1111 = vmatpush1.msra.mxu0 %v647
    %1112 = vmatprep.subr.mxu0 %v642
    %1113 = vmatpush1.msra.mxu0 %v641
    %1114 = vmatprep.subr.mxu0 %v636
    %1115 = vmatpush1.msra.mxu0 %v635
    %1116 = vmatprep.subr.mxu0 %v630
    %1117 = vmatpush1.msra.mxu0 %v629
    %1118 = vmatprep.subr.mxu0 %v624
    %1119 = vmatpush1.msra.mxu0 %v623
    %1120 = vmatprep.subr.mxu0 %v618
    %1121 = vmatpush1.msra.mxu0 %v617
    %1122 = vmatprep.subr.mxu0 %v612
    %1123 = vmatpush1.msra.mxu0 %v611
    %1124 = vmatprep.subr.mxu0 %v798
    %1125 = vmatpush2.msra.mxu0 %v797
    %1126 = vmatprep.subr.mxu0 %v792
    %1127 = vmatpush2.msra.mxu0 %v791
    %1128 = vmatprep.subr.mxu0 %v786
    %1129 = vmatpush2.msra.mxu0 %v785
    %1130 = vmatprep.subr.mxu0 %v780
    %1131 = vmatpush2.msra.mxu0 %v779
    %1132 = vmatprep.subr.mxu0 %v774
    %1133 = vmatpush2.msra.mxu0 %v773
    %1134 = vmatprep.subr.mxu0 %v768
    %1135 = vmatpush2.msra.mxu0 %v767
    %1136 = vmatprep.subr.mxu0 %v762
    %1137 = vmatpush2.msra.mxu0 %v761
    %1138 = vmatprep.subr.mxu0 %v756
    %1139 = vmatpush2.msra.mxu0 %v755
    %1140 = vmatprep.subr.mxu0 %v750
    %1141 = vmatpush2.msra.mxu0 %v749
    %1142 = vmatprep.subr.mxu0 %v744
    %1143 = vmatpush2.msra.mxu0 %v743
    %1144 = vmatprep.subr.mxu0 %v738
    %1145 = vmatpush2.msra.mxu0 %v737
    %1146 = vmatprep.subr.mxu0 %v732
    %1147 = vmatpush2.msra.mxu0 %v731
    %1148 = vmatprep.subr.mxu0 %v726
    %1149 = vmatpush2.msra.mxu0 %v725
    %1150 = vmatprep.subr.mxu0 %v720
    %1151 = vmatpush2.msra.mxu0 %v719
    %1152 = vmatprep.subr.mxu0 %v714
    %1153 = vmatpush2.msra.mxu0 %v713
    %1154 = vmatprep.subr.mxu0 %v708
    %1155 = vmatpush2.msra.mxu0 %v707
    %1156 = vmatprep.mubr.f32.mxu0 %v870
    %1157 = vmatmul.mubr.f32.gmra.mxu0 %v868
    %v1158 = vpop.f32.mrf.mxu0
    %v1159 = vadd.f32 %v1088, %v1158
    %v1160 = vpop.f32.mrf.mxu0
    %v1161 = vadd.f32 %v1090, %v1160
    %1162 = vdwg.mxu0
    %1163 = vmatprep.subr.mxu0 %v128
    %1164 = vmatpush1.msra.mxu0 %v127
    %1165 = vmatprep.subr.mxu0 %v122
    %1166 = vmatpush1.msra.mxu0 %v121
    %1167 = vmatprep.subr.mxu0 %v116
    %1168 = vmatpush1.msra.mxu0 %v115
    %1169 = vmatprep.subr.mxu0 %v110
    %1170 = vmatpush1.msra.mxu0 %v109
    %1171 = vmatprep.subr.mxu0 %v104
    %1172 = vmatpush1.msra.mxu0 %v103
    %1173 = vmatprep.subr.mxu0 %v98
    %1174 = vmatpush1.msra.mxu0 %v97
    %1175 = vmatprep.subr.mxu0 %v92
    %1176 = vmatpush1.msra.mxu0 %v91
    %1177 = vmatprep.subr.mxu0 %v86
    %1178 = vmatpush1.msra.mxu0 %v85
    %1179 = vmatprep.subr.mxu0 %v80
    %1180 = vmatpush1.msra.mxu0 %v79
    %1181 = vmatprep.subr.mxu0 %v74
    %1182 = vmatpush1.msra.mxu0 %v73
    %1183 = vmatprep.subr.mxu0 %v68
    %1184 = vmatpush1.msra.mxu0 %v67
    %1185 = vmatprep.subr.mxu0 %v62
    %1186 = vmatpush1.msra.mxu0 %v61
    %1187 = vmatprep.subr.mxu0 %v56
    %1188 = vmatpush1.msra.mxu0 %v55
    %1189 = vmatprep.subr.mxu0 %v50
    %1190 = vmatpush1.msra.mxu0 %v49
    %1191 = vmatprep.subr.mxu0 %v44
    %1192 = vmatpush1.msra.mxu0 %v43
    %1193 = vmatprep.subr.mxu0 %v38
    %1194 = vmatpush1.msra.mxu0 %v37
    %1195 = vmatprep.subr.mxu0 %v224
    %1196 = vmatpush2.msra.mxu0 %v223
    %1197 = vmatprep.subr.mxu0 %v218
    %1198 = vmatpush2.msra.mxu0 %v217
    %1199 = vmatprep.subr.mxu0 %v212
    %1200 = vmatpush2.msra.mxu0 %v211
    %1201 = vmatprep.subr.mxu0 %v206
    %1202 = vmatpush2.msra.mxu0 %v205
    %1203 = vmatprep.subr.mxu0 %v200
    %1204 = vmatpush2.msra.mxu0 %v199
    %1205 = vmatprep.subr.mxu0 %v194
    %1206 = vmatpush2.msra.mxu0 %v193
    %1207 = vmatprep.subr.mxu0 %v188
    %1208 = vmatpush2.msra.mxu0 %v187
    %1209 = vmatprep.subr.mxu0 %v182
    %1210 = vmatpush2.msra.mxu0 %v181
    %1211 = vmatprep.subr.mxu0 %v176
    %1212 = vmatpush2.msra.mxu0 %v175
    %1213 = vmatprep.subr.mxu0 %v170
    %1214 = vmatpush2.msra.mxu0 %v169
    %1215 = vmatprep.subr.mxu0 %v164
    %1216 = vmatpush2.msra.mxu0 %v163
    %1217 = vmatprep.subr.mxu0 %v158
    %1218 = vmatpush2.msra.mxu0 %v157
    %1219 = vmatprep.subr.mxu0 %v152
    %1220 = vmatpush2.msra.mxu0 %v151
    %1221 = vmatprep.subr.mxu0 %v146
    %1222 = vmatpush2.msra.mxu0 %v145
    %1223 = vmatprep.subr.mxu0 %v140
    %1224 = vmatpush2.msra.mxu0 %v139
    %1225 = vmatprep.subr.mxu0 %v134
    %1226 = vmatpush2.msra.mxu0 %v133
    %1227 = vmatprep.mubr.f32.mxu0 %v852
    %1228 = vmatmul.mubr.f32.gmra.mxu0 %v844
    %v1229 = vpop.f32.mrf.mxu0
    %v1230 = vadd.f32 %v816, %v1229
    %v1231 = vpop.f32.mrf.mxu0
    %v1232 = vadd.f32 %v820, %v1231
    %1233 = vdwg.mxu0
    %1234 = vmatprep.subr.mxu0 %v320
    %1235 = vmatpush1.msra.mxu0 %v319
    %1236 = vmatprep.subr.mxu0 %v314
    %1237 = vmatpush1.msra.mxu0 %v313
    %1238 = vmatprep.subr.mxu0 %v308
    %1239 = vmatpush1.msra.mxu0 %v307
    %1240 = vmatprep.subr.mxu0 %v302
    %1241 = vmatpush1.msra.mxu0 %v301
    %1242 = vmatprep.subr.mxu0 %v296
    %1243 = vmatpush1.msra.mxu0 %v295
    %1244 = vmatprep.subr.mxu0 %v290
    %1245 = vmatpush1.msra.mxu0 %v289
    %1246 = vmatprep.subr.mxu0 %v284
    %1247 = vmatpush1.msra.mxu0 %v283
    %1248 = vmatprep.subr.mxu0 %v278
    %1249 = vmatpush1.msra.mxu0 %v277
    %1250 = vmatprep.subr.mxu0 %v272
    %1251 = vmatpush1.msra.mxu0 %v271
    %1252 = vmatprep.subr.mxu0 %v266
    %1253 = vmatpush1.msra.mxu0 %v265
    %1254 = vmatprep.subr.mxu0 %v260
    %1255 = vmatpush1.msra.mxu0 %v259
    %1256 = vmatprep.subr.mxu0 %v254
    %1257 = vmatpush1.msra.mxu0 %v253
    %1258 = vmatprep.subr.mxu0 %v248
    %1259 = vmatpush1.msra.mxu0 %v247
    %1260 = vmatprep.subr.mxu0 %v242
    %1261 = vmatpush1.msra.mxu0 %v241
    %1262 = vmatprep.subr.mxu0 %v236
    %1263 = vmatpush1.msra.mxu0 %v235
    %1264 = vmatprep.subr.mxu0 %v230
    %1265 = vmatpush1.msra.mxu0 %v229
    %1266 = vmatprep.subr.mxu0 %v416
    %1267 = vmatpush2.msra.mxu0 %v415
    %1268 = vmatprep.subr.mxu0 %v410
    %1269 = vmatpush2.msra.mxu0 %v409
    %1270 = vmatprep.subr.mxu0 %v404
    %1271 = vmatpush2.msra.mxu0 %v403
    %1272 = vmatprep.subr.mxu0 %v398
    %1273 = vmatpush2.msra.mxu0 %v397
    %1274 = vmatprep.subr.mxu0 %v392
    %1275 = vmatpush2.msra.mxu0 %v391
    %1276 = vmatprep.subr.mxu0 %v386
    %1277 = vmatpush2.msra.mxu0 %v385
    %1278 = vmatprep.subr.mxu0 %v380
    %1279 = vmatpush2.msra.mxu0 %v379
    %1280 = vmatprep.subr.mxu0 %v374
    %1281 = vmatpush2.msra.mxu0 %v373
    %1282 = vmatprep.subr.mxu0 %v368
    %1283 = vmatpush2.msra.mxu0 %v367
    %1284 = vmatprep.subr.mxu0 %v362
    %1285 = vmatpush2.msra.mxu0 %v361
    %1286 = vmatprep.subr.mxu0 %v356
    %1287 = vmatpush2.msra.mxu0 %v355
    %1288 = vmatprep.subr.mxu0 %v350
    %1289 = vmatpush2.msra.mxu0 %v349
    %1290 = vmatprep.subr.mxu0 %v344
    %1291 = vmatpush2.msra.mxu0 %v343
    %1292 = vmatprep.subr.mxu0 %v338
    %1293 = vmatpush2.msra.mxu0 %v337
    %1294 = vmatprep.subr.mxu0 %v332
    %1295 = vmatpush2.msra.mxu0 %v331
    %1296 = vmatprep.subr.mxu0 %v326
    %1297 = vmatpush2.msra.mxu0 %v325
    %1298 = vmatprep.mubr.f32.mxu0 %v853
    %1299 = vmatmul.mubr.f32.gmra.mxu0 %v851
    %v1300 = vpop.f32.mrf.mxu0
    %v1301 = vadd.f32 %v1230, %v1300
    %v1302 = vpop.f32.mrf.mxu0
    %v1303 = vadd.f32 %v1232, %v1302
    %1304 = vdwg.mxu0
    %1305 = vmatprep.subr.mxu0 %v512
    %1306 = vmatpush1.msra.mxu0 %v511
    %1307 = vmatprep.subr.mxu0 %v506
    %1308 = vmatpush1.msra.mxu0 %v505
    %1309 = vmatprep.subr.mxu0 %v500
    %1310 = vmatpush1.msra.mxu0 %v499
    %1311 = vmatprep.subr.mxu0 %v494
    %1312 = vmatpush1.msra.mxu0 %v493
    %1313 = vmatprep.subr.mxu0 %v488
    %1314 = vmatpush1.msra.mxu0 %v487
    %1315 = vmatprep.subr.mxu0 %v482
    %1316 = vmatpush1.msra.mxu0 %v481
    %1317 = vmatprep.subr.mxu0 %v476
    %1318 = vmatpush1.msra.mxu0 %v475
    %1319 = vmatprep.subr.mxu0 %v470
    %1320 = vmatpush1.msra.mxu0 %v469
    %1321 = vmatprep.subr.mxu0 %v464
    %1322 = vmatpush1.msra.mxu0 %v463
    %1323 = vmatprep.subr.mxu0 %v458
    %1324 = vmatpush1.msra.mxu0 %v457
    %1325 = vmatprep.subr.mxu0 %v452
    %1326 = vmatpush1.msra.mxu0 %v451
    %1327 = vmatprep.subr.mxu0 %v446
    %1328 = vmatpush1.msra.mxu0 %v445
    %1329 = vmatprep.subr.mxu0 %v440
    %1330 = vmatpush1.msra.mxu0 %v439
    %1331 = vmatprep.subr.mxu0 %v434
    %1332 = vmatpush1.msra.mxu0 %v433
    %1333 = vmatprep.subr.mxu0 %v428
    %1334 = vmatpush1.msra.mxu0 %v427
    %1335 = vmatprep.subr.mxu0 %v422
    %1336 = vmatpush1.msra.mxu0 %v421
    %1337 = vmatprep.subr.mxu0 %v608
    %1338 = vmatpush2.msra.mxu0 %v607
    %1339 = vmatprep.subr.mxu0 %v602
    %1340 = vmatpush2.msra.mxu0 %v601
    %1341 = vmatprep.subr.mxu0 %v596
    %1342 = vmatpush2.msra.mxu0 %v595
    %1343 = vmatprep.subr.mxu0 %v590
    %1344 = vmatpush2.msra.mxu0 %v589
    %1345 = vmatprep.subr.mxu0 %v584
    %1346 = vmatpush2.msra.mxu0 %v583
    %1347 = vmatprep.subr.mxu0 %v578
    %1348 = vmatpush2.msra.mxu0 %v577
    %1349 = vmatprep.subr.mxu0 %v572
    %1350 = vmatpush2.msra.mxu0 %v571
    %1351 = vmatprep.subr.mxu0 %v566
    %1352 = vmatpush2.msra.mxu0 %v565
    %1353 = vmatprep.subr.mxu0 %v560
    %1354 = vmatpush2.msra.mxu0 %v559
    %1355 = vmatprep.subr.mxu0 %v554
    %1356 = vmatpush2.msra.mxu0 %v553
    %1357 = vmatprep.subr.mxu0 %v548
    %1358 = vmatpush2.msra.mxu0 %v547
    %1359 = vmatprep.subr.mxu0 %v542
    %1360 = vmatpush2.msra.mxu0 %v541
    %1361 = vmatprep.subr.mxu0 %v536
    %1362 = vmatpush2.msra.mxu0 %v535
    %1363 = vmatprep.subr.mxu0 %v530
    %1364 = vmatpush2.msra.mxu0 %v529
    %1365 = vmatprep.subr.mxu0 %v524
    %1366 = vmatpush2.msra.mxu0 %v523
    %1367 = vmatprep.subr.mxu0 %v518
    %1368 = vmatpush2.msra.mxu0 %v517
    %1369 = vmatprep.mubr.f32.mxu0 %v869
    %1370 = vmatmul.mubr.f32.gmra.mxu0 %v861
    %v1371 = vpop.f32.mrf.mxu0
    %v1372 = vadd.f32 %v1301, %v1371
    %v1373 = vpop.f32.mrf.mxu0
    %v1374 = vadd.f32 %v1303, %v1373
    %1375 = vdwg.mxu0
    %1376 = vmatprep.subr.mxu0 %v704
    %1377 = vmatpush1.msra.mxu0 %v703
    %1378 = vmatprep.subr.mxu0 %v698
    %1379 = vmatpush1.msra.mxu0 %v697
    %1380 = vmatprep.subr.mxu0 %v692
    %1381 = vmatpush1.msra.mxu0 %v691
    %1382 = vmatprep.subr.mxu0 %v686
    %1383 = vmatpush1.msra.mxu0 %v685
    %1384 = vmatprep.subr.mxu0 %v680
    %1385 = vmatpush1.msra.mxu0 %v679
    %1386 = vmatprep.subr.mxu0 %v674
    %1387 = vmatpush1.msra.mxu0 %v673
    %1388 = vmatprep.subr.mxu0 %v668
    %1389 = vmatpush1.msra.mxu0 %v667
    %1390 = vmatprep.subr.mxu0 %v662
    %1391 = vmatpush1.msra.mxu0 %v661
    %1392 = vmatprep.subr.mxu0 %v656
    %1393 = vmatpush1.msra.mxu0 %v655
    %1394 = vmatprep.subr.mxu0 %v650
    %1395 = vmatpush1.msra.mxu0 %v649
    %1396 = vmatprep.subr.mxu0 %v644
    %1397 = vmatpush1.msra.mxu0 %v643
    %1398 = vmatprep.subr.mxu0 %v638
    %1399 = vmatpush1.msra.mxu0 %v637
    %1400 = vmatprep.subr.mxu0 %v632
    %1401 = vmatpush1.msra.mxu0 %v631
    %1402 = vmatprep.subr.mxu0 %v626
    %1403 = vmatpush1.msra.mxu0 %v625
    %1404 = vmatprep.subr.mxu0 %v620
    %1405 = vmatpush1.msra.mxu0 %v619
    %1406 = vmatprep.subr.mxu0 %v614
    %1407 = vmatpush1.msra.mxu0 %v613
    %1408 = vmatprep.subr.mxu0 %v800
    %1409 = vmatpush2.msra.mxu0 %v799
    %1410 = vmatprep.subr.mxu0 %v794
    %1411 = vmatpush2.msra.mxu0 %v793
    %1412 = vmatprep.subr.mxu0 %v788
    %1413 = vmatpush2.msra.mxu0 %v787
    %1414 = vmatprep.subr.mxu0 %v782
    %1415 = vmatpush2.msra.mxu0 %v781
    %1416 = vmatprep.subr.mxu0 %v776
    %1417 = vmatpush2.msra.mxu0 %v775
    %1418 = vmatprep.subr.mxu0 %v770
    %1419 = vmatpush2.msra.mxu0 %v769
    %1420 = vmatprep.subr.mxu0 %v764
    %1421 = vmatpush2.msra.mxu0 %v763
    %1422 = vmatprep.subr.mxu0 %v758
    %1423 = vmatpush2.msra.mxu0 %v757
    %1424 = vmatprep.subr.mxu0 %v752
    %1425 = vmatpush2.msra.mxu0 %v751
    %1426 = vmatprep.subr.mxu0 %v746
    %1427 = vmatpush2.msra.mxu0 %v745
    %1428 = vmatprep.subr.mxu0 %v740
    %1429 = vmatpush2.msra.mxu0 %v739
    %1430 = vmatprep.subr.mxu0 %v734
    %1431 = vmatpush2.msra.mxu0 %v733
    %1432 = vmatprep.subr.mxu0 %v728
    %1433 = vmatpush2.msra.mxu0 %v727
    %1434 = vmatprep.subr.mxu0 %v722
    %1435 = vmatpush2.msra.mxu0 %v721
    %1436 = vmatprep.subr.mxu0 %v716
    %1437 = vmatpush2.msra.mxu0 %v715
    %1438 = vmatprep.subr.mxu0 %v710
    %1439 = vmatpush2.msra.mxu0 %v709
    %1440 = vmatprep.mubr.f32.mxu0 %v870
    %1441 = vmatmul.mubr.f32.gmra.mxu0 %v868
    %v1442 = vpop.f32.mrf.mxu0
    %v1443 = vadd.f32 %v1372, %v1442
    %v1444 = vpop.f32.mrf.mxu0
    %v1445 = vadd.f32 %v1374, %v1444
    %1446 = vdwg.mxu0
    %1447 = vmatprep.subr.mxu0 %v130
    %1448 = vmatpush1.msra.mxu0 %v129
    %1449 = vmatprep.subr.mxu0 %v124
    %1450 = vmatpush1.msra.mxu0 %v123
    %1451 = vmatprep.subr.mxu0 %v118
    %1452 = vmatpush1.msra.mxu0 %v117
    %1453 = vmatprep.subr.mxu0 %v112
    %1454 = vmatpush1.msra.mxu0 %v111
    %1455 = vmatprep.subr.mxu0 %v106
    %1456 = vmatpush1.msra.mxu0 %v105
    %1457 = vmatprep.subr.mxu0 %v100
    %1458 = vmatpush1.msra.mxu0 %v99
    %1459 = vmatprep.subr.mxu0 %v94
    %1460 = vmatpush1.msra.mxu0 %v93
    %1461 = vmatprep.subr.mxu0 %v88
    %1462 = vmatpush1.msra.mxu0 %v87
    %1463 = vmatprep.subr.mxu0 %v82
    %1464 = vmatpush1.msra.mxu0 %v81
    %1465 = vmatprep.subr.mxu0 %v76
    %1466 = vmatpush1.msra.mxu0 %v75
    %1467 = vmatprep.subr.mxu0 %v70
    %1468 = vmatpush1.msra.mxu0 %v69
    %1469 = vmatprep.subr.mxu0 %v64
    %1470 = vmatpush1.msra.mxu0 %v63
    %1471 = vmatprep.subr.mxu0 %v58
    %1472 = vmatpush1.msra.mxu0 %v57
    %1473 = vmatprep.subr.mxu0 %v52
    %1474 = vmatpush1.msra.mxu0 %v51
    %1475 = vmatprep.subr.mxu0 %v46
    %1476 = vmatpush1.msra.mxu0 %v45
    %1477 = vmatprep.subr.mxu0 %v40
    %1478 = vmatpush1.msra.mxu0 %v39
    %1479 = vmatprep.subr.mxu0 %v226
    %1480 = vmatpush2.msra.mxu0 %v225
    %1481 = vmatprep.subr.mxu0 %v220
    %1482 = vmatpush2.msra.mxu0 %v219
    %1483 = vmatprep.subr.mxu0 %v214
    %1484 = vmatpush2.msra.mxu0 %v213
    %1485 = vmatprep.subr.mxu0 %v208
    %1486 = vmatpush2.msra.mxu0 %v207
    %1487 = vmatprep.subr.mxu0 %v202
    %1488 = vmatpush2.msra.mxu0 %v201
    %1489 = vmatprep.subr.mxu0 %v196
    %1490 = vmatpush2.msra.mxu0 %v195
    %1491 = vmatprep.subr.mxu0 %v190
    %1492 = vmatpush2.msra.mxu0 %v189
    %1493 = vmatprep.subr.mxu0 %v184
    %1494 = vmatpush2.msra.mxu0 %v183
    %1495 = vmatprep.subr.mxu0 %v178
    %1496 = vmatpush2.msra.mxu0 %v177
    %1497 = vmatprep.subr.mxu0 %v172
    %1498 = vmatpush2.msra.mxu0 %v171
    %1499 = vmatprep.subr.mxu0 %v166
    %1500 = vmatpush2.msra.mxu0 %v165
    %1501 = vmatprep.subr.mxu0 %v160
    %1502 = vmatpush2.msra.mxu0 %v159
    %1503 = vmatprep.subr.mxu0 %v154
    %1504 = vmatpush2.msra.mxu0 %v153
    %1505 = vmatprep.subr.mxu0 %v148
    %1506 = vmatpush2.msra.mxu0 %v147
    %1507 = vmatprep.subr.mxu0 %v142
    %1508 = vmatpush2.msra.mxu0 %v141
    %1509 = vmatprep.subr.mxu0 %v136
    %1510 = vmatpush2.msra.mxu0 %v135
    %1511 = vmatprep.mubr.f32.mxu0 %v852
    %1512 = vmatmul.mubr.f32.gmra.mxu0 %v844
    %v1513 = vpop.f32.mrf.mxu0
    %v1514 = vadd.f32 %v824, %v1513
    %v1515 = vpop.f32.mrf.mxu0
    %v1516 = vadd.f32 %v828, %v1515
    %1517 = vdwg.mxu0
    %1518 = vmatprep.subr.mxu0 %v322
    %1519 = vmatpush1.msra.mxu0 %v321
    %1520 = vmatprep.subr.mxu0 %v316
    %1521 = vmatpush1.msra.mxu0 %v315
    %1522 = vmatprep.subr.mxu0 %v310
    %1523 = vmatpush1.msra.mxu0 %v309
    %1524 = vmatprep.subr.mxu0 %v304
    %1525 = vmatpush1.msra.mxu0 %v303
    %1526 = vmatprep.subr.mxu0 %v298
    %1527 = vmatpush1.msra.mxu0 %v297
    %1528 = vmatprep.subr.mxu0 %v292
    %1529 = vmatpush1.msra.mxu0 %v291
    %1530 = vmatprep.subr.mxu0 %v286
    %1531 = vmatpush1.msra.mxu0 %v285
    %1532 = vmatprep.subr.mxu0 %v280
    %1533 = vmatpush1.msra.mxu0 %v279
    %1534 = vmatprep.subr.mxu0 %v274
    %1535 = vmatpush1.msra.mxu0 %v273
    %1536 = vmatprep.subr.mxu0 %v268
    %1537 = vmatpush1.msra.mxu0 %v267
    %1538 = vmatprep.subr.mxu0 %v262
    %1539 = vmatpush1.msra.mxu0 %v261
    %1540 = vmatprep.subr.mxu0 %v256
    %1541 = vmatpush1.msra.mxu0 %v255
    %1542 = vmatprep.subr.mxu0 %v250
    %1543 = vmatpush1.msra.mxu0 %v249
    %1544 = vmatprep.subr.mxu0 %v244
    %1545 = vmatpush1.msra.mxu0 %v243
    %1546 = vmatprep.subr.mxu0 %v238
    %1547 = vmatpush1.msra.mxu0 %v237
    %1548 = vmatprep.subr.mxu0 %v232
    %1549 = vmatpush1.msra.mxu0 %v231
    %1550 = vmatprep.subr.mxu0 %v418
    %1551 = vmatpush2.msra.mxu0 %v417
    %1552 = vmatprep.subr.mxu0 %v412
    %1553 = vmatpush2.msra.mxu0 %v411
    %1554 = vmatprep.subr.mxu0 %v406
    %1555 = vmatpush2.msra.mxu0 %v405
    %1556 = vmatprep.subr.mxu0 %v400
    %1557 = vmatpush2.msra.mxu0 %v399
    %1558 = vmatprep.subr.mxu0 %v394
    %1559 = vmatpush2.msra.mxu0 %v393
    %1560 = vmatprep.subr.mxu0 %v388
    %1561 = vmatpush2.msra.mxu0 %v387
    %1562 = vmatprep.subr.mxu0 %v382
    %1563 = vmatpush2.msra.mxu0 %v381
    %1564 = vmatprep.subr.mxu0 %v376
    %1565 = vmatpush2.msra.mxu0 %v375
    %1566 = vmatprep.subr.mxu0 %v370
    %1567 = vmatpush2.msra.mxu0 %v369
    %1568 = vmatprep.subr.mxu0 %v364
    %1569 = vmatpush2.msra.mxu0 %v363
    %1570 = vmatprep.subr.mxu0 %v358
    %1571 = vmatpush2.msra.mxu0 %v357
    %1572 = vmatprep.subr.mxu0 %v352
    %1573 = vmatpush2.msra.mxu0 %v351
    %1574 = vmatprep.subr.mxu0 %v346
    %1575 = vmatpush2.msra.mxu0 %v345
    %1576 = vmatprep.subr.mxu0 %v340
    %1577 = vmatpush2.msra.mxu0 %v339
    %1578 = vmatprep.subr.mxu0 %v334
    %1579 = vmatpush2.msra.mxu0 %v333
    %1580 = vmatprep.subr.mxu0 %v328
    %1581 = vmatpush2.msra.mxu0 %v327
    %1582 = vmatprep.mubr.f32.mxu0 %v853
    %1583 = vmatmul.mubr.f32.gmra.mxu0 %v851
    %v1584 = vpop.f32.mrf.mxu0
    %v1585 = vadd.f32 %v1514, %v1584
    %v1586 = vpop.f32.mrf.mxu0
    %v1587 = vadd.f32 %v1516, %v1586
    %1588 = vdwg.mxu0
    %1589 = vmatprep.subr.mxu0 %v514
    %1590 = vmatpush1.msra.mxu0 %v513
    %1591 = vmatprep.subr.mxu0 %v508
    %1592 = vmatpush1.msra.mxu0 %v507
    %1593 = vmatprep.subr.mxu0 %v502
    %1594 = vmatpush1.msra.mxu0 %v501
    %1595 = vmatprep.subr.mxu0 %v496
    %1596 = vmatpush1.msra.mxu0 %v495
    %1597 = vmatprep.subr.mxu0 %v490
    %1598 = vmatpush1.msra.mxu0 %v489
    %1599 = vmatprep.subr.mxu0 %v484
    %1600 = vmatpush1.msra.mxu0 %v483
    %1601 = vmatprep.subr.mxu0 %v478
    %1602 = vmatpush1.msra.mxu0 %v477
    %1603 = vmatprep.subr.mxu0 %v472
    %1604 = vmatpush1.msra.mxu0 %v471
    %1605 = vmatprep.subr.mxu0 %v466
    %1606 = vmatpush1.msra.mxu0 %v465
    %1607 = vmatprep.subr.mxu0 %v460
    %1608 = vmatpush1.msra.mxu0 %v459
    %1609 = vmatprep.subr.mxu0 %v454
    %1610 = vmatpush1.msra.mxu0 %v453
    %1611 = vmatprep.subr.mxu0 %v448
    %1612 = vmatpush1.msra.mxu0 %v447
    %1613 = vmatprep.subr.mxu0 %v442
    %1614 = vmatpush1.msra.mxu0 %v441
    %1615 = vmatprep.subr.mxu0 %v436
    %1616 = vmatpush1.msra.mxu0 %v435
    %1617 = vmatprep.subr.mxu0 %v430
    %1618 = vmatpush1.msra.mxu0 %v429
    %1619 = vmatprep.subr.mxu0 %v424
    %1620 = vmatpush1.msra.mxu0 %v423
    %1621 = vmatprep.subr.mxu0 %v610
    %1622 = vmatpush2.msra.mxu0 %v609
    %1623 = vmatprep.subr.mxu0 %v604
    %1624 = vmatpush2.msra.mxu0 %v603
    %1625 = vmatprep.subr.mxu0 %v598
    %1626 = vmatpush2.msra.mxu0 %v597
    %1627 = vmatprep.subr.mxu0 %v592
    %1628 = vmatpush2.msra.mxu0 %v591
    %1629 = vmatprep.subr.mxu0 %v586
    %1630 = vmatpush2.msra.mxu0 %v585
    %1631 = vmatprep.subr.mxu0 %v580
    %1632 = vmatpush2.msra.mxu0 %v579
    %1633 = vmatprep.subr.mxu0 %v574
    %1634 = vmatpush2.msra.mxu0 %v573
    %1635 = vmatprep.subr.mxu0 %v568
    %1636 = vmatpush2.msra.mxu0 %v567
    %1637 = vmatprep.subr.mxu0 %v562
    %1638 = vmatpush2.msra.mxu0 %v561
    %1639 = vmatprep.subr.mxu0 %v556
    %1640 = vmatpush2.msra.mxu0 %v555
    %1641 = vmatprep.subr.mxu0 %v550
    %1642 = vmatpush2.msra.mxu0 %v549
    %1643 = vmatprep.subr.mxu0 %v544
    %1644 = vmatpush2.msra.mxu0 %v543
    %1645 = vmatprep.subr.mxu0 %v538
    %1646 = vmatpush2.msra.mxu0 %v537
    %1647 = vmatprep.subr.mxu0 %v532
    %1648 = vmatpush2.msra.mxu0 %v531
    %1649 = vmatprep.subr.mxu0 %v526
    %1650 = vmatpush2.msra.mxu0 %v525
    %1651 = vmatprep.subr.mxu0 %v520
    %1652 = vmatpush2.msra.mxu0 %v519
    %1653 = vmatprep.mubr.f32.mxu0 %v869
    %1654 = vmatmul.mubr.f32.gmra.mxu0 %v861
    %v1655 = vpop.f32.mrf.mxu0
    %v1656 = vadd.f32 %v1585, %v1655
    %v1657 = vpop.f32.mrf.mxu0
    %v1658 = vadd.f32 %v1587, %v1657
    %1659 = vdwg.mxu0
    %1660 = vmatprep.subr.mxu0 %v706
    %1661 = vmatpush1.msra.mxu0 %v705
    %1662 = vmatprep.subr.mxu0 %v700
    %1663 = vmatpush1.msra.mxu0 %v699
    %1664 = vmatprep.subr.mxu0 %v694
    %1665 = vmatpush1.msra.mxu0 %v693
    %1666 = vmatprep.subr.mxu0 %v688
    %1667 = vmatpush1.msra.mxu0 %v687
    %1668 = vmatprep.subr.mxu0 %v682
    %1669 = vmatpush1.msra.mxu0 %v681
    %1670 = vmatprep.subr.mxu0 %v676
    %1671 = vmatpush1.msra.mxu0 %v675
    %1672 = vmatprep.subr.mxu0 %v670
    %1673 = vmatpush1.msra.mxu0 %v669
    %1674 = vmatprep.subr.mxu0 %v664
    %1675 = vmatpush1.msra.mxu0 %v663
    %1676 = vmatprep.subr.mxu0 %v658
    %1677 = vmatpush1.msra.mxu0 %v657
    %1678 = vmatprep.subr.mxu0 %v652
    %1679 = vmatpush1.msra.mxu0 %v651
    %1680 = vmatprep.subr.mxu0 %v646
    %1681 = vmatpush1.msra.mxu0 %v645
    %1682 = vmatprep.subr.mxu0 %v640
    %1683 = vmatpush1.msra.mxu0 %v639
    %1684 = vmatprep.subr.mxu0 %v634
    %1685 = vmatpush1.msra.mxu0 %v633
    %1686 = vmatprep.subr.mxu0 %v628
    %1687 = vmatpush1.msra.mxu0 %v627
    %1688 = vmatprep.subr.mxu0 %v622
    %1689 = vmatpush1.msra.mxu0 %v621
    %1690 = vmatprep.subr.mxu0 %v616
    %1691 = vmatpush1.msra.mxu0 %v615
    %1692 = vmatprep.subr.mxu0 %v802
    %1693 = vmatpush2.msra.mxu0 %v801
    %1694 = vmatprep.subr.mxu0 %v796
    %1695 = vmatpush2.msra.mxu0 %v795
    %1696 = vmatprep.subr.mxu0 %v790
    %1697 = vmatpush2.msra.mxu0 %v789
    %1698 = vmatprep.subr.mxu0 %v784
    %1699 = vmatpush2.msra.mxu0 %v783
    %1700 = vmatprep.subr.mxu0 %v778
    %1701 = vmatpush2.msra.mxu0 %v777
    %1702 = vmatprep.subr.mxu0 %v772
    %1703 = vmatpush2.msra.mxu0 %v771
    %1704 = vmatprep.subr.mxu0 %v766
    %1705 = vmatpush2.msra.mxu0 %v765
    %1706 = vmatprep.subr.mxu0 %v760
    %1707 = vmatpush2.msra.mxu0 %v759
    %1708 = vmatprep.subr.mxu0 %v754
    %1709 = vmatpush2.msra.mxu0 %v753
    %1710 = vmatprep.subr.mxu0 %v748
    %1711 = vmatpush2.msra.mxu0 %v747
    %1712 = vmatprep.subr.mxu0 %v742
    %1713 = vmatpush2.msra.mxu0 %v741
    %1714 = vmatprep.subr.mxu0 %v736
    %1715 = vmatpush2.msra.mxu0 %v735
    %1716 = vmatprep.subr.mxu0 %v730
    %1717 = vmatpush2.msra.mxu0 %v729
    %1718 = vmatprep.subr.mxu0 %v724
    %1719 = vmatpush2.msra.mxu0 %v723
    %1720 = vmatprep.subr.mxu0 %v718
    %1721 = vmatpush2.msra.mxu0 %v717
    %1722 = vmatprep.subr.mxu0 %v712
    %1723 = vmatpush2.msra.mxu0 %v711
    %1724 = vmatprep.mubr.f32.mxu0 %v870
    %1725 = vmatmul.mubr.f32.gmra.mxu0 %v868
    %v1726 = vpop.f32.mrf.mxu0
    %v1727 = vadd.f32 %v1656, %v1726
    %v1728 = vpop.f32.mrf.mxu0
    %v1729 = vadd.f32 %v1658, %v1728
    %1730 = vdwg.mxu0
    %v1731 = vmax.f32 %v1159, 0.0
    %v1732 = vmax.f32 %v1161, 0.0
    %v1733 = vmax.f32 %v1443, 0.0
    %v1734 = vmax.f32 %v1445, 0.0
    %v1735 = vmax.f32 %v1727, 0.0
    %v1736 = vmax.f32 %v1729, 0.0
    %v1737 = vld [vmem:[%s3] sm:$0xff]
    %v1738 = vld [vmem:[%s3 + $0x8] sm:$0xff]
    %v1739 = vld [vmem:[%s3 + $0x10] sm:$0xff]
    %v1740 = vld [vmem:[%s3 + $0x18] sm:$0xff]
    %v1741 = vld [vmem:[%s3 + $0x20] sm:$0xff]
    %v1742 = vld [vmem:[%s3 + $0x28] sm:$0xff]
    %v1743 = vld [vmem:[%s3 + $0x30] sm:$0xff]
    %v1744 = vld [vmem:[%s3 + $0x38] sm:$0xff]
    %v1745 = vld [vmem:[%s3 + $0x40] sm:$0xff]
    %v1746 = vld [vmem:[%s3 + $0x48] sm:$0xff]
    %v1747 = vld [vmem:[%s3 + $0x50] sm:$0xff]
    %v1748 = vld [vmem:[%s3 + $0x58] sm:$0xff]
    %v1749 = vld [vmem:[%s3 + $0x60] sm:$0xff]
    %v1750 = vld [vmem:[%s3 + $0x68] sm:$0xff]
    %v1751 = vld [vmem:[%s3 + $0x70] sm:$0xff]
    %v1752 = vld [vmem:[%s3 + $0x78] sm:$0xff]
    %v1753 = vld [vmem:[%s3 + $0x80] sm:$0xff]
    %v1754 = vld [vmem:[%s3 + $0x88] sm:$0xff]
    %v1755 = vld [vmem:[%s3 + $0x90] sm:$0xff]
    %v1756 = vld [vmem:[%s3 + $0x98] sm:$0xff]
    %v1757 = vld [vmem:[%s3 + $0xa0] sm:$0xff]
    %v1758 = vld [vmem:[%s3 + $0xa8] sm:$0xff]
    %v1759 = vld [vmem:[%s3 + $0xb0] sm:$0xff]
    %v1760 = vld [vmem:[%s3 + $0xb8] sm:$0xff]
    %v1761 = vld [vmem:[%s3 + $0xc0] sm:$0xff]
    %v1762 = vld [vmem:[%s3 + $0xc8] sm:$0xff]
    %v1763 = vld [vmem:[%s3 + $0xd0] sm:$0xff]
    %v1764 = vld [vmem:[%s3 + $0xd8] sm:$0xff]
    %v1765 = vld [vmem:[%s3 + $0xe0] sm:$0xff]
    %v1766 = vld [vmem:[%s3 + $0xe8] sm:$0xff]
    %v1767 = vld [vmem:[%s3 + $0xf0] sm:$0xff]
    %v1768 = vld [vmem:[%s3 + $0xf8] sm:$0xff]
    %v1769 = vld [vmem:[%s3 + $0x100] sm:$0xff]
    %v1770 = vld [vmem:[%s3 + $0x108] sm:$0xff]
    %v1771 = vld [vmem:[%s3 + $0x110] sm:$0xff]
    %v1772 = vld [vmem:[%s3 + $0x118] sm:$0xff]
    %v1773 = vld [vmem:[%s3 + $0x120] sm:$0xff]
    %v1774 = vld [vmem:[%s3 + $0x128] sm:$0xff]
    %v1775 = vld [vmem:[%s3 + $0x130] sm:$0xff]
    %v1776 = vld [vmem:[%s3 + $0x138] sm:$0xff]
    %v1777 = vld [vmem:[%s3 + $0x140] sm:$0xff]
    %v1778 = vld [vmem:[%s3 + $0x148] sm:$0xff]
    %v1779 = vld [vmem:[%s3 + $0x150] sm:$0xff]
    %v1780 = vld [vmem:[%s3 + $0x158] sm:$0xff]
    %v1781 = vld [vmem:[%s3 + $0x160] sm:$0xff]
    %v1782 = vld [vmem:[%s3 + $0x168] sm:$0xff]
    %v1783 = vld [vmem:[%s3 + $0x170] sm:$0xff]
    %v1784 = vld [vmem:[%s3 + $0x178] sm:$0xff]
    %v1785 = vld [vmem:[%s3 + $0x180] sm:$0xff]
    %v1786 = vld [vmem:[%s3 + $0x188] sm:$0xff]
    %v1787 = vld [vmem:[%s3 + $0x190] sm:$0xff]
    %v1788 = vld [vmem:[%s3 + $0x198] sm:$0xff]
    %v1789 = vld [vmem:[%s3 + $0x1a0] sm:$0xff]
    %v1790 = vld [vmem:[%s3 + $0x1a8] sm:$0xff]
    %v1791 = vld [vmem:[%s3 + $0x1b0] sm:$0xff]
    %v1792 = vld [vmem:[%s3 + $0x1b8] sm:$0xff]
    %v1793 = vld [vmem:[%s3 + $0x1c0] sm:$0xff]
    %v1794 = vld [vmem:[%s3 + $0x1c8] sm:$0xff]
    %v1795 = vld [vmem:[%s3 + $0x1d0] sm:$0xff]
    %v1796 = vld [vmem:[%s3 + $0x1d8] sm:$0xff]
    %v1797 = vld [vmem:[%s3 + $0x1e0] sm:$0xff]
    %v1798 = vld [vmem:[%s3 + $0x1e8] sm:$0xff]
    %v1799 = vld [vmem:[%s3 + $0x1f0] sm:$0xff]
    %v1800 = vld [vmem:[%s3 + $0x1f8] sm:$0xff]
    %v1801 = vld [vmem:[%s3 + $0x200] sm:$0xff]
    %v1802 = vld [vmem:[%s3 + $0x208] sm:$0xff]
    %v1803 = vld [vmem:[%s3 + $0x210] sm:$0xff]
    %v1804 = vld [vmem:[%s3 + $0x218] sm:$0xff]
    %v1805 = vld [vmem:[%s3 + $0x220] sm:$0xff]
    %v1806 = vld [vmem:[%s3 + $0x228] sm:$0xff]
    %v1807 = vld [vmem:[%s3 + $0x230] sm:$0xff]
    %v1808 = vld [vmem:[%s3 + $0x238] sm:$0xff]
    %v1809 = vld [vmem:[%s3 + $0x240] sm:$0xff]
    %v1810 = vld [vmem:[%s3 + $0x248] sm:$0xff]
    %v1811 = vld [vmem:[%s3 + $0x250] sm:$0xff]
    %v1812 = vld [vmem:[%s3 + $0x258] sm:$0xff]
    %v1813 = vld [vmem:[%s3 + $0x260] sm:$0xff]
    %v1814 = vld [vmem:[%s3 + $0x268] sm:$0xff]
    %v1815 = vld [vmem:[%s3 + $0x270] sm:$0xff]
    %v1816 = vld [vmem:[%s3 + $0x278] sm:$0xff]
    %v1817 = vld [vmem:[%s3 + $0x280] sm:$0xff]
    %v1818 = vld [vmem:[%s3 + $0x288] sm:$0xff]
    %v1819 = vld [vmem:[%s3 + $0x290] sm:$0xff]
    %v1820 = vld [vmem:[%s3 + $0x298] sm:$0xff]
    %v1821 = vld [vmem:[%s3 + $0x2a0] sm:$0xff]
    %v1822 = vld [vmem:[%s3 + $0x2a8] sm:$0xff]
    %v1823 = vld [vmem:[%s3 + $0x2b0] sm:$0xff]
    %v1824 = vld [vmem:[%s3 + $0x2b8] sm:$0xff]
    %v1825 = vld [vmem:[%s3 + $0x2c0] sm:$0xff]
    %v1826 = vld [vmem:[%s3 + $0x2c8] sm:$0xff]
    %v1827 = vld [vmem:[%s3 + $0x2d0] sm:$0xff]
    %v1828 = vld [vmem:[%s3 + $0x2d8] sm:$0xff]
    %v1829 = vld [vmem:[%s3 + $0x2e0] sm:$0xff]
    %v1830 = vld [vmem:[%s3 + $0x2e8] sm:$0xff]
    %v1831 = vld [vmem:[%s3 + $0x2f0] sm:$0xff]
    %v1832 = vld [vmem:[%s3 + $0x2f8] sm:$0xff]
    %v1833 = vld [vmem:[%s4] sm:$0x1]
    %v1835 = vlaneseq
    %v1836 = vshrl.u32 %v1835, 7
    %v1837 = vsub.s32 0, %v1836
    %v1838 = vrot.slane %v1833, %v1837
    %1840 = vmatprep.subr.mxu0 0.0
    %1841 = vmatpush1.msra.mxu0 %v1752
    %1842 = vmatprep.subr.mxu0 0.0
    %1843 = vmatpush1.msra.mxu0 %v1751
    %1844 = vmatprep.subr.mxu0 0.0
    %1845 = vmatpush1.msra.mxu0 %v1750
    %1846 = vmatprep.subr.mxu0 0.0
    %1847 = vmatpush1.msra.mxu0 %v1749
    %1848 = vmatprep.subr.mxu0 0.0
    %1849 = vmatpush1.msra.mxu0 %v1748
    %1850 = vmatprep.subr.mxu0 0.0
    %1851 = vmatpush1.msra.mxu0 %v1747
    %1852 = vmatprep.subr.mxu0 0.0
    %1853 = vmatpush1.msra.mxu0 %v1746
    %1854 = vmatprep.subr.mxu0 0.0
    %1855 = vmatpush1.msra.mxu0 %v1745
    %1856 = vmatprep.subr.mxu0 0.0
    %1857 = vmatpush1.msra.mxu0 %v1744
    %1858 = vmatprep.subr.mxu0 0.0
    %1859 = vmatpush1.msra.mxu0 %v1743
    %1860 = vmatprep.subr.mxu0 0.0
    %1861 = vmatpush1.msra.mxu0 %v1742
    %1862 = vmatprep.subr.mxu0 0.0
    %1863 = vmatpush1.msra.mxu0 %v1741
    %1864 = vmatprep.subr.mxu0 0.0
    %1865 = vmatpush1.msra.mxu0 %v1740
    %1866 = vmatprep.subr.mxu0 0.0
    %1867 = vmatpush1.msra.mxu0 %v1739
    %1868 = vmatprep.subr.mxu0 0.0
    %1869 = vmatpush1.msra.mxu0 %v1738
    %1870 = vmatprep.subr.mxu0 0.0
    %1871 = vmatpush1.msra.mxu0 %v1737
    %1872 = vmatprep.subr.mxu0 0.0
    %1873 = vmatpush2.msra.mxu0 %v1768
    %1874 = vmatprep.subr.mxu0 0.0
    %1875 = vmatpush2.msra.mxu0 %v1767
    %1876 = vmatprep.subr.mxu0 0.0
    %1877 = vmatpush2.msra.mxu0 %v1766
    %1878 = vmatprep.subr.mxu0 0.0
    %1879 = vmatpush2.msra.mxu0 %v1765
    %1880 = vmatprep.subr.mxu0 0.0
    %1881 = vmatpush2.msra.mxu0 %v1764
    %1882 = vmatprep.subr.mxu0 0.0
    %1883 = vmatpush2.msra.mxu0 %v1763
    %1884 = vmatprep.subr.mxu0 0.0
    %1885 = vmatpush2.msra.mxu0 %v1762
    %1886 = vmatprep.subr.mxu0 0.0
    %1887 = vmatpush2.msra.mxu0 %v1761
    %1888 = vmatprep.subr.mxu0 0.0
    %1889 = vmatpush2.msra.mxu0 %v1760
    %1890 = vmatprep.subr.mxu0 0.0
    %1891 = vmatpush2.msra.mxu0 %v1759
    %1892 = vmatprep.subr.mxu0 0.0
    %1893 = vmatpush2.msra.mxu0 %v1758
    %1894 = vmatprep.subr.mxu0 0.0
    %1895 = vmatpush2.msra.mxu0 %v1757
    %1896 = vmatprep.subr.mxu0 0.0
    %1897 = vmatpush2.msra.mxu0 %v1756
    %1898 = vmatprep.subr.mxu0 0.0
    %1899 = vmatpush2.msra.mxu0 %v1755
    %1900 = vmatprep.subr.mxu0 0.0
    %1901 = vmatpush2.msra.mxu0 %v1754
    %1902 = vmatprep.subr.mxu0 0.0
    %1903 = vmatpush2.msra.mxu0 %v1753
    %1904 = vmatprep.mubr.f32.mxu0 %v1732
    %1905 = vmatmul.mubr.f32.gmra.mxu0 %v1731
    %v1906 = vpop.f32.mrf.mxu0
    %v1907 = vadd.f32 %v1838, %v1906
    %v1908 = vpop.f32.mrf.mxu0
    %1909 = vdwg.mxu0
    %1910 = vmatprep.subr.mxu0 0.0
    %1911 = vmatpush1.msra.mxu0 %v1784
    %1912 = vmatprep.subr.mxu0 0.0
    %1913 = vmatpush1.msra.mxu0 %v1783
    %1914 = vmatprep.subr.mxu0 0.0
    %1915 = vmatpush1.msra.mxu0 %v1782
    %1916 = vmatprep.subr.mxu0 0.0
    %1917 = vmatpush1.msra.mxu0 %v1781
    %1918 = vmatprep.subr.mxu0 0.0
    %1919 = vmatpush1.msra.mxu0 %v1780
    %1920 = vmatprep.subr.mxu0 0.0
    %1921 = vmatpush1.msra.mxu0 %v1779
    %1922 = vmatprep.subr.mxu0 0.0
    %1923 = vmatpush1.msra.mxu0 %v1778
    %1924 = vmatprep.subr.mxu0 0.0
    %1925 = vmatpush1.msra.mxu0 %v1777
    %1926 = vmatprep.subr.mxu0 0.0
    %1927 = vmatpush1.msra.mxu0 %v1776
    %1928 = vmatprep.subr.mxu0 0.0
    %1929 = vmatpush1.msra.mxu0 %v1775
    %1930 = vmatprep.subr.mxu0 0.0
    %1931 = vmatpush1.msra.mxu0 %v1774
    %1932 = vmatprep.subr.mxu0 0.0
    %1933 = vmatpush1.msra.mxu0 %v1773
    %1934 = vmatprep.subr.mxu0 0.0
    %1935 = vmatpush1.msra.mxu0 %v1772
    %1936 = vmatprep.subr.mxu0 0.0
    %1937 = vmatpush1.msra.mxu0 %v1771
    %1938 = vmatprep.subr.mxu0 0.0
    %1939 = vmatpush1.msra.mxu0 %v1770
    %1940 = vmatprep.subr.mxu0 0.0
    %1941 = vmatpush1.msra.mxu0 %v1769
    %1942 = vmatprep.subr.mxu0 0.0
    %1943 = vmatpush2.msra.mxu0 %v1800
    %1944 = vmatprep.subr.mxu0 0.0
    %1945 = vmatpush2.msra.mxu0 %v1799
    %1946 = vmatprep.subr.mxu0 0.0
    %1947 = vmatpush2.msra.mxu0 %v1798
    %1948 = vmatprep.subr.mxu0 0.0
    %1949 = vmatpush2.msra.mxu0 %v1797
    %1950 = vmatprep.subr.mxu0 0.0
    %1951 = vmatpush2.msra.mxu0 %v1796
    %1952 = vmatprep.subr.mxu0 0.0
    %1953 = vmatpush2.msra.mxu0 %v1795
    %1954 = vmatprep.subr.mxu0 0.0
    %1955 = vmatpush2.msra.mxu0 %v1794
    %1956 = vmatprep.subr.mxu0 0.0
    %1957 = vmatpush2.msra.mxu0 %v1793
    %1958 = vmatprep.subr.mxu0 0.0
    %1959 = vmatpush2.msra.mxu0 %v1792
    %1960 = vmatprep.subr.mxu0 0.0
    %1961 = vmatpush2.msra.mxu0 %v1791
    %1962 = vmatprep.subr.mxu0 0.0
    %1963 = vmatpush2.msra.mxu0 %v1790
    %1964 = vmatprep.subr.mxu0 0.0
    %1965 = vmatpush2.msra.mxu0 %v1789
    %1966 = vmatprep.subr.mxu0 0.0
    %1967 = vmatpush2.msra.mxu0 %v1788
    %1968 = vmatprep.subr.mxu0 0.0
    %1969 = vmatpush2.msra.mxu0 %v1787
    %1970 = vmatprep.subr.mxu0 0.0
    %1971 = vmatpush2.msra.mxu0 %v1786
    %1972 = vmatprep.subr.mxu0 0.0
    %1973 = vmatpush2.msra.mxu0 %v1785
    %1974 = vmatprep.mubr.f32.mxu0 %v1734
    %1975 = vmatmul.mubr.f32.gmra.mxu0 %v1733
    %v1976 = vpop.f32.mrf.mxu0
    %v1977 = vadd.f32 %v1907, %v1976
    %v1978 = vpop.f32.mrf.mxu0
    %1979 = vdwg.mxu0
    %1980 = vmatprep.subr.mxu0 0.0
    %1981 = vmatpush1.msra.mxu0 %v1816
    %1982 = vmatprep.subr.mxu0 0.0
    %1983 = vmatpush1.msra.mxu0 %v1815
    %1984 = vmatprep.subr.mxu0 0.0
    %1985 = vmatpush1.msra.mxu0 %v1814
    %1986 = vmatprep.subr.mxu0 0.0
    %1987 = vmatpush1.msra.mxu0 %v1813
    %1988 = vmatprep.subr.mxu0 0.0
    %1989 = vmatpush1.msra.mxu0 %v1812
    %1990 = vmatprep.subr.mxu0 0.0
    %1991 = vmatpush1.msra.mxu0 %v1811
    %1992 = vmatprep.subr.mxu0 0.0
    %1993 = vmatpush1.msra.mxu0 %v1810
    %1994 = vmatprep.subr.mxu0 0.0
    %1995 = vmatpush1.msra.mxu0 %v1809
    %1996 = vmatprep.subr.mxu0 0.0
    %1997 = vmatpush1.msra.mxu0 %v1808
    %1998 = vmatprep.subr.mxu0 0.0
    %1999 = vmatpush1.msra.mxu0 %v1807
    %2000 = vmatprep.subr.mxu0 0.0
    %2001 = vmatpush1.msra.mxu0 %v1806
    %2002 = vmatprep.subr.mxu0 0.0
    %2003 = vmatpush1.msra.mxu0 %v1805
    %2004 = vmatprep.subr.mxu0 0.0
    %2005 = vmatpush1.msra.mxu0 %v1804
    %2006 = vmatprep.subr.mxu0 0.0
    %2007 = vmatpush1.msra.mxu0 %v1803
    %2008 = vmatprep.subr.mxu0 0.0
    %2009 = vmatpush1.msra.mxu0 %v1802
    %2010 = vmatprep.subr.mxu0 0.0
    %2011 = vmatpush1.msra.mxu0 %v1801
    %2012 = vmatprep.subr.mxu0 0.0
    %2013 = vmatpush2.msra.mxu0 %v1832
    %2014 = vmatprep.subr.mxu0 0.0
    %2015 = vmatpush2.msra.mxu0 %v1831
    %2016 = vmatprep.subr.mxu0 0.0
    %2017 = vmatpush2.msra.mxu0 %v1830
    %2018 = vmatprep.subr.mxu0 0.0
    %2019 = vmatpush2.msra.mxu0 %v1829
    %2020 = vmatprep.subr.mxu0 0.0
    %2021 = vmatpush2.msra.mxu0 %v1828
    %2022 = vmatprep.subr.mxu0 0.0
    %2023 = vmatpush2.msra.mxu0 %v1827
    %2024 = vmatprep.subr.mxu0 0.0
    %2025 = vmatpush2.msra.mxu0 %v1826
    %2026 = vmatprep.subr.mxu0 0.0
    %2027 = vmatpush2.msra.mxu0 %v1825
    %2028 = vmatprep.subr.mxu0 0.0
    %2029 = vmatpush2.msra.mxu0 %v1824
    %2030 = vmatprep.subr.mxu0 0.0
    %2031 = vmatpush2.msra.mxu0 %v1823
    %2032 = vmatprep.subr.mxu0 0.0
    %2033 = vmatpush2.msra.mxu0 %v1822
    %2034 = vmatprep.subr.mxu0 0.0
    %2035 = vmatpush2.msra.mxu0 %v1821
    %2036 = vmatprep.subr.mxu0 0.0
    %2037 = vmatpush2.msra.mxu0 %v1820
    %2038 = vmatprep.subr.mxu0 0.0
    %2039 = vmatpush2.msra.mxu0 %v1819
    %2040 = vmatprep.subr.mxu0 0.0
    %2041 = vmatpush2.msra.mxu0 %v1818
    %2042 = vmatprep.subr.mxu0 0.0
    %2043 = vmatpush2.msra.mxu0 %v1817
    %2044 = vmatprep.mubr.f32.mxu0 %v1736
    %2045 = vmatmul.mubr.f32.gmra.mxu0 %v1735
    %v2046 = vpop.f32.mrf.mxu0
    %v2047 = vadd.f32 %v1977, %v2046
    %v2048 = vpop.f32.mrf.mxu0
    %2049 = vdwg.mxu0
    %v2050 = vmax.f32 %v2047, 0.0
    %v2051 = vld [vmem:[%s5] sm:$0xff]
    %v2052 = vld [vmem:[%s5 + $0x8] sm:$0xff]
    %v2053 = vld [vmem:[%s5 + $0x10] sm:$0xff]
    %v2054 = vld [vmem:[%s5 + $0x18] sm:$0xff]
    %v2055 = vld [vmem:[%s5 + $0x20] sm:$0xff]
    %v2056 = vld [vmem:[%s5 + $0x28] sm:$0xff]
    %v2057 = vld [vmem:[%s5 + $0x30] sm:$0xff]
    %v2058 = vld [vmem:[%s5 + $0x38] sm:$0xff]
    %v2059 = vld [vmem:[%s6] sm:$0x1]
    %v2061 = vlaneseq
    %v2062 = vshrl.u32 %v2061, 7
    %v2063 = vsub.s32 0, %v2062
    %v2064 = vrot.slane %v2059, %v2063
    %vm2066 = vcmask 523264
    %v2068 = vsel %vm2066, %v2050, 0
    %2070 = vmatprep.subr.mxu0 0.0
    %2071 = vmatpush1.msra.mxu0 0.0
    %2072 = vmatprep.subr.mxu0 0.0
    %2073 = vmatpush1.msra.mxu0 0.0
    %2074 = vmatprep.subr.mxu0 0.0
    %2075 = vmatpush1.msra.mxu0 0.0
    %2076 = vmatprep.subr.mxu0 0.0
    %2077 = vmatpush1.msra.mxu0 0.0
    %2078 = vmatprep.subr.mxu0 0.0
    %2079 = vmatpush1.msra.mxu0 0.0
    %2080 = vmatprep.subr.mxu0 0.0
    %2081 = vmatpush1.msra.mxu0 0.0
    %2082 = vmatprep.subr.mxu0 0.0
    %2083 = vmatpush1.msra.mxu0 0.0
    %2084 = vmatprep.subr.mxu0 0.0
    %2085 = vmatpush1.msra.mxu0 0.0
    %2086 = vmatprep.subr.mxu0 0.0
    %2087 = vmatpush1.msra.mxu0 %v2058
    %2088 = vmatprep.subr.mxu0 0.0
    %2089 = vmatpush1.msra.mxu0 %v2057
    %2090 = vmatprep.subr.mxu0 0.0
    %2091 = vmatpush1.msra.mxu0 %v2056
    %2092 = vmatprep.subr.mxu0 0.0
    %2093 = vmatpush1.msra.mxu0 %v2055
    %2094 = vmatprep.subr.mxu0 0.0
    %2095 = vmatpush1.msra.mxu0 %v2054
    %2096 = vmatprep.subr.mxu0 0.0
    %2097 = vmatpush1.msra.mxu0 %v2053
    %2098 = vmatprep.subr.mxu0 0.0
    %2099 = vmatpush1.msra.mxu0 %v2052
    %2100 = vmatprep.subr.mxu0 0.0
    %2101 = vmatpush1.msra.mxu0 %v2051
    %2102 = vmatprep.subr.mxu0 0.0
    %2103 = vmatpush2.msra.mxu0 0.0
    %2104 = vmatprep.subr.mxu0 0.0
    %2105 = vmatpush2.msra.mxu0 0.0
    %2106 = vmatprep.subr.mxu0 0.0
    %2107 = vmatpush2.msra.mxu0 0.0
    %2108 = vmatprep.subr.mxu0 0.0
    %2109 = vmatpush2.msra.mxu0 0.0
    %2110 = vmatprep.subr.mxu0 0.0
    %2111 = vmatpush2.msra.mxu0 0.0
    %2112 = vmatprep.subr.mxu0 0.0
    %2113 = vmatpush2.msra.mxu0 0.0
    %2114 = vmatprep.subr.mxu0 0.0
    %2115 = vmatpush2.msra.mxu0 0.0
    %2116 = vmatprep.subr.mxu0 0.0
    %2117 = vmatpush2.msra.mxu0 0.0
    %2118 = vmatprep.subr.mxu0 0.0
    %2119 = vmatpush2.msra.mxu0 0.0
    %2120 = vmatprep.subr.mxu0 0.0
    %2121 = vmatpush2.msra.mxu0 0.0
    %2122 = vmatprep.subr.mxu0 0.0
    %2123 = vmatpush2.msra.mxu0 0.0
    %2124 = vmatprep.subr.mxu0 0.0
    %2125 = vmatpush2.msra.mxu0 0.0
    %2126 = vmatprep.subr.mxu0 0.0
    %2127 = vmatpush2.msra.mxu0 0.0
    %2128 = vmatprep.subr.mxu0 0.0
    %2129 = vmatpush2.msra.mxu0 0.0
    %2130 = vmatprep.subr.mxu0 0.0
    %2131 = vmatpush2.msra.mxu0 0.0
    %2132 = vmatprep.subr.mxu0 0.0
    %2133 = vmatpush2.msra.mxu0 0.0
    %2134 = vmatprep.mubr.f32.mxu0 0.0
    %2135 = vmatmul.mubr.f32.gmra.mxu0 %v2068
    %v2136 = vpop.f32.mrf.mxu0
    %v2137 = vadd.f32 %v2064, %v2136
    %v2138 = vpop.f32.mrf.mxu0
    %2139 = vdwg.mxu0
    %v2140 = vmax.f32 %v2137, 0.0
    %v2141 = vld [vmem:[%s7] sm:$0xff]
    %v2142 = vld [vmem:[%s7 + $0x8] sm:$0xff]
    %v2143 = vld [vmem:[%s8] sm:$0x1]
    %v2145 = vlaneseq
    %v2146 = vshrl.u32 %v2145, 7
    %v2147 = vsub.s32 0, %v2146
    %v2148 = vrot.slane %v2143, %v2147
    %vm2150 = vcmask 130048
    %v2152 = vsel %vm2150, %v2140, 0
    %2154 = vmatprep.subr.mxu0 0.0
    %2155 = vmatpush1.msra.mxu0 0.0
    %2156 = vmatprep.subr.mxu0 0.0
    %2157 = vmatpush1.msra.mxu0 0.0
    %2158 = vmatprep.subr.mxu0 0.0
    %2159 = vmatpush1.msra.mxu0 0.0
    %2160 = vmatprep.subr.mxu0 0.0
    %2161 = vmatpush1.msra.mxu0 0.0
    %2162 = vmatprep.subr.mxu0 0.0
    %2163 = vmatpush1.msra.mxu0 0.0
    %2164 = vmatprep.subr.mxu0 0.0
    %2165 = vmatpush1.msra.mxu0 0.0
    %2166 = vmatprep.subr.mxu0 0.0
    %2167 = vmatpush1.msra.mxu0 0.0
    %2168 = vmatprep.subr.mxu0 0.0
    %2169 = vmatpush1.msra.mxu0 0.0
    %2170 = vmatprep.subr.mxu0 0.0
    %2171 = vmatpush1.msra.mxu0 0.0
    %2172 = vmatprep.subr.mxu0 0.0
    %2173 = vmatpush1.msra.mxu0 0.0
    %2174 = vmatprep.subr.mxu0 0.0
    %2175 = vmatpush1.msra.mxu0 0.0
    %2176 = vmatprep.subr.mxu0 0.0
    %2177 = vmatpush1.msra.mxu0 0.0
    %2178 = vmatprep.subr.mxu0 0.0
    %2179 = vmatpush1.msra.mxu0 0.0
    %2180 = vmatprep.subr.mxu0 0.0
    %2181 = vmatpush1.msra.mxu0 0.0
    %2182 = vmatprep.subr.mxu0 0.0
    %2183 = vmatpush1.msra.mxu0 %v2142
    %2184 = vmatprep.subr.mxu0 0.0
    %2185 = vmatpush1.msra.mxu0 %v2141
    %2186 = vmatprep.subr.mxu0 0.0
    %2187 = vmatpush2.msra.mxu0 0.0
    %2188 = vmatprep.subr.mxu0 0.0
    %2189 = vmatpush2.msra.mxu0 0.0
    %2190 = vmatprep.subr.mxu0 0.0
    %2191 = vmatpush2.msra.mxu0 0.0
    %2192 = vmatprep.subr.mxu0 0.0
    %2193 = vmatpush2.msra.mxu0 0.0
    %2194 = vmatprep.subr.mxu0 0.0
    %2195 = vmatpush2.msra.mxu0 0.0
    %2196 = vmatprep.subr.mxu0 0.0
    %2197 = vmatpush2.msra.mxu0 0.0
    %2198 = vmatprep.subr.mxu0 0.0
    %2199 = vmatpush2.msra.mxu0 0.0
    %2200 = vmatprep.subr.mxu0 0.0
    %2201 = vmatpush2.msra.mxu0 0.0
    %2202 = vmatprep.subr.mxu0 0.0
    %2203 = vmatpush2.msra.mxu0 0.0
    %2204 = vmatprep.subr.mxu0 0.0
    %2205 = vmatpush2.msra.mxu0 0.0
    %2206 = vmatprep.subr.mxu0 0.0
    %2207 = vmatpush2.msra.mxu0 0.0
    %2208 = vmatprep.subr.mxu0 0.0
    %2209 = vmatpush2.msra.mxu0 0.0
    %2210 = vmatprep.subr.mxu0 0.0
    %2211 = vmatpush2.msra.mxu0 0.0
    %2212 = vmatprep.subr.mxu0 0.0
    %2213 = vmatpush2.msra.mxu0 0.0
    %2214 = vmatprep.subr.mxu0 0.0
    %2215 = vmatpush2.msra.mxu0 0.0
    %2216 = vmatprep.subr.mxu0 0.0
    %2217 = vmatpush2.msra.mxu0 0.0
    %2218 = vmatprep.mubr.f32.mxu0 0.0
    %2219 = vmatmul.mubr.f32.gmra.mxu0 %v2152
    %v2220 = vpop.f32.mrf.mxu0
    %v2221 = vadd.f32 %v2148, %v2220
    %v2222 = vpop.f32.mrf.mxu0
    %2223 = vdwg.mxu0
    %v2224 = vmax.f32 %v2221, 0.0
    %vm2225 = vcmask 17408
    %2226 = vst.msk [vmem:[#allocation2] sm:$0x3] %vm2225, %v2224
    // Predicated region
    $region38: #{agent_forward.7} parent=1 // pred_check
      _
    $region39: #{agent_forward.7} parent=1 // pred_check_branch
      %2228 = sbr.rel (0) target = $region41
    $region40: #{agent_forward.7} parent=1 // pred_region
      %s2230 = ssub.s32 32, 32
      %2231 = vsyncadd [#allocation3], %s2230
      %s2233 = sshll.u32 [#allocation2], 4
      %s2234 = int_to_ptr.vmem [resolvable:$true] %s2233
      %2236 = dma.vmem_to_hbm [thread:$0]  %s2234, 32, %s9, [#allocation3]
    $region41: #{agent_forward.7} parent=1 // pred_fallthru
      _
    // Predicated region
    $region42: #{agent_forward.7} parent=1 // pred_check
      _
    $region43: #{agent_forward.7} parent=1 // pred_check_branch
      %2238 = sbr.rel (0) target = $region45
    $region44: #{agent_forward.7} parent=1 // pred_region
      %2239 = dma.done [#allocation3], 32
    $region45: #{agent_forward.7} parent=1 // pred_fallthru
      _
    %2240 = vsyncpa [#allocation3], 1

</llo_original>
